<compile_context>
chip_gen: v7x
topology: tpu7x:2x2x1
jax: 0.10.0
libtpu: 0.0.40
codegen_flags: <defaults>
</compile_context>

<pallas_src>
import functools

import jax
import jax.numpy as jnp
import numpy as np
from jax import lax
from jax.experimental import pallas as pl
from jax.experimental.pallas import tpu as pltpu

LEAKY_SLOPE = 0.01   # F.leaky_relu default
BN_EPS = 1e-5        # nn.BatchNorm2d default
LANE = 128           # lane-dense output width


# ----------------------------------------------------------------------------
# Pallas kernels
# ----------------------------------------------------------------------------
def _conv_block_kernel(p_ref, w_ref, b_ref, s_ref, t_ref, o_ref, *, nm):
    """Fused conv(GEMM) + bias + leaky_relu + BN(eval affine) + 2x2 max-pool.

    p_ref: (4*nm, K)  im2col patches, rows ordered (q, n, ho, wo); q = position
                      inside the 2x2 pool window (q-major => each pool group is
                      a contiguous, sublane-aligned row block).
    w_ref: (K, Cp)    flattened 5x5 conv weights, Cout zero-padded to Cp=128.
    b/s/t: (1, Cp)    conv bias / BN scale / BN shift (zero in padding cols).
    o_ref: (nm, Cp)   pooled output, rows ordered (n, ho, wo), lane-dense.
    """
    # One stacked MXU matmul covering the whole batch and all 4 pool positions.
    z = jnp.dot(p_ref[...], w_ref[...], preferred_element_type=jnp.float32)
    z = z + b_ref[...]                                  # conv bias
    z = jnp.where(z >= 0.0, z, LEAKY_SLOPE * z)         # leaky_relu
    z = z * s_ref[...] + t_ref[...]                     # BatchNorm (eval affine)
    # 2x2 max-pool == max over the 4 q row-blocks (static 8-aligned slices).
    r01 = jnp.maximum(z[0 * nm:1 * nm, :], z[1 * nm:2 * nm, :])
    r23 = jnp.maximum(z[2 * nm:3 * nm, :], z[3 * nm:4 * nm, :])
    o_ref[...] = jnp.maximum(r01, r23).astype(o_ref.dtype)


def conv_block_pallas(p, wmat, bias, scale, shift):
    rows, k = p.shape
    cp = wmat.shape[1]
    nm = rows // 4
    kern = functools.partial(_conv_block_kernel, nm=nm)
    return pl.pallas_call(
        kern,
        out_shape=jax.ShapeDtypeStruct((nm, cp), jnp.float32),
        grid_spec=pltpu.PrefetchScalarGridSpec(
            num_scalar_prefetch=0,
            grid=(1,),
            in_specs=[
                pl.BlockSpec((rows, k), lambda i: (0, 0)),
                pl.BlockSpec((k, cp), lambda i: (0, 0)),
                pl.BlockSpec((1, cp), lambda i: (0, 0)),
                pl.BlockSpec((1, cp), lambda i: (0, 0)),
                pl.BlockSpec((1, cp), lambda i: (0, 0)),
            ],
            out_specs=pl.BlockSpec((nm, cp), lambda i: (0, 0)),
        ),
        compiler_params=pltpu.CompilerParams(
            dimension_semantics=("arbitrary",)),
    )(p, wmat, bias, scale, shift)


def _block5_head_kernel(x_ref, w5_ref, b5_ref, s5_ref, t5_ref,
                        w6_ref, b6_ref, o_ref, *, co5):
    """Fused block 5 (conv5+leaky+bn5+pool5, as a dense GEMM) + 1x1-conv head.

    x_ref : (N, 4*Cin5)   flattened 2x2xCin5 block-4 output, cols (a, b, ci).
    w5_ref: (4*Cin5, 4*co5) dense-ified conv5 weights; column block q = pool pos.
    b5/s5/t5: (1, 4*co5)  bias / BN scale / BN shift tiled over the 4 positions.
    w6_ref: (co5, 128)    1x1 conv head weights, 47 -> padded to 128 lanes.
    b6_ref: (1, 128)      head bias (zero in padding cols).
    o_ref : (N, 128)      sigmoid outputs, lane-dense (wrapper slices [:, :47]).
    """
    z = jnp.dot(x_ref[...], w5_ref[...], preferred_element_type=jnp.float32)
    z = z + b5_ref[...]
    z = jnp.where(z >= 0.0, z, LEAKY_SLOPE * z)
    z = z * s5_ref[...] + t5_ref[...]
    # pool5 (2x2 -> 1x1): max over the 4 lane-aligned column blocks.
    f01 = jnp.maximum(z[:, 0 * co5:1 * co5], z[:, 1 * co5:2 * co5])
    f23 = jnp.maximum(z[:, 2 * co5:3 * co5], z[:, 3 * co5:4 * co5])
    feat = jnp.maximum(f01, f23)                               # (N, co5)
    logits = jnp.dot(feat, w6_ref[...], preferred_element_type=jnp.float32)
    logits = logits + b6_ref[...]
    # Exact sigmoid (approx=True would be cheaper but risks the 1e-3 check).
    o_ref[...] = pl.reciprocal(1.0 + jnp.exp(-logits), approx=False)


def block5_head_pallas(x, w5r, b5, s5, t5, w6, b6, *, co5):
    n, k5 = x.shape
    c4 = w5r.shape[1]
    ch = w6.shape[1]
    kern = functools.partial(_block5_head_kernel, co5=co5)
    return pl.pallas_call(
        kern,
        out_shape=jax.ShapeDtypeStruct((n, ch), jnp.float32),
        grid_spec=pltpu.PrefetchScalarGridSpec(
            num_scalar_prefetch=0,
            grid=(1,),
            in_specs=[
                pl.BlockSpec((n, k5), lambda i: (0, 0)),
                pl.BlockSpec((k5, c4), lambda i: (0, 0)),
                pl.BlockSpec((1, c4), lambda i: (0, 0)),
                pl.BlockSpec((1, c4), lambda i: (0, 0)),
                pl.BlockSpec((1, c4), lambda i: (0, 0)),
                pl.BlockSpec((co5, ch), lambda i: (0, 0)),
                pl.BlockSpec((1, ch), lambda i: (0, 0)),
            ],
            out_specs=pl.BlockSpec((n, ch), lambda i: (0, 0)),
        ),
        compiler_params=pltpu.CompilerParams(
            dimension_semantics=("arbitrary",)),
    )(x, w5r, b5, s5, t5, w6, b6)


# ----------------------------------------------------------------------------
# Plain-JAX glue (im2col / weight repacking / layout plumbing)
# ----------------------------------------------------------------------------
def _pad_cols(a, target):
    pad = target - a.shape[-1]
    if pad == 0:
        return a
    return jnp.pad(a, [(0, 0)] * (a.ndim - 1) + [(0, pad)])


def _im2col_pool_groups_qmajor(x):
    # x: (N, H, W, C) NHWC -> (4*N*Ho*Wo, 25*C) patches for 5x5 conv, pad=2,
    # rows ordered (q, n, ho, wo) with q = position inside the 2x2 pool window.
    N, H, W, C = x.shape
    xp = jnp.pad(x, ((0, 0), (2, 2), (2, 2), (0, 0)))
    cols = [xp[:, dy:dy + H, dx:dx + W, :] for dy in range(5) for dx in range(5)]
    patches = jnp.concatenate(cols, axis=-1)           # (N, H, W, 25*C), order (dy,dx,ci)
    Ho, Wo = H // 2, W // 2
    p = patches.reshape(N, Ho, 2, Wo, 2, 25 * C)
    p = p.transpose(2, 4, 0, 1, 3, 5)                  # (i, j, N, Ho, Wo, 25*C)
    return p.reshape(4 * N * Ho * Wo, 25 * C), Ho, Wo


def _pack_conv5_dense(w5):
    # w5: (co, ci, 5, 5).  Block-5 input is 2x2 spatial, so each conv position
    # (i, j) in {0,1}^2 only touches a 2x2 sub-block of the 5x5 taps.  Repack as
    # a dense (4*ci, 4*co) matrix: rows ordered (a, b, ci), column block q=(i,j).
    co, ci = w5.shape[0], w5.shape[1]
    mats = []
    for i in range(2):
        for j in range(2):
            sub = w5[:, :, 2 - i:4 - i, 2 - j:4 - j]   # (co, ci, a, b)
            sub = jnp.transpose(sub, (2, 3, 1, 0))     # (a, b, ci, co)
            mats.append(sub.reshape(4 * ci, co))
    return jnp.concatenate(mats, axis=1)               # (4*ci, 4*co)


def conv_classifier_forward(params, x_nchw):
    """Pallas forward.  x_nchw: (N, C, H, W) like the PyTorch module."""
    x = jnp.transpose(x_nchw, (0, 2, 3, 1)).astype(jnp.float32)    # NHWC
    N = x.shape[0]

    # ---- blocks 1-4: im2col (XLA glue) + fused GEMM/pool kernel -------------
    for blk in params["blocks"][:4]:
        co, ci = blk["w"].shape[0], blk["w"].shape[1]
        cp = max(co, LANE)                                         # lane-dense Cout
        p, Ho, Wo = _im2col_pool_groups_qmajor(x)
        # (Cout, Cin, 5, 5) -> (25*Cin, Cout), row order (dy, dx, ci).
        wmat = jnp.transpose(blk["w"], (2, 3, 1, 0)).reshape(25 * ci, co)
        scale = blk["gamma"] / jnp.sqrt(blk["var"] + BN_EPS)
        shift = blk["beta"] - blk["mean"] * scale
        y = conv_block_pallas(
            p,
            _pad_cols(wmat, cp),
            _pad_cols(blk["b"][None, :], cp),
            _pad_cols(scale[None, :], cp),
            _pad_cols(shift[None, :], cp),
        )
        x = y[:, :co].reshape(N, Ho, Wo, co)

    assert x.shape[1] == 2 and x.shape[2] == 2, (
        "fused block-5 path expects 32x32 input (2x2 spatial after four pools)")

    # ---- block 5 + 1x1-conv head: one fused kernel, no im2col glue ----------
    blk5 = params["blocks"][4]
    co5, ci5 = blk5["w"].shape[0], blk5["w"].shape[1]              # 256, 128
    feat4 = x.reshape(N, 4 * ci5)                                  # cols (a, b, ci)
    w5r = _pack_conv5_dense(blk5["w"])                             # (4*ci5, 4*co5)
    scale5 = blk5["gamma"] / jnp.sqrt(blk5["var"] + BN_EPS)
    shift5 = blk5["beta"] - blk5["mean"] * scale5
    b5t = jnp.tile(blk5["b"], 4)[None, :]
    s5t = jnp.tile(scale5, 4)[None, :]
    t5t = jnp.tile(shift5, 4)[None, :]
    n_cls = params["b6"].shape[0]                                  # 47
    w6 = params["w6"].reshape(n_cls, co5).T                        # (256, 47)
    w6p = _pad_cols(w6, LANE)
    b6p = _pad_cols(params["b6"][None, :], LANE)

    out = block5_head_pallas(feat4, w5r, b5t, s5t, t5t, w6p, b6p, co5=co5)
    out = out[:, :n_cls]
    return jnp.squeeze(out)   # torch.squeeze of (N, 47, 1, 1) -> (N, 47)


# ----------------------------------------------------------------------------
# Deterministic parameter init (shapes from Conv_classifier.__init__)
# ----------------------------------------------------------------------------
def init_params(key, encoding_channels):
    chans = [encoding_channels, 16, 32, 64, 128, 256]
    blocks = []
    for i in range(5):
        key, k1, k2, k3, k4, k5, k6 = jax.random.split(key, 7)
        ci, co = chans[i], chans[i + 1]
        blocks.append(dict(
            w=jax.random.normal(k1, (co, ci, 5, 5), jnp.float32) / np.sqrt(25 * ci),
            b=0.1 * jax.random.normal(k2, (co,), jnp.float32),
            gamma=1.0 + 0.1 * jax.random.normal(k3, (co,), jnp.float32),
            beta=0.1 * jax.random.normal(k4, (co,), jnp.float32),
            mean=0.1 * jax.random.normal(k5, (co,), jnp.float32),
            var=0.9 + 0.1 * jnp.abs(jax.random.normal(k6, (co,), jnp.float32)),
        ))
    key, k1, k2 = jax.random.split(key, 3)
    return dict(
        blocks=blocks,
        w6=jax.random.normal(k1, (47, 256, 1, 1), jnp.float32) / np.sqrt(256),
        b6=0.1 * jax.random.normal(k2, (47,), jnp.float32),
    )


# ----------------------------------------------------------------------------
# Pure-JAX reference (mirrors the PyTorch forward, eval-mode BN)
# ----------------------------------------------------------------------------
def reference_forward(params, x_nchw):
    x = x_nchw.astype(jnp.float32)
    for blk in params["blocks"]:
        y = lax.conv_general_dilated(x, blk["w"], (1, 1), ((2, 2), (2, 2)),
                                     dimension_numbers=("NCHW", "OIHW", "NCHW"))
        y = y + blk["b"][None, :, None, None]
        y = jnp.where(y >= 0, y, LEAKY_SLOPE * y)
        scale = blk["gamma"] / jnp.sqrt(blk["var"] + BN_EPS)
        shift = blk["beta"] - blk["mean"] * scale
        y = y * scale[None, :, None, None] + shift[None, :, None, None]
        x = lax.reduce_window(y, -jnp.inf, lax.max, (1, 1, 2, 2), (1, 1, 2, 2), "VALID")
    y = lax.conv_general_dilated(x, params["w6"], (1, 1), ((0, 0), (0, 0)),
                                 dimension_numbers=("NCHW", "OIHW", "NCHW"))
    y = y + params["b6"][None, :, None, None]
    y = 1.0 / (1.0 + jnp.exp(-y))
    return jnp.squeeze(y)


# ----------------------------------------------------------------------------
if __name__ == "__main__":
    key = jax.random.PRNGKey(0)
    k_param, k_input = jax.random.split(key)

    encoding_channels = 4
    dim = 32                      # must be divisible by 2**5 (five max-pools)
    batch = 2
    x = jax.random.normal(k_input, (batch, encoding_channels, dim, dim), jnp.float32)

    params = init_params(k_param, encoding_channels)

    fwd = jax.jit(conv_classifier_forward)
    out = fwd(params, x)
    out = jax.block_until_ready(out)

    ref = jax.block_until_ready(jax.jit(reference_forward)(params, x))
    assert out.shape == (batch, 47), out.shape
    np.testing.assert_allclose(np.asarray(out), np.asarray(ref), rtol=1e-3, atol=1e-3)

    print("KERNEL_OK")
</pallas_src>

<mosaic_0001>
module attributes {stable_mosaic.version = 11 : i64} {
  func.func @_conv_block_kernel(%arg0: i32, %arg1: memref<2048x100xf32, #tpu.memory_space<vmem>>, %arg2: memref<100x128xf32, #tpu.memory_space<vmem>>, %arg3: memref<1x128xf32, #tpu.memory_space<vmem>>, %arg4: memref<1x128xf32, #tpu.memory_space<vmem>>, %arg5: memref<1x128xf32, #tpu.memory_space<vmem>>, %arg6: memref<512x128xf32, #tpu.memory_space<vmem>>) attributes {dimension_semantics = [#tpu.dimension_semantics<arbitrary>], iteration_bounds = array<i64: 1>, scalar_prefetch = 0 : i64, scratch_operands = 0 : i64, tpu.core_type = #tpu.core_type<tc>, window_params = [{pipeline_mode = #tpu.pipeline_mode<synchronous>, transform_indices = @transform_0, window_bounds = array<i64: 2048, 100>}, {pipeline_mode = #tpu.pipeline_mode<synchronous>, transform_indices = @transform_1, window_bounds = array<i64: 100, 128>}, {pipeline_mode = #tpu.pipeline_mode<synchronous>, transform_indices = @transform_2, window_bounds = array<i64: 1, 128>}, {pipeline_mode = #tpu.pipeline_mode<synchronous>, transform_indices = @transform_3, window_bounds = array<i64: 1, 128>}, {pipeline_mode = #tpu.pipeline_mode<synchronous>, transform_indices = @transform_4, window_bounds = array<i64: 1, 128>}, {pipeline_mode = #tpu.pipeline_mode<synchronous>, transform_indices = @transform_5, window_bounds = array<i64: 512, 128>}]} {
    %c0 = arith.constant 0 : index
    %c0_0 = arith.constant 0 : index
    %0 = vector.load %arg1[%c0, %c0_0] : memref<2048x100xf32, #tpu.memory_space<vmem>>, vector<2048x100xf32>
    %c0_1 = arith.constant 0 : index
    %c0_2 = arith.constant 0 : index
    %1 = vector.load %arg2[%c0_1, %c0_2] : memref<100x128xf32, #tpu.memory_space<vmem>>, vector<100x128xf32>
    %cst = arith.constant dense<0.000000e+00> : vector<2048x128xf32>
    %2 = tpu.matmul %0, %1, %cst {dimension_numbers = #tpu.dot_dimension_numbers<[1], [0], [0], [1], [0, 0, 1, 1], [], []>} : vector<2048x100xf32>, vector<100x128xf32>, vector<2048x128xf32> -> vector<2048x128xf32>
    %c0_3 = arith.constant 0 : index
    %c0_4 = arith.constant 0 : index
    %3 = vector.load %arg3[%c0_3, %c0_4] : memref<1x128xf32, #tpu.memory_space<vmem>>, vector<1x128xf32>
    %4 = vector.broadcast %3 : vector<1x128xf32> to vector<2048x128xf32>
    %5 = arith.addf %2, %4 : vector<2048x128xf32>
    %cst_5 = arith.constant 0.000000e+00 : f32
    %6 = vector.broadcast %cst_5 : f32 to vector<2048x128xf32>
    %7 = arith.cmpf oge, %5, %6 : vector<2048x128xf32>
    %cst_6 = arith.constant 0.00999999977 : f32
    %8 = vector.broadcast %cst_6 : f32 to vector<2048x128xf32>
    %9 = arith.mulf %8, %5 : vector<2048x128xf32>
    %10 = arith.select %7, %5, %9 : vector<2048x128xi1>, vector<2048x128xf32>
    %c0_7 = arith.constant 0 : index
    %c0_8 = arith.constant 0 : index
    %11 = vector.load %arg4[%c0_7, %c0_8] : memref<1x128xf32, #tpu.memory_space<vmem>>, vector<1x128xf32>
    %12 = vector.broadcast %11 : vector<1x128xf32> to vector<2048x128xf32>
    %13 = arith.mulf %10, %12 : vector<2048x128xf32>
    %c0_9 = arith.constant 0 : index
    %c0_10 = arith.constant 0 : index
    %14 = vector.load %arg5[%c0_9, %c0_10] : memref<1x128xf32, #tpu.memory_space<vmem>>, vector<1x128xf32>
    %15 = vector.broadcast %14 : vector<1x128xf32> to vector<2048x128xf32>
    %16 = arith.addf %13, %15 : vector<2048x128xf32>
    %17 = vector.extract_strided_slice %16 {offsets = [0, 0], sizes = [512, 128], strides = [1, 1]} : vector<2048x128xf32> to vector<512x128xf32>
    %18 = vector.extract_strided_slice %16 {offsets = [512, 0], sizes = [512, 128], strides = [1, 1]} : vector<2048x128xf32> to vector<512x128xf32>
    %19 = arith.maximumf %17, %18 : vector<512x128xf32>
    %20 = vector.extract_strided_slice %16 {offsets = [1024, 0], sizes = [512, 128], strides = [1, 1]} : vector<2048x128xf32> to vector<512x128xf32>
    %21 = vector.extract_strided_slice %16 {offsets = [1536, 0], sizes = [512, 128], strides = [1, 1]} : vector<2048x128xf32> to vector<512x128xf32>
    %22 = arith.maximumf %20, %21 : vector<512x128xf32>
    %23 = arith.maximumf %19, %22 : vector<512x128xf32>
    %c0_11 = arith.constant 0 : index
    %c0_12 = arith.constant 0 : index
    %24 = vector.load %arg6[%c0_11, %c0_12] : memref<512x128xf32, #tpu.memory_space<vmem>>, vector<512x128xf32>
    tpu.vector_store %arg6[%c0_11, %c0_12], %23 {strides = array<i32>} : memref<512x128xf32, #tpu.memory_space<vmem>>, vector<512x128xf32>,
    return
  }
  func.func @transform_0(%arg0: i32) -> (i32, i32) {
    %c0_i32 = arith.constant 0 : i32
    %c0_i32_0 = arith.constant 0 : i32
    %c0_i32_1 = arith.constant 0 : i32
    return %c0_i32, %c0_i32_0 : i32, i32
  }
  func.func @transform_1(%arg0: i32) -> (i32, i32) {
    %c0_i32 = arith.constant 0 : i32
    %c0_i32_0 = arith.constant 0 : i32
    %c0_i32_1 = arith.constant 0 : i32
    return %c0_i32, %c0_i32_0 : i32, i32
  }
  func.func @transform_2(%arg0: i32) -> (i32, i32) {
    %c0_i32 = arith.constant 0 : i32
    %c0_i32_0 = arith.constant 0 : i32
    %c0_i32_1 = arith.constant 0 : i32
    return %c0_i32, %c0_i32_0 : i32, i32
  }
  func.func @transform_3(%arg0: i32) -> (i32, i32) {
    %c0_i32 = arith.constant 0 : i32
    %c0_i32_0 = arith.constant 0 : i32
    %c0_i32_1 = arith.constant 0 : i32
    return %c0_i32, %c0_i32_0 : i32, i32
  }
  func.func @transform_4(%arg0: i32) -> (i32, i32) {
    %c0_i32 = arith.constant 0 : i32
    %c0_i32_0 = arith.constant 0 : i32
    %c0_i32_1 = arith.constant 0 : i32
    return %c0_i32, %c0_i32_0 : i32, i32
  }
  func.func @transform_5(%arg0: i32) -> (i32, i32) {
    %c0_i32 = arith.constant 0 : i32
    %c0_i32_0 = arith.constant 0 : i32
    %c0_i32_1 = arith.constant 0 : i32
    return %c0_i32, %c0_i32_0 : i32, i32
  }
}

module attributes {stable_mosaic.version = 11 : i64} {
  func.func @_conv_block_kernel(%arg0: i32, %arg1: memref<512x400xf32, #tpu.memory_space<vmem>>, %arg2: memref<400x128xf32, #tpu.memory_space<vmem>>, %arg3: memref<1x128xf32, #tpu.memory_space<vmem>>, %arg4: memref<1x128xf32, #tpu.memory_space<vmem>>, %arg5: memref<1x128xf32, #tpu.memory_space<vmem>>, %arg6: memref<128x128xf32, #tpu.memory_space<vmem>>) attributes {dimension_semantics = [#tpu.dimension_semantics<arbitrary>], iteration_bounds = array<i64: 1>, scalar_prefetch = 0 : i64, scratch_operands = 0 : i64, tpu.core_type = #tpu.core_type<tc>, window_params = [{pipeline_mode = #tpu.pipeline_mode<synchronous>, transform_indices = @transform_0, window_bounds = array<i64: 512, 400>}, {pipeline_mode = #tpu.pipeline_mode<synchronous>, transform_indices = @transform_1, window_bounds = array<i64: 400, 128>}, {pipeline_mode = #tpu.pipeline_mode<synchronous>, transform_indices = @transform_2, window_bounds = array<i64: 1, 128>}, {pipeline_mode = #tpu.pipeline_mode<synchronous>, transform_indices = @transform_3, window_bounds = array<i64: 1, 128>}, {pipeline_mode = #tpu.pipeline_mode<synchronous>, transform_indices = @transform_4, window_bounds = array<i64: 1, 128>}, {pipeline_mode = #tpu.pipeline_mode<synchronous>, transform_indices = @transform_5, window_bounds = array<i64: 128, 128>}]} {
    %c0 = arith.constant 0 : index
    %c0_0 = arith.constant 0 : index
    %0 = vector.load %arg1[%c0, %c0_0] : memref<512x400xf32, #tpu.memory_space<vmem>>, vector<512x400xf32>
    %c0_1 = arith.constant 0 : index
    %c0_2 = arith.constant 0 : index
    %1 = vector.load %arg2[%c0_1, %c0_2] : memref<400x128xf32, #tpu.memory_space<vmem>>, vector<400x128xf32>
    %cst = arith.constant dense<0.000000e+00> : vector<512x128xf32>
    %2 = tpu.matmul %0, %1, %cst {dimension_numbers = #tpu.dot_dimension_numbers<[1], [0], [0], [1], [0, 0, 1, 1], [], []>} : vector<512x400xf32>, vector<400x128xf32>, vector<512x128xf32> -> vector<512x128xf32>
    %c0_3 = arith.constant 0 : index
    %c0_4 = arith.constant 0 : index
    %3 = vector.load %arg3[%c0_3, %c0_4] : memref<1x128xf32, #tpu.memory_space<vmem>>, vector<1x128xf32>
    %4 = vector.broadcast %3 : vector<1x128xf32> to vector<512x128xf32>
    %5 = arith.addf %2, %4 : vector<512x128xf32>
    %cst_5 = arith.constant 0.000000e+00 : f32
    %6 = vector.broadcast %cst_5 : f32 to vector<512x128xf32>
    %7 = arith.cmpf oge, %5, %6 : vector<512x128xf32>
    %cst_6 = arith.constant 0.00999999977 : f32
    %8 = vector.broadcast %cst_6 : f32 to vector<512x128xf32>
    %9 = arith.mulf %8, %5 : vector<512x128xf32>
    %10 = arith.select %7, %5, %9 : vector<512x128xi1>, vector<512x128xf32>
    %c0_7 = arith.constant 0 : index
    %c0_8 = arith.constant 0 : index
    %11 = vector.load %arg4[%c0_7, %c0_8] : memref<1x128xf32, #tpu.memory_space<vmem>>, vector<1x128xf32>
    %12 = vector.broadcast %11 : vector<1x128xf32> to vector<512x128xf32>
    %13 = arith.mulf %10, %12 : vector<512x128xf32>
    %c0_9 = arith.constant 0 : index
    %c0_10 = arith.constant 0 : index
    %14 = vector.load %arg5[%c0_9, %c0_10] : memref<1x128xf32, #tpu.memory_space<vmem>>, vector<1x128xf32>
    %15 = vector.broadcast %14 : vector<1x128xf32> to vector<512x128xf32>
    %16 = arith.addf %13, %15 : vector<512x128xf32>
    %17 = vector.extract_strided_slice %16 {offsets = [0, 0], sizes = [128, 128], strides = [1, 1]} : vector<512x128xf32> to vector<128x128xf32>
    %18 = vector.extract_strided_slice %16 {offsets = [128, 0], sizes = [128, 128], strides = [1, 1]} : vector<512x128xf32> to vector<128x128xf32>
    %19 = arith.maximumf %17, %18 : vector<128x128xf32>
    %20 = vector.extract_strided_slice %16 {offsets = [256, 0], sizes = [128, 128], strides = [1, 1]} : vector<512x128xf32> to vector<128x128xf32>
    %21 = vector.extract_strided_slice %16 {offsets = [384, 0], sizes = [128, 128], strides = [1, 1]} : vector<512x128xf32> to vector<128x128xf32>
    %22 = arith.maximumf %20, %21 : vector<128x128xf32>
    %23 = arith.maximumf %19, %22 : vector<128x128xf32>
    %c0_11 = arith.constant 0 : index
    %c0_12 = arith.constant 0 : index
    %24 = vector.load %arg6[%c0_11, %c0_12] : memref<128x128xf32, #tpu.memory_space<vmem>>, vector<128x128xf32>
    tpu.vector_store %arg6[%c0_11, %c0_12], %23 {strides = array<i32>} : memref<128x128xf32, #tpu.memory_space<vmem>>, vector<128x128xf32>,
    return
  }
  func.func @transform_0(%arg0: i32) -> (i32, i32) {
    %c0_i32 = arith.constant 0 : i32
    %c0_i32_0 = arith.constant 0 : i32
    %c0_i32_1 = arith.constant 0 : i32
    return %c0_i32, %c0_i32_0 : i32, i32
  }
  func.func @transform_1(%arg0: i32) -> (i32, i32) {
    %c0_i32 = arith.constant 0 : i32
    %c0_i32_0 = arith.constant 0 : i32
    %c0_i32_1 = arith.constant 0 : i32
    return %c0_i32, %c0_i32_0 : i32, i32
  }
  func.func @transform_2(%arg0: i32) -> (i32, i32) {
    %c0_i32 = arith.constant 0 : i32
    %c0_i32_0 = arith.constant 0 : i32
    %c0_i32_1 = arith.constant 0 : i32
    return %c0_i32, %c0_i32_0 : i32, i32
  }
  func.func @transform_3(%arg0: i32) -> (i32, i32) {
    %c0_i32 = arith.constant 0 : i32
    %c0_i32_0 = arith.constant 0 : i32
    %c0_i32_1 = arith.constant 0 : i32
    return %c0_i32, %c0_i32_0 : i32, i32
  }
  func.func @transform_4(%arg0: i32) -> (i32, i32) {
    %c0_i32 = arith.constant 0 : i32
    %c0_i32_0 = arith.constant 0 : i32
    %c0_i32_1 = arith.constant 0 : i32
    return %c0_i32, %c0_i32_0 : i32, i32
  }
  func.func @transform_5(%arg0: i32) -> (i32, i32) {
    %c0_i32 = arith.constant 0 : i32
    %c0_i32_0 = arith.constant 0 : i32
    %c0_i32_1 = arith.constant 0 : i32
    return %c0_i32, %c0_i32_0 : i32, i32
  }
}

module attributes {stable_mosaic.version = 11 : i64} {
  func.func @_conv_block_kernel(%arg0: i32, %arg1: memref<128x800xf32, #tpu.memory_space<vmem>>, %arg2: memref<800x128xf32, #tpu.memory_space<vmem>>, %arg3: memref<1x128xf32, #tpu.memory_space<vmem>>, %arg4: memref<1x128xf32, #tpu.memory_space<vmem>>, %arg5: memref<1x128xf32, #tpu.memory_space<vmem>>, %arg6: memref<32x128xf32, #tpu.memory_space<vmem>>) attributes {dimension_semantics = [#tpu.dimension_semantics<arbitrary>], iteration_bounds = array<i64: 1>, scalar_prefetch = 0 : i64, scratch_operands = 0 : i64, tpu.core_type = #tpu.core_type<tc>, window_params = [{pipeline_mode = #tpu.pipeline_mode<synchronous>, transform_indices = @transform_0, window_bounds = array<i64: 128, 800>}, {pipeline_mode = #tpu.pipeline_mode<synchronous>, transform_indices = @transform_1, window_bounds = array<i64: 800, 128>}, {pipeline_mode = #tpu.pipeline_mode<synchronous>, transform_indices = @transform_2, window_bounds = array<i64: 1, 128>}, {pipeline_mode = #tpu.pipeline_mode<synchronous>, transform_indices = @transform_3, window_bounds = array<i64: 1, 128>}, {pipeline_mode = #tpu.pipeline_mode<synchronous>, transform_indices = @transform_4, window_bounds = array<i64: 1, 128>}, {pipeline_mode = #tpu.pipeline_mode<synchronous>, transform_indices = @transform_5, window_bounds = array<i64: 32, 128>}]} {
    %c0 = arith.constant 0 : index
    %c0_0 = arith.constant 0 : index
    %0 = vector.load %arg1[%c0, %c0_0] : memref<128x800xf32, #tpu.memory_space<vmem>>, vector<128x800xf32>
    %c0_1 = arith.constant 0 : index
    %c0_2 = arith.constant 0 : index
    %1 = vector.load %arg2[%c0_1, %c0_2] : memref<800x128xf32, #tpu.memory_space<vmem>>, vector<800x128xf32>
    %cst = arith.constant dense<0.000000e+00> : vector<128x128xf32>
    %2 = tpu.matmul %0, %1, %cst {dimension_numbers = #tpu.dot_dimension_numbers<[1], [0], [0], [1], [0, 0, 1, 1], [], []>} : vector<128x800xf32>, vector<800x128xf32>, vector<128x128xf32> -> vector<128x128xf32>
    %c0_3 = arith.constant 0 : index
    %c0_4 = arith.constant 0 : index
    %3 = vector.load %arg3[%c0_3, %c0_4] : memref<1x128xf32, #tpu.memory_space<vmem>>, vector<1x128xf32>
    %4 = vector.broadcast %3 : vector<1x128xf32> to vector<128x128xf32>
    %5 = arith.addf %2, %4 : vector<128x128xf32>
    %cst_5 = arith.constant 0.000000e+00 : f32
    %6 = vector.broadcast %cst_5 : f32 to vector<128x128xf32>
    %7 = arith.cmpf oge, %5, %6 : vector<128x128xf32>
    %cst_6 = arith.constant 0.00999999977 : f32
    %8 = vector.broadcast %cst_6 : f32 to vector<128x128xf32>
    %9 = arith.mulf %8, %5 : vector<128x128xf32>
    %10 = arith.select %7, %5, %9 : vector<128x128xi1>, vector<128x128xf32>
    %c0_7 = arith.constant 0 : index
    %c0_8 = arith.constant 0 : index
    %11 = vector.load %arg4[%c0_7, %c0_8] : memref<1x128xf32, #tpu.memory_space<vmem>>, vector<1x128xf32>
    %12 = vector.broadcast %11 : vector<1x128xf32> to vector<128x128xf32>
    %13 = arith.mulf %10, %12 : vector<128x128xf32>
    %c0_9 = arith.constant 0 : index
    %c0_10 = arith.constant 0 : index
    %14 = vector.load %arg5[%c0_9, %c0_10] : memref<1x128xf32, #tpu.memory_space<vmem>>, vector<1x128xf32>
    %15 = vector.broadcast %14 : vector<1x128xf32> to vector<128x128xf32>
    %16 = arith.addf %13, %15 : vector<128x128xf32>
    %17 = vector.extract_strided_slice %16 {offsets = [0, 0], sizes = [32, 128], strides = [1, 1]} : vector<128x128xf32> to vector<32x128xf32>
    %18 = vector.extract_strided_slice %16 {offsets = [32, 0], sizes = [32, 128], strides = [1, 1]} : vector<128x128xf32> to vector<32x128xf32>
    %19 = arith.maximumf %17, %18 : vector<32x128xf32>
    %20 = vector.extract_strided_slice %16 {offsets = [64, 0], sizes = [32, 128], strides = [1, 1]} : vector<128x128xf32> to vector<32x128xf32>
    %21 = vector.extract_strided_slice %16 {offsets = [96, 0], sizes = [32, 128], strides = [1, 1]} : vector<128x128xf32> to vector<32x128xf32>
    %22 = arith.maximumf %20, %21 : vector<32x128xf32>
    %23 = arith.maximumf %19, %22 : vector<32x128xf32>
    %c0_11 = arith.constant 0 : index
    %c0_12 = arith.constant 0 : index
    %24 = vector.load %arg6[%c0_11, %c0_12] : memref<32x128xf32, #tpu.memory_space<vmem>>, vector<32x128xf32>
    tpu.vector_store %arg6[%c0_11, %c0_12], %23 {strides = array<i32>} : memref<32x128xf32, #tpu.memory_space<vmem>>, vector<32x128xf32>,
    return
  }
  func.func @transform_0(%arg0: i32) -> (i32, i32) {
    %c0_i32 = arith.constant 0 : i32
    %c0_i32_0 = arith.constant 0 : i32
    %c0_i32_1 = arith.constant 0 : i32
    return %c0_i32, %c0_i32_0 : i32, i32
  }
  func.func @transform_1(%arg0: i32) -> (i32, i32) {
    %c0_i32 = arith.constant 0 : i32
    %c0_i32_0 = arith.constant 0 : i32
    %c0_i32_1 = arith.constant 0 : i32
    return %c0_i32, %c0_i32_0 : i32, i32
  }
  func.func @transform_2(%arg0: i32) -> (i32, i32) {
    %c0_i32 = arith.constant 0 : i32
    %c0_i32_0 = arith.constant 0 : i32
    %c0_i32_1 = arith.constant 0 : i32
    return %c0_i32, %c0_i32_0 : i32, i32
  }
  func.func @transform_3(%arg0: i32) -> (i32, i32) {
    %c0_i32 = arith.constant 0 : i32
    %c0_i32_0 = arith.constant 0 : i32
    %c0_i32_1 = arith.constant 0 : i32
    return %c0_i32, %c0_i32_0 : i32, i32
  }
  func.func @transform_4(%arg0: i32) -> (i32, i32) {
    %c0_i32 = arith.constant 0 : i32
    %c0_i32_0 = arith.constant 0 : i32
    %c0_i32_1 = arith.constant 0 : i32
    return %c0_i32, %c0_i32_0 : i32, i32
  }
  func.func @transform_5(%arg0: i32) -> (i32, i32) {
    %c0_i32 = arith.constant 0 : i32
    %c0_i32_0 = arith.constant 0 : i32
    %c0_i32_1 = arith.constant 0 : i32
    return %c0_i32, %c0_i32_0 : i32, i32
  }
}

module attributes {stable_mosaic.version = 11 : i64} {
  func.func @_conv_block_kernel(%arg0: i32, %arg1: memref<32x1600xf32, #tpu.memory_space<vmem>>, %arg2: memref<1600x128xf32, #tpu.memory_space<vmem>>, %arg3: memref<1x128xf32, #tpu.memory_space<vmem>>, %arg4: memref<1x128xf32, #tpu.memory_space<vmem>>, %arg5: memref<1x128xf32, #tpu.memory_space<vmem>>, %arg6: memref<8x128xf32, #tpu.memory_space<vmem>>) attributes {dimension_semantics = [#tpu.dimension_semantics<arbitrary>], iteration_bounds = array<i64: 1>, scalar_prefetch = 0 : i64, scratch_operands = 0 : i64, tpu.core_type = #tpu.core_type<tc>, window_params = [{pipeline_mode = #tpu.pipeline_mode<synchronous>, transform_indices = @transform_0, window_bounds = array<i64: 32, 1600>}, {pipeline_mode = #tpu.pipeline_mode<synchronous>, transform_indices = @transform_1, window_bounds = array<i64: 1600, 128>}, {pipeline_mode = #tpu.pipeline_mode<synchronous>, transform_indices = @transform_2, window_bounds = array<i64: 1, 128>}, {pipeline_mode = #tpu.pipeline_mode<synchronous>, transform_indices = @transform_3, window_bounds = array<i64: 1, 128>}, {pipeline_mode = #tpu.pipeline_mode<synchronous>, transform_indices = @transform_4, window_bounds = array<i64: 1, 128>}, {pipeline_mode = #tpu.pipeline_mode<synchronous>, transform_indices = @transform_5, window_bounds = array<i64: 8, 128>}]} {
    %c0 = arith.constant 0 : index
    %c0_0 = arith.constant 0 : index
    %0 = vector.load %arg1[%c0, %c0_0] : memref<32x1600xf32, #tpu.memory_space<vmem>>, vector<32x1600xf32>
    %c0_1 = arith.constant 0 : index
    %c0_2 = arith.constant 0 : index
    %1 = vector.load %arg2[%c0_1, %c0_2] : memref<1600x128xf32, #tpu.memory_space<vmem>>, vector<1600x128xf32>
    %cst = arith.constant dense<0.000000e+00> : vector<32x128xf32>
    %2 = tpu.matmul %0, %1, %cst {dimension_numbers = #tpu.dot_dimension_numbers<[1], [0], [0], [1], [0, 0, 1, 1], [], []>} : vector<32x1600xf32>, vector<1600x128xf32>, vector<32x128xf32> -> vector<32x128xf32>
    %c0_3 = arith.constant 0 : index
    %c0_4 = arith.constant 0 : index
    %3 = vector.load %arg3[%c0_3, %c0_4] : memref<1x128xf32, #tpu.memory_space<vmem>>, vector<1x128xf32>
    %4 = vector.broadcast %3 : vector<1x128xf32> to vector<32x128xf32>
    %5 = arith.addf %2, %4 : vector<32x128xf32>
    %cst_5 = arith.constant 0.000000e+00 : f32
    %6 = vector.broadcast %cst_5 : f32 to vector<32x128xf32>
    %7 = arith.cmpf oge, %5, %6 : vector<32x128xf32>
    %cst_6 = arith.constant 0.00999999977 : f32
    %8 = vector.broadcast %cst_6 : f32 to vector<32x128xf32>
    %9 = arith.mulf %8, %5 : vector<32x128xf32>
    %10 = arith.select %7, %5, %9 : vector<32x128xi1>, vector<32x128xf32>
    %c0_7 = arith.constant 0 : index
    %c0_8 = arith.constant 0 : index
    %11 = vector.load %arg4[%c0_7, %c0_8] : memref<1x128xf32, #tpu.memory_space<vmem>>, vector<1x128xf32>
    %12 = vector.broadcast %11 : vector<1x128xf32> to vector<32x128xf32>
    %13 = arith.mulf %10, %12 : vector<32x128xf32>
    %c0_9 = arith.constant 0 : index
    %c0_10 = arith.constant 0 : index
    %14 = vector.load %arg5[%c0_9, %c0_10] : memref<1x128xf32, #tpu.memory_space<vmem>>, vector<1x128xf32>
    %15 = vector.broadcast %14 : vector<1x128xf32> to vector<32x128xf32>
    %16 = arith.addf %13, %15 : vector<32x128xf32>
    %17 = vector.extract_strided_slice %16 {offsets = [0, 0], sizes = [8, 128], strides = [1, 1]} : vector<32x128xf32> to vector<8x128xf32>
    %18 = vector.extract_strided_slice %16 {offsets = [8, 0], sizes = [8, 128], strides = [1, 1]} : vector<32x128xf32> to vector<8x128xf32>
    %19 = arith.maximumf %17, %18 : vector<8x128xf32>
    %20 = vector.extract_strided_slice %16 {offsets = [16, 0], sizes = [8, 128], strides = [1, 1]} : vector<32x128xf32> to vector<8x128xf32>
    %21 = vector.extract_strided_slice %16 {offsets = [24, 0], sizes = [8, 128], strides = [1, 1]} : vector<32x128xf32> to vector<8x128xf32>
    %22 = arith.maximumf %20, %21 : vector<8x128xf32>
    %23 = arith.maximumf %19, %22 : vector<8x128xf32>
    %c0_11 = arith.constant 0 : index
    %c0_12 = arith.constant 0 : index
    %24 = vector.load %arg6[%c0_11, %c0_12] : memref<8x128xf32, #tpu.memory_space<vmem>>, vector<8x128xf32>
    tpu.vector_store %arg6[%c0_11, %c0_12], %23 {strides = array<i32>} : memref<8x128xf32, #tpu.memory_space<vmem>>, vector<8x128xf32>,
    return
  }
  func.func @transform_0(%arg0: i32) -> (i32, i32) {
    %c0_i32 = arith.constant 0 : i32
    %c0_i32_0 = arith.constant 0 : i32
    %c0_i32_1 = arith.constant 0 : i32
    return %c0_i32, %c0_i32_0 : i32, i32
  }
  func.func @transform_1(%arg0: i32) -> (i32, i32) {
    %c0_i32 = arith.constant 0 : i32
    %c0_i32_0 = arith.constant 0 : i32
    %c0_i32_1 = arith.constant 0 : i32
    return %c0_i32, %c0_i32_0 : i32, i32
  }
  func.func @transform_2(%arg0: i32) -> (i32, i32) {
    %c0_i32 = arith.constant 0 : i32
    %c0_i32_0 = arith.constant 0 : i32
    %c0_i32_1 = arith.constant 0 : i32
    return %c0_i32, %c0_i32_0 : i32, i32
  }
  func.func @transform_3(%arg0: i32) -> (i32, i32) {
    %c0_i32 = arith.constant 0 : i32
    %c0_i32_0 = arith.constant 0 : i32
    %c0_i32_1 = arith.constant 0 : i32
    return %c0_i32, %c0_i32_0 : i32, i32
  }
  func.func @transform_4(%arg0: i32) -> (i32, i32) {
    %c0_i32 = arith.constant 0 : i32
    %c0_i32_0 = arith.constant 0 : i32
    %c0_i32_1 = arith.constant 0 : i32
    return %c0_i32, %c0_i32_0 : i32, i32
  }
  func.func @transform_5(%arg0: i32) -> (i32, i32) {
    %c0_i32 = arith.constant 0 : i32
    %c0_i32_0 = arith.constant 0 : i32
    %c0_i32_1 = arith.constant 0 : i32
    return %c0_i32, %c0_i32_0 : i32, i32
  }
}

module attributes {stable_mosaic.version = 11 : i64} {
  func.func @_block5_head_kernel(%arg0: i32, %arg1: memref<2x512xf32, #tpu.memory_space<vmem>>, %arg2: memref<512x1024xf32, #tpu.memory_space<vmem>>, %arg3: memref<1x1024xf32, #tpu.memory_space<vmem>>, %arg4: memref<1x1024xf32, #tpu.memory_space<vmem>>, %arg5: memref<1x1024xf32, #tpu.memory_space<vmem>>, %arg6: memref<256x128xf32, #tpu.memory_space<vmem>>, %arg7: memref<1x128xf32, #tpu.memory_space<vmem>>, %arg8: memref<2x128xf32, #tpu.memory_space<vmem>>) attributes {dimension_semantics = [#tpu.dimension_semantics<arbitrary>], iteration_bounds = array<i64: 1>, scalar_prefetch = 0 : i64, scratch_operands = 0 : i64, tpu.core_type = #tpu.core_type<tc>, window_params = [{pipeline_mode = #tpu.pipeline_mode<synchronous>, transform_indices = @transform_0, window_bounds = array<i64: 2, 512>}, {pipeline_mode = #tpu.pipeline_mode<synchronous>, transform_indices = @transform_1, window_bounds = array<i64: 512, 1024>}, {pipeline_mode = #tpu.pipeline_mode<synchronous>, transform_indices = @transform_2, window_bounds = array<i64: 1, 1024>}, {pipeline_mode = #tpu.pipeline_mode<synchronous>, transform_indices = @transform_3, window_bounds = array<i64: 1, 1024>}, {pipeline_mode = #tpu.pipeline_mode<synchronous>, transform_indices = @transform_4, window_bounds = array<i64: 1, 1024>}, {pipeline_mode = #tpu.pipeline_mode<synchronous>, transform_indices = @transform_5, window_bounds = array<i64: 256, 128>}, {pipeline_mode = #tpu.pipeline_mode<synchronous>, transform_indices = @transform_6, window_bounds = array<i64: 1, 128>}, {pipeline_mode = #tpu.pipeline_mode<synchronous>, transform_indices = @transform_7, window_bounds = array<i64: 2, 128>}]} {
    %c0 = arith.constant 0 : index
    %c0_0 = arith.constant 0 : index
    %0 = vector.load %arg1[%c0, %c0_0] : memref<2x512xf32, #tpu.memory_space<vmem>>, vector<2x512xf32>
    %c0_1 = arith.constant 0 : index
    %c0_2 = arith.constant 0 : index
    %1 = vector.load %arg2[%c0_1, %c0_2] : memref<512x1024xf32, #tpu.memory_space<vmem>>, vector<512x1024xf32>
    %cst = arith.constant dense<0.000000e+00> : vector<2x1024xf32>
    %2 = tpu.matmul %0, %1, %cst {dimension_numbers = #tpu.dot_dimension_numbers<[1], [0], [0], [1], [0, 0, 1, 1], [], []>} : vector<2x512xf32>, vector<512x1024xf32>, vector<2x1024xf32> -> vector<2x1024xf32>
    %c0_3 = arith.constant 0 : index
    %c0_4 = arith.constant 0 : index
    %3 = vector.load %arg3[%c0_3, %c0_4] : memref<1x1024xf32, #tpu.memory_space<vmem>>, vector<1x1024xf32>
    %4 = vector.broadcast %3 : vector<1x1024xf32> to vector<2x1024xf32>
    %5 = arith.addf %2, %4 : vector<2x1024xf32>
    %cst_5 = arith.constant 0.000000e+00 : f32
    %6 = vector.broadcast %cst_5 : f32 to vector<2x1024xf32>
    %7 = arith.cmpf oge, %5, %6 : vector<2x1024xf32>
    %cst_6 = arith.constant 0.00999999977 : f32
    %8 = vector.broadcast %cst_6 : f32 to vector<2x1024xf32>
    %9 = arith.mulf %8, %5 : vector<2x1024xf32>
    %10 = arith.select %7, %5, %9 : vector<2x1024xi1>, vector<2x1024xf32>
    %c0_7 = arith.constant 0 : index
    %c0_8 = arith.constant 0 : index
    %11 = vector.load %arg4[%c0_7, %c0_8] : memref<1x1024xf32, #tpu.memory_space<vmem>>, vector<1x1024xf32>
    %12 = vector.broadcast %11 : vector<1x1024xf32> to vector<2x1024xf32>
    %13 = arith.mulf %10, %12 : vector<2x1024xf32>
    %c0_9 = arith.constant 0 : index
    %c0_10 = arith.constant 0 : index
    %14 = vector.load %arg5[%c0_9, %c0_10] : memref<1x1024xf32, #tpu.memory_space<vmem>>, vector<1x1024xf32>
    %15 = vector.broadcast %14 : vector<1x1024xf32> to vector<2x1024xf32>
    %16 = arith.addf %13, %15 : vector<2x1024xf32>
    %17 = vector.extract_strided_slice %16 {offsets = [0, 0], sizes = [2, 256], strides = [1, 1]} : vector<2x1024xf32> to vector<2x256xf32>
    %18 = vector.extract_strided_slice %16 {offsets = [0, 256], sizes = [2, 256], strides = [1, 1]} : vector<2x1024xf32> to vector<2x256xf32>
    %19 = arith.maximumf %17, %18 : vector<2x256xf32>
    %20 = vector.extract_strided_slice %16 {offsets = [0, 512], sizes = [2, 256], strides = [1, 1]} : vector<2x1024xf32> to vector<2x256xf32>
    %21 = vector.extract_strided_slice %16 {offsets = [0, 768], sizes = [2, 256], strides = [1, 1]} : vector<2x1024xf32> to vector<2x256xf32>
    %22 = arith.maximumf %20, %21 : vector<2x256xf32>
    %23 = arith.maximumf %19, %22 : vector<2x256xf32>
    %c0_11 = arith.constant 0 : index
    %c0_12 = arith.constant 0 : index
    %24 = vector.load %arg6[%c0_11, %c0_12] : memref<256x128xf32, #tpu.memory_space<vmem>>, vector<256x128xf32>
    %cst_13 = arith.constant dense<0.000000e+00> : vector<2x128xf32>
    %25 = tpu.matmul %23, %24, %cst_13 {dimension_numbers = #tpu.dot_dimension_numbers<[1], [0], [0], [1], [0, 0, 1, 1], [], []>} : vector<2x256xf32>, vector<256x128xf32>, vector<2x128xf32> -> vector<2x128xf32>
    %c0_14 = arith.constant 0 : index
    %c0_15 = arith.constant 0 : index
    %26 = vector.load %arg7[%c0_14, %c0_15] : memref<1x128xf32, #tpu.memory_space<vmem>>, vector<1x128xf32>
    %27 = vector.broadcast %26 : vector<1x128xf32> to vector<2x128xf32>
    %28 = arith.addf %25, %27 : vector<2x128xf32>
    %cst_16 = arith.constant 0.000000e+00 : f32
    %29 = vector.broadcast %cst_16 : f32 to vector<2x128xf32>
    %30 = arith.subf %29, %28 : vector<2x128xf32>
    %31 = math.exp %30 : vector<2x128xf32>
    %cst_17 = arith.constant 1.000000e+00 : f32
    %32 = vector.broadcast %cst_17 : f32 to vector<2x128xf32>
    %33 = arith.addf %32, %31 : vector<2x128xf32>
    %34 = tpu.reciprocal %33 : vector<2x128xf32> -> vector<2x128xf32>
    %c0_18 = arith.constant 0 : index
    %c0_19 = arith.constant 0 : index
    %35 = vector.load %arg8[%c0_18, %c0_19] : memref<2x128xf32, #tpu.memory_space<vmem>>, vector<2x128xf32>
    tpu.vector_store %arg8[%c0_18, %c0_19], %34 {strides = array<i32>} : memref<2x128xf32, #tpu.memory_space<vmem>>, vector<2x128xf32>,
    return
  }
  func.func @transform_0(%arg0: i32) -> (i32, i32) {
    %c0_i32 = arith.constant 0 : i32
    %c0_i32_0 = arith.constant 0 : i32
    %c0_i32_1 = arith.constant 0 : i32
    return %c0_i32, %c0_i32_0 : i32, i32
  }
  func.func @transform_1(%arg0: i32) -> (i32, i32) {
    %c0_i32 = arith.constant 0 : i32
    %c0_i32_0 = arith.constant 0 : i32
    %c0_i32_1 = arith.constant 0 : i32
    return %c0_i32, %c0_i32_0 : i32, i32
  }
  func.func @transform_2(%arg0: i32) -> (i32, i32) {
    %c0_i32 = arith.constant 0 : i32
    %c0_i32_0 = arith.constant 0 : i32
    %c0_i32_1 = arith.constant 0 : i32
    return %c0_i32, %c0_i32_0 : i32, i32
  }
  func.func @transform_3(%arg0: i32) -> (i32, i32) {
    %c0_i32 = arith.constant 0 : i32
    %c0_i32_0 = arith.constant 0 : i32
    %c0_i32_1 = arith.constant 0 : i32
    return %c0_i32, %c0_i32_0 : i32, i32
  }
  func.func @transform_4(%arg0: i32) -> (i32, i32) {
    %c0_i32 = arith.constant 0 : i32
    %c0_i32_0 = arith.constant 0 : i32
    %c0_i32_1 = arith.constant 0 : i32
    return %c0_i32, %c0_i32_0 : i32, i32
  }
  func.func @transform_5(%arg0: i32) -> (i32, i32) {
    %c0_i32 = arith.constant 0 : i32
    %c0_i32_0 = arith.constant 0 : i32
    %c0_i32_1 = arith.constant 0 : i32
    return %c0_i32, %c0_i32_0 : i32, i32
  }
  func.func @transform_6(%arg0: i32) -> (i32, i32) {
    %c0_i32 = arith.constant 0 : i32
    %c0_i32_0 = arith.constant 0 : i32
    %c0_i32_1 = arith.constant 0 : i32
    return %c0_i32, %c0_i32_0 : i32, i32
  }
  func.func @transform_7(%arg0: i32) -> (i32, i32) {
    %c0_i32 = arith.constant 0 : i32
    %c0_i32_0 = arith.constant 0 : i32
    %c0_i32_1 = arith.constant 0 : i32
    return %c0_i32, %c0_i32_0 : i32, i32
  }
}

</mosaic_0001>

<llo_original>
// kernel: conv_classifier_forward.5
$region0: #{conv_classifier_forward.5}
  #allocation0 [shape = 'u32[]', space=smem, size = 0x4, offset = 0x4, fixed_abs, tag = 'smem constant byte address 0x4 - core index']
  #allocation1 [shape = 'u32[144,128]{1,0:T(1,128)}', space=vmem, size = 0x12000, scoped, tag = 'internal scratch']
  %s0 = inlined_call_operand.vmem [shape: f32[2048,100], index: 0, kind: input, shape index: {}]
  %s1 = inlined_call_operand.vmem [shape: f32[100,128], index: 1, kind: input, shape index: {}]
  %s2 = inlined_call_operand.vmem [shape: f32[1,128], index: 2, kind: input, shape index: {}]
  %s3 = inlined_call_operand.vmem [shape: f32[1,128], index: 3, kind: input, shape index: {}]
  %s4 = inlined_call_operand.vmem [shape: f32[1,128], index: 4, kind: input, shape index: {}]
  %s5 = inlined_call_operand.vmem [shape: f32[512,128], index: 5, kind: output, shape index: {}]
  %s6 = sld [smem:[#allocation0]]
  $region30: #{conv_classifier_forward.5} parent=0
    _
  %s8 = ssub.s32 1, %s6
  %s9 = scalar_select 0, %s8, %s6
  // Predicated region
  $region2: #{conv_classifier_forward.5} parent=0 // pred_check
    _
  $region3: #{conv_classifier_forward.5} parent=0 // pred_check_branch
    %11 = sbr.rel (0) target = $region5
  $region4: #{conv_classifier_forward.5} parent=0 // pred_region
    _
  $region5: #{conv_classifier_forward.5} parent=0 // pred_fallthru
    _
  // Predicated region
  $region6: #{conv_classifier_forward.5} parent=0 // pred_check
    _
  $region7: #{conv_classifier_forward.5} parent=0 // pred_check_branch
    %13 = sbr.rel (0) target = $region9
  $region8: #{conv_classifier_forward.5} parent=0 // pred_region
    _
  $region9: #{conv_classifier_forward.5} parent=0 // pred_fallthru
    _
  // Predicated region
  $region10: #{conv_classifier_forward.5} parent=0 // pred_check
    _
  $region11: #{conv_classifier_forward.5} parent=0 // pred_check_branch
    %15 = sbr.rel (0) target = $region13
  $region12: #{conv_classifier_forward.5} parent=0 // pred_region
    _
  $region13: #{conv_classifier_forward.5} parent=0 // pred_fallthru
    _
  // Predicated region
  $region14: #{conv_classifier_forward.5} parent=0 // pred_check
    _
  $region15: #{conv_classifier_forward.5} parent=0 // pred_check_branch
    %17 = sbr.rel (0) target = $region17
  $region16: #{conv_classifier_forward.5} parent=0 // pred_region
    _
  $region17: #{conv_classifier_forward.5} parent=0 // pred_fallthru
    _
  // Predicated region
  $region18: #{conv_classifier_forward.5} parent=0 // pred_check
    _
  $region19: #{conv_classifier_forward.5} parent=0 // pred_check_branch
    %19 = sbr.rel (0) target = $region21
  $region20: #{conv_classifier_forward.5} parent=0 // pred_region
    _
  $region21: #{conv_classifier_forward.5} parent=0 // pred_fallthru
    _
  %v20 = vld [vmem:[%s0] sm:$0xff]
  %v21 = vld [vmem:[%s0 + $0x8] sm:$0xff]
  %v22 = vld [vmem:[%s0 + $0x10] sm:$0xff]
  %v23 = vld [vmem:[%s0 + $0x18] sm:$0xff]
  %v24 = vld [vmem:[%s0 + $0x20] sm:$0xff]
  %v25 = vld [vmem:[%s0 + $0x28] sm:$0xff]
  %v26 = vld [vmem:[%s0 + $0x30] sm:$0xff]
  %v27 = vld [vmem:[%s0 + $0x38] sm:$0xff]
  %v28 = vld [vmem:[%s0 + $0x40] sm:$0xff]
  %v29 = vld [vmem:[%s0 + $0x48] sm:$0xff]
  %v30 = vld [vmem:[%s0 + $0x50] sm:$0xff]
  %v31 = vld [vmem:[%s0 + $0x58] sm:$0xff]
  %v32 = vld [vmem:[%s0 + $0x60] sm:$0xff]
  %v33 = vld [vmem:[%s0 + $0x68] sm:$0xff]
  %v34 = vld [vmem:[%s0 + $0x70] sm:$0xff]
  %v35 = vld [vmem:[%s0 + $0x78] sm:$0xff]
  %v36 = vld [vmem:[%s0 + $0x80] sm:$0xff]
  %v37 = vld [vmem:[%s0 + $0x88] sm:$0xff]
  %v38 = vld [vmem:[%s0 + $0x90] sm:$0xff]
  %v39 = vld [vmem:[%s0 + $0x98] sm:$0xff]
  %v40 = vld [vmem:[%s0 + $0xa0] sm:$0xff]
  %v41 = vld [vmem:[%s0 + $0xa8] sm:$0xff]
  %v42 = vld [vmem:[%s0 + $0xb0] sm:$0xff]
  %v43 = vld [vmem:[%s0 + $0xb8] sm:$0xff]
  %v44 = vld [vmem:[%s0 + $0xc0] sm:$0xff]
  %v45 = vld [vmem:[%s0 + $0xc8] sm:$0xff]
  %v46 = vld [vmem:[%s0 + $0xd0] sm:$0xff]
  %v47 = vld [vmem:[%s0 + $0xd8] sm:$0xff]
  %v48 = vld [vmem:[%s0 + $0xe0] sm:$0xff]
  %v49 = vld [vmem:[%s0 + $0xe8] sm:$0xff]
  %v50 = vld [vmem:[%s0 + $0xf0] sm:$0xff]
  %v51 = vld [vmem:[%s0 + $0xf8] sm:$0xff]
  %v52 = vld [vmem:[%s0 + $0x100] sm:$0xff]
  %v53 = vld [vmem:[%s0 + $0x108] sm:$0xff]
  %v54 = vld [vmem:[%s0 + $0x110] sm:$0xff]
  %v55 = vld [vmem:[%s0 + $0x118] sm:$0xff]
  %v56 = vld [vmem:[%s0 + $0x120] sm:$0xff]
  %v57 = vld [vmem:[%s0 + $0x128] sm:$0xff]
  %v58 = vld [vmem:[%s0 + $0x130] sm:$0xff]
  %v59 = vld [vmem:[%s0 + $0x138] sm:$0xff]
  %v60 = vld [vmem:[%s0 + $0x140] sm:$0xff]
  %v61 = vld [vmem:[%s0 + $0x148] sm:$0xff]
  %v62 = vld [vmem:[%s0 + $0x150] sm:$0xff]
  %v63 = vld [vmem:[%s0 + $0x158] sm:$0xff]
  %v64 = vld [vmem:[%s0 + $0x160] sm:$0xff]
  %v65 = vld [vmem:[%s0 + $0x168] sm:$0xff]
  %v66 = vld [vmem:[%s0 + $0x170] sm:$0xff]
  %v67 = vld [vmem:[%s0 + $0x178] sm:$0xff]
  %v68 = vld [vmem:[%s0 + $0x180] sm:$0xff]
  %v69 = vld [vmem:[%s0 + $0x188] sm:$0xff]
  %v70 = vld [vmem:[%s0 + $0x190] sm:$0xff]
  %v71 = vld [vmem:[%s0 + $0x198] sm:$0xff]
  %v72 = vld [vmem:[%s0 + $0x1a0] sm:$0xff]
  %v73 = vld [vmem:[%s0 + $0x1a8] sm:$0xff]
  %v74 = vld [vmem:[%s0 + $0x1b0] sm:$0xff]
  %v75 = vld [vmem:[%s0 + $0x1b8] sm:$0xff]
  %v76 = vld [vmem:[%s0 + $0x1c0] sm:$0xff]
  %v77 = vld [vmem:[%s0 + $0x1c8] sm:$0xff]
  %v78 = vld [vmem:[%s0 + $0x1d0] sm:$0xff]
  %v79 = vld [vmem:[%s0 + $0x1d8] sm:$0xff]
  %v80 = vld [vmem:[%s0 + $0x1e0] sm:$0xff]
  %v81 = vld [vmem:[%s0 + $0x1e8] sm:$0xff]
  %v82 = vld [vmem:[%s0 + $0x1f0] sm:$0xff]
  %v83 = vld [vmem:[%s0 + $0x1f8] sm:$0xff]
  %v84 = vld [vmem:[%s0 + $0x200] sm:$0xff]
  %v85 = vld [vmem:[%s0 + $0x208] sm:$0xff]
  %v86 = vld [vmem:[%s0 + $0x210] sm:$0xff]
  %v87 = vld [vmem:[%s0 + $0x218] sm:$0xff]
  %v88 = vld [vmem:[%s0 + $0x220] sm:$0xff]
  %v89 = vld [vmem:[%s0 + $0x228] sm:$0xff]
  %v90 = vld [vmem:[%s0 + $0x230] sm:$0xff]
  %v91 = vld [vmem:[%s0 + $0x238] sm:$0xff]
  %v92 = vld [vmem:[%s0 + $0x240] sm:$0xff]
  %v93 = vld [vmem:[%s0 + $0x248] sm:$0xff]
  %v94 = vld [vmem:[%s0 + $0x250] sm:$0xff]
  %v95 = vld [vmem:[%s0 + $0x258] sm:$0xff]
  %v96 = vld [vmem:[%s0 + $0x260] sm:$0xff]
  %v97 = vld [vmem:[%s0 + $0x268] sm:$0xff]
  %v98 = vld [vmem:[%s0 + $0x270] sm:$0xff]
  %v99 = vld [vmem:[%s0 + $0x278] sm:$0xff]
  %v100 = vld [vmem:[%s0 + $0x280] sm:$0xff]
  %v101 = vld [vmem:[%s0 + $0x288] sm:$0xff]
  %v102 = vld [vmem:[%s0 + $0x290] sm:$0xff]
  %v103 = vld [vmem:[%s0 + $0x298] sm:$0xff]
  %v104 = vld [vmem:[%s0 + $0x2a0] sm:$0xff]
  %v105 = vld [vmem:[%s0 + $0x2a8] sm:$0xff]
  %v106 = vld [vmem:[%s0 + $0x2b0] sm:$0xff]
  %v107 = vld [vmem:[%s0 + $0x2b8] sm:$0xff]
  %v108 = vld [vmem:[%s0 + $0x2c0] sm:$0xff]
  %v109 = vld [vmem:[%s0 + $0x2c8] sm:$0xff]
  %v110 = vld [vmem:[%s0 + $0x2d0] sm:$0xff]
  %v111 = vld [vmem:[%s0 + $0x2d8] sm:$0xff]
  %v112 = vld [vmem:[%s0 + $0x2e0] sm:$0xff]
  %v113 = vld [vmem:[%s0 + $0x2e8] sm:$0xff]
  %v114 = vld [vmem:[%s0 + $0x2f0] sm:$0xff]
  %v115 = vld [vmem:[%s0 + $0x2f8] sm:$0xff]
  %v116 = vld [vmem:[%s0 + $0x300] sm:$0xff]
  %v117 = vld [vmem:[%s0 + $0x308] sm:$0xff]
  %v118 = vld [vmem:[%s0 + $0x310] sm:$0xff]
  %v119 = vld [vmem:[%s0 + $0x318] sm:$0xff]
  %v120 = vld [vmem:[%s0 + $0x320] sm:$0xff]
  %v121 = vld [vmem:[%s0 + $0x328] sm:$0xff]
  %v122 = vld [vmem:[%s0 + $0x330] sm:$0xff]
  %v123 = vld [vmem:[%s0 + $0x338] sm:$0xff]
  %v124 = vld [vmem:[%s0 + $0x340] sm:$0xff]
  %v125 = vld [vmem:[%s0 + $0x348] sm:$0xff]
  %v126 = vld [vmem:[%s0 + $0x350] sm:$0xff]
  %v127 = vld [vmem:[%s0 + $0x358] sm:$0xff]
  %v128 = vld [vmem:[%s0 + $0x360] sm:$0xff]
  %v129 = vld [vmem:[%s0 + $0x368] sm:$0xff]
  %v130 = vld [vmem:[%s0 + $0x370] sm:$0xff]
  %v131 = vld [vmem:[%s0 + $0x378] sm:$0xff]
  %v132 = vld [vmem:[%s0 + $0x380] sm:$0xff]
  %v133 = vld [vmem:[%s0 + $0x388] sm:$0xff]
  %v134 = vld [vmem:[%s0 + $0x390] sm:$0xff]
  %v135 = vld [vmem:[%s0 + $0x398] sm:$0xff]
  %v136 = vld [vmem:[%s0 + $0x3a0] sm:$0xff]
  %v137 = vld [vmem:[%s0 + $0x3a8] sm:$0xff]
  %v138 = vld [vmem:[%s0 + $0x3b0] sm:$0xff]
  %v139 = vld [vmem:[%s0 + $0x3b8] sm:$0xff]
  %v140 = vld [vmem:[%s0 + $0x3c0] sm:$0xff]
  %v141 = vld [vmem:[%s0 + $0x3c8] sm:$0xff]
  %v142 = vld [vmem:[%s0 + $0x3d0] sm:$0xff]
  %v143 = vld [vmem:[%s0 + $0x3d8] sm:$0xff]
  %v144 = vld [vmem:[%s0 + $0x3e0] sm:$0xff]
  %v145 = vld [vmem:[%s0 + $0x3e8] sm:$0xff]
  %v146 = vld [vmem:[%s0 + $0x3f0] sm:$0xff]
  %v147 = vld [vmem:[%s0 + $0x3f8] sm:$0xff]
  %v148 = vld [vmem:[%s0 + $0x400] sm:$0xff]
  %v149 = vld [vmem:[%s0 + $0x408] sm:$0xff]
  %v150 = vld [vmem:[%s0 + $0x410] sm:$0xff]
  %v151 = vld [vmem:[%s0 + $0x418] sm:$0xff]
  %v152 = vld [vmem:[%s0 + $0x420] sm:$0xff]
  %v153 = vld [vmem:[%s0 + $0x428] sm:$0xff]
  %v154 = vld [vmem:[%s0 + $0x430] sm:$0xff]
  %v155 = vld [vmem:[%s0 + $0x438] sm:$0xff]
  %v156 = vld [vmem:[%s0 + $0x440] sm:$0xff]
  %v157 = vld [vmem:[%s0 + $0x448] sm:$0xff]
  %v158 = vld [vmem:[%s0 + $0x450] sm:$0xff]
  %v159 = vld [vmem:[%s0 + $0x458] sm:$0xff]
  %v160 = vld [vmem:[%s0 + $0x460] sm:$0xff]
  %v161 = vld [vmem:[%s0 + $0x468] sm:$0xff]
  %v162 = vld [vmem:[%s0 + $0x470] sm:$0xff]
  %v163 = vld [vmem:[%s0 + $0x478] sm:$0xff]
  %v164 = vld [vmem:[%s0 + $0x480] sm:$0xff]
  %v165 = vld [vmem:[%s0 + $0x488] sm:$0xff]
  %v166 = vld [vmem:[%s0 + $0x490] sm:$0xff]
  %v167 = vld [vmem:[%s0 + $0x498] sm:$0xff]
  %v168 = vld [vmem:[%s0 + $0x4a0] sm:$0xff]
  %v169 = vld [vmem:[%s0 + $0x4a8] sm:$0xff]
  %v170 = vld [vmem:[%s0 + $0x4b0] sm:$0xff]
  %v171 = vld [vmem:[%s0 + $0x4b8] sm:$0xff]
  %v172 = vld [vmem:[%s0 + $0x4c0] sm:$0xff]
  %v173 = vld [vmem:[%s0 + $0x4c8] sm:$0xff]
  %v174 = vld [vmem:[%s0 + $0x4d0] sm:$0xff]
  %v175 = vld [vmem:[%s0 + $0x4d8] sm:$0xff]
  %v176 = vld [vmem:[%s0 + $0x4e0] sm:$0xff]
  %v177 = vld [vmem:[%s0 + $0x4e8] sm:$0xff]
  %v178 = vld [vmem:[%s0 + $0x4f0] sm:$0xff]
  %v179 = vld [vmem:[%s0 + $0x4f8] sm:$0xff]
  %v180 = vld [vmem:[%s0 + $0x500] sm:$0xff]
  %v181 = vld [vmem:[%s0 + $0x508] sm:$0xff]
  %v182 = vld [vmem:[%s0 + $0x510] sm:$0xff]
  %v183 = vld [vmem:[%s0 + $0x518] sm:$0xff]
  %v184 = vld [vmem:[%s0 + $0x520] sm:$0xff]
  %v185 = vld [vmem:[%s0 + $0x528] sm:$0xff]
  %v186 = vld [vmem:[%s0 + $0x530] sm:$0xff]
  %v187 = vld [vmem:[%s0 + $0x538] sm:$0xff]
  %v188 = vld [vmem:[%s0 + $0x540] sm:$0xff]
  %v189 = vld [vmem:[%s0 + $0x548] sm:$0xff]
  %v190 = vld [vmem:[%s0 + $0x550] sm:$0xff]
  %v191 = vld [vmem:[%s0 + $0x558] sm:$0xff]
  %v192 = vld [vmem:[%s0 + $0x560] sm:$0xff]
  %v193 = vld [vmem:[%s0 + $0x568] sm:$0xff]
  %v194 = vld [vmem:[%s0 + $0x570] sm:$0xff]
  %v195 = vld [vmem:[%s0 + $0x578] sm:$0xff]
  %v196 = vld [vmem:[%s0 + $0x580] sm:$0xff]
  %v197 = vld [vmem:[%s0 + $0x588] sm:$0xff]
  %v198 = vld [vmem:[%s0 + $0x590] sm:$0xff]
  %v199 = vld [vmem:[%s0 + $0x598] sm:$0xff]
  %v200 = vld [vmem:[%s0 + $0x5a0] sm:$0xff]
  %v201 = vld [vmem:[%s0 + $0x5a8] sm:$0xff]
  %v202 = vld [vmem:[%s0 + $0x5b0] sm:$0xff]
  %v203 = vld [vmem:[%s0 + $0x5b8] sm:$0xff]
  %v204 = vld [vmem:[%s0 + $0x5c0] sm:$0xff]
  %v205 = vld [vmem:[%s0 + $0x5c8] sm:$0xff]
  %v206 = vld [vmem:[%s0 + $0x5d0] sm:$0xff]
  %v207 = vld [vmem:[%s0 + $0x5d8] sm:$0xff]
  %v208 = vld [vmem:[%s0 + $0x5e0] sm:$0xff]
  %v209 = vld [vmem:[%s0 + $0x5e8] sm:$0xff]
  %v210 = vld [vmem:[%s0 + $0x5f0] sm:$0xff]
  %v211 = vld [vmem:[%s0 + $0x5f8] sm:$0xff]
  %v212 = vld [vmem:[%s0 + $0x600] sm:$0xff]
  %v213 = vld [vmem:[%s0 + $0x608] sm:$0xff]
  %v214 = vld [vmem:[%s0 + $0x610] sm:$0xff]
  %v215 = vld [vmem:[%s0 + $0x618] sm:$0xff]
  %v216 = vld [vmem:[%s0 + $0x620] sm:$0xff]
  %v217 = vld [vmem:[%s0 + $0x628] sm:$0xff]
  %v218 = vld [vmem:[%s0 + $0x630] sm:$0xff]
  %v219 = vld [vmem:[%s0 + $0x638] sm:$0xff]
  %v220 = vld [vmem:[%s0 + $0x640] sm:$0xff]
  %v221 = vld [vmem:[%s0 + $0x648] sm:$0xff]
  %v222 = vld [vmem:[%s0 + $0x650] sm:$0xff]
  %v223 = vld [vmem:[%s0 + $0x658] sm:$0xff]
  %v224 = vld [vmem:[%s0 + $0x660] sm:$0xff]
  %v225 = vld [vmem:[%s0 + $0x668] sm:$0xff]
  %v226 = vld [vmem:[%s0 + $0x670] sm:$0xff]
  %v227 = vld [vmem:[%s0 + $0x678] sm:$0xff]
  %v228 = vld [vmem:[%s0 + $0x680] sm:$0xff]
  %v229 = vld [vmem:[%s0 + $0x688] sm:$0xff]
  %v230 = vld [vmem:[%s0 + $0x690] sm:$0xff]
  %v231 = vld [vmem:[%s0 + $0x698] sm:$0xff]
  %v232 = vld [vmem:[%s0 + $0x6a0] sm:$0xff]
  %v233 = vld [vmem:[%s0 + $0x6a8] sm:$0xff]
  %v234 = vld [vmem:[%s0 + $0x6b0] sm:$0xff]
  %v235 = vld [vmem:[%s0 + $0x6b8] sm:$0xff]
  %v236 = vld [vmem:[%s0 + $0x6c0] sm:$0xff]
  %v237 = vld [vmem:[%s0 + $0x6c8] sm:$0xff]
  %v238 = vld [vmem:[%s0 + $0x6d0] sm:$0xff]
  %v239 = vld [vmem:[%s0 + $0x6d8] sm:$0xff]
  %v240 = vld [vmem:[%s0 + $0x6e0] sm:$0xff]
  %v241 = vld [vmem:[%s0 + $0x6e8] sm:$0xff]
  %v242 = vld [vmem:[%s0 + $0x6f0] sm:$0xff]
  %v243 = vld [vmem:[%s0 + $0x6f8] sm:$0xff]
  %v244 = vld [vmem:[%s0 + $0x700] sm:$0xff]
  %v245 = vld [vmem:[%s0 + $0x708] sm:$0xff]
  %v246 = vld [vmem:[%s0 + $0x710] sm:$0xff]
  %v247 = vld [vmem:[%s0 + $0x718] sm:$0xff]
  %v248 = vld [vmem:[%s0 + $0x720] sm:$0xff]
  %v249 = vld [vmem:[%s0 + $0x728] sm:$0xff]
  %v250 = vld [vmem:[%s0 + $0x730] sm:$0xff]
  %v251 = vld [vmem:[%s0 + $0x738] sm:$0xff]
  %v252 = vld [vmem:[%s0 + $0x740] sm:$0xff]
  %v253 = vld [vmem:[%s0 + $0x748] sm:$0xff]
  %v254 = vld [vmem:[%s0 + $0x750] sm:$0xff]
  %v255 = vld [vmem:[%s0 + $0x758] sm:$0xff]
  %v256 = vld [vmem:[%s0 + $0x760] sm:$0xff]
  %v257 = vld [vmem:[%s0 + $0x768] sm:$0xff]
  %v258 = vld [vmem:[%s0 + $0x770] sm:$0xff]
  %v259 = vld [vmem:[%s0 + $0x778] sm:$0xff]
  %v260 = vld [vmem:[%s0 + $0x780] sm:$0xff]
  %v261 = vld [vmem:[%s0 + $0x788] sm:$0xff]
  %v262 = vld [vmem:[%s0 + $0x790] sm:$0xff]
  %v263 = vld [vmem:[%s0 + $0x798] sm:$0xff]
  %v264 = vld [vmem:[%s0 + $0x7a0] sm:$0xff]
  %v265 = vld [vmem:[%s0 + $0x7a8] sm:$0xff]
  %v266 = vld [vmem:[%s0 + $0x7b0] sm:$0xff]
  %v267 = vld [vmem:[%s0 + $0x7b8] sm:$0xff]
  %v268 = vld [vmem:[%s0 + $0x7c0] sm:$0xff]
  %v269 = vld [vmem:[%s0 + $0x7c8] sm:$0xff]
  %v270 = vld [vmem:[%s0 + $0x7d0] sm:$0xff]
  %v271 = vld [vmem:[%s0 + $0x7d8] sm:$0xff]
  %v272 = vld [vmem:[%s0 + $0x7e0] sm:$0xff]
  %v273 = vld [vmem:[%s0 + $0x7e8] sm:$0xff]
  %v274 = vld [vmem:[%s0 + $0x7f0] sm:$0xff]
  %v275 = vld [vmem:[%s0 + $0x7f8] sm:$0xff]
  %v276 = vld [vmem:[%s1] sm:$0xff]
  %v277 = vld [vmem:[%s1 + $0x8] sm:$0xff]
  %v278 = vld [vmem:[%s1 + $0x10] sm:$0xff]
  %v279 = vld [vmem:[%s1 + $0x18] sm:$0xff]
  %v280 = vld [vmem:[%s1 + $0x20] sm:$0xff]
  %v281 = vld [vmem:[%s1 + $0x28] sm:$0xff]
  %v282 = vld [vmem:[%s1 + $0x30] sm:$0xff]
  %v283 = vld [vmem:[%s1 + $0x38] sm:$0xff]
  %v284 = vld [vmem:[%s1 + $0x40] sm:$0xff]
  %v285 = vld [vmem:[%s1 + $0x48] sm:$0xff]
  %v286 = vld [vmem:[%s1 + $0x50] sm:$0xff]
  %v287 = vld [vmem:[%s1 + $0x58] sm:$0xff]
  %v288 = vld [vmem:[%s1 + $0x60] sm:$0xf]
  %v289 = vld [vmem:[%s2] sm:$0x1]
  %v291 = vlaneseq
  %v292 = vshrl.u32 %v291, 7
  %v293 = vsub.s32 0, %v292
  %v294 = vrot.slane %v289, %v293
  %vm296 = vcmask 818176
  %v298 = vsel %vm296, %v20, 0
  %v301 = vsel %vm296, %v21, 0
  %v304 = vsel %vm296, %v22, 0
  %v307 = vsel %vm296, %v23, 0
  %v310 = vsel %vm296, %v24, 0
  %v313 = vsel %vm296, %v25, 0
  %v316 = vsel %vm296, %v26, 0
  %v319 = vsel %vm296, %v27, 0
  %v322 = vsel %vm296, %v28, 0
  %v325 = vsel %vm296, %v29, 0
  %v328 = vsel %vm296, %v30, 0
  %v331 = vsel %vm296, %v31, 0
  %v334 = vsel %vm296, %v32, 0
  %v337 = vsel %vm296, %v33, 0
  %v340 = vsel %vm296, %v34, 0
  %v343 = vsel %vm296, %v35, 0
  %v346 = vsel %vm296, %v36, 0
  %v349 = vsel %vm296, %v37, 0
  %v352 = vsel %vm296, %v38, 0
  %v355 = vsel %vm296, %v39, 0
  %v358 = vsel %vm296, %v40, 0
  %v361 = vsel %vm296, %v41, 0
  %v364 = vsel %vm296, %v42, 0
  %v367 = vsel %vm296, %v43, 0
  %v370 = vsel %vm296, %v44, 0
  %v373 = vsel %vm296, %v45, 0
  %v376 = vsel %vm296, %v46, 0
  %v379 = vsel %vm296, %v47, 0
  %v382 = vsel %vm296, %v48, 0
  %v385 = vsel %vm296, %v49, 0
  %v388 = vsel %vm296, %v50, 0
  %v391 = vsel %vm296, %v51, 0
  %v394 = vsel %vm296, %v52, 0
  %v397 = vsel %vm296, %v53, 0
  %v400 = vsel %vm296, %v54, 0
  %v403 = vsel %vm296, %v55, 0
  %v406 = vsel %vm296, %v56, 0
  %v409 = vsel %vm296, %v57, 0
  %v412 = vsel %vm296, %v58, 0
  %v415 = vsel %vm296, %v59, 0
  %v418 = vsel %vm296, %v60, 0
  %v421 = vsel %vm296, %v61, 0
  %v424 = vsel %vm296, %v62, 0
  %v427 = vsel %vm296, %v63, 0
  %v430 = vsel %vm296, %v64, 0
  %v433 = vsel %vm296, %v65, 0
  %v436 = vsel %vm296, %v66, 0
  %v439 = vsel %vm296, %v67, 0
  %v442 = vsel %vm296, %v68, 0
  %v445 = vsel %vm296, %v69, 0
  %v448 = vsel %vm296, %v70, 0
  %v451 = vsel %vm296, %v71, 0
  %v454 = vsel %vm296, %v72, 0
  %v457 = vsel %vm296, %v73, 0
  %v460 = vsel %vm296, %v74, 0
  %v463 = vsel %vm296, %v75, 0
  %v466 = vsel %vm296, %v76, 0
  %v469 = vsel %vm296, %v77, 0
  %v472 = vsel %vm296, %v78, 0
  %v475 = vsel %vm296, %v79, 0
  %v478 = vsel %vm296, %v80, 0
  %v481 = vsel %vm296, %v81, 0
  %v484 = vsel %vm296, %v82, 0
  %v487 = vsel %vm296, %v83, 0
  %v490 = vsel %vm296, %v84, 0
  %v493 = vsel %vm296, %v85, 0
  %v496 = vsel %vm296, %v86, 0
  %v499 = vsel %vm296, %v87, 0
  %v502 = vsel %vm296, %v88, 0
  %v505 = vsel %vm296, %v89, 0
  %v508 = vsel %vm296, %v90, 0
  %v511 = vsel %vm296, %v91, 0
  %v514 = vsel %vm296, %v92, 0
  %v517 = vsel %vm296, %v93, 0
  %v520 = vsel %vm296, %v94, 0
  %v523 = vsel %vm296, %v95, 0
  %v526 = vsel %vm296, %v96, 0
  %v529 = vsel %vm296, %v97, 0
  %v532 = vsel %vm296, %v98, 0
  %v535 = vsel %vm296, %v99, 0
  %v538 = vsel %vm296, %v100, 0
  %v541 = vsel %vm296, %v101, 0
  %v544 = vsel %vm296, %v102, 0
  %v547 = vsel %vm296, %v103, 0
  %v550 = vsel %vm296, %v104, 0
  %v553 = vsel %vm296, %v105, 0
  %v556 = vsel %vm296, %v106, 0
  %v559 = vsel %vm296, %v107, 0
  %v562 = vsel %vm296, %v108, 0
  %v565 = vsel %vm296, %v109, 0
  %v568 = vsel %vm296, %v110, 0
  %v571 = vsel %vm296, %v111, 0
  %v574 = vsel %vm296, %v112, 0
  %v577 = vsel %vm296, %v113, 0
  %v580 = vsel %vm296, %v114, 0
  %v583 = vsel %vm296, %v115, 0
  %v586 = vsel %vm296, %v116, 0
  %v589 = vsel %vm296, %v117, 0
  %v592 = vsel %vm296, %v118, 0
  %v595 = vsel %vm296, %v119, 0
  %v598 = vsel %vm296, %v120, 0
  %v601 = vsel %vm296, %v121, 0
  %v604 = vsel %vm296, %v122, 0
  %v607 = vsel %vm296, %v123, 0
  %v610 = vsel %vm296, %v124, 0
  %v613 = vsel %vm296, %v125, 0
  %v616 = vsel %vm296, %v126, 0
  %v619 = vsel %vm296, %v127, 0
  %v622 = vsel %vm296, %v128, 0
  %v625 = vsel %vm296, %v129, 0
  %v628 = vsel %vm296, %v130, 0
  %v631 = vsel %vm296, %v131, 0
  %v634 = vsel %vm296, %v132, 0
  %v637 = vsel %vm296, %v133, 0
  %v640 = vsel %vm296, %v134, 0
  %v643 = vsel %vm296, %v135, 0
  %v646 = vsel %vm296, %v136, 0
  %v649 = vsel %vm296, %v137, 0
  %v652 = vsel %vm296, %v138, 0
  %v655 = vsel %vm296, %v139, 0
  %v658 = vsel %vm296, %v140, 0
  %v661 = vsel %vm296, %v141, 0
  %v664 = vsel %vm296, %v142, 0
  %v667 = vsel %vm296, %v143, 0
  %v670 = vsel %vm296, %v144, 0
  %v673 = vsel %vm296, %v145, 0
  %v676 = vsel %vm296, %v146, 0
  %v679 = vsel %vm296, %v147, 0
  %v682 = vsel %vm296, %v148, 0
  %v685 = vsel %vm296, %v149, 0
  %v688 = vsel %vm296, %v150, 0
  %v691 = vsel %vm296, %v151, 0
  %v694 = vsel %vm296, %v152, 0
  %v697 = vsel %vm296, %v153, 0
  %v700 = vsel %vm296, %v154, 0
  %v703 = vsel %vm296, %v155, 0
  %v706 = vsel %vm296, %v156, 0
  %v709 = vsel %vm296, %v157, 0
  %v712 = vsel %vm296, %v158, 0
  %v715 = vsel %vm296, %v159, 0
  %v718 = vsel %vm296, %v160, 0
  %v721 = vsel %vm296, %v161, 0
  %v724 = vsel %vm296, %v162, 0
  %v727 = vsel %vm296, %v163, 0
  %v730 = vsel %vm296, %v164, 0
  %v733 = vsel %vm296, %v165, 0
  %v736 = vsel %vm296, %v166, 0
  %v739 = vsel %vm296, %v167, 0
  %v742 = vsel %vm296, %v168, 0
  %v745 = vsel %vm296, %v169, 0
  %v748 = vsel %vm296, %v170, 0
  %v751 = vsel %vm296, %v171, 0
  %v754 = vsel %vm296, %v172, 0
  %v757 = vsel %vm296, %v173, 0
  %v760 = vsel %vm296, %v174, 0
  %v763 = vsel %vm296, %v175, 0
  %v766 = vsel %vm296, %v176, 0
  %v769 = vsel %vm296, %v177, 0
  %v772 = vsel %vm296, %v178, 0
  %v775 = vsel %vm296, %v179, 0
  %v778 = vsel %vm296, %v180, 0
  %v781 = vsel %vm296, %v181, 0
  %v784 = vsel %vm296, %v182, 0
  %v787 = vsel %vm296, %v183, 0
  %v790 = vsel %vm296, %v184, 0
  %v793 = vsel %vm296, %v185, 0
  %v796 = vsel %vm296, %v186, 0
  %v799 = vsel %vm296, %v187, 0
  %v802 = vsel %vm296, %v188, 0
  %v805 = vsel %vm296, %v189, 0
  %v808 = vsel %vm296, %v190, 0
  %v811 = vsel %vm296, %v191, 0
  %v814 = vsel %vm296, %v192, 0
  %v817 = vsel %vm296, %v193, 0
  %v820 = vsel %vm296, %v194, 0
  %v823 = vsel %vm296, %v195, 0
  %v826 = vsel %vm296, %v196, 0
  %v829 = vsel %vm296, %v197, 0
  %v832 = vsel %vm296, %v198, 0
  %v835 = vsel %vm296, %v199, 0
  %v838 = vsel %vm296, %v200, 0
  %v841 = vsel %vm296, %v201, 0
  %v844 = vsel %vm296, %v202, 0
  %v847 = vsel %vm296, %v203, 0
  %v850 = vsel %vm296, %v204, 0
  %v853 = vsel %vm296, %v205, 0
  %v856 = vsel %vm296, %v206, 0
  %v859 = vsel %vm296, %v207, 0
  %v862 = vsel %vm296, %v208, 0
  %v865 = vsel %vm296, %v209, 0
  %v868 = vsel %vm296, %v210, 0
  %v871 = vsel %vm296, %v211, 0
  %v874 = vsel %vm296, %v212, 0
  %v877 = vsel %vm296, %v213, 0
  %v880 = vsel %vm296, %v214, 0
  %v883 = vsel %vm296, %v215, 0
  %v886 = vsel %vm296, %v216, 0
  %v889 = vsel %vm296, %v217, 0
  %v892 = vsel %vm296, %v218, 0
  %v895 = vsel %vm296, %v219, 0
  %v898 = vsel %vm296, %v220, 0
  %v901 = vsel %vm296, %v221, 0
  %v904 = vsel %vm296, %v222, 0
  %v907 = vsel %vm296, %v223, 0
  %v910 = vsel %vm296, %v224, 0
  %v913 = vsel %vm296, %v225, 0
  %v916 = vsel %vm296, %v226, 0
  %v919 = vsel %vm296, %v227, 0
  %v922 = vsel %vm296, %v228, 0
  %v925 = vsel %vm296, %v229, 0
  %v928 = vsel %vm296, %v230, 0
  %v931 = vsel %vm296, %v231, 0
  %v934 = vsel %vm296, %v232, 0
  %v937 = vsel %vm296, %v233, 0
  %v940 = vsel %vm296, %v234, 0
  %v943 = vsel %vm296, %v235, 0
  %v946 = vsel %vm296, %v236, 0
  %v949 = vsel %vm296, %v237, 0
  %v952 = vsel %vm296, %v238, 0
  %v955 = vsel %vm296, %v239, 0
  %v958 = vsel %vm296, %v240, 0
  %v961 = vsel %vm296, %v241, 0
  %v964 = vsel %vm296, %v242, 0
  %v967 = vsel %vm296, %v243, 0
  %v970 = vsel %vm296, %v244, 0
  %v973 = vsel %vm296, %v245, 0
  %v976 = vsel %vm296, %v246, 0
  %v979 = vsel %vm296, %v247, 0
  %v982 = vsel %vm296, %v248, 0
  %v985 = vsel %vm296, %v249, 0
  %v988 = vsel %vm296, %v250, 0
  %v991 = vsel %vm296, %v251, 0
  %v994 = vsel %vm296, %v252, 0
  %v997 = vsel %vm296, %v253, 0
  %v1000 = vsel %vm296, %v254, 0
  %v1003 = vsel %vm296, %v255, 0
  %v1006 = vsel %vm296, %v256, 0
  %v1009 = vsel %vm296, %v257, 0
  %v1012 = vsel %vm296, %v258, 0
  %v1015 = vsel %vm296, %v259, 0
  %v1018 = vsel %vm296, %v260, 0
  %v1021 = vsel %vm296, %v261, 0
  %v1024 = vsel %vm296, %v262, 0
  %v1027 = vsel %vm296, %v263, 0
  %v1030 = vsel %vm296, %v264, 0
  %v1033 = vsel %vm296, %v265, 0
  %v1036 = vsel %vm296, %v266, 0
  %v1039 = vsel %vm296, %v267, 0
  %v1042 = vsel %vm296, %v268, 0
  %v1045 = vsel %vm296, %v269, 0
  %v1048 = vsel %vm296, %v270, 0
  %v1051 = vsel %vm296, %v271, 0
  %v1054 = vsel %vm296, %v272, 0
  %v1057 = vsel %vm296, %v273, 0
  %v1060 = vsel %vm296, %v274, 0
  %v1063 = vsel %vm296, %v275, 0
  %vm1065 = vcmask 1043456
  %v1067 = vsel %vm1065, %v288, 0
  %1069 = vmatprep.subr.mxu0 0.0
  %1070 = vmatpush1.msra.mxu0 %v276
  %1071 = vmatprep.subr.mxu0 0.0
  %1072 = vmatpush1.msra.mxu0 %v277
  %1073 = vmatprep.subr.mxu0 0.0
  %1074 = vmatpush1.msra.mxu0 %v278
  %1075 = vmatprep.subr.mxu0 0.0
  %1076 = vmatpush1.msra.mxu0 %v279
  %1077 = vmatprep.subr.mxu0 0.0
  %1078 = vmatpush1.msra.mxu0 %v280
  %1079 = vmatprep.subr.mxu0 0.0
  %1080 = vmatpush1.msra.mxu0 %v281
  %1081 = vmatprep.subr.mxu0 0.0
  %1082 = vmatpush1.msra.mxu0 %v282
  %1083 = vmatprep.subr.mxu0 0.0
  %1084 = vmatpush1.msra.mxu0 %v283
  %1085 = vmatprep.subr.mxu0 0.0
  %1086 = vmatpush1.msra.mxu0 %v284
  %1087 = vmatprep.subr.mxu0 0.0
  %1088 = vmatpush1.msra.mxu0 %v285
  %1089 = vmatprep.subr.mxu0 0.0
  %1090 = vmatpush1.msra.mxu0 %v286
  %1091 = vmatprep.subr.mxu0 0.0
  %1092 = vmatpush1.msra.mxu0 %v287
  %1093 = vmatprep.subr.mxu0 0.0
  %1094 = vmatpush1.msra.mxu0 %v1067
  %1095 = vmatprep.subr.mxu0 0.0
  %1096 = vmatpush1.msra.mxu0 0.0
  %1097 = vmatprep.subr.mxu0 0.0
  %1098 = vmatpush1.msra.mxu0 0.0
  %1099 = vmatprep.subr.mxu0 0.0
  %1100 = vmatpush1.msra.mxu0 0.0
  %1101 = vmatprep.subr.mxu0 0.0
  %1102 = vmatpush1.msra.mxu0 0.0
  %1103 = vmatprep.subr.mxu0 0.0
  %1104 = vmatpush1.msra.mxu0 0.0
  %1105 = vmatprep.subr.mxu0 0.0
  %1106 = vmatpush1.msra.mxu0 0.0
  %1107 = vmatprep.subr.mxu0 0.0
  %1108 = vmatpush1.msra.mxu0 0.0
  %1109 = vmatprep.subr.mxu0 0.0
  %1110 = vmatpush1.msra.mxu0 0.0
  %1111 = vmatprep.subr.mxu0 0.0
  %1112 = vmatpush1.msra.mxu0 0.0
  %1113 = vmatprep.subr.mxu0 0.0
  %1114 = vmatpush1.msra.mxu0 0.0
  %1115 = vmatprep.subr.mxu0 0.0
  %1116 = vmatpush1.msra.mxu0 0.0
  %1117 = vmatprep.subr.mxu0 0.0
  %1118 = vmatpush1.msra.mxu0 0.0
  %1119 = vmatprep.subr.mxu0 0.0
  %1120 = vmatpush1.msra.mxu0 0.0
  %1121 = vmatprep.subr.mxu0 0.0
  %1122 = vmatpush1.msra.mxu0 0.0
  %1123 = vmatprep.subr.mxu0 0.0
  %1124 = vmatpush1.msra.mxu0 0.0
  %1125 = vmatprep.subr.mxu0 0.0
  %1126 = vmatpush1.msra.mxu0 0.0
  %1127 = vmatprep.subr.mxu0 0.0
  %1128 = vmatpush1.msra.mxu0 0.0
  %1129 = vmatprep.subr.mxu0 0.0
  %1130 = vmatpush1.msra.mxu0 0.0
  %1131 = vmatprep.subr.mxu0 0.0
  %1132 = vmatpush1.msra.mxu0 0.0
  %1133 = vmatprep.mubr.f32.mxu0 0.0
  %1134 = vmatmul.mubr.f32.gmra.mrb[0].mxu0 %v298
  %v1135 = vpop.f32.mrb[0].mxu0
  %v1136 = vadd.f32 %v294, %v1135
  %v1137 = vpop.f32.mrb[0].mxu0
  %1138 = vmatprep.mubr.f32.mxu0 0.0
  %1139 = vmatmul.mubr.f32.gmra.mrb[0].mxu0 %v301
  %v1140 = vpop.f32.mrb[0].mxu0
  %v1141 = vadd.f32 %v294, %v1140
  %v1142 = vpop.f32.mrb[0].mxu0
  %1143 = vmatprep.mubr.f32.mxu0 0.0
  %1144 = vmatmul.mubr.f32.gmra.mrb[0].mxu0 %v304
  %v1145 = vpop.f32.mrb[0].mxu0
  %v1146 = vadd.f32 %v294, %v1145
  %v1147 = vpop.f32.mrb[0].mxu0
  %1148 = vmatprep.mubr.f32.mxu0 0.0
  %1149 = vmatmul.mubr.f32.gmra.mrb[0].mxu0 %v307
  %v1150 = vpop.f32.mrb[0].mxu0
  %v1151 = vadd.f32 %v294, %v1150
  %v1152 = vpop.f32.mrb[0].mxu0
  %1153 = vmatprep.mubr.f32.mxu0 0.0
  %1154 = vmatmul.mubr.f32.gmra.mrb[0].mxu0 %v310
  %v1155 = vpop.f32.mrb[0].mxu0
  %v1156 = vadd.f32 %v294, %v1155
  %v1157 = vpop.f32.mrb[0].mxu0
  %1158 = vmatprep.mubr.f32.mxu0 0.0
  %1159 = vmatmul.mubr.f32.gmra.mrb[0].mxu0 %v313
  %v1160 = vpop.f32.mrb[0].mxu0
  %v1161 = vadd.f32 %v294, %v1160
  %v1162 = vpop.f32.mrb[0].mxu0
  %1163 = vmatprep.mubr.f32.mxu0 0.0
  %1164 = vmatmul.mubr.f32.gmra.mrb[0].mxu0 %v316
  %v1165 = vpop.f32.mrb[0].mxu0
  %v1166 = vadd.f32 %v294, %v1165
  %v1167 = vpop.f32.mrb[0].mxu0
  %1168 = vmatprep.mubr.f32.mxu0 0.0
  %1169 = vmatmul.mubr.f32.gmra.mrb[0].mxu0 %v319
  %v1170 = vpop.f32.mrb[0].mxu0
  %v1171 = vadd.f32 %v294, %v1170
  %v1172 = vpop.f32.mrb[0].mxu0
  %1173 = vmatprep.mubr.f32.mxu0 0.0
  %1174 = vmatmul.mubr.f32.gmra.mrb[0].mxu0 %v322
  %v1175 = vpop.f32.mrb[0].mxu0
  %v1176 = vadd.f32 %v294, %v1175
  %v1177 = vpop.f32.mrb[0].mxu0
  %1178 = vmatprep.mubr.f32.mxu0 0.0
  %1179 = vmatmul.mubr.f32.gmra.mrb[0].mxu0 %v325
  %v1180 = vpop.f32.mrb[0].mxu0
  %v1181 = vadd.f32 %v294, %v1180
  %v1182 = vpop.f32.mrb[0].mxu0
  %1183 = vmatprep.mubr.f32.mxu0 0.0
  %1184 = vmatmul.mubr.f32.gmra.mrb[0].mxu0 %v328
  %v1185 = vpop.f32.mrb[0].mxu0
  %v1186 = vadd.f32 %v294, %v1185
  %v1187 = vpop.f32.mrb[0].mxu0
  %1188 = vmatprep.mubr.f32.mxu0 0.0
  %1189 = vmatmul.mubr.f32.gmra.mrb[0].mxu0 %v331
  %v1190 = vpop.f32.mrb[0].mxu0
  %v1191 = vadd.f32 %v294, %v1190
  %v1192 = vpop.f32.mrb[0].mxu0
  %1193 = vmatprep.mubr.f32.mxu0 0.0
  %1194 = vmatmul.mubr.f32.gmra.mrb[0].mxu0 %v334
  %v1195 = vpop.f32.mrb[0].mxu0
  %v1196 = vadd.f32 %v294, %v1195
  %v1197 = vpop.f32.mrb[0].mxu0
  %1198 = vmatprep.mubr.f32.mxu0 0.0
  %1199 = vmatmul.mubr.f32.gmra.mrb[0].mxu0 %v337
  %v1200 = vpop.f32.mrb[0].mxu0
  %v1201 = vadd.f32 %v294, %v1200
  %v1202 = vpop.f32.mrb[0].mxu0
  %1203 = vmatprep.mubr.f32.mxu0 0.0
  %1204 = vmatmul.mubr.f32.gmra.mrb[0].mxu0 %v340
  %v1205 = vpop.f32.mrb[0].mxu0
  %v1206 = vadd.f32 %v294, %v1205
  %v1207 = vpop.f32.mrb[0].mxu0
  %1208 = vmatprep.mubr.f32.mxu0 0.0
  %1209 = vmatmul.mubr.f32.gmra.mrb[0].mxu0 %v343
  %v1210 = vpop.f32.mrb[0].mxu0
  %v1211 = vadd.f32 %v294, %v1210
  %v1212 = vpop.f32.mrb[0].mxu0
  %1213 = vmatprep.mubr.f32.mxu0 0.0
  %1214 = vmatmul.mubr.f32.gmra.mrb[0].mxu0 %v346
  %v1215 = vpop.f32.mrb[0].mxu0
  %v1216 = vadd.f32 %v294, %v1215
  %v1217 = vpop.f32.mrb[0].mxu0
  %1218 = vmatprep.mubr.f32.mxu0 0.0
  %1219 = vmatmul.mubr.f32.gmra.mrb[0].mxu0 %v349
  %v1220 = vpop.f32.mrb[0].mxu0
  %v1221 = vadd.f32 %v294, %v1220
  %v1222 = vpop.f32.mrb[0].mxu0
  %1223 = vmatprep.mubr.f32.mxu0 0.0
  %1224 = vmatmul.mubr.f32.gmra.mrb[0].mxu0 %v352
  %v1225 = vpop.f32.mrb[0].mxu0
  %v1226 = vadd.f32 %v294, %v1225
  %v1227 = vpop.f32.mrb[0].mxu0
  %1228 = vmatprep.mubr.f32.mxu0 0.0
  %1229 = vmatmul.mubr.f32.gmra.mrb[0].mxu0 %v355
  %v1230 = vpop.f32.mrb[0].mxu0
  %v1231 = vadd.f32 %v294, %v1230
  %v1232 = vpop.f32.mrb[0].mxu0
  %1233 = vmatprep.mubr.f32.mxu0 0.0
  %1234 = vmatmul.mubr.f32.gmra.mrb[0].mxu0 %v358
  %v1235 = vpop.f32.mrb[0].mxu0
  %v1236 = vadd.f32 %v294, %v1235
  %v1237 = vpop.f32.mrb[0].mxu0
  %1238 = vmatprep.mubr.f32.mxu0 0.0
  %1239 = vmatmul.mubr.f32.gmra.mrb[0].mxu0 %v361
  %v1240 = vpop.f32.mrb[0].mxu0
  %v1241 = vadd.f32 %v294, %v1240
  %v1242 = vpop.f32.mrb[0].mxu0
  %1243 = vmatprep.mubr.f32.mxu0 0.0
  %1244 = vmatmul.mubr.f32.gmra.mrb[0].mxu0 %v364
  %v1245 = vpop.f32.mrb[0].mxu0
  %v1246 = vadd.f32 %v294, %v1245
  %v1247 = vpop.f32.mrb[0].mxu0
  %1248 = vmatprep.mubr.f32.mxu0 0.0
  %1249 = vmatmul.mubr.f32.gmra.mrb[0].mxu0 %v367
  %v1250 = vpop.f32.mrb[0].mxu0
  %v1251 = vadd.f32 %v294, %v1250
  %v1252 = vpop.f32.mrb[0].mxu0
  %1253 = vmatprep.mubr.f32.mxu0 0.0
  %1254 = vmatmul.mubr.f32.gmra.mrb[0].mxu0 %v370
  %v1255 = vpop.f32.mrb[0].mxu0
  %v1256 = vadd.f32 %v294, %v1255
  %v1257 = vpop.f32.mrb[0].mxu0
  %1258 = vmatprep.mubr.f32.mxu0 0.0
  %1259 = vmatmul.mubr.f32.gmra.mrb[0].mxu0 %v373
  %v1260 = vpop.f32.mrb[0].mxu0
  %v1261 = vadd.f32 %v294, %v1260
  %v1262 = vpop.f32.mrb[0].mxu0
  %1263 = vmatprep.mubr.f32.mxu0 0.0
  %1264 = vmatmul.mubr.f32.gmra.mrb[0].mxu0 %v376
  %v1265 = vpop.f32.mrb[0].mxu0
  %v1266 = vadd.f32 %v294, %v1265
  %v1267 = vpop.f32.mrb[0].mxu0
  %1268 = vmatprep.mubr.f32.mxu0 0.0
  %1269 = vmatmul.mubr.f32.gmra.mrb[0].mxu0 %v379
  %v1270 = vpop.f32.mrb[0].mxu0
  %v1271 = vadd.f32 %v294, %v1270
  %v1272 = vpop.f32.mrb[0].mxu0
  %1273 = vmatprep.mubr.f32.mxu0 0.0
  %1274 = vmatmul.mubr.f32.gmra.mrb[0].mxu0 %v382
  %v1275 = vpop.f32.mrb[0].mxu0
  %v1276 = vadd.f32 %v294, %v1275
  %v1277 = vpop.f32.mrb[0].mxu0
  %1278 = vmatprep.mubr.f32.mxu0 0.0
  %1279 = vmatmul.mubr.f32.gmra.mrb[0].mxu0 %v385
  %v1280 = vpop.f32.mrb[0].mxu0
  %v1281 = vadd.f32 %v294, %v1280
  %v1282 = vpop.f32.mrb[0].mxu0
  %1283 = vmatprep.mubr.f32.mxu0 0.0
  %1284 = vmatmul.mubr.f32.gmra.mrb[0].mxu0 %v388
  %v1285 = vpop.f32.mrb[0].mxu0
  %v1286 = vadd.f32 %v294, %v1285
  %v1287 = vpop.f32.mrb[0].mxu0
  %1288 = vmatprep.mubr.f32.mxu0 0.0
  %1289 = vmatmul.mubr.f32.gmra.mrb[0].mxu0 %v391
  %v1290 = vpop.f32.mrb[0].mxu0
  %v1291 = vadd.f32 %v294, %v1290
  %v1292 = vpop.f32.mrb[0].mxu0
  %1293 = vmatprep.mubr.f32.mxu0 0.0
  %1294 = vmatmul.mubr.f32.gmra.mrb[0].mxu0 %v394
  %v1295 = vpop.f32.mrb[0].mxu0
  %v1296 = vadd.f32 %v294, %v1295
  %v1297 = vpop.f32.mrb[0].mxu0
  %1298 = vmatprep.mubr.f32.mxu0 0.0
  %1299 = vmatmul.mubr.f32.gmra.mrb[0].mxu0 %v397
  %v1300 = vpop.f32.mrb[0].mxu0
  %v1301 = vadd.f32 %v294, %v1300
  %v1302 = vpop.f32.mrb[0].mxu0
  %1303 = vmatprep.mubr.f32.mxu0 0.0
  %1304 = vmatmul.mubr.f32.gmra.mrb[0].mxu0 %v400
  %v1305 = vpop.f32.mrb[0].mxu0
  %v1306 = vadd.f32 %v294, %v1305
  %v1307 = vpop.f32.mrb[0].mxu0
  %1308 = vmatprep.mubr.f32.mxu0 0.0
  %1309 = vmatmul.mubr.f32.gmra.mrb[0].mxu0 %v403
  %v1310 = vpop.f32.mrb[0].mxu0
  %v1311 = vadd.f32 %v294, %v1310
  %v1312 = vpop.f32.mrb[0].mxu0
  %1313 = vmatprep.mubr.f32.mxu0 0.0
  %1314 = vmatmul.mubr.f32.gmra.mrb[0].mxu0 %v406
  %v1315 = vpop.f32.mrb[0].mxu0
  %v1316 = vadd.f32 %v294, %v1315
  %v1317 = vpop.f32.mrb[0].mxu0
  %1318 = vmatprep.mubr.f32.mxu0 0.0
  %1319 = vmatmul.mubr.f32.gmra.mrb[0].mxu0 %v409
  %v1320 = vpop.f32.mrb[0].mxu0
  %v1321 = vadd.f32 %v294, %v1320
  %v1322 = vpop.f32.mrb[0].mxu0
  %1323 = vmatprep.mubr.f32.mxu0 0.0
  %1324 = vmatmul.mubr.f32.gmra.mrb[0].mxu0 %v412
  %v1325 = vpop.f32.mrb[0].mxu0
  %v1326 = vadd.f32 %v294, %v1325
  %v1327 = vpop.f32.mrb[0].mxu0
  %1328 = vmatprep.mubr.f32.mxu0 0.0
  %1329 = vmatmul.mubr.f32.gmra.mrb[0].mxu0 %v415
  %v1330 = vpop.f32.mrb[0].mxu0
  %v1331 = vadd.f32 %v294, %v1330
  %v1332 = vpop.f32.mrb[0].mxu0
  %1333 = vmatprep.mubr.f32.mxu0 0.0
  %1334 = vmatmul.mubr.f32.gmra.mrb[0].mxu0 %v418
  %v1335 = vpop.f32.mrb[0].mxu0
  %v1336 = vadd.f32 %v294, %v1335
  %v1337 = vpop.f32.mrb[0].mxu0
  %1338 = vmatprep.mubr.f32.mxu0 0.0
  %1339 = vmatmul.mubr.f32.gmra.mrb[0].mxu0 %v421
  %v1340 = vpop.f32.mrb[0].mxu0
  %v1341 = vadd.f32 %v294, %v1340
  %v1342 = vpop.f32.mrb[0].mxu0
  %1343 = vmatprep.mubr.f32.mxu0 0.0
  %1344 = vmatmul.mubr.f32.gmra.mrb[0].mxu0 %v424
  %v1345 = vpop.f32.mrb[0].mxu0
  %v1346 = vadd.f32 %v294, %v1345
  %v1347 = vpop.f32.mrb[0].mxu0
  %1348 = vmatprep.mubr.f32.mxu0 0.0
  %1349 = vmatmul.mubr.f32.gmra.mrb[0].mxu0 %v427
  %v1350 = vpop.f32.mrb[0].mxu0
  %v1351 = vadd.f32 %v294, %v1350
  %v1352 = vpop.f32.mrb[0].mxu0
  %1353 = vmatprep.mubr.f32.mxu0 0.0
  %1354 = vmatmul.mubr.f32.gmra.mrb[0].mxu0 %v430
  %v1355 = vpop.f32.mrb[0].mxu0
  %v1356 = vadd.f32 %v294, %v1355
  %v1357 = vpop.f32.mrb[0].mxu0
  %1358 = vmatprep.mubr.f32.mxu0 0.0
  %1359 = vmatmul.mubr.f32.gmra.mrb[0].mxu0 %v433
  %v1360 = vpop.f32.mrb[0].mxu0
  %v1361 = vadd.f32 %v294, %v1360
  %v1362 = vpop.f32.mrb[0].mxu0
  %1363 = vmatprep.mubr.f32.mxu0 0.0
  %1364 = vmatmul.mubr.f32.gmra.mrb[0].mxu0 %v436
  %v1365 = vpop.f32.mrb[0].mxu0
  %v1366 = vadd.f32 %v294, %v1365
  %v1367 = vpop.f32.mrb[0].mxu0
  %1368 = vmatprep.mubr.f32.mxu0 0.0
  %1369 = vmatmul.mubr.f32.gmra.mrb[0].mxu0 %v439
  %v1370 = vpop.f32.mrb[0].mxu0
  %v1371 = vadd.f32 %v294, %v1370
  %v1372 = vpop.f32.mrb[0].mxu0
  %1373 = vmatprep.mubr.f32.mxu0 0.0
  %1374 = vmatmul.mubr.f32.gmra.mrb[0].mxu0 %v442
  %v1375 = vpop.f32.mrb[0].mxu0
  %v1376 = vadd.f32 %v294, %v1375
  %v1377 = vpop.f32.mrb[0].mxu0
  %1378 = vmatprep.mubr.f32.mxu0 0.0
  %1379 = vmatmul.mubr.f32.gmra.mrb[0].mxu0 %v445
  %v1380 = vpop.f32.mrb[0].mxu0
  %v1381 = vadd.f32 %v294, %v1380
  %v1382 = vpop.f32.mrb[0].mxu0
  %1383 = vmatprep.mubr.f32.mxu0 0.0
  %1384 = vmatmul.mubr.f32.gmra.mrb[0].mxu0 %v448
  %v1385 = vpop.f32.mrb[0].mxu0
  %v1386 = vadd.f32 %v294, %v1385
  %v1387 = vpop.f32.mrb[0].mxu0
  %1388 = vmatprep.mubr.f32.mxu0 0.0
  %1389 = vmatmul.mubr.f32.gmra.mrb[0].mxu0 %v451
  %v1390 = vpop.f32.mrb[0].mxu0
  %v1391 = vadd.f32 %v294, %v1390
  %v1392 = vpop.f32.mrb[0].mxu0
  %1393 = vmatprep.mubr.f32.mxu0 0.0
  %1394 = vmatmul.mubr.f32.gmra.mrb[0].mxu0 %v454
  %v1395 = vpop.f32.mrb[0].mxu0
  %v1396 = vadd.f32 %v294, %v1395
  %v1397 = vpop.f32.mrb[0].mxu0
  %1398 = vmatprep.mubr.f32.mxu0 0.0
  %1399 = vmatmul.mubr.f32.gmra.mrb[0].mxu0 %v457
  %v1400 = vpop.f32.mrb[0].mxu0
  %v1401 = vadd.f32 %v294, %v1400
  %v1402 = vpop.f32.mrb[0].mxu0
  %1403 = vmatprep.mubr.f32.mxu0 0.0
  %1404 = vmatmul.mubr.f32.gmra.mrb[0].mxu0 %v460
  %v1405 = vpop.f32.mrb[0].mxu0
  %v1406 = vadd.f32 %v294, %v1405
  %v1407 = vpop.f32.mrb[0].mxu0
  %1408 = vmatprep.mubr.f32.mxu0 0.0
  %1409 = vmatmul.mubr.f32.gmra.mrb[0].mxu0 %v463
  %v1410 = vpop.f32.mrb[0].mxu0
  %v1411 = vadd.f32 %v294, %v1410
  %v1412 = vpop.f32.mrb[0].mxu0
  %1413 = vmatprep.mubr.f32.mxu0 0.0
  %1414 = vmatmul.mubr.f32.gmra.mrb[0].mxu0 %v466
  %v1415 = vpop.f32.mrb[0].mxu0
  %v1416 = vadd.f32 %v294, %v1415
  %v1417 = vpop.f32.mrb[0].mxu0
  %1418 = vmatprep.mubr.f32.mxu0 0.0
  %1419 = vmatmul.mubr.f32.gmra.mrb[0].mxu0 %v469
  %v1420 = vpop.f32.mrb[0].mxu0
  %v1421 = vadd.f32 %v294, %v1420
  %v1422 = vpop.f32.mrb[0].mxu0
  %1423 = vmatprep.mubr.f32.mxu0 0.0
  %1424 = vmatmul.mubr.f32.gmra.mrb[0].mxu0 %v472
  %v1425 = vpop.f32.mrb[0].mxu0
  %v1426 = vadd.f32 %v294, %v1425
  %v1427 = vpop.f32.mrb[0].mxu0
  %1428 = vmatprep.mubr.f32.mxu0 0.0
  %1429 = vmatmul.mubr.f32.gmra.mrb[0].mxu0 %v475
  %v1430 = vpop.f32.mrb[0].mxu0
  %v1431 = vadd.f32 %v294, %v1430
  %v1432 = vpop.f32.mrb[0].mxu0
  %1433 = vmatprep.mubr.f32.mxu0 0.0
  %1434 = vmatmul.mubr.f32.gmra.mrb[0].mxu0 %v478
  %v1435 = vpop.f32.mrb[0].mxu0
  %v1436 = vadd.f32 %v294, %v1435
  %v1437 = vpop.f32.mrb[0].mxu0
  %1438 = vmatprep.mubr.f32.mxu0 0.0
  %1439 = vmatmul.mubr.f32.gmra.mrb[0].mxu0 %v481
  %v1440 = vpop.f32.mrb[0].mxu0
  %v1441 = vadd.f32 %v294, %v1440
  %v1442 = vpop.f32.mrb[0].mxu0
  %1443 = vmatprep.mubr.f32.mxu0 0.0
  %1444 = vmatmul.mubr.f32.gmra.mrb[0].mxu0 %v484
  %v1445 = vpop.f32.mrb[0].mxu0
  %v1446 = vadd.f32 %v294, %v1445
  %v1447 = vpop.f32.mrb[0].mxu0
  %1448 = vmatprep.mubr.f32.mxu0 0.0
  %1449 = vmatmul.mubr.f32.gmra.mrb[0].mxu0 %v487
  %v1450 = vpop.f32.mrb[0].mxu0
  %v1451 = vadd.f32 %v294, %v1450
  %v1452 = vpop.f32.mrb[0].mxu0
  %1453 = vmatprep.mubr.f32.mxu0 0.0
  %1454 = vmatmul.mubr.f32.gmra.mrb[0].mxu0 %v490
  %v1455 = vpop.f32.mrb[0].mxu0
  %v1456 = vadd.f32 %v294, %v1455
  %v1457 = vpop.f32.mrb[0].mxu0
  %1458 = vmatprep.mubr.f32.mxu0 0.0
  %1459 = vmatmul.mubr.f32.gmra.mrb[0].mxu0 %v493
  %v1460 = vpop.f32.mrb[0].mxu0
  %v1461 = vadd.f32 %v294, %v1460
  %v1462 = vpop.f32.mrb[0].mxu0
  %1463 = vmatprep.mubr.f32.mxu0 0.0
  %1464 = vmatmul.mubr.f32.gmra.mrb[0].mxu0 %v496
  %v1465 = vpop.f32.mrb[0].mxu0
  %v1466 = vadd.f32 %v294, %v1465
  %v1467 = vpop.f32.mrb[0].mxu0
  %1468 = vmatprep.mubr.f32.mxu0 0.0
  %1469 = vmatmul.mubr.f32.gmra.mrb[0].mxu0 %v499
  %v1470 = vpop.f32.mrb[0].mxu0
  %v1471 = vadd.f32 %v294, %v1470
  %v1472 = vpop.f32.mrb[0].mxu0
  %1473 = vmatprep.mubr.f32.mxu0 0.0
  %1474 = vmatmul.mubr.f32.gmra.mrb[0].mxu0 %v502
  %v1475 = vpop.f32.mrb[0].mxu0
  %v1476 = vadd.f32 %v294, %v1475
  %v1477 = vpop.f32.mrb[0].mxu0
  %1478 = vmatprep.mubr.f32.mxu0 0.0
  %1479 = vmatmul.mubr.f32.gmra.mrb[0].mxu0 %v505
  %v1480 = vpop.f32.mrb[0].mxu0
  %v1481 = vadd.f32 %v294, %v1480
  %v1482 = vpop.f32.mrb[0].mxu0
  %1483 = vmatprep.mubr.f32.mxu0 0.0
  %1484 = vmatmul.mubr.f32.gmra.mrb[0].mxu0 %v508
  %v1485 = vpop.f32.mrb[0].mxu0
  %v1486 = vadd.f32 %v294, %v1485
  %v1487 = vpop.f32.mrb[0].mxu0
  %1488 = vmatprep.mubr.f32.mxu0 0.0
  %1489 = vmatmul.mubr.f32.gmra.mrb[0].mxu0 %v511
  %v1490 = vpop.f32.mrb[0].mxu0
  %v1491 = vadd.f32 %v294, %v1490
  %v1492 = vpop.f32.mrb[0].mxu0
  %1493 = vmatprep.mubr.f32.mxu0 0.0
  %1494 = vmatmul.mubr.f32.gmra.mrb[0].mxu0 %v514
  %v1495 = vpop.f32.mrb[0].mxu0
  %v1496 = vadd.f32 %v294, %v1495
  %v1497 = vpop.f32.mrb[0].mxu0
  %1498 = vmatprep.mubr.f32.mxu0 0.0
  %1499 = vmatmul.mubr.f32.gmra.mrb[0].mxu0 %v517
  %v1500 = vpop.f32.mrb[0].mxu0
  %v1501 = vadd.f32 %v294, %v1500
  %v1502 = vpop.f32.mrb[0].mxu0
  %1503 = vmatprep.mubr.f32.mxu0 0.0
  %1504 = vmatmul.mubr.f32.gmra.mrb[0].mxu0 %v520
  %v1505 = vpop.f32.mrb[0].mxu0
  %v1506 = vadd.f32 %v294, %v1505
  %v1507 = vpop.f32.mrb[0].mxu0
  %1508 = vmatprep.mubr.f32.mxu0 0.0
  %1509 = vmatmul.mubr.f32.gmra.mrb[0].mxu0 %v523
  %v1510 = vpop.f32.mrb[0].mxu0
  %v1511 = vadd.f32 %v294, %v1510
  %v1512 = vpop.f32.mrb[0].mxu0
  %1513 = vmatprep.mubr.f32.mxu0 0.0
  %1514 = vmatmul.mubr.f32.gmra.mrb[0].mxu0 %v526
  %v1515 = vpop.f32.mrb[0].mxu0
  %v1516 = vadd.f32 %v294, %v1515
  %v1517 = vpop.f32.mrb[0].mxu0
  %1518 = vmatprep.mubr.f32.mxu0 0.0
  %1519 = vmatmul.mubr.f32.gmra.mrb[0].mxu0 %v529
  %v1520 = vpop.f32.mrb[0].mxu0
  %v1521 = vadd.f32 %v294, %v1520
  %v1522 = vpop.f32.mrb[0].mxu0
  %1523 = vmatprep.mubr.f32.mxu0 0.0
  %1524 = vmatmul.mubr.f32.gmra.mrb[0].mxu0 %v532
  %v1525 = vpop.f32.mrb[0].mxu0
  %v1526 = vadd.f32 %v294, %v1525
  %v1527 = vpop.f32.mrb[0].mxu0
  %1528 = vmatprep.mubr.f32.mxu0 0.0
  %1529 = vmatmul.mubr.f32.gmra.mrb[0].mxu0 %v535
  %v1530 = vpop.f32.mrb[0].mxu0
  %v1531 = vadd.f32 %v294, %v1530
  %v1532 = vpop.f32.mrb[0].mxu0
  %1533 = vmatprep.mubr.f32.mxu0 0.0
  %1534 = vmatmul.mubr.f32.gmra.mrb[0].mxu0 %v538
  %v1535 = vpop.f32.mrb[0].mxu0
  %v1536 = vadd.f32 %v294, %v1535
  %v1537 = vpop.f32.mrb[0].mxu0
  %1538 = vmatprep.mubr.f32.mxu0 0.0
  %1539 = vmatmul.mubr.f32.gmra.mrb[0].mxu0 %v541
  %v1540 = vpop.f32.mrb[0].mxu0
  %v1541 = vadd.f32 %v294, %v1540
  %v1542 = vpop.f32.mrb[0].mxu0
  %1543 = vmatprep.mubr.f32.mxu0 0.0
  %1544 = vmatmul.mubr.f32.gmra.mrb[0].mxu0 %v544
  %v1545 = vpop.f32.mrb[0].mxu0
  %v1546 = vadd.f32 %v294, %v1545
  %v1547 = vpop.f32.mrb[0].mxu0
  %1548 = vmatprep.mubr.f32.mxu0 0.0
  %1549 = vmatmul.mubr.f32.gmra.mrb[0].mxu0 %v547
  %v1550 = vpop.f32.mrb[0].mxu0
  %v1551 = vadd.f32 %v294, %v1550
  %v1552 = vpop.f32.mrb[0].mxu0
  %1553 = vmatprep.mubr.f32.mxu0 0.0
  %1554 = vmatmul.mubr.f32.gmra.mrb[0].mxu0 %v550
  %v1555 = vpop.f32.mrb[0].mxu0
  %v1556 = vadd.f32 %v294, %v1555
  %v1557 = vpop.f32.mrb[0].mxu0
  %1558 = vmatprep.mubr.f32.mxu0 0.0
  %1559 = vmatmul.mubr.f32.gmra.mrb[0].mxu0 %v553
  %v1560 = vpop.f32.mrb[0].mxu0
  %v1561 = vadd.f32 %v294, %v1560
  %v1562 = vpop.f32.mrb[0].mxu0
  %1563 = vmatprep.mubr.f32.mxu0 0.0
  %1564 = vmatmul.mubr.f32.gmra.mrb[0].mxu0 %v556
  %v1565 = vpop.f32.mrb[0].mxu0
  %v1566 = vadd.f32 %v294, %v1565
  %v1567 = vpop.f32.mrb[0].mxu0
  %1568 = vmatprep.mubr.f32.mxu0 0.0
  %1569 = vmatmul.mubr.f32.gmra.mrb[0].mxu0 %v559
  %v1570 = vpop.f32.mrb[0].mxu0
  %v1571 = vadd.f32 %v294, %v1570
  %v1572 = vpop.f32.mrb[0].mxu0
  %1573 = vmatprep.mubr.f32.mxu0 0.0
  %1574 = vmatmul.mubr.f32.gmra.mrb[0].mxu0 %v562
  %v1575 = vpop.f32.mrb[0].mxu0
  %v1576 = vadd.f32 %v294, %v1575
  %v1577 = vpop.f32.mrb[0].mxu0
  %1578 = vmatprep.mubr.f32.mxu0 0.0
  %1579 = vmatmul.mubr.f32.gmra.mrb[0].mxu0 %v565
  %v1580 = vpop.f32.mrb[0].mxu0
  %v1581 = vadd.f32 %v294, %v1580
  %v1582 = vpop.f32.mrb[0].mxu0
  %1583 = vmatprep.mubr.f32.mxu0 0.0
  %1584 = vmatmul.mubr.f32.gmra.mrb[0].mxu0 %v568
  %v1585 = vpop.f32.mrb[0].mxu0
  %v1586 = vadd.f32 %v294, %v1585
  %v1587 = vpop.f32.mrb[0].mxu0
  %1588 = vmatprep.mubr.f32.mxu0 0.0
  %1589 = vmatmul.mubr.f32.gmra.mrb[0].mxu0 %v571
  %v1590 = vpop.f32.mrb[0].mxu0
  %v1591 = vadd.f32 %v294, %v1590
  %v1592 = vpop.f32.mrb[0].mxu0
  %1593 = vmatprep.mubr.f32.mxu0 0.0
  %1594 = vmatmul.mubr.f32.gmra.mrb[0].mxu0 %v574
  %v1595 = vpop.f32.mrb[0].mxu0
  %v1596 = vadd.f32 %v294, %v1595
  %v1597 = vpop.f32.mrb[0].mxu0
  %1598 = vmatprep.mubr.f32.mxu0 0.0
  %1599 = vmatmul.mubr.f32.gmra.mrb[0].mxu0 %v577
  %v1600 = vpop.f32.mrb[0].mxu0
  %v1601 = vadd.f32 %v294, %v1600
  %v1602 = vpop.f32.mrb[0].mxu0
  %1603 = vmatprep.mubr.f32.mxu0 0.0
  %1604 = vmatmul.mubr.f32.gmra.mrb[0].mxu0 %v580
  %v1605 = vpop.f32.mrb[0].mxu0
  %v1606 = vadd.f32 %v294, %v1605
  %v1607 = vpop.f32.mrb[0].mxu0
  %1608 = vmatprep.mubr.f32.mxu0 0.0
  %1609 = vmatmul.mubr.f32.gmra.mrb[0].mxu0 %v583
  %v1610 = vpop.f32.mrb[0].mxu0
  %v1611 = vadd.f32 %v294, %v1610
  %v1612 = vpop.f32.mrb[0].mxu0
  %1613 = vmatprep.mubr.f32.mxu0 0.0
  %1614 = vmatmul.mubr.f32.gmra.mrb[0].mxu0 %v586
  %v1615 = vpop.f32.mrb[0].mxu0
  %v1616 = vadd.f32 %v294, %v1615
  %v1617 = vpop.f32.mrb[0].mxu0
  %1618 = vmatprep.mubr.f32.mxu0 0.0
  %1619 = vmatmul.mubr.f32.gmra.mrb[0].mxu0 %v589
  %v1620 = vpop.f32.mrb[0].mxu0
  %v1621 = vadd.f32 %v294, %v1620
  %v1622 = vpop.f32.mrb[0].mxu0
  %1623 = vmatprep.mubr.f32.mxu0 0.0
  %1624 = vmatmul.mubr.f32.gmra.mrb[0].mxu0 %v592
  %v1625 = vpop.f32.mrb[0].mxu0
  %v1626 = vadd.f32 %v294, %v1625
  %v1627 = vpop.f32.mrb[0].mxu0
  %1628 = vmatprep.mubr.f32.mxu0 0.0
  %1629 = vmatmul.mubr.f32.gmra.mrb[0].mxu0 %v595
  %v1630 = vpop.f32.mrb[0].mxu0
  %v1631 = vadd.f32 %v294, %v1630
  %v1632 = vpop.f32.mrb[0].mxu0
  %1633 = vmatprep.mubr.f32.mxu0 0.0
  %1634 = vmatmul.mubr.f32.gmra.mrb[0].mxu0 %v598
  %v1635 = vpop.f32.mrb[0].mxu0
  %v1636 = vadd.f32 %v294, %v1635
  %v1637 = vpop.f32.mrb[0].mxu0
  %1638 = vmatprep.mubr.f32.mxu0 0.0
  %1639 = vmatmul.mubr.f32.gmra.mrb[0].mxu0 %v601
  %v1640 = vpop.f32.mrb[0].mxu0
  %v1641 = vadd.f32 %v294, %v1640
  %v1642 = vpop.f32.mrb[0].mxu0
  %1643 = vmatprep.mubr.f32.mxu0 0.0
  %1644 = vmatmul.mubr.f32.gmra.mrb[0].mxu0 %v604
  %v1645 = vpop.f32.mrb[0].mxu0
  %v1646 = vadd.f32 %v294, %v1645
  %v1647 = vpop.f32.mrb[0].mxu0
  %1648 = vmatprep.mubr.f32.mxu0 0.0
  %1649 = vmatmul.mubr.f32.gmra.mrb[0].mxu0 %v607
  %v1650 = vpop.f32.mrb[0].mxu0
  %v1651 = vadd.f32 %v294, %v1650
  %v1652 = vpop.f32.mrb[0].mxu0
  %1653 = vmatprep.mubr.f32.mxu0 0.0
  %1654 = vmatmul.mubr.f32.gmra.mrb[0].mxu0 %v610
  %v1655 = vpop.f32.mrb[0].mxu0
  %v1656 = vadd.f32 %v294, %v1655
  %v1657 = vpop.f32.mrb[0].mxu0
  %1658 = vmatprep.mubr.f32.mxu0 0.0
  %1659 = vmatmul.mubr.f32.gmra.mrb[0].mxu0 %v613
  %v1660 = vpop.f32.mrb[0].mxu0
  %v1661 = vadd.f32 %v294, %v1660
  %v1662 = vpop.f32.mrb[0].mxu0
  %1663 = vmatprep.mubr.f32.mxu0 0.0
  %1664 = vmatmul.mubr.f32.gmra.mrb[0].mxu0 %v616
  %v1665 = vpop.f32.mrb[0].mxu0
  %v1666 = vadd.f32 %v294, %v1665
  %v1667 = vpop.f32.mrb[0].mxu0
  %1668 = vmatprep.mubr.f32.mxu0 0.0
  %1669 = vmatmul.mubr.f32.gmra.mrb[0].mxu0 %v619
  %v1670 = vpop.f32.mrb[0].mxu0
  %v1671 = vadd.f32 %v294, %v1670
  %v1672 = vpop.f32.mrb[0].mxu0
  %1673 = vmatprep.mubr.f32.mxu0 0.0
  %1674 = vmatmul.mubr.f32.gmra.mrb[0].mxu0 %v622
  %v1675 = vpop.f32.mrb[0].mxu0
  %v1676 = vadd.f32 %v294, %v1675
  %v1677 = vpop.f32.mrb[0].mxu0
  %1678 = vmatprep.mubr.f32.mxu0 0.0
  %1679 = vmatmul.mubr.f32.gmra.mrb[0].mxu0 %v625
  %v1680 = vpop.f32.mrb[0].mxu0
  %v1681 = vadd.f32 %v294, %v1680
  %v1682 = vpop.f32.mrb[0].mxu0
  %1683 = vmatprep.mubr.f32.mxu0 0.0
  %1684 = vmatmul.mubr.f32.gmra.mrb[0].mxu0 %v628
  %v1685 = vpop.f32.mrb[0].mxu0
  %v1686 = vadd.f32 %v294, %v1685
  %v1687 = vpop.f32.mrb[0].mxu0
  %1688 = vmatprep.mubr.f32.mxu0 0.0
  %1689 = vmatmul.mubr.f32.gmra.mrb[0].mxu0 %v631
  %v1690 = vpop.f32.mrb[0].mxu0
  %v1691 = vadd.f32 %v294, %v1690
  %v1692 = vpop.f32.mrb[0].mxu0
  %1693 = vmatprep.mubr.f32.mxu0 0.0
  %1694 = vmatmul.mubr.f32.gmra.mrb[0].mxu0 %v634
  %v1695 = vpop.f32.mrb[0].mxu0
  %v1696 = vadd.f32 %v294, %v1695
  %v1697 = vpop.f32.mrb[0].mxu0
  %1698 = vmatprep.mubr.f32.mxu0 0.0
  %1699 = vmatmul.mubr.f32.gmra.mrb[0].mxu0 %v637
  %v1700 = vpop.f32.mrb[0].mxu0
  %v1701 = vadd.f32 %v294, %v1700
  %v1702 = vpop.f32.mrb[0].mxu0
  %1703 = vmatprep.mubr.f32.mxu0 0.0
  %1704 = vmatmul.mubr.f32.gmra.mrb[0].mxu0 %v640
  %v1705 = vpop.f32.mrb[0].mxu0
  %v1706 = vadd.f32 %v294, %v1705
  %v1707 = vpop.f32.mrb[0].mxu0
  %1708 = vmatprep.mubr.f32.mxu0 0.0
  %1709 = vmatmul.mubr.f32.gmra.mrb[0].mxu0 %v643
  %v1710 = vpop.f32.mrb[0].mxu0
  %v1711 = vadd.f32 %v294, %v1710
  %v1712 = vpop.f32.mrb[0].mxu0
  %1713 = vmatprep.mubr.f32.mxu0 0.0
  %1714 = vmatmul.mubr.f32.gmra.mrb[0].mxu0 %v646
  %v1715 = vpop.f32.mrb[0].mxu0
  %v1716 = vadd.f32 %v294, %v1715
  %v1717 = vpop.f32.mrb[0].mxu0
  %1718 = vmatprep.mubr.f32.mxu0 0.0
  %1719 = vmatmul.mubr.f32.gmra.mrb[0].mxu0 %v649
  %v1720 = vpop.f32.mrb[0].mxu0
  %v1721 = vadd.f32 %v294, %v1720
  %v1722 = vpop.f32.mrb[0].mxu0
  %1723 = vmatprep.mubr.f32.mxu0 0.0
  %1724 = vmatmul.mubr.f32.gmra.mrb[0].mxu0 %v652
  %v1725 = vpop.f32.mrb[0].mxu0
  %v1726 = vadd.f32 %v294, %v1725
  %v1727 = vpop.f32.mrb[0].mxu0
  %1728 = vmatprep.mubr.f32.mxu0 0.0
  %1729 = vmatmul.mubr.f32.gmra.mrb[0].mxu0 %v655
  %v1730 = vpop.f32.mrb[0].mxu0
  %v1731 = vadd.f32 %v294, %v1730
  %v1732 = vpop.f32.mrb[0].mxu0
  %1733 = vmatprep.mubr.f32.mxu0 0.0
  %1734 = vmatmul.mubr.f32.gmra.mrb[0].mxu0 %v658
  %v1735 = vpop.f32.mrb[0].mxu0
  %v1736 = vadd.f32 %v294, %v1735
  %v1737 = vpop.f32.mrb[0].mxu0
  %1738 = vmatprep.mubr.f32.mxu0 0.0
  %1739 = vmatmul.mubr.f32.gmra.mrb[0].mxu0 %v661
  %v1740 = vpop.f32.mrb[0].mxu0
  %v1741 = vadd.f32 %v294, %v1740
  %v1742 = vpop.f32.mrb[0].mxu0
  %1743 = vmatprep.mubr.f32.mxu0 0.0
  %1744 = vmatmul.mubr.f32.gmra.mrb[0].mxu0 %v664
  %v1745 = vpop.f32.mrb[0].mxu0
  %v1746 = vadd.f32 %v294, %v1745
  %v1747 = vpop.f32.mrb[0].mxu0
  %1748 = vmatprep.mubr.f32.mxu0 0.0
  %1749 = vmatmul.mubr.f32.gmra.mrb[0].mxu0 %v667
  %v1750 = vpop.f32.mrb[0].mxu0
  %v1751 = vadd.f32 %v294, %v1750
  %v1752 = vpop.f32.mrb[0].mxu0
  %1753 = vmatprep.mubr.f32.mxu0 0.0
  %1754 = vmatmul.mubr.f32.gmra.mrb[0].mxu0 %v670
  %v1755 = vpop.f32.mrb[0].mxu0
  %v1756 = vadd.f32 %v294, %v1755
  %v1757 = vpop.f32.mrb[0].mxu0
  %1758 = vmatprep.mubr.f32.mxu0 0.0
  %1759 = vmatmul.mubr.f32.gmra.mrb[0].mxu0 %v673
  %v1760 = vpop.f32.mrb[0].mxu0
  %v1761 = vadd.f32 %v294, %v1760
  %v1762 = vpop.f32.mrb[0].mxu0
  %1763 = vmatprep.mubr.f32.mxu0 0.0
  %1764 = vmatmul.mubr.f32.gmra.mrb[0].mxu0 %v676
  %v1765 = vpop.f32.mrb[0].mxu0
  %v1766 = vadd.f32 %v294, %v1765
  %v1767 = vpop.f32.mrb[0].mxu0
  %1768 = vmatprep.mubr.f32.mxu0 0.0
  %1769 = vmatmul.mubr.f32.gmra.mrb[0].mxu0 %v679
  %v1770 = vpop.f32.mrb[0].mxu0
  %v1771 = vadd.f32 %v294, %v1770
  %v1772 = vpop.f32.mrb[0].mxu0
  %1773 = vmatprep.mubr.f32.mxu0 0.0
  %1774 = vmatmul.mubr.f32.gmra.mrb[0].mxu0 %v682
  %v1775 = vpop.f32.mrb[0].mxu0
  %v1776 = vadd.f32 %v294, %v1775
  %v1777 = vpop.f32.mrb[0].mxu0
  %1778 = vmatprep.mubr.f32.mxu0 0.0
  %1779 = vmatmul.mubr.f32.gmra.mrb[0].mxu0 %v685
  %v1780 = vpop.f32.mrb[0].mxu0
  %v1781 = vadd.f32 %v294, %v1780
  %v1782 = vpop.f32.mrb[0].mxu0
  %1783 = vmatprep.mubr.f32.mxu0 0.0
  %1784 = vmatmul.mubr.f32.gmra.mrb[0].mxu0 %v688
  %v1785 = vpop.f32.mrb[0].mxu0
  %v1786 = vadd.f32 %v294, %v1785
  %v1787 = vpop.f32.mrb[0].mxu0
  %1788 = vmatprep.mubr.f32.mxu0 0.0
  %1789 = vmatmul.mubr.f32.gmra.mrb[0].mxu0 %v691
  %v1790 = vpop.f32.mrb[0].mxu0
  %v1791 = vadd.f32 %v294, %v1790
  %v1792 = vpop.f32.mrb[0].mxu0
  %1793 = vmatprep.mubr.f32.mxu0 0.0
  %1794 = vmatmul.mubr.f32.gmra.mrb[0].mxu0 %v694
  %v1795 = vpop.f32.mrb[0].mxu0
  %v1796 = vadd.f32 %v294, %v1795
  %v1797 = vpop.f32.mrb[0].mxu0
  %1798 = vmatprep.mubr.f32.mxu0 0.0
  %1799 = vmatmul.mubr.f32.gmra.mrb[0].mxu0 %v697
  %v1800 = vpop.f32.mrb[0].mxu0
  %v1801 = vadd.f32 %v294, %v1800
  %v1802 = vpop.f32.mrb[0].mxu0
  %1803 = vmatprep.mubr.f32.mxu0 0.0
  %1804 = vmatmul.mubr.f32.gmra.mrb[0].mxu0 %v700
  %v1805 = vpop.f32.mrb[0].mxu0
  %v1806 = vadd.f32 %v294, %v1805
  %v1807 = vpop.f32.mrb[0].mxu0
  %1808 = vmatprep.mubr.f32.mxu0 0.0
  %1809 = vmatmul.mubr.f32.gmra.mrb[0].mxu0 %v703
  %v1810 = vpop.f32.mrb[0].mxu0
  %v1811 = vadd.f32 %v294, %v1810
  %v1812 = vpop.f32.mrb[0].mxu0
  %1813 = vmatprep.mubr.f32.mxu0 0.0
  %1814 = vmatmul.mubr.f32.gmra.mrb[0].mxu0 %v706
  %v1815 = vpop.f32.mrb[0].mxu0
  %v1816 = vadd.f32 %v294, %v1815
  %v1817 = vpop.f32.mrb[0].mxu0
  %1818 = vmatprep.mubr.f32.mxu0 0.0
  %1819 = vmatmul.mubr.f32.gmra.mrb[0].mxu0 %v709
  %v1820 = vpop.f32.mrb[0].mxu0
  %v1821 = vadd.f32 %v294, %v1820
  %v1822 = vpop.f32.mrb[0].mxu0
  %1823 = vmatprep.mubr.f32.mxu0 0.0
  %1824 = vmatmul.mubr.f32.gmra.mrb[0].mxu0 %v712
  %v1825 = vpop.f32.mrb[0].mxu0
  %v1826 = vadd.f32 %v294, %v1825
  %v1827 = vpop.f32.mrb[0].mxu0
  %1828 = vmatprep.mubr.f32.mxu0 0.0
  %1829 = vmatmul.mubr.f32.gmra.mrb[0].mxu0 %v715
  %v1830 = vpop.f32.mrb[0].mxu0
  %v1831 = vadd.f32 %v294, %v1830
  %v1832 = vpop.f32.mrb[0].mxu0
  %1833 = vmatprep.mubr.f32.mxu0 0.0
  %1834 = vmatmul.mubr.f32.gmra.mrb[0].mxu0 %v718
  %v1835 = vpop.f32.mrb[0].mxu0
  %v1836 = vadd.f32 %v294, %v1835
  %v1837 = vpop.f32.mrb[0].mxu0
  %1838 = vmatprep.mubr.f32.mxu0 0.0
  %1839 = vmatmul.mubr.f32.gmra.mrb[0].mxu0 %v721
  %v1840 = vpop.f32.mrb[0].mxu0
  %v1841 = vadd.f32 %v294, %v1840
  %v1842 = vpop.f32.mrb[0].mxu0
  %1843 = vmatprep.mubr.f32.mxu0 0.0
  %1844 = vmatmul.mubr.f32.gmra.mrb[0].mxu0 %v724
  %v1845 = vpop.f32.mrb[0].mxu0
  %v1846 = vadd.f32 %v294, %v1845
  %v1847 = vpop.f32.mrb[0].mxu0
  %1848 = vmatprep.mubr.f32.mxu0 0.0
  %1849 = vmatmul.mubr.f32.gmra.mrb[0].mxu0 %v727
  %v1850 = vpop.f32.mrb[0].mxu0
  %v1851 = vadd.f32 %v294, %v1850
  %v1852 = vpop.f32.mrb[0].mxu0
  %1853 = vmatprep.mubr.f32.mxu0 0.0
  %1854 = vmatmul.mubr.f32.gmra.mrb[0].mxu0 %v730
  %v1855 = vpop.f32.mrb[0].mxu0
  %v1856 = vadd.f32 %v294, %v1855
  %v1857 = vpop.f32.mrb[0].mxu0
  %1858 = vmatprep.mubr.f32.mxu0 0.0
  %1859 = vmatmul.mubr.f32.gmra.mrb[0].mxu0 %v733
  %v1860 = vpop.f32.mrb[0].mxu0
  %v1861 = vadd.f32 %v294, %v1860
  %v1862 = vpop.f32.mrb[0].mxu0
  %1863 = vmatprep.mubr.f32.mxu0 0.0
  %1864 = vmatmul.mubr.f32.gmra.mrb[0].mxu0 %v736
  %v1865 = vpop.f32.mrb[0].mxu0
  %v1866 = vadd.f32 %v294, %v1865
  %v1867 = vpop.f32.mrb[0].mxu0
  %1868 = vmatprep.mubr.f32.mxu0 0.0
  %1869 = vmatmul.mubr.f32.gmra.mrb[0].mxu0 %v739
  %v1870 = vpop.f32.mrb[0].mxu0
  %v1871 = vadd.f32 %v294, %v1870
  %v1872 = vpop.f32.mrb[0].mxu0
  %1873 = vmatprep.mubr.f32.mxu0 0.0
  %1874 = vmatmul.mubr.f32.gmra.mrb[0].mxu0 %v742
  %v1875 = vpop.f32.mrb[0].mxu0
  %v1876 = vadd.f32 %v294, %v1875
  %v1877 = vpop.f32.mrb[0].mxu0
  %1878 = vmatprep.mubr.f32.mxu0 0.0
  %1879 = vmatmul.mubr.f32.gmra.mrb[0].mxu0 %v745
  %v1880 = vpop.f32.mrb[0].mxu0
  %v1881 = vadd.f32 %v294, %v1880
  %v1882 = vpop.f32.mrb[0].mxu0
  %1883 = vmatprep.mubr.f32.mxu0 0.0
  %1884 = vmatmul.mubr.f32.gmra.mrb[0].mxu0 %v748
  %v1885 = vpop.f32.mrb[0].mxu0
  %v1886 = vadd.f32 %v294, %v1885
  %v1887 = vpop.f32.mrb[0].mxu0
  %1888 = vmatprep.mubr.f32.mxu0 0.0
  %1889 = vmatmul.mubr.f32.gmra.mrb[0].mxu0 %v751
  %v1890 = vpop.f32.mrb[0].mxu0
  %v1891 = vadd.f32 %v294, %v1890
  %v1892 = vpop.f32.mrb[0].mxu0
  %1893 = vmatprep.mubr.f32.mxu0 0.0
  %1894 = vmatmul.mubr.f32.gmra.mrb[0].mxu0 %v754
  %v1895 = vpop.f32.mrb[0].mxu0
  %v1896 = vadd.f32 %v294, %v1895
  %v1897 = vpop.f32.mrb[0].mxu0
  %1898 = vmatprep.mubr.f32.mxu0 0.0
  %1899 = vmatmul.mubr.f32.gmra.mrb[0].mxu0 %v757
  %v1900 = vpop.f32.mrb[0].mxu0
  %v1901 = vadd.f32 %v294, %v1900
  %v1902 = vpop.f32.mrb[0].mxu0
  %1903 = vmatprep.mubr.f32.mxu0 0.0
  %1904 = vmatmul.mubr.f32.gmra.mrb[0].mxu0 %v760
  %v1905 = vpop.f32.mrb[0].mxu0
  %v1906 = vadd.f32 %v294, %v1905
  %v1907 = vpop.f32.mrb[0].mxu0
  %1908 = vmatprep.mubr.f32.mxu0 0.0
  %1909 = vmatmul.mubr.f32.gmra.mrb[0].mxu0 %v763
  %v1910 = vpop.f32.mrb[0].mxu0
  %v1911 = vadd.f32 %v294, %v1910
  %v1912 = vpop.f32.mrb[0].mxu0
  %1913 = vmatprep.mubr.f32.mxu0 0.0
  %1914 = vmatmul.mubr.f32.gmra.mrb[0].mxu0 %v766
  %v1915 = vpop.f32.mrb[0].mxu0
  %v1916 = vadd.f32 %v294, %v1915
  %v1917 = vpop.f32.mrb[0].mxu0
  %1918 = vmatprep.mubr.f32.mxu0 0.0
  %1919 = vmatmul.mubr.f32.gmra.mrb[0].mxu0 %v769
  %v1920 = vpop.f32.mrb[0].mxu0
  %v1921 = vadd.f32 %v294, %v1920
  %v1922 = vpop.f32.mrb[0].mxu0
  %1923 = vmatprep.mubr.f32.mxu0 0.0
  %1924 = vmatmul.mubr.f32.gmra.mrb[0].mxu0 %v772
  %v1925 = vpop.f32.mrb[0].mxu0
  %v1926 = vadd.f32 %v294, %v1925
  %v1927 = vpop.f32.mrb[0].mxu0
  %1928 = vmatprep.mubr.f32.mxu0 0.0
  %1929 = vmatmul.mubr.f32.gmra.mrb[0].mxu0 %v775
  %v1930 = vpop.f32.mrb[0].mxu0
  %v1931 = vadd.f32 %v294, %v1930
  %v1932 = vpop.f32.mrb[0].mxu0
  %1933 = vmatprep.mubr.f32.mxu0 0.0
  %1934 = vmatmul.mubr.f32.gmra.mrb[0].mxu0 %v778
  %v1935 = vpop.f32.mrb[0].mxu0
  %v1936 = vadd.f32 %v294, %v1935
  %v1937 = vpop.f32.mrb[0].mxu0
  %1938 = vmatprep.mubr.f32.mxu0 0.0
  %1939 = vmatmul.mubr.f32.gmra.mrb[0].mxu0 %v781
  %v1940 = vpop.f32.mrb[0].mxu0
  %v1941 = vadd.f32 %v294, %v1940
  %v1942 = vpop.f32.mrb[0].mxu0
  %1943 = vmatprep.mubr.f32.mxu0 0.0
  %1944 = vmatmul.mubr.f32.gmra.mrb[0].mxu0 %v784
  %v1945 = vpop.f32.mrb[0].mxu0
  %v1946 = vadd.f32 %v294, %v1945
  %v1947 = vpop.f32.mrb[0].mxu0
  %1948 = vmatprep.mubr.f32.mxu0 0.0
  %1949 = vmatmul.mubr.f32.gmra.mrb[0].mxu0 %v787
  %v1950 = vpop.f32.mrb[0].mxu0
  %v1951 = vadd.f32 %v294, %v1950
  %v1952 = vpop.f32.mrb[0].mxu0
  %1953 = vmatprep.mubr.f32.mxu0 0.0
  %1954 = vmatmul.mubr.f32.gmra.mrb[0].mxu0 %v790
  %v1955 = vpop.f32.mrb[0].mxu0
  %v1956 = vadd.f32 %v294, %v1955
  %v1957 = vpop.f32.mrb[0].mxu0
  %1958 = vmatprep.mubr.f32.mxu0 0.0
  %1959 = vmatmul.mubr.f32.gmra.mrb[0].mxu0 %v793
  %v1960 = vpop.f32.mrb[0].mxu0
  %v1961 = vadd.f32 %v294, %v1960
  %v1962 = vpop.f32.mrb[0].mxu0
  %1963 = vmatprep.mubr.f32.mxu0 0.0
  %1964 = vmatmul.mubr.f32.gmra.mrb[0].mxu0 %v796
  %v1965 = vpop.f32.mrb[0].mxu0
  %v1966 = vadd.f32 %v294, %v1965
  %v1967 = vpop.f32.mrb[0].mxu0
  %1968 = vmatprep.mubr.f32.mxu0 0.0
  %1969 = vmatmul.mubr.f32.gmra.mrb[0].mxu0 %v799
  %v1970 = vpop.f32.mrb[0].mxu0
  %v1971 = vadd.f32 %v294, %v1970
  %v1972 = vpop.f32.mrb[0].mxu0
  %1973 = vmatprep.mubr.f32.mxu0 0.0
  %1974 = vmatmul.mubr.f32.gmra.mrb[0].mxu0 %v802
  %v1975 = vpop.f32.mrb[0].mxu0
  %v1976 = vadd.f32 %v294, %v1975
  %v1977 = vpop.f32.mrb[0].mxu0
  %1978 = vmatprep.mubr.f32.mxu0 0.0
  %1979 = vmatmul.mubr.f32.gmra.mrb[0].mxu0 %v805
  %v1980 = vpop.f32.mrb[0].mxu0
  %v1981 = vadd.f32 %v294, %v1980
  %v1982 = vpop.f32.mrb[0].mxu0
  %1983 = vmatprep.mubr.f32.mxu0 0.0
  %1984 = vmatmul.mubr.f32.gmra.mrb[0].mxu0 %v808
  %v1985 = vpop.f32.mrb[0].mxu0
  %v1986 = vadd.f32 %v294, %v1985
  %v1987 = vpop.f32.mrb[0].mxu0
  %1988 = vmatprep.mubr.f32.mxu0 0.0
  %1989 = vmatmul.mubr.f32.gmra.mrb[0].mxu0 %v811
  %v1990 = vpop.f32.mrb[0].mxu0
  %v1991 = vadd.f32 %v294, %v1990
  %v1992 = vpop.f32.mrb[0].mxu0
  %1993 = vmatprep.mubr.f32.mxu0 0.0
  %1994 = vmatmul.mubr.f32.gmra.mrb[0].mxu0 %v814
  %v1995 = vpop.f32.mrb[0].mxu0
  %v1996 = vadd.f32 %v294, %v1995
  %v1997 = vpop.f32.mrb[0].mxu0
  %1998 = vmatprep.mubr.f32.mxu0 0.0
  %1999 = vmatmul.mubr.f32.gmra.mrb[0].mxu0 %v817
  %v2000 = vpop.f32.mrb[0].mxu0
  %v2001 = vadd.f32 %v294, %v2000
  %v2002 = vpop.f32.mrb[0].mxu0
  %2003 = vmatprep.mubr.f32.mxu0 0.0
  %2004 = vmatmul.mubr.f32.gmra.mrb[0].mxu0 %v820
  %v2005 = vpop.f32.mrb[0].mxu0
  %v2006 = vadd.f32 %v294, %v2005
  %v2007 = vpop.f32.mrb[0].mxu0
  %2008 = vmatprep.mubr.f32.mxu0 0.0
  %2009 = vmatmul.mubr.f32.gmra.mrb[0].mxu0 %v823
  %v2010 = vpop.f32.mrb[0].mxu0
  %v2011 = vadd.f32 %v294, %v2010
  %v2012 = vpop.f32.mrb[0].mxu0
  %2013 = vmatprep.mubr.f32.mxu0 0.0
  %2014 = vmatmul.mubr.f32.gmra.mrb[0].mxu0 %v826
  %v2015 = vpop.f32.mrb[0].mxu0
  %v2016 = vadd.f32 %v294, %v2015
  %v2017 = vpop.f32.mrb[0].mxu0
  %2018 = vmatprep.mubr.f32.mxu0 0.0
  %2019 = vmatmul.mubr.f32.gmra.mrb[0].mxu0 %v829
  %v2020 = vpop.f32.mrb[0].mxu0
  %v2021 = vadd.f32 %v294, %v2020
  %v2022 = vpop.f32.mrb[0].mxu0
  %2023 = vmatprep.mubr.f32.mxu0 0.0
  %2024 = vmatmul.mubr.f32.gmra.mrb[0].mxu0 %v832
  %v2025 = vpop.f32.mrb[0].mxu0
  %v2026 = vadd.f32 %v294, %v2025
  %v2027 = vpop.f32.mrb[0].mxu0
  %2028 = vmatprep.mubr.f32.mxu0 0.0
  %2029 = vmatmul.mubr.f32.gmra.mrb[0].mxu0 %v835
  %v2030 = vpop.f32.mrb[0].mxu0
  %v2031 = vadd.f32 %v294, %v2030
  %v2032 = vpop.f32.mrb[0].mxu0
  %2033 = vmatprep.mubr.f32.mxu0 0.0
  %2034 = vmatmul.mubr.f32.gmra.mrb[0].mxu0 %v838
  %v2035 = vpop.f32.mrb[0].mxu0
  %v2036 = vadd.f32 %v294, %v2035
  %v2037 = vpop.f32.mrb[0].mxu0
  %2038 = vmatprep.mubr.f32.mxu0 0.0
  %2039 = vmatmul.mubr.f32.gmra.mrb[0].mxu0 %v841
  %v2040 = vpop.f32.mrb[0].mxu0
  %v2041 = vadd.f32 %v294, %v2040
  %v2042 = vpop.f32.mrb[0].mxu0
  %2043 = vmatprep.mubr.f32.mxu0 0.0
  %2044 = vmatmul.mubr.f32.gmra.mrb[0].mxu0 %v844
  %v2045 = vpop.f32.mrb[0].mxu0
  %v2046 = vadd.f32 %v294, %v2045
  %v2047 = vpop.f32.mrb[0].mxu0
  %2048 = vmatprep.mubr.f32.mxu0 0.0
  %2049 = vmatmul.mubr.f32.gmra.mrb[0].mxu0 %v847
  %v2050 = vpop.f32.mrb[0].mxu0
  %v2051 = vadd.f32 %v294, %v2050
  %v2052 = vpop.f32.mrb[0].mxu0
  %2053 = vmatprep.mubr.f32.mxu0 0.0
  %2054 = vmatmul.mubr.f32.gmra.mrb[0].mxu0 %v850
  %v2055 = vpop.f32.mrb[0].mxu0
  %v2056 = vadd.f32 %v294, %v2055
  %v2057 = vpop.f32.mrb[0].mxu0
  %2058 = vmatprep.mubr.f32.mxu0 0.0
  %2059 = vmatmul.mubr.f32.gmra.mrb[0].mxu0 %v853
  %v2060 = vpop.f32.mrb[0].mxu0
  %v2061 = vadd.f32 %v294, %v2060
  %v2062 = vpop.f32.mrb[0].mxu0
  %2063 = vmatprep.mubr.f32.mxu0 0.0
  %2064 = vmatmul.mubr.f32.gmra.mrb[0].mxu0 %v856
  %v2065 = vpop.f32.mrb[0].mxu0
  %v2066 = vadd.f32 %v294, %v2065
  %v2067 = vpop.f32.mrb[0].mxu0
  %2068 = vmatprep.mubr.f32.mxu0 0.0
  %2069 = vmatmul.mubr.f32.gmra.mrb[0].mxu0 %v859
  %v2070 = vpop.f32.mrb[0].mxu0
  %v2071 = vadd.f32 %v294, %v2070
  %v2072 = vpop.f32.mrb[0].mxu0
  %2073 = vmatprep.mubr.f32.mxu0 0.0
  %2074 = vmatmul.mubr.f32.gmra.mrb[0].mxu0 %v862
  %v2075 = vpop.f32.mrb[0].mxu0
  %v2076 = vadd.f32 %v294, %v2075
  %v2077 = vpop.f32.mrb[0].mxu0
  %2078 = vmatprep.mubr.f32.mxu0 0.0
  %2079 = vmatmul.mubr.f32.gmra.mrb[0].mxu0 %v865
  %v2080 = vpop.f32.mrb[0].mxu0
  %v2081 = vadd.f32 %v294, %v2080
  %v2082 = vpop.f32.mrb[0].mxu0
  %2083 = vmatprep.mubr.f32.mxu0 0.0
  %2084 = vmatmul.mubr.f32.gmra.mrb[0].mxu0 %v868
  %v2085 = vpop.f32.mrb[0].mxu0
  %v2086 = vadd.f32 %v294, %v2085
  %v2087 = vpop.f32.mrb[0].mxu0
  %2088 = vmatprep.mubr.f32.mxu0 0.0
  %2089 = vmatmul.mubr.f32.gmra.mrb[0].mxu0 %v871
  %v2090 = vpop.f32.mrb[0].mxu0
  %v2091 = vadd.f32 %v294, %v2090
  %v2092 = vpop.f32.mrb[0].mxu0
  %2093 = vmatprep.mubr.f32.mxu0 0.0
  %2094 = vmatmul.mubr.f32.gmra.mrb[0].mxu0 %v874
  %v2095 = vpop.f32.mrb[0].mxu0
  %v2096 = vadd.f32 %v294, %v2095
  %v2097 = vpop.f32.mrb[0].mxu0
  %2098 = vmatprep.mubr.f32.mxu0 0.0
  %2099 = vmatmul.mubr.f32.gmra.mrb[0].mxu0 %v877
  %v2100 = vpop.f32.mrb[0].mxu0
  %v2101 = vadd.f32 %v294, %v2100
  %v2102 = vpop.f32.mrb[0].mxu0
  %2103 = vmatprep.mubr.f32.mxu0 0.0
  %2104 = vmatmul.mubr.f32.gmra.mrb[0].mxu0 %v880
  %v2105 = vpop.f32.mrb[0].mxu0
  %v2106 = vadd.f32 %v294, %v2105
  %v2107 = vpop.f32.mrb[0].mxu0
  %2108 = vmatprep.mubr.f32.mxu0 0.0
  %2109 = vmatmul.mubr.f32.gmra.mrb[0].mxu0 %v883
  %v2110 = vpop.f32.mrb[0].mxu0
  %v2111 = vadd.f32 %v294, %v2110
  %v2112 = vpop.f32.mrb[0].mxu0
  %2113 = vmatprep.mubr.f32.mxu0 0.0
  %2114 = vmatmul.mubr.f32.gmra.mrb[0].mxu0 %v886
  %v2115 = vpop.f32.mrb[0].mxu0
  %v2116 = vadd.f32 %v294, %v2115
  %v2117 = vpop.f32.mrb[0].mxu0
  %2118 = vmatprep.mubr.f32.mxu0 0.0
  %2119 = vmatmul.mubr.f32.gmra.mrb[0].mxu0 %v889
  %v2120 = vpop.f32.mrb[0].mxu0
  %v2121 = vadd.f32 %v294, %v2120
  %v2122 = vpop.f32.mrb[0].mxu0
  %2123 = vmatprep.mubr.f32.mxu0 0.0
  %2124 = vmatmul.mubr.f32.gmra.mrb[0].mxu0 %v892
  %v2125 = vpop.f32.mrb[0].mxu0
  %v2126 = vadd.f32 %v294, %v2125
  %v2127 = vpop.f32.mrb[0].mxu0
  %2128 = vmatprep.mubr.f32.mxu0 0.0
  %2129 = vmatmul.mubr.f32.gmra.mrb[0].mxu0 %v895
  %v2130 = vpop.f32.mrb[0].mxu0
  %v2131 = vadd.f32 %v294, %v2130
  %v2132 = vpop.f32.mrb[0].mxu0
  %2133 = vmatprep.mubr.f32.mxu0 0.0
  %2134 = vmatmul.mubr.f32.gmra.mrb[0].mxu0 %v898
  %v2135 = vpop.f32.mrb[0].mxu0
  %v2136 = vadd.f32 %v294, %v2135
  %v2137 = vpop.f32.mrb[0].mxu0
  %2138 = vmatprep.mubr.f32.mxu0 0.0
  %2139 = vmatmul.mubr.f32.gmra.mrb[0].mxu0 %v901
  %v2140 = vpop.f32.mrb[0].mxu0
  %v2141 = vadd.f32 %v294, %v2140
  %v2142 = vpop.f32.mrb[0].mxu0
  %2143 = vmatprep.mubr.f32.mxu0 0.0
  %2144 = vmatmul.mubr.f32.gmra.mrb[0].mxu0 %v904
  %v2145 = vpop.f32.mrb[0].mxu0
  %v2146 = vadd.f32 %v294, %v2145
  %v2147 = vpop.f32.mrb[0].mxu0
  %2148 = vmatprep.mubr.f32.mxu0 0.0
  %2149 = vmatmul.mubr.f32.gmra.mrb[0].mxu0 %v907
  %v2150 = vpop.f32.mrb[0].mxu0
  %v2151 = vadd.f32 %v294, %v2150
  %v2152 = vpop.f32.mrb[0].mxu0
  %2153 = vmatprep.mubr.f32.mxu0 0.0
  %2154 = vmatmul.mubr.f32.gmra.mrb[0].mxu0 %v910
  %v2155 = vpop.f32.mrb[0].mxu0
  %v2156 = vadd.f32 %v294, %v2155
  %v2157 = vpop.f32.mrb[0].mxu0
  %2158 = vmatprep.mubr.f32.mxu0 0.0
  %2159 = vmatmul.mubr.f32.gmra.mrb[0].mxu0 %v913
  %v2160 = vpop.f32.mrb[0].mxu0
  %v2161 = vadd.f32 %v294, %v2160
  %v2162 = vpop.f32.mrb[0].mxu0
  %2163 = vmatprep.mubr.f32.mxu0 0.0
  %2164 = vmatmul.mubr.f32.gmra.mrb[0].mxu0 %v916
  %v2165 = vpop.f32.mrb[0].mxu0
  %v2166 = vadd.f32 %v294, %v2165
  %v2167 = vpop.f32.mrb[0].mxu0
  %2168 = vmatprep.mubr.f32.mxu0 0.0
  %2169 = vmatmul.mubr.f32.gmra.mrb[0].mxu0 %v919
  %v2170 = vpop.f32.mrb[0].mxu0
  %v2171 = vadd.f32 %v294, %v2170
  %v2172 = vpop.f32.mrb[0].mxu0
  %2173 = vmatprep.mubr.f32.mxu0 0.0
  %2174 = vmatmul.mubr.f32.gmra.mrb[0].mxu0 %v922
  %v2175 = vpop.f32.mrb[0].mxu0
  %v2176 = vadd.f32 %v294, %v2175
  %v2177 = vpop.f32.mrb[0].mxu0
  %2178 = vmatprep.mubr.f32.mxu0 0.0
  %2179 = vmatmul.mubr.f32.gmra.mrb[0].mxu0 %v925
  %v2180 = vpop.f32.mrb[0].mxu0
  %v2181 = vadd.f32 %v294, %v2180
  %v2182 = vpop.f32.mrb[0].mxu0
  %2183 = vmatprep.mubr.f32.mxu0 0.0
  %2184 = vmatmul.mubr.f32.gmra.mrb[0].mxu0 %v928
  %v2185 = vpop.f32.mrb[0].mxu0
  %v2186 = vadd.f32 %v294, %v2185
  %v2187 = vpop.f32.mrb[0].mxu0
  %2188 = vmatprep.mubr.f32.mxu0 0.0
  %2189 = vmatmul.mubr.f32.gmra.mrb[0].mxu0 %v931
  %v2190 = vpop.f32.mrb[0].mxu0
  %v2191 = vadd.f32 %v294, %v2190
  %v2192 = vpop.f32.mrb[0].mxu0
  %2193 = vmatprep.mubr.f32.mxu0 0.0
  %2194 = vmatmul.mubr.f32.gmra.mrb[0].mxu0 %v934
  %v2195 = vpop.f32.mrb[0].mxu0
  %v2196 = vadd.f32 %v294, %v2195
  %v2197 = vpop.f32.mrb[0].mxu0
  %2198 = vmatprep.mubr.f32.mxu0 0.0
  %2199 = vmatmul.mubr.f32.gmra.mrb[0].mxu0 %v937
  %v2200 = vpop.f32.mrb[0].mxu0
  %v2201 = vadd.f32 %v294, %v2200
  %v2202 = vpop.f32.mrb[0].mxu0
  %2203 = vmatprep.mubr.f32.mxu0 0.0
  %2204 = vmatmul.mubr.f32.gmra.mrb[0].mxu0 %v940
  %v2205 = vpop.f32.mrb[0].mxu0
  %v2206 = vadd.f32 %v294, %v2205
  %v2207 = vpop.f32.mrb[0].mxu0
  %2208 = vmatprep.mubr.f32.mxu0 0.0
  %2209 = vmatmul.mubr.f32.gmra.mrb[0].mxu0 %v943
  %v2210 = vpop.f32.mrb[0].mxu0
  %v2211 = vadd.f32 %v294, %v2210
  %v2212 = vpop.f32.mrb[0].mxu0
  %2213 = vmatprep.mubr.f32.mxu0 0.0
  %2214 = vmatmul.mubr.f32.gmra.mrb[0].mxu0 %v946
  %v2215 = vpop.f32.mrb[0].mxu0
  %v2216 = vadd.f32 %v294, %v2215
  %v2217 = vpop.f32.mrb[0].mxu0
  %2218 = vmatprep.mubr.f32.mxu0 0.0
  %2219 = vmatmul.mubr.f32.gmra.mrb[0].mxu0 %v949
  %v2220 = vpop.f32.mrb[0].mxu0
  %v2221 = vadd.f32 %v294, %v2220
  %v2222 = vpop.f32.mrb[0].mxu0
  %2223 = vmatprep.mubr.f32.mxu0 0.0
  %2224 = vmatmul.mubr.f32.gmra.mrb[0].mxu0 %v952
  %v2225 = vpop.f32.mrb[0].mxu0
  %v2226 = vadd.f32 %v294, %v2225
  %v2227 = vpop.f32.mrb[0].mxu0
  %2228 = vmatprep.mubr.f32.mxu0 0.0
  %2229 = vmatmul.mubr.f32.gmra.mrb[0].mxu0 %v955
  %v2230 = vpop.f32.mrb[0].mxu0
  %v2231 = vadd.f32 %v294, %v2230
  %v2232 = vpop.f32.mrb[0].mxu0
  %2233 = vmatprep.mubr.f32.mxu0 0.0
  %2234 = vmatmul.mubr.f32.gmra.mrb[0].mxu0 %v958
  %v2235 = vpop.f32.mrb[0].mxu0
  %v2236 = vadd.f32 %v294, %v2235
  %v2237 = vpop.f32.mrb[0].mxu0
  %2238 = vmatprep.mubr.f32.mxu0 0.0
  %2239 = vmatmul.mubr.f32.gmra.mrb[0].mxu0 %v961
  %v2240 = vpop.f32.mrb[0].mxu0
  %v2241 = vadd.f32 %v294, %v2240
  %v2242 = vpop.f32.mrb[0].mxu0
  %2243 = vmatprep.mubr.f32.mxu0 0.0
  %2244 = vmatmul.mubr.f32.gmra.mrb[0].mxu0 %v964
  %v2245 = vpop.f32.mrb[0].mxu0
  %v2246 = vadd.f32 %v294, %v2245
  %v2247 = vpop.f32.mrb[0].mxu0
  %2248 = vmatprep.mubr.f32.mxu0 0.0
  %2249 = vmatmul.mubr.f32.gmra.mrb[0].mxu0 %v967
  %v2250 = vpop.f32.mrb[0].mxu0
  %v2251 = vadd.f32 %v294, %v2250
  %v2252 = vpop.f32.mrb[0].mxu0
  %2253 = vmatprep.mubr.f32.mxu0 0.0
  %2254 = vmatmul.mubr.f32.gmra.mrb[0].mxu0 %v970
  %v2255 = vpop.f32.mrb[0].mxu0
  %v2256 = vadd.f32 %v294, %v2255
  %v2257 = vpop.f32.mrb[0].mxu0
  %2258 = vmatprep.mubr.f32.mxu0 0.0
  %2259 = vmatmul.mubr.f32.gmra.mrb[0].mxu0 %v973
  %v2260 = vpop.f32.mrb[0].mxu0
  %v2261 = vadd.f32 %v294, %v2260
  %v2262 = vpop.f32.mrb[0].mxu0
  %2263 = vmatprep.mubr.f32.mxu0 0.0
  %2264 = vmatmul.mubr.f32.gmra.mrb[0].mxu0 %v976
  %v2265 = vpop.f32.mrb[0].mxu0
  %v2266 = vadd.f32 %v294, %v2265
  %v2267 = vpop.f32.mrb[0].mxu0
  %2268 = vmatprep.mubr.f32.mxu0 0.0
  %2269 = vmatmul.mubr.f32.gmra.mrb[0].mxu0 %v979
  %v2270 = vpop.f32.mrb[0].mxu0
  %v2271 = vadd.f32 %v294, %v2270
  %v2272 = vpop.f32.mrb[0].mxu0
  %2273 = vmatprep.mubr.f32.mxu0 0.0
  %2274 = vmatmul.mubr.f32.gmra.mrb[0].mxu0 %v982
  %v2275 = vpop.f32.mrb[0].mxu0
  %v2276 = vadd.f32 %v294, %v2275
  %v2277 = vpop.f32.mrb[0].mxu0
  %2278 = vmatprep.mubr.f32.mxu0 0.0
  %2279 = vmatmul.mubr.f32.gmra.mrb[0].mxu0 %v985
  %v2280 = vpop.f32.mrb[0].mxu0
  %v2281 = vadd.f32 %v294, %v2280
  %v2282 = vpop.f32.mrb[0].mxu0
  %2283 = vmatprep.mubr.f32.mxu0 0.0
  %2284 = vmatmul.mubr.f32.gmra.mrb[0].mxu0 %v988
  %v2285 = vpop.f32.mrb[0].mxu0
  %v2286 = vadd.f32 %v294, %v2285
  %v2287 = vpop.f32.mrb[0].mxu0
  %2288 = vmatprep.mubr.f32.mxu0 0.0
  %2289 = vmatmul.mubr.f32.gmra.mrb[0].mxu0 %v991
  %v2290 = vpop.f32.mrb[0].mxu0
  %v2291 = vadd.f32 %v294, %v2290
  %v2292 = vpop.f32.mrb[0].mxu0
  %2293 = vmatprep.mubr.f32.mxu0 0.0
  %2294 = vmatmul.mubr.f32.gmra.mrb[0].mxu0 %v994
  %v2295 = vpop.f32.mrb[0].mxu0
  %v2296 = vadd.f32 %v294, %v2295
  %v2297 = vpop.f32.mrb[0].mxu0
  %2298 = vmatprep.mubr.f32.mxu0 0.0
  %2299 = vmatmul.mubr.f32.gmra.mrb[0].mxu0 %v997
  %v2300 = vpop.f32.mrb[0].mxu0
  %v2301 = vadd.f32 %v294, %v2300
  %v2302 = vpop.f32.mrb[0].mxu0
  %2303 = vmatprep.mubr.f32.mxu0 0.0
  %2304 = vmatmul.mubr.f32.gmra.mrb[0].mxu0 %v1000
  %v2305 = vpop.f32.mrb[0].mxu0
  %v2306 = vadd.f32 %v294, %v2305
  %v2307 = vpop.f32.mrb[0].mxu0
  %2308 = vmatprep.mubr.f32.mxu0 0.0
  %2309 = vmatmul.mubr.f32.gmra.mrb[0].mxu0 %v1003
  %v2310 = vpop.f32.mrb[0].mxu0
  %v2311 = vadd.f32 %v294, %v2310
  %v2312 = vpop.f32.mrb[0].mxu0
  %2313 = vmatprep.mubr.f32.mxu0 0.0
  %2314 = vmatmul.mubr.f32.gmra.mrb[0].mxu0 %v1006
  %v2315 = vpop.f32.mrb[0].mxu0
  %v2316 = vadd.f32 %v294, %v2315
  %v2317 = vpop.f32.mrb[0].mxu0
  %2318 = vmatprep.mubr.f32.mxu0 0.0
  %2319 = vmatmul.mubr.f32.gmra.mrb[0].mxu0 %v1009
  %v2320 = vpop.f32.mrb[0].mxu0
  %v2321 = vadd.f32 %v294, %v2320
  %v2322 = vpop.f32.mrb[0].mxu0
  %2323 = vmatprep.mubr.f32.mxu0 0.0
  %2324 = vmatmul.mubr.f32.gmra.mrb[0].mxu0 %v1012
  %v2325 = vpop.f32.mrb[0].mxu0
  %v2326 = vadd.f32 %v294, %v2325
  %v2327 = vpop.f32.mrb[0].mxu0
  %2328 = vmatprep.mubr.f32.mxu0 0.0
  %2329 = vmatmul.mubr.f32.gmra.mrb[0].mxu0 %v1015
  %v2330 = vpop.f32.mrb[0].mxu0
  %v2331 = vadd.f32 %v294, %v2330
  %v2332 = vpop.f32.mrb[0].mxu0
  %2333 = vmatprep.mubr.f32.mxu0 0.0
  %2334 = vmatmul.mubr.f32.gmra.mrb[0].mxu0 %v1018
  %v2335 = vpop.f32.mrb[0].mxu0
  %v2336 = vadd.f32 %v294, %v2335
  %v2337 = vpop.f32.mrb[0].mxu0
  %2338 = vmatprep.mubr.f32.mxu0 0.0
  %2339 = vmatmul.mubr.f32.gmra.mrb[0].mxu0 %v1021
  %v2340 = vpop.f32.mrb[0].mxu0
  %v2341 = vadd.f32 %v294, %v2340
  %v2342 = vpop.f32.mrb[0].mxu0
  %2343 = vmatprep.mubr.f32.mxu0 0.0
  %2344 = vmatmul.mubr.f32.gmra.mrb[0].mxu0 %v1024
  %v2345 = vpop.f32.mrb[0].mxu0
  %v2346 = vadd.f32 %v294, %v2345
  %v2347 = vpop.f32.mrb[0].mxu0
  %2348 = vmatprep.mubr.f32.mxu0 0.0
  %2349 = vmatmul.mubr.f32.gmra.mrb[0].mxu0 %v1027
  %v2350 = vpop.f32.mrb[0].mxu0
  %v2351 = vadd.f32 %v294, %v2350
  %v2352 = vpop.f32.mrb[0].mxu0
  %2353 = vmatprep.mubr.f32.mxu0 0.0
  %2354 = vmatmul.mubr.f32.gmra.mrb[0].mxu0 %v1030
  %v2355 = vpop.f32.mrb[0].mxu0
  %v2356 = vadd.f32 %v294, %v2355
  %v2357 = vpop.f32.mrb[0].mxu0
  %2358 = vmatprep.mubr.f32.mxu0 0.0
  %2359 = vmatmul.mubr.f32.gmra.mrb[0].mxu0 %v1033
  %v2360 = vpop.f32.mrb[0].mxu0
  %v2361 = vadd.f32 %v294, %v2360
  %v2362 = vpop.f32.mrb[0].mxu0
  %2363 = vmatprep.mubr.f32.mxu0 0.0
  %2364 = vmatmul.mubr.f32.gmra.mrb[0].mxu0 %v1036
  %v2365 = vpop.f32.mrb[0].mxu0
  %v2366 = vadd.f32 %v294, %v2365
  %v2367 = vpop.f32.mrb[0].mxu0
  %2368 = vmatprep.mubr.f32.mxu0 0.0
  %2369 = vmatmul.mubr.f32.gmra.mrb[0].mxu0 %v1039
  %v2370 = vpop.f32.mrb[0].mxu0
  %v2371 = vadd.f32 %v294, %v2370
  %v2372 = vpop.f32.mrb[0].mxu0
  %2373 = vmatprep.mubr.f32.mxu0 0.0
  %2374 = vmatmul.mubr.f32.gmra.mrb[0].mxu0 %v1042
  %v2375 = vpop.f32.mrb[0].mxu0
  %v2376 = vadd.f32 %v294, %v2375
  %v2377 = vpop.f32.mrb[0].mxu0
  %2378 = vmatprep.mubr.f32.mxu0 0.0
  %2379 = vmatmul.mubr.f32.gmra.mrb[0].mxu0 %v1045
  %v2380 = vpop.f32.mrb[0].mxu0
  %v2381 = vadd.f32 %v294, %v2380
  %v2382 = vpop.f32.mrb[0].mxu0
  %2383 = vmatprep.mubr.f32.mxu0 0.0
  %2384 = vmatmul.mubr.f32.gmra.mrb[0].mxu0 %v1048
  %v2385 = vpop.f32.mrb[0].mxu0
  %v2386 = vadd.f32 %v294, %v2385
  %v2387 = vpop.f32.mrb[0].mxu0
  %2388 = vmatprep.mubr.f32.mxu0 0.0
  %2389 = vmatmul.mubr.f32.gmra.mrb[0].mxu0 %v1051
  %v2390 = vpop.f32.mrb[0].mxu0
  %v2391 = vadd.f32 %v294, %v2390
  %v2392 = vpop.f32.mrb[0].mxu0
  %2393 = vmatprep.mubr.f32.mxu0 0.0
  %2394 = vmatmul.mubr.f32.gmra.mrb[0].mxu0 %v1054
  %v2395 = vpop.f32.mrb[0].mxu0
  %v2396 = vadd.f32 %v294, %v2395
  %v2397 = vpop.f32.mrb[0].mxu0
  %2398 = vmatprep.mubr.f32.mxu0 0.0
  %2399 = vmatmul.mubr.f32.gmra.mrb[0].mxu0 %v1057
  %v2400 = vpop.f32.mrb[0].mxu0
  %v2401 = vadd.f32 %v294, %v2400
  %v2402 = vpop.f32.mrb[0].mxu0
  %2403 = vmatprep.mubr.f32.mxu0 0.0
  %2404 = vmatmul.mubr.f32.gmra.mrb[0].mxu0 %v1060
  %v2405 = vpop.f32.mrb[0].mxu0
  %v2406 = vadd.f32 %v294, %v2405
  %v2407 = vpop.f32.mrb[0].mxu0
  %2408 = vmatprep.mubr.f32.mxu0 0.0
  %2409 = vmatmul.mubr.f32.gmra.mrb[0].mxu0 %v1063
  %v2410 = vpop.f32.mrb[0].mxu0
  %v2411 = vadd.f32 %v294, %v2410
  %v2412 = vpop.f32.mrb[0].mxu0
  %2413 = vdwg.mxu0
  %vm2414 = vcmp.ge.f32.partialorder %v1136, 0.0
  %vm2415 = vcmp.ge.f32.partialorder %v1141, 0.0
  %vm2416 = vcmp.ge.f32.partialorder %v1146, 0.0
  %vm2417 = vcmp.ge.f32.partialorder %v1151, 0.0
  %vm2418 = vcmp.ge.f32.partialorder %v1156, 0.0
  %vm2419 = vcmp.ge.f32.partialorder %v1161, 0.0
  %vm2420 = vcmp.ge.f32.partialorder %v1166, 0.0
  %vm2421 = vcmp.ge.f32.partialorder %v1171, 0.0
  %vm2422 = vcmp.ge.f32.partialorder %v1176, 0.0
  %vm2423 = vcmp.ge.f32.partialorder %v1181, 0.0
  %vm2424 = vcmp.ge.f32.partialorder %v1186, 0.0
  %vm2425 = vcmp.ge.f32.partialorder %v1191, 0.0
  %vm2426 = vcmp.ge.f32.partialorder %v1196, 0.0
  %vm2427 = vcmp.ge.f32.partialorder %v1201, 0.0
  %vm2428 = vcmp.ge.f32.partialorder %v1206, 0.0
  %vm2429 = vcmp.ge.f32.partialorder %v1211, 0.0
  %vm2430 = vcmp.ge.f32.partialorder %v1216, 0.0
  %vm2431 = vcmp.ge.f32.partialorder %v1221, 0.0
  %vm2432 = vcmp.ge.f32.partialorder %v1226, 0.0
  %vm2433 = vcmp.ge.f32.partialorder %v1231, 0.0
  %vm2434 = vcmp.ge.f32.partialorder %v1236, 0.0
  %vm2435 = vcmp.ge.f32.partialorder %v1241, 0.0
  %vm2436 = vcmp.ge.f32.partialorder %v1246, 0.0
  %vm2437 = vcmp.ge.f32.partialorder %v1251, 0.0
  %vm2438 = vcmp.ge.f32.partialorder %v1256, 0.0
  %vm2439 = vcmp.ge.f32.partialorder %v1261, 0.0
  %vm2440 = vcmp.ge.f32.partialorder %v1266, 0.0
  %vm2441 = vcmp.ge.f32.partialorder %v1271, 0.0
  %vm2442 = vcmp.ge.f32.partialorder %v1276, 0.0
  %vm2443 = vcmp.ge.f32.partialorder %v1281, 0.0
  %vm2444 = vcmp.ge.f32.partialorder %v1286, 0.0
  %vm2445 = vcmp.ge.f32.partialorder %v1291, 0.0
  %vm2446 = vcmp.ge.f32.partialorder %v1296, 0.0
  %vm2447 = vcmp.ge.f32.partialorder %v1301, 0.0
  %vm2448 = vcmp.ge.f32.partialorder %v1306, 0.0
  %vm2449 = vcmp.ge.f32.partialorder %v1311, 0.0
  %vm2450 = vcmp.ge.f32.partialorder %v1316, 0.0
  %vm2451 = vcmp.ge.f32.partialorder %v1321, 0.0
  %vm2452 = vcmp.ge.f32.partialorder %v1326, 0.0
  %vm2453 = vcmp.ge.f32.partialorder %v1331, 0.0
  %vm2454 = vcmp.ge.f32.partialorder %v1336, 0.0
  %vm2455 = vcmp.ge.f32.partialorder %v1341, 0.0
  %vm2456 = vcmp.ge.f32.partialorder %v1346, 0.0
  %vm2457 = vcmp.ge.f32.partialorder %v1351, 0.0
  %vm2458 = vcmp.ge.f32.partialorder %v1356, 0.0
  %vm2459 = vcmp.ge.f32.partialorder %v1361, 0.0
  %vm2460 = vcmp.ge.f32.partialorder %v1366, 0.0
  %vm2461 = vcmp.ge.f32.partialorder %v1371, 0.0
  %vm2462 = vcmp.ge.f32.partialorder %v1376, 0.0
  %vm2463 = vcmp.ge.f32.partialorder %v1381, 0.0
  %vm2464 = vcmp.ge.f32.partialorder %v1386, 0.0
  %vm2465 = vcmp.ge.f32.partialorder %v1391, 0.0
  %vm2466 = vcmp.ge.f32.partialorder %v1396, 0.0
  %vm2467 = vcmp.ge.f32.partialorder %v1401, 0.0
  %vm2468 = vcmp.ge.f32.partialorder %v1406, 0.0
  %vm2469 = vcmp.ge.f32.partialorder %v1411, 0.0
  %vm2470 = vcmp.ge.f32.partialorder %v1416, 0.0
  %vm2471 = vcmp.ge.f32.partialorder %v1421, 0.0
  %vm2472 = vcmp.ge.f32.partialorder %v1426, 0.0
  %vm2473 = vcmp.ge.f32.partialorder %v1431, 0.0
  %vm2474 = vcmp.ge.f32.partialorder %v1436, 0.0
  %vm2475 = vcmp.ge.f32.partialorder %v1441, 0.0
  %vm2476 = vcmp.ge.f32.partialorder %v1446, 0.0
  %vm2477 = vcmp.ge.f32.partialorder %v1451, 0.0
  %vm2478 = vcmp.ge.f32.partialorder %v1456, 0.0
  %vm2479 = vcmp.ge.f32.partialorder %v1461, 0.0
  %vm2480 = vcmp.ge.f32.partialorder %v1466, 0.0
  %vm2481 = vcmp.ge.f32.partialorder %v1471, 0.0
  %vm2482 = vcmp.ge.f32.partialorder %v1476, 0.0
  %vm2483 = vcmp.ge.f32.partialorder %v1481, 0.0
  %vm2484 = vcmp.ge.f32.partialorder %v1486, 0.0
  %vm2485 = vcmp.ge.f32.partialorder %v1491, 0.0
  %vm2486 = vcmp.ge.f32.partialorder %v1496, 0.0
  %vm2487 = vcmp.ge.f32.partialorder %v1501, 0.0
  %vm2488 = vcmp.ge.f32.partialorder %v1506, 0.0
  %vm2489 = vcmp.ge.f32.partialorder %v1511, 0.0
  %vm2490 = vcmp.ge.f32.partialorder %v1516, 0.0
  %vm2491 = vcmp.ge.f32.partialorder %v1521, 0.0
  %vm2492 = vcmp.ge.f32.partialorder %v1526, 0.0
  %vm2493 = vcmp.ge.f32.partialorder %v1531, 0.0
  %vm2494 = vcmp.ge.f32.partialorder %v1536, 0.0
  %vm2495 = vcmp.ge.f32.partialorder %v1541, 0.0
  %vm2496 = vcmp.ge.f32.partialorder %v1546, 0.0
  %vm2497 = vcmp.ge.f32.partialorder %v1551, 0.0
  %vm2498 = vcmp.ge.f32.partialorder %v1556, 0.0
  %vm2499 = vcmp.ge.f32.partialorder %v1561, 0.0
  %vm2500 = vcmp.ge.f32.partialorder %v1566, 0.0
  %vm2501 = vcmp.ge.f32.partialorder %v1571, 0.0
  %vm2502 = vcmp.ge.f32.partialorder %v1576, 0.0
  %vm2503 = vcmp.ge.f32.partialorder %v1581, 0.0
  %vm2504 = vcmp.ge.f32.partialorder %v1586, 0.0
  %vm2505 = vcmp.ge.f32.partialorder %v1591, 0.0
  %vm2506 = vcmp.ge.f32.partialorder %v1596, 0.0
  %vm2507 = vcmp.ge.f32.partialorder %v1601, 0.0
  %vm2508 = vcmp.ge.f32.partialorder %v1606, 0.0
  %vm2509 = vcmp.ge.f32.partialorder %v1611, 0.0
  %vm2510 = vcmp.ge.f32.partialorder %v1616, 0.0
  %vm2511 = vcmp.ge.f32.partialorder %v1621, 0.0
  %vm2512 = vcmp.ge.f32.partialorder %v1626, 0.0
  %vm2513 = vcmp.ge.f32.partialorder %v1631, 0.0
  %vm2514 = vcmp.ge.f32.partialorder %v1636, 0.0
  %vm2515 = vcmp.ge.f32.partialorder %v1641, 0.0
  %vm2516 = vcmp.ge.f32.partialorder %v1646, 0.0
  %vm2517 = vcmp.ge.f32.partialorder %v1651, 0.0
  %vm2518 = vcmp.ge.f32.partialorder %v1656, 0.0
  %vm2519 = vcmp.ge.f32.partialorder %v1661, 0.0
  %vm2520 = vcmp.ge.f32.partialorder %v1666, 0.0
  %vm2521 = vcmp.ge.f32.partialorder %v1671, 0.0
  %vm2522 = vcmp.ge.f32.partialorder %v1676, 0.0
  %vm2523 = vcmp.ge.f32.partialorder %v1681, 0.0
  %vm2524 = vcmp.ge.f32.partialorder %v1686, 0.0
  %vm2525 = vcmp.ge.f32.partialorder %v1691, 0.0
  %vm2526 = vcmp.ge.f32.partialorder %v1696, 0.0
  %vm2527 = vcmp.ge.f32.partialorder %v1701, 0.0
  %vm2528 = vcmp.ge.f32.partialorder %v1706, 0.0
  %vm2529 = vcmp.ge.f32.partialorder %v1711, 0.0
  %vm2530 = vcmp.ge.f32.partialorder %v1716, 0.0
  %vm2531 = vcmp.ge.f32.partialorder %v1721, 0.0
  %vm2532 = vcmp.ge.f32.partialorder %v1726, 0.0
  %vm2533 = vcmp.ge.f32.partialorder %v1731, 0.0
  %vm2534 = vcmp.ge.f32.partialorder %v1736, 0.0
  %vm2535 = vcmp.ge.f32.partialorder %v1741, 0.0
  %vm2536 = vcmp.ge.f32.partialorder %v1746, 0.0
  %vm2537 = vcmp.ge.f32.partialorder %v1751, 0.0
  %vm2538 = vcmp.ge.f32.partialorder %v1756, 0.0
  %vm2539 = vcmp.ge.f32.partialorder %v1761, 0.0
  %vm2540 = vcmp.ge.f32.partialorder %v1766, 0.0
  %vm2541 = vcmp.ge.f32.partialorder %v1771, 0.0
  %vm2542 = vcmp.ge.f32.partialorder %v1776, 0.0
  %vm2543 = vcmp.ge.f32.partialorder %v1781, 0.0
  %vm2544 = vcmp.ge.f32.partialorder %v1786, 0.0
  %vm2545 = vcmp.ge.f32.partialorder %v1791, 0.0
  %vm2546 = vcmp.ge.f32.partialorder %v1796, 0.0
  %vm2547 = vcmp.ge.f32.partialorder %v1801, 0.0
  %vm2548 = vcmp.ge.f32.partialorder %v1806, 0.0
  %vm2549 = vcmp.ge.f32.partialorder %v1811, 0.0
  %vm2550 = vcmp.ge.f32.partialorder %v1816, 0.0
  %vm2551 = vcmp.ge.f32.partialorder %v1821, 0.0
  %vm2552 = vcmp.ge.f32.partialorder %v1826, 0.0
  %vm2553 = vcmp.ge.f32.partialorder %v1831, 0.0
  %vm2554 = vcmp.ge.f32.partialorder %v1836, 0.0
  %vm2555 = vcmp.ge.f32.partialorder %v1841, 0.0
  %vm2556 = vcmp.ge.f32.partialorder %v1846, 0.0
  %vm2557 = vcmp.ge.f32.partialorder %v1851, 0.0
  %vm2558 = vcmp.ge.f32.partialorder %v1856, 0.0
  %vm2559 = vcmp.ge.f32.partialorder %v1861, 0.0
  %vm2560 = vcmp.ge.f32.partialorder %v1866, 0.0
  %vm2561 = vcmp.ge.f32.partialorder %v1871, 0.0
  %vm2562 = vcmp.ge.f32.partialorder %v1876, 0.0
  %vm2563 = vcmp.ge.f32.partialorder %v1881, 0.0
  %vm2564 = vcmp.ge.f32.partialorder %v1886, 0.0
  %vm2565 = vcmp.ge.f32.partialorder %v1891, 0.0
  %vm2566 = vcmp.ge.f32.partialorder %v1896, 0.0
  %vm2567 = vcmp.ge.f32.partialorder %v1901, 0.0
  %vm2568 = vcmp.ge.f32.partialorder %v1906, 0.0
  %vm2569 = vcmp.ge.f32.partialorder %v1911, 0.0
  %vm2570 = vcmp.ge.f32.partialorder %v1916, 0.0
  %vm2571 = vcmp.ge.f32.partialorder %v1921, 0.0
  %vm2572 = vcmp.ge.f32.partialorder %v1926, 0.0
  %vm2573 = vcmp.ge.f32.partialorder %v1931, 0.0
  %vm2574 = vcmp.ge.f32.partialorder %v1936, 0.0
  %vm2575 = vcmp.ge.f32.partialorder %v1941, 0.0
  %vm2576 = vcmp.ge.f32.partialorder %v1946, 0.0
  %vm2577 = vcmp.ge.f32.partialorder %v1951, 0.0
  %vm2578 = vcmp.ge.f32.partialorder %v1956, 0.0
  %vm2579 = vcmp.ge.f32.partialorder %v1961, 0.0
  %vm2580 = vcmp.ge.f32.partialorder %v1966, 0.0
  %vm2581 = vcmp.ge.f32.partialorder %v1971, 0.0
  %vm2582 = vcmp.ge.f32.partialorder %v1976, 0.0
  %vm2583 = vcmp.ge.f32.partialorder %v1981, 0.0
  %vm2584 = vcmp.ge.f32.partialorder %v1986, 0.0
  %vm2585 = vcmp.ge.f32.partialorder %v1991, 0.0
  %vm2586 = vcmp.ge.f32.partialorder %v1996, 0.0
  %vm2587 = vcmp.ge.f32.partialorder %v2001, 0.0
  %vm2588 = vcmp.ge.f32.partialorder %v2006, 0.0
  %vm2589 = vcmp.ge.f32.partialorder %v2011, 0.0
  %vm2590 = vcmp.ge.f32.partialorder %v2016, 0.0
  %vm2591 = vcmp.ge.f32.partialorder %v2021, 0.0
  %vm2592 = vcmp.ge.f32.partialorder %v2026, 0.0
  %vm2593 = vcmp.ge.f32.partialorder %v2031, 0.0
  %vm2594 = vcmp.ge.f32.partialorder %v2036, 0.0
  %vm2595 = vcmp.ge.f32.partialorder %v2041, 0.0
  %vm2596 = vcmp.ge.f32.partialorder %v2046, 0.0
  %vm2597 = vcmp.ge.f32.partialorder %v2051, 0.0
  %vm2598 = vcmp.ge.f32.partialorder %v2056, 0.0
  %vm2599 = vcmp.ge.f32.partialorder %v2061, 0.0
  %vm2600 = vcmp.ge.f32.partialorder %v2066, 0.0
  %vm2601 = vcmp.ge.f32.partialorder %v2071, 0.0
  %vm2602 = vcmp.ge.f32.partialorder %v2076, 0.0
  %vm2603 = vcmp.ge.f32.partialorder %v2081, 0.0
  %vm2604 = vcmp.ge.f32.partialorder %v2086, 0.0
  %vm2605 = vcmp.ge.f32.partialorder %v2091, 0.0
  %vm2606 = vcmp.ge.f32.partialorder %v2096, 0.0
  %vm2607 = vcmp.ge.f32.partialorder %v2101, 0.0
  %vm2608 = vcmp.ge.f32.partialorder %v2106, 0.0
  %vm2609 = vcmp.ge.f32.partialorder %v2111, 0.0
  %vm2610 = vcmp.ge.f32.partialorder %v2116, 0.0
  %vm2611 = vcmp.ge.f32.partialorder %v2121, 0.0
  %vm2612 = vcmp.ge.f32.partialorder %v2126, 0.0
  %vm2613 = vcmp.ge.f32.partialorder %v2131, 0.0
  %vm2614 = vcmp.ge.f32.partialorder %v2136, 0.0
  %vm2615 = vcmp.ge.f32.partialorder %v2141, 0.0
  %vm2616 = vcmp.ge.f32.partialorder %v2146, 0.0
  %vm2617 = vcmp.ge.f32.partialorder %v2151, 0.0
  %vm2618 = vcmp.ge.f32.partialorder %v2156, 0.0
  %vm2619 = vcmp.ge.f32.partialorder %v2161, 0.0
  %vm2620 = vcmp.ge.f32.partialorder %v2166, 0.0
  %vm2621 = vcmp.ge.f32.partialorder %v2171, 0.0
  %vm2622 = vcmp.ge.f32.partialorder %v2176, 0.0
  %vm2623 = vcmp.ge.f32.partialorder %v2181, 0.0
  %vm2624 = vcmp.ge.f32.partialorder %v2186, 0.0
  %vm2625 = vcmp.ge.f32.partialorder %v2191, 0.0
  %vm2626 = vcmp.ge.f32.partialorder %v2196, 0.0
  %vm2627 = vcmp.ge.f32.partialorder %v2201, 0.0
  %vm2628 = vcmp.ge.f32.partialorder %v2206, 0.0
  %vm2629 = vcmp.ge.f32.partialorder %v2211, 0.0
  %vm2630 = vcmp.ge.f32.partialorder %v2216, 0.0
  %vm2631 = vcmp.ge.f32.partialorder %v2221, 0.0
  %vm2632 = vcmp.ge.f32.partialorder %v2226, 0.0
  %vm2633 = vcmp.ge.f32.partialorder %v2231, 0.0
  %vm2634 = vcmp.ge.f32.partialorder %v2236, 0.0
  %vm2635 = vcmp.ge.f32.partialorder %v2241, 0.0
  %vm2636 = vcmp.ge.f32.partialorder %v2246, 0.0
  %vm2637 = vcmp.ge.f32.partialorder %v2251, 0.0
  %vm2638 = vcmp.ge.f32.partialorder %v2256, 0.0
  %vm2639 = vcmp.ge.f32.partialorder %v2261, 0.0
  %vm2640 = vcmp.ge.f32.partialorder %v2266, 0.0
  %vm2641 = vcmp.ge.f32.partialorder %v2271, 0.0
  %vm2642 = vcmp.ge.f32.partialorder %v2276, 0.0
  %vm2643 = vcmp.ge.f32.partialorder %v2281, 0.0
  %vm2644 = vcmp.ge.f32.partialorder %v2286, 0.0
  %vm2645 = vcmp.ge.f32.partialorder %v2291, 0.0
  %vm2646 = vcmp.ge.f32.partialorder %v2296, 0.0
  %vm2647 = vcmp.ge.f32.partialorder %v2301, 0.0
  %vm2648 = vcmp.ge.f32.partialorder %v2306, 0.0
  %vm2649 = vcmp.ge.f32.partialorder %v2311, 0.0
  %vm2650 = vcmp.ge.f32.partialorder %v2316, 0.0
  %vm2651 = vcmp.ge.f32.partialorder %v2321, 0.0
  %vm2652 = vcmp.ge.f32.partialorder %v2326, 0.0
  %vm2653 = vcmp.ge.f32.partialorder %v2331, 0.0
  %vm2654 = vcmp.ge.f32.partialorder %v2336, 0.0
  %vm2655 = vcmp.ge.f32.partialorder %v2341, 0.0
  %vm2656 = vcmp.ge.f32.partialorder %v2346, 0.0
  %vm2657 = vcmp.ge.f32.partialorder %v2351, 0.0
  %vm2658 = vcmp.ge.f32.partialorder %v2356, 0.0
  %vm2659 = vcmp.ge.f32.partialorder %v2361, 0.0
  %vm2660 = vcmp.ge.f32.partialorder %v2366, 0.0
  %vm2661 = vcmp.ge.f32.partialorder %v2371, 0.0
  %vm2662 = vcmp.ge.f32.partialorder %v2376, 0.0
  %vm2663 = vcmp.ge.f32.partialorder %v2381, 0.0
  %vm2664 = vcmp.ge.f32.partialorder %v2386, 0.0
  %vm2665 = vcmp.ge.f32.partialorder %v2391, 0.0
  %vm2666 = vcmp.ge.f32.partialorder %v2396, 0.0
  %vm2667 = vcmp.ge.f32.partialorder %v2401, 0.0
  %vm2668 = vcmp.ge.f32.partialorder %v2406, 0.0
  %vm2669 = vcmp.ge.f32.partialorder %v2411, 0.0
  %v2670 = vmul.f32 %v1136, 0.01
  %v2671 = vmul.f32 %v1141, 0.01
  %v2672 = vmul.f32 %v1146, 0.01
  %v2673 = vmul.f32 %v1151, 0.01
  %v2674 = vmul.f32 %v1156, 0.01
  %v2675 = vmul.f32 %v1161, 0.01
  %v2676 = vmul.f32 %v1166, 0.01
  %v2677 = vmul.f32 %v1171, 0.01
  %v2678 = vmul.f32 %v1176, 0.01
  %v2679 = vmul.f32 %v1181, 0.01
  %v2680 = vmul.f32 %v1186, 0.01
  %v2681 = vmul.f32 %v1191, 0.01
  %v2682 = vmul.f32 %v1196, 0.01
  %v2683 = vmul.f32 %v1201, 0.01
  %v2684 = vmul.f32 %v1206, 0.01
  %v2685 = vmul.f32 %v1211, 0.01
  %v2686 = vmul.f32 %v1216, 0.01
  %v2687 = vmul.f32 %v1221, 0.01
  %v2688 = vmul.f32 %v1226, 0.01
  %v2689 = vmul.f32 %v1231, 0.01
  %v2690 = vmul.f32 %v1236, 0.01
  %v2691 = vmul.f32 %v1241, 0.01
  %v2692 = vmul.f32 %v1246, 0.01
  %v2693 = vmul.f32 %v1251, 0.01
  %v2694 = vmul.f32 %v1256, 0.01
  %v2695 = vmul.f32 %v1261, 0.01
  %v2696 = vmul.f32 %v1266, 0.01
  %v2697 = vmul.f32 %v1271, 0.01
  %v2698 = vmul.f32 %v1276, 0.01
  %v2699 = vmul.f32 %v1281, 0.01
  %v2700 = vmul.f32 %v1286, 0.01
  %v2701 = vmul.f32 %v1291, 0.01
  %v2702 = vmul.f32 %v1296, 0.01
  %v2703 = vmul.f32 %v1301, 0.01
  %v2704 = vmul.f32 %v1306, 0.01
  %v2705 = vmul.f32 %v1311, 0.01
  %v2706 = vmul.f32 %v1316, 0.01
  %v2707 = vmul.f32 %v1321, 0.01
  %v2708 = vmul.f32 %v1326, 0.01
  %v2709 = vmul.f32 %v1331, 0.01
  %v2710 = vmul.f32 %v1336, 0.01
  %v2711 = vmul.f32 %v1341, 0.01
  %v2712 = vmul.f32 %v1346, 0.01
  %v2713 = vmul.f32 %v1351, 0.01
  %v2714 = vmul.f32 %v1356, 0.01
  %v2715 = vmul.f32 %v1361, 0.01
  %v2716 = vmul.f32 %v1366, 0.01
  %v2717 = vmul.f32 %v1371, 0.01
  %v2718 = vmul.f32 %v1376, 0.01
  %v2719 = vmul.f32 %v1381, 0.01
  %v2720 = vmul.f32 %v1386, 0.01
  %v2721 = vmul.f32 %v1391, 0.01
  %v2722 = vmul.f32 %v1396, 0.01
  %v2723 = vmul.f32 %v1401, 0.01
  %v2724 = vmul.f32 %v1406, 0.01
  %v2725 = vmul.f32 %v1411, 0.01
  %v2726 = vmul.f32 %v1416, 0.01
  %v2727 = vmul.f32 %v1421, 0.01
  %v2728 = vmul.f32 %v1426, 0.01
  %v2729 = vmul.f32 %v1431, 0.01
  %v2730 = vmul.f32 %v1436, 0.01
  %v2731 = vmul.f32 %v1441, 0.01
  %v2732 = vmul.f32 %v1446, 0.01
  %v2733 = vmul.f32 %v1451, 0.01
  %v2734 = vmul.f32 %v1456, 0.01
  %v2735 = vmul.f32 %v1461, 0.01
  %v2736 = vmul.f32 %v1466, 0.01
  %v2737 = vmul.f32 %v1471, 0.01
  %v2738 = vmul.f32 %v1476, 0.01
  %v2739 = vmul.f32 %v1481, 0.01
  %v2740 = vmul.f32 %v1486, 0.01
  %v2741 = vmul.f32 %v1491, 0.01
  %v2742 = vmul.f32 %v1496, 0.01
  %v2743 = vmul.f32 %v1501, 0.01
  %v2744 = vmul.f32 %v1506, 0.01
  %v2745 = vmul.f32 %v1511, 0.01
  %v2746 = vmul.f32 %v1516, 0.01
  %v2747 = vmul.f32 %v1521, 0.01
  %v2748 = vmul.f32 %v1526, 0.01
  %v2749 = vmul.f32 %v1531, 0.01
  %v2750 = vmul.f32 %v1536, 0.01
  %v2751 = vmul.f32 %v1541, 0.01
  %v2752 = vmul.f32 %v1546, 0.01
  %v2753 = vmul.f32 %v1551, 0.01
  %v2754 = vmul.f32 %v1556, 0.01
  %v2755 = vmul.f32 %v1561, 0.01
  %v2756 = vmul.f32 %v1566, 0.01
  %v2757 = vmul.f32 %v1571, 0.01
  %v2758 = vmul.f32 %v1576, 0.01
  %v2759 = vmul.f32 %v1581, 0.01
  %v2760 = vmul.f32 %v1586, 0.01
  %v2761 = vmul.f32 %v1591, 0.01
  %v2762 = vmul.f32 %v1596, 0.01
  %v2763 = vmul.f32 %v1601, 0.01
  %v2764 = vmul.f32 %v1606, 0.01
  %v2765 = vmul.f32 %v1611, 0.01
  %v2766 = vmul.f32 %v1616, 0.01
  %v2767 = vmul.f32 %v1621, 0.01
  %v2768 = vmul.f32 %v1626, 0.01
  %v2769 = vmul.f32 %v1631, 0.01
  %v2770 = vmul.f32 %v1636, 0.01
  %v2771 = vmul.f32 %v1641, 0.01
  %v2772 = vmul.f32 %v1646, 0.01
  %v2773 = vmul.f32 %v1651, 0.01
  %v2774 = vmul.f32 %v1656, 0.01
  %v2775 = vmul.f32 %v1661, 0.01
  %v2776 = vmul.f32 %v1666, 0.01
  %v2777 = vmul.f32 %v1671, 0.01
  %v2778 = vmul.f32 %v1676, 0.01
  %v2779 = vmul.f32 %v1681, 0.01
  %v2780 = vmul.f32 %v1686, 0.01
  %v2781 = vmul.f32 %v1691, 0.01
  %v2782 = vmul.f32 %v1696, 0.01
  %v2783 = vmul.f32 %v1701, 0.01
  %v2784 = vmul.f32 %v1706, 0.01
  %v2785 = vmul.f32 %v1711, 0.01
  %v2786 = vmul.f32 %v1716, 0.01
  %v2787 = vmul.f32 %v1721, 0.01
  %v2788 = vmul.f32 %v1726, 0.01
  %v2789 = vmul.f32 %v1731, 0.01
  %v2790 = vmul.f32 %v1736, 0.01
  %v2791 = vmul.f32 %v1741, 0.01
  %v2792 = vmul.f32 %v1746, 0.01
  %v2793 = vmul.f32 %v1751, 0.01
  %v2794 = vmul.f32 %v1756, 0.01
  %v2795 = vmul.f32 %v1761, 0.01
  %v2796 = vmul.f32 %v1766, 0.01
  %v2797 = vmul.f32 %v1771, 0.01
  %v2798 = vmul.f32 %v1776, 0.01
  %v2799 = vmul.f32 %v1781, 0.01
  %v2800 = vmul.f32 %v1786, 0.01
  %v2801 = vmul.f32 %v1791, 0.01
  %v2802 = vmul.f32 %v1796, 0.01
  %v2803 = vmul.f32 %v1801, 0.01
  %v2804 = vmul.f32 %v1806, 0.01
  %v2805 = vmul.f32 %v1811, 0.01
  %v2806 = vmul.f32 %v1816, 0.01
  %v2807 = vmul.f32 %v1821, 0.01
  %v2808 = vmul.f32 %v1826, 0.01
  %v2809 = vmul.f32 %v1831, 0.01
  %v2810 = vmul.f32 %v1836, 0.01
  %v2811 = vmul.f32 %v1841, 0.01
  %v2812 = vmul.f32 %v1846, 0.01
  %v2813 = vmul.f32 %v1851, 0.01
  %v2814 = vmul.f32 %v1856, 0.01
  %v2815 = vmul.f32 %v1861, 0.01
  %v2816 = vmul.f32 %v1866, 0.01
  %v2817 = vmul.f32 %v1871, 0.01
  %v2818 = vmul.f32 %v1876, 0.01
  %v2819 = vmul.f32 %v1881, 0.01
  %v2820 = vmul.f32 %v1886, 0.01
  %v2821 = vmul.f32 %v1891, 0.01
  %v2822 = vmul.f32 %v1896, 0.01
  %v2823 = vmul.f32 %v1901, 0.01
  %v2824 = vmul.f32 %v1906, 0.01
  %v2825 = vmul.f32 %v1911, 0.01
  %v2826 = vmul.f32 %v1916, 0.01
  %v2827 = vmul.f32 %v1921, 0.01
  %v2828 = vmul.f32 %v1926, 0.01
  %v2829 = vmul.f32 %v1931, 0.01
  %v2830 = vmul.f32 %v1936, 0.01
  %v2831 = vmul.f32 %v1941, 0.01
  %v2832 = vmul.f32 %v1946, 0.01
  %v2833 = vmul.f32 %v1951, 0.01
  %v2834 = vmul.f32 %v1956, 0.01
  %v2835 = vmul.f32 %v1961, 0.01
  %v2836 = vmul.f32 %v1966, 0.01
  %v2837 = vmul.f32 %v1971, 0.01
  %v2838 = vmul.f32 %v1976, 0.01
  %v2839 = vmul.f32 %v1981, 0.01
  %v2840 = vmul.f32 %v1986, 0.01
  %v2841 = vmul.f32 %v1991, 0.01
  %v2842 = vmul.f32 %v1996, 0.01
  %v2843 = vmul.f32 %v2001, 0.01
  %v2844 = vmul.f32 %v2006, 0.01
  %v2845 = vmul.f32 %v2011, 0.01
  %v2846 = vmul.f32 %v2016, 0.01
  %v2847 = vmul.f32 %v2021, 0.01
  %v2848 = vmul.f32 %v2026, 0.01
  %v2849 = vmul.f32 %v2031, 0.01
  %v2850 = vmul.f32 %v2036, 0.01
  %v2851 = vmul.f32 %v2041, 0.01
  %v2852 = vmul.f32 %v2046, 0.01
  %v2853 = vmul.f32 %v2051, 0.01
  %v2854 = vmul.f32 %v2056, 0.01
  %v2855 = vmul.f32 %v2061, 0.01
  %v2856 = vmul.f32 %v2066, 0.01
  %v2857 = vmul.f32 %v2071, 0.01
  %v2858 = vmul.f32 %v2076, 0.01
  %v2859 = vmul.f32 %v2081, 0.01
  %v2860 = vmul.f32 %v2086, 0.01
  %v2861 = vmul.f32 %v2091, 0.01
  %v2862 = vmul.f32 %v2096, 0.01
  %v2863 = vmul.f32 %v2101, 0.01
  %v2864 = vmul.f32 %v2106, 0.01
  %v2865 = vmul.f32 %v2111, 0.01
  %v2866 = vmul.f32 %v2116, 0.01
  %v2867 = vmul.f32 %v2121, 0.01
  %v2868 = vmul.f32 %v2126, 0.01
  %v2869 = vmul.f32 %v2131, 0.01
  %v2870 = vmul.f32 %v2136, 0.01
  %v2871 = vmul.f32 %v2141, 0.01
  %v2872 = vmul.f32 %v2146, 0.01
  %v2873 = vmul.f32 %v2151, 0.01
  %v2874 = vmul.f32 %v2156, 0.01
  %v2875 = vmul.f32 %v2161, 0.01
  %v2876 = vmul.f32 %v2166, 0.01
  %v2877 = vmul.f32 %v2171, 0.01
  %v2878 = vmul.f32 %v2176, 0.01
  %v2879 = vmul.f32 %v2181, 0.01
  %v2880 = vmul.f32 %v2186, 0.01
  %v2881 = vmul.f32 %v2191, 0.01
  %v2882 = vmul.f32 %v2196, 0.01
  %v2883 = vmul.f32 %v2201, 0.01
  %v2884 = vmul.f32 %v2206, 0.01
  %v2885 = vmul.f32 %v2211, 0.01
  %v2886 = vmul.f32 %v2216, 0.01
  %v2887 = vmul.f32 %v2221, 0.01
  %v2888 = vmul.f32 %v2226, 0.01
  %v2889 = vmul.f32 %v2231, 0.01
  %v2890 = vmul.f32 %v2236, 0.01
  %v2891 = vmul.f32 %v2241, 0.01
  %v2892 = vmul.f32 %v2246, 0.01
  %v2893 = vmul.f32 %v2251, 0.01
  %v2894 = vmul.f32 %v2256, 0.01
  %v2895 = vmul.f32 %v2261, 0.01
  %v2896 = vmul.f32 %v2266, 0.01
  %v2897 = vmul.f32 %v2271, 0.01
  %v2898 = vmul.f32 %v2276, 0.01
  %v2899 = vmul.f32 %v2281, 0.01
  %v2900 = vmul.f32 %v2286, 0.01
  %v2901 = vmul.f32 %v2291, 0.01
  %v2902 = vmul.f32 %v2296, 0.01
  %v2903 = vmul.f32 %v2301, 0.01
  %v2904 = vmul.f32 %v2306, 0.01
  %v2905 = vmul.f32 %v2311, 0.01
  %v2906 = vmul.f32 %v2316, 0.01
  %v2907 = vmul.f32 %v2321, 0.01
  %v2908 = vmul.f32 %v2326, 0.01
  %v2909 = vmul.f32 %v2331, 0.01
  %v2910 = vmul.f32 %v2336, 0.01
  %v2911 = vmul.f32 %v2341, 0.01
  %v2912 = vmul.f32 %v2346, 0.01
  %v2913 = vmul.f32 %v2351, 0.01
  %v2914 = vmul.f32 %v2356, 0.01
  %v2915 = vmul.f32 %v2361, 0.01
  %v2916 = vmul.f32 %v2366, 0.01
  %v2917 = vmul.f32 %v2371, 0.01
  %v2918 = vmul.f32 %v2376, 0.01
  %v2919 = vmul.f32 %v2381, 0.01
  %v2920 = vmul.f32 %v2386, 0.01
  %v2921 = vmul.f32 %v2391, 0.01
  %v2922 = vmul.f32 %v2396, 0.01
  %v2923 = vmul.f32 %v2401, 0.01
  %v2924 = vmul.f32 %v2406, 0.01
  %v2925 = vmul.f32 %v2411, 0.01
  %v2926 = vsel %vm2414, %v1136, %v2670
  %v2927 = vsel %vm2415, %v1141, %v2671
  %v2928 = vsel %vm2416, %v1146, %v2672
  %v2929 = vsel %vm2417, %v1151, %v2673
  %v2930 = vsel %vm2418, %v1156, %v2674
  %v2931 = vsel %vm2419, %v1161, %v2675
  %v2932 = vsel %vm2420, %v1166, %v2676
  %v2933 = vsel %vm2421, %v1171, %v2677
  %v2934 = vsel %vm2422, %v1176, %v2678
  %v2935 = vsel %vm2423, %v1181, %v2679
  %v2936 = vsel %vm2424, %v1186, %v2680
  %v2937 = vsel %vm2425, %v1191, %v2681
  %v2938 = vsel %vm2426, %v1196, %v2682
  %v2939 = vsel %vm2427, %v1201, %v2683
  %v2940 = vsel %vm2428, %v1206, %v2684
  %v2941 = vsel %vm2429, %v1211, %v2685
  %v2942 = vsel %vm2430, %v1216, %v2686
  %v2943 = vsel %vm2431, %v1221, %v2687
  %v2944 = vsel %vm2432, %v1226, %v2688
  %v2945 = vsel %vm2433, %v1231, %v2689
  %v2946 = vsel %vm2434, %v1236, %v2690
  %v2947 = vsel %vm2435, %v1241, %v2691
  %v2948 = vsel %vm2436, %v1246, %v2692
  %v2949 = vsel %vm2437, %v1251, %v2693
  %v2950 = vsel %vm2438, %v1256, %v2694
  %v2951 = vsel %vm2439, %v1261, %v2695
  %v2952 = vsel %vm2440, %v1266, %v2696
  %v2953 = vsel %vm2441, %v1271, %v2697
  %v2954 = vsel %vm2442, %v1276, %v2698
  %v2955 = vsel %vm2443, %v1281, %v2699
  %v2956 = vsel %vm2444, %v1286, %v2700
  %v2957 = vsel %vm2445, %v1291, %v2701
  %v2958 = vsel %vm2446, %v1296, %v2702
  %v2959 = vsel %vm2447, %v1301, %v2703
  %v2960 = vsel %vm2448, %v1306, %v2704
  %v2961 = vsel %vm2449, %v1311, %v2705
  %v2962 = vsel %vm2450, %v1316, %v2706
  %v2963 = vsel %vm2451, %v1321, %v2707
  %v2964 = vsel %vm2452, %v1326, %v2708
  %v2965 = vsel %vm2453, %v1331, %v2709
  %v2966 = vsel %vm2454, %v1336, %v2710
  %v2967 = vsel %vm2455, %v1341, %v2711
  %v2968 = vsel %vm2456, %v1346, %v2712
  %v2969 = vsel %vm2457, %v1351, %v2713
  %v2970 = vsel %vm2458, %v1356, %v2714
  %v2971 = vsel %vm2459, %v1361, %v2715
  %v2972 = vsel %vm2460, %v1366, %v2716
  %v2973 = vsel %vm2461, %v1371, %v2717
  %v2974 = vsel %vm2462, %v1376, %v2718
  %v2975 = vsel %vm2463, %v1381, %v2719
  %v2976 = vsel %vm2464, %v1386, %v2720
  %v2977 = vsel %vm2465, %v1391, %v2721
  %v2978 = vsel %vm2466, %v1396, %v2722
  %v2979 = vsel %vm2467, %v1401, %v2723
  %v2980 = vsel %vm2468, %v1406, %v2724
  %v2981 = vsel %vm2469, %v1411, %v2725
  %v2982 = vsel %vm2470, %v1416, %v2726
  %v2983 = vsel %vm2471, %v1421, %v2727
  %v2984 = vsel %vm2472, %v1426, %v2728
  %v2985 = vsel %vm2473, %v1431, %v2729
  %v2986 = vsel %vm2474, %v1436, %v2730
  %v2987 = vsel %vm2475, %v1441, %v2731
  %v2988 = vsel %vm2476, %v1446, %v2732
  %v2989 = vsel %vm2477, %v1451, %v2733
  %v2990 = vsel %vm2478, %v1456, %v2734
  %v2991 = vsel %vm2479, %v1461, %v2735
  %v2992 = vsel %vm2480, %v1466, %v2736
  %v2993 = vsel %vm2481, %v1471, %v2737
  %v2994 = vsel %vm2482, %v1476, %v2738
  %v2995 = vsel %vm2483, %v1481, %v2739
  %v2996 = vsel %vm2484, %v1486, %v2740
  %v2997 = vsel %vm2485, %v1491, %v2741
  %v2998 = vsel %vm2486, %v1496, %v2742
  %v2999 = vsel %vm2487, %v1501, %v2743
  %v3000 = vsel %vm2488, %v1506, %v2744
  %v3001 = vsel %vm2489, %v1511, %v2745
  %v3002 = vsel %vm2490, %v1516, %v2746
  %v3003 = vsel %vm2491, %v1521, %v2747
  %v3004 = vsel %vm2492, %v1526, %v2748
  %v3005 = vsel %vm2493, %v1531, %v2749
  %v3006 = vsel %vm2494, %v1536, %v2750
  %v3007 = vsel %vm2495, %v1541, %v2751
  %v3008 = vsel %vm2496, %v1546, %v2752
  %v3009 = vsel %vm2497, %v1551, %v2753
  %v3010 = vsel %vm2498, %v1556, %v2754
  %v3011 = vsel %vm2499, %v1561, %v2755
  %v3012 = vsel %vm2500, %v1566, %v2756
  %v3013 = vsel %vm2501, %v1571, %v2757
  %v3014 = vsel %vm2502, %v1576, %v2758
  %v3015 = vsel %vm2503, %v1581, %v2759
  %v3016 = vsel %vm2504, %v1586, %v2760
  %v3017 = vsel %vm2505, %v1591, %v2761
  %v3018 = vsel %vm2506, %v1596, %v2762
  %v3019 = vsel %vm2507, %v1601, %v2763
  %v3020 = vsel %vm2508, %v1606, %v2764
  %v3021 = vsel %vm2509, %v1611, %v2765
  %v3022 = vsel %vm2510, %v1616, %v2766
  %v3023 = vsel %vm2511, %v1621, %v2767
  %v3024 = vsel %vm2512, %v1626, %v2768
  %v3025 = vsel %vm2513, %v1631, %v2769
  %v3026 = vsel %vm2514, %v1636, %v2770
  %v3027 = vsel %vm2515, %v1641, %v2771
  %v3028 = vsel %vm2516, %v1646, %v2772
  %v3029 = vsel %vm2517, %v1651, %v2773
  %v3030 = vsel %vm2518, %v1656, %v2774
  %v3031 = vsel %vm2519, %v1661, %v2775
  %v3032 = vsel %vm2520, %v1666, %v2776
  %v3033 = vsel %vm2521, %v1671, %v2777
  %v3034 = vsel %vm2522, %v1676, %v2778
  %v3035 = vsel %vm2523, %v1681, %v2779
  %v3036 = vsel %vm2524, %v1686, %v2780
  %v3037 = vsel %vm2525, %v1691, %v2781
  %v3038 = vsel %vm2526, %v1696, %v2782
  %v3039 = vsel %vm2527, %v1701, %v2783
  %v3040 = vsel %vm2528, %v1706, %v2784
  %v3041 = vsel %vm2529, %v1711, %v2785
  %v3042 = vsel %vm2530, %v1716, %v2786
  %v3043 = vsel %vm2531, %v1721, %v2787
  %v3044 = vsel %vm2532, %v1726, %v2788
  %v3045 = vsel %vm2533, %v1731, %v2789
  %v3046 = vsel %vm2534, %v1736, %v2790
  %v3047 = vsel %vm2535, %v1741, %v2791
  %v3048 = vsel %vm2536, %v1746, %v2792
  %v3049 = vsel %vm2537, %v1751, %v2793
  %v3050 = vsel %vm2538, %v1756, %v2794
  %v3051 = vsel %vm2539, %v1761, %v2795
  %v3052 = vsel %vm2540, %v1766, %v2796
  %v3053 = vsel %vm2541, %v1771, %v2797
  %v3054 = vsel %vm2542, %v1776, %v2798
  %v3055 = vsel %vm2543, %v1781, %v2799
  %v3056 = vsel %vm2544, %v1786, %v2800
  %v3057 = vsel %vm2545, %v1791, %v2801
  %v3058 = vsel %vm2546, %v1796, %v2802
  %v3059 = vsel %vm2547, %v1801, %v2803
  %v3060 = vsel %vm2548, %v1806, %v2804
  %v3061 = vsel %vm2549, %v1811, %v2805
  %v3062 = vsel %vm2550, %v1816, %v2806
  %v3063 = vsel %vm2551, %v1821, %v2807
  %v3064 = vsel %vm2552, %v1826, %v2808
  %v3065 = vsel %vm2553, %v1831, %v2809
  %v3066 = vsel %vm2554, %v1836, %v2810
  %v3067 = vsel %vm2555, %v1841, %v2811
  %v3068 = vsel %vm2556, %v1846, %v2812
  %v3069 = vsel %vm2557, %v1851, %v2813
  %v3070 = vsel %vm2558, %v1856, %v2814
  %v3071 = vsel %vm2559, %v1861, %v2815
  %v3072 = vsel %vm2560, %v1866, %v2816
  %v3073 = vsel %vm2561, %v1871, %v2817
  %v3074 = vsel %vm2562, %v1876, %v2818
  %v3075 = vsel %vm2563, %v1881, %v2819
  %v3076 = vsel %vm2564, %v1886, %v2820
  %v3077 = vsel %vm2565, %v1891, %v2821
  %v3078 = vsel %vm2566, %v1896, %v2822
  %v3079 = vsel %vm2567, %v1901, %v2823
  %v3080 = vsel %vm2568, %v1906, %v2824
  %v3081 = vsel %vm2569, %v1911, %v2825
  %v3082 = vsel %vm2570, %v1916, %v2826
  %v3083 = vsel %vm2571, %v1921, %v2827
  %v3084 = vsel %vm2572, %v1926, %v2828
  %v3085 = vsel %vm2573, %v1931, %v2829
  %v3086 = vsel %vm2574, %v1936, %v2830
  %v3087 = vsel %vm2575, %v1941, %v2831
  %v3088 = vsel %vm2576, %v1946, %v2832
  %v3089 = vsel %vm2577, %v1951, %v2833
  %v3090 = vsel %vm2578, %v1956, %v2834
  %v3091 = vsel %vm2579, %v1961, %v2835
  %v3092 = vsel %vm2580, %v1966, %v2836
  %v3093 = vsel %vm2581, %v1971, %v2837
  %v3094 = vsel %vm2582, %v1976, %v2838
  %v3095 = vsel %vm2583, %v1981, %v2839
  %v3096 = vsel %vm2584, %v1986, %v2840
  %v3097 = vsel %vm2585, %v1991, %v2841
  %v3098 = vsel %vm2586, %v1996, %v2842
  %v3099 = vsel %vm2587, %v2001, %v2843
  %v3100 = vsel %vm2588, %v2006, %v2844
  %v3101 = vsel %vm2589, %v2011, %v2845
  %v3102 = vsel %vm2590, %v2016, %v2846
  %v3103 = vsel %vm2591, %v2021, %v2847
  %v3104 = vsel %vm2592, %v2026, %v2848
  %v3105 = vsel %vm2593, %v2031, %v2849
  %v3106 = vsel %vm2594, %v2036, %v2850
  %v3107 = vsel %vm2595, %v2041, %v2851
  %v3108 = vsel %vm2596, %v2046, %v2852
  %v3109 = vsel %vm2597, %v2051, %v2853
  %v3110 = vsel %vm2598, %v2056, %v2854
  %v3111 = vsel %vm2599, %v2061, %v2855
  %v3112 = vsel %vm2600, %v2066, %v2856
  %v3113 = vsel %vm2601, %v2071, %v2857
  %v3114 = vsel %vm2602, %v2076, %v2858
  %v3115 = vsel %vm2603, %v2081, %v2859
  %v3116 = vsel %vm2604, %v2086, %v2860
  %v3117 = vsel %vm2605, %v2091, %v2861
  %v3118 = vsel %vm2606, %v2096, %v2862
  %v3119 = vsel %vm2607, %v2101, %v2863
  %v3120 = vsel %vm2608, %v2106, %v2864
  %v3121 = vsel %vm2609, %v2111, %v2865
  %v3122 = vsel %vm2610, %v2116, %v2866
  %v3123 = vsel %vm2611, %v2121, %v2867
  %v3124 = vsel %vm2612, %v2126, %v2868
  %v3125 = vsel %vm2613, %v2131, %v2869
  %v3126 = vsel %vm2614, %v2136, %v2870
  %v3127 = vsel %vm2615, %v2141, %v2871
  %v3128 = vsel %vm2616, %v2146, %v2872
  %v3129 = vsel %vm2617, %v2151, %v2873
  %v3130 = vsel %vm2618, %v2156, %v2874
  %v3131 = vsel %vm2619, %v2161, %v2875
  %v3132 = vsel %vm2620, %v2166, %v2876
  %v3133 = vsel %vm2621, %v2171, %v2877
  %v3134 = vsel %vm2622, %v2176, %v2878
  %v3135 = vsel %vm2623, %v2181, %v2879
  %v3136 = vsel %vm2624, %v2186, %v2880
  %v3137 = vsel %vm2625, %v2191, %v2881
  %v3138 = vsel %vm2626, %v2196, %v2882
  %v3139 = vsel %vm2627, %v2201, %v2883
  %v3140 = vsel %vm2628, %v2206, %v2884
  %v3141 = vsel %vm2629, %v2211, %v2885
  %v3142 = vsel %vm2630, %v2216, %v2886
  %v3143 = vsel %vm2631, %v2221, %v2887
  %v3144 = vsel %vm2632, %v2226, %v2888
  %v3145 = vsel %vm2633, %v2231, %v2889
  %v3146 = vsel %vm2634, %v2236, %v2890
  %v3147 = vsel %vm2635, %v2241, %v2891
  %v3148 = vsel %vm2636, %v2246, %v2892
  %v3149 = vsel %vm2637, %v2251, %v2893
  %v3150 = vsel %vm2638, %v2256, %v2894
  %v3151 = vsel %vm2639, %v2261, %v2895
  %v3152 = vsel %vm2640, %v2266, %v2896
  %v3153 = vsel %vm2641, %v2271, %v2897
  %v3154 = vsel %vm2642, %v2276, %v2898
  %v3155 = vsel %vm2643, %v2281, %v2899
  %v3156 = vsel %vm2644, %v2286, %v2900
  %v3157 = vsel %vm2645, %v2291, %v2901
  %v3158 = vsel %vm2646, %v2296, %v2902
  %v3159 = vsel %vm2647, %v2301, %v2903
  %v3160 = vsel %vm2648, %v2306, %v2904
  %v3161 = vsel %vm2649, %v2311, %v2905
  %v3162 = vsel %vm2650, %v2316, %v2906
  %v3163 = vsel %vm2651, %v2321, %v2907
  %v3164 = vsel %vm2652, %v2326, %v2908
  %v3165 = vsel %vm2653, %v2331, %v2909
  %v3166 = vsel %vm2654, %v2336, %v2910
  %v3167 = vsel %vm2655, %v2341, %v2911
  %v3168 = vsel %vm2656, %v2346, %v2912
  %v3169 = vsel %vm2657, %v2351, %v2913
  %v3170 = vsel %vm2658, %v2356, %v2914
  %v3171 = vsel %vm2659, %v2361, %v2915
  %v3172 = vsel %vm2660, %v2366, %v2916
  %v3173 = vsel %vm2661, %v2371, %v2917
  %v3174 = vsel %vm2662, %v2376, %v2918
  %v3175 = vsel %vm2663, %v2381, %v2919
  %v3176 = vsel %vm2664, %v2386, %v2920
  %v3177 = vsel %vm2665, %v2391, %v2921
  %v3178 = vsel %vm2666, %v2396, %v2922
  %v3179 = vsel %vm2667, %v2401, %v2923
  %v3180 = vsel %vm2668, %v2406, %v2924
  %v3181 = vsel %vm2669, %v2411, %v2925
  %v3182 = vld [vmem:[%s3] sm:$0x1]
  %v3184 = vlaneseq
  %v3185 = vshrl.u32 %v3184, 7
  %v3186 = vsub.s32 0, %v3185
  %v3187 = vrot.slane %v3182, %v3186
  %v3189 = vmul.f32 %v2926, %v3187
  %v3190 = vmul.f32 %v2927, %v3187
  %v3191 = vmul.f32 %v2928, %v3187
  %v3192 = vmul.f32 %v2929, %v3187
  %v3193 = vmul.f32 %v2930, %v3187
  %v3194 = vmul.f32 %v2931, %v3187
  %v3195 = vmul.f32 %v2932, %v3187
  %v3196 = vmul.f32 %v2933, %v3187
  %v3197 = vmul.f32 %v2934, %v3187
  %v3198 = vmul.f32 %v2935, %v3187
  %v3199 = vmul.f32 %v2936, %v3187
  %v3200 = vmul.f32 %v2937, %v3187
  %v3201 = vmul.f32 %v2938, %v3187
  %v3202 = vmul.f32 %v2939, %v3187
  %v3203 = vmul.f32 %v2940, %v3187
  %v3204 = vmul.f32 %v2941, %v3187
  %v3205 = vmul.f32 %v2942, %v3187
  %v3206 = vmul.f32 %v2943, %v3187
  %v3207 = vmul.f32 %v2944, %v3187
  %v3208 = vmul.f32 %v2945, %v3187
  %v3209 = vmul.f32 %v2946, %v3187
  %v3210 = vmul.f32 %v2947, %v3187
  %v3211 = vmul.f32 %v2948, %v3187
  %v3212 = vmul.f32 %v2949, %v3187
  %v3213 = vmul.f32 %v2950, %v3187
  %v3214 = vmul.f32 %v2951, %v3187
  %v3215 = vmul.f32 %v2952, %v3187
  %v3216 = vmul.f32 %v2953, %v3187
  %v3217 = vmul.f32 %v2954, %v3187
  %v3218 = vmul.f32 %v2955, %v3187
  %v3219 = vmul.f32 %v2956, %v3187
  %v3220 = vmul.f32 %v2957, %v3187
  %v3221 = vmul.f32 %v2958, %v3187
  %v3222 = vmul.f32 %v2959, %v3187
  %v3223 = vmul.f32 %v2960, %v3187
  %v3224 = vmul.f32 %v2961, %v3187
  %v3225 = vmul.f32 %v2962, %v3187
  %v3226 = vmul.f32 %v2963, %v3187
  %v3227 = vmul.f32 %v2964, %v3187
  %v3228 = vmul.f32 %v2965, %v3187
  %v3229 = vmul.f32 %v2966, %v3187
  %v3230 = vmul.f32 %v2967, %v3187
  %v3231 = vmul.f32 %v2968, %v3187
  %v3232 = vmul.f32 %v2969, %v3187
  %v3233 = vmul.f32 %v2970, %v3187
  %v3234 = vmul.f32 %v2971, %v3187
  %v3235 = vmul.f32 %v2972, %v3187
  %v3236 = vmul.f32 %v2973, %v3187
  %v3237 = vmul.f32 %v2974, %v3187
  %v3238 = vmul.f32 %v2975, %v3187
  %v3239 = vmul.f32 %v2976, %v3187
  %v3240 = vmul.f32 %v2977, %v3187
  %v3241 = vmul.f32 %v2978, %v3187
  %v3242 = vmul.f32 %v2979, %v3187
  %v3243 = vmul.f32 %v2980, %v3187
  %v3244 = vmul.f32 %v2981, %v3187
  %v3245 = vmul.f32 %v2982, %v3187
  %v3246 = vmul.f32 %v2983, %v3187
  %v3247 = vmul.f32 %v2984, %v3187
  %v3248 = vmul.f32 %v2985, %v3187
  %v3249 = vmul.f32 %v2986, %v3187
  %v3250 = vmul.f32 %v2987, %v3187
  %v3251 = vmul.f32 %v2988, %v3187
  %v3252 = vmul.f32 %v2989, %v3187
  %v3253 = vmul.f32 %v2990, %v3187
  %v3254 = vmul.f32 %v2991, %v3187
  %v3255 = vmul.f32 %v2992, %v3187
  %v3256 = vmul.f32 %v2993, %v3187
  %v3257 = vmul.f32 %v2994, %v3187
  %v3258 = vmul.f32 %v2995, %v3187
  %v3259 = vmul.f32 %v2996, %v3187
  %v3260 = vmul.f32 %v2997, %v3187
  %v3261 = vmul.f32 %v2998, %v3187
  %v3262 = vmul.f32 %v2999, %v3187
  %v3263 = vmul.f32 %v3000, %v3187
  %v3264 = vmul.f32 %v3001, %v3187
  %v3265 = vmul.f32 %v3002, %v3187
  %v3266 = vmul.f32 %v3003, %v3187
  %v3267 = vmul.f32 %v3004, %v3187
  %v3268 = vmul.f32 %v3005, %v3187
  %v3269 = vmul.f32 %v3006, %v3187
  %v3270 = vmul.f32 %v3007, %v3187
  %v3271 = vmul.f32 %v3008, %v3187
  %v3272 = vmul.f32 %v3009, %v3187
  %v3273 = vmul.f32 %v3010, %v3187
  %v3274 = vmul.f32 %v3011, %v3187
  %v3275 = vmul.f32 %v3012, %v3187
  %v3276 = vmul.f32 %v3013, %v3187
  %v3277 = vmul.f32 %v3014, %v3187
  %v3278 = vmul.f32 %v3015, %v3187
  %v3279 = vmul.f32 %v3016, %v3187
  %v3280 = vmul.f32 %v3017, %v3187
  %v3281 = vmul.f32 %v3018, %v3187
  %v3282 = vmul.f32 %v3019, %v3187
  %v3283 = vmul.f32 %v3020, %v3187
  %v3284 = vmul.f32 %v3021, %v3187
  %v3285 = vmul.f32 %v3022, %v3187
  %v3286 = vmul.f32 %v3023, %v3187
  %v3287 = vmul.f32 %v3024, %v3187
  %v3288 = vmul.f32 %v3025, %v3187
  %v3289 = vmul.f32 %v3026, %v3187
  %v3290 = vmul.f32 %v3027, %v3187
  %v3291 = vmul.f32 %v3028, %v3187
  %v3292 = vmul.f32 %v3029, %v3187
  %v3293 = vmul.f32 %v3030, %v3187
  %v3294 = vmul.f32 %v3031, %v3187
  %v3295 = vmul.f32 %v3032, %v3187
  %v3296 = vmul.f32 %v3033, %v3187
  %v3297 = vmul.f32 %v3034, %v3187
  %v3298 = vmul.f32 %v3035, %v3187
  %v3299 = vmul.f32 %v3036, %v3187
  %v3300 = vmul.f32 %v3037, %v3187
  %v3301 = vmul.f32 %v3038, %v3187
  %v3302 = vmul.f32 %v3039, %v3187
  %v3303 = vmul.f32 %v3040, %v3187
  %v3304 = vmul.f32 %v3041, %v3187
  %v3305 = vmul.f32 %v3042, %v3187
  %v3306 = vmul.f32 %v3043, %v3187
  %v3307 = vmul.f32 %v3044, %v3187
  %v3308 = vmul.f32 %v3045, %v3187
  %v3309 = vmul.f32 %v3046, %v3187
  %v3310 = vmul.f32 %v3047, %v3187
  %v3311 = vmul.f32 %v3048, %v3187
  %v3312 = vmul.f32 %v3049, %v3187
  %v3313 = vmul.f32 %v3050, %v3187
  %v3314 = vmul.f32 %v3051, %v3187
  %v3315 = vmul.f32 %v3052, %v3187
  %v3316 = vmul.f32 %v3053, %v3187
  %v3317 = vmul.f32 %v3054, %v3187
  %v3318 = vmul.f32 %v3055, %v3187
  %v3319 = vmul.f32 %v3056, %v3187
  %v3320 = vmul.f32 %v3057, %v3187
  %v3321 = vmul.f32 %v3058, %v3187
  %v3322 = vmul.f32 %v3059, %v3187
  %v3323 = vmul.f32 %v3060, %v3187
  %v3324 = vmul.f32 %v3061, %v3187
  %v3325 = vmul.f32 %v3062, %v3187
  %v3326 = vmul.f32 %v3063, %v3187
  %v3327 = vmul.f32 %v3064, %v3187
  %v3328 = vmul.f32 %v3065, %v3187
  %v3329 = vmul.f32 %v3066, %v3187
  %v3330 = vmul.f32 %v3067, %v3187
  %v3331 = vmul.f32 %v3068, %v3187
  %v3332 = vmul.f32 %v3069, %v3187
  %v3333 = vmul.f32 %v3070, %v3187
  %v3334 = vmul.f32 %v3071, %v3187
  %v3335 = vmul.f32 %v3072, %v3187
  %v3336 = vmul.f32 %v3073, %v3187
  %v3337 = vmul.f32 %v3074, %v3187
  %v3338 = vmul.f32 %v3075, %v3187
  %v3339 = vmul.f32 %v3076, %v3187
  %v3340 = vmul.f32 %v3077, %v3187
  %v3341 = vmul.f32 %v3078, %v3187
  %v3342 = vmul.f32 %v3079, %v3187
  %v3343 = vmul.f32 %v3080, %v3187
  %v3344 = vmul.f32 %v3081, %v3187
  %v3345 = vmul.f32 %v3082, %v3187
  %v3346 = vmul.f32 %v3083, %v3187
  %v3347 = vmul.f32 %v3084, %v3187
  %v3348 = vmul.f32 %v3085, %v3187
  %v3349 = vmul.f32 %v3086, %v3187
  %v3350 = vmul.f32 %v3087, %v3187
  %v3351 = vmul.f32 %v3088, %v3187
  %v3352 = vmul.f32 %v3089, %v3187
  %v3353 = vmul.f32 %v3090, %v3187
  %v3354 = vmul.f32 %v3091, %v3187
  %v3355 = vmul.f32 %v3092, %v3187
  %v3356 = vmul.f32 %v3093, %v3187
  %v3357 = vmul.f32 %v3094, %v3187
  %v3358 = vmul.f32 %v3095, %v3187
  %v3359 = vmul.f32 %v3096, %v3187
  %v3360 = vmul.f32 %v3097, %v3187
  %v3361 = vmul.f32 %v3098, %v3187
  %v3362 = vmul.f32 %v3099, %v3187
  %v3363 = vmul.f32 %v3100, %v3187
  %v3364 = vmul.f32 %v3101, %v3187
  %v3365 = vmul.f32 %v3102, %v3187
  %v3366 = vmul.f32 %v3103, %v3187
  %v3367 = vmul.f32 %v3104, %v3187
  %v3368 = vmul.f32 %v3105, %v3187
  %v3369 = vmul.f32 %v3106, %v3187
  %v3370 = vmul.f32 %v3107, %v3187
  %v3371 = vmul.f32 %v3108, %v3187
  %v3372 = vmul.f32 %v3109, %v3187
  %v3373 = vmul.f32 %v3110, %v3187
  %v3374 = vmul.f32 %v3111, %v3187
  %v3375 = vmul.f32 %v3112, %v3187
  %v3376 = vmul.f32 %v3113, %v3187
  %v3377 = vmul.f32 %v3114, %v3187
  %v3378 = vmul.f32 %v3115, %v3187
  %v3379 = vmul.f32 %v3116, %v3187
  %v3380 = vmul.f32 %v3117, %v3187
  %v3381 = vmul.f32 %v3118, %v3187
  %v3382 = vmul.f32 %v3119, %v3187
  %v3383 = vmul.f32 %v3120, %v3187
  %v3384 = vmul.f32 %v3121, %v3187
  %v3385 = vmul.f32 %v3122, %v3187
  %v3386 = vmul.f32 %v3123, %v3187
  %v3387 = vmul.f32 %v3124, %v3187
  %v3388 = vmul.f32 %v3125, %v3187
  %v3389 = vmul.f32 %v3126, %v3187
  %v3390 = vmul.f32 %v3127, %v3187
  %v3391 = vmul.f32 %v3128, %v3187
  %v3392 = vmul.f32 %v3129, %v3187
  %v3393 = vmul.f32 %v3130, %v3187
  %v3394 = vmul.f32 %v3131, %v3187
  %v3395 = vmul.f32 %v3132, %v3187
  %v3396 = vmul.f32 %v3133, %v3187
  %v3397 = vmul.f32 %v3134, %v3187
  %v3398 = vmul.f32 %v3135, %v3187
  %v3399 = vmul.f32 %v3136, %v3187
  %v3400 = vmul.f32 %v3137, %v3187
  %v3401 = vmul.f32 %v3138, %v3187
  %v3402 = vmul.f32 %v3139, %v3187
  %v3403 = vmul.f32 %v3140, %v3187
  %v3404 = vmul.f32 %v3141, %v3187
  %v3405 = vmul.f32 %v3142, %v3187
  %v3406 = vmul.f32 %v3143, %v3187
  %v3407 = vmul.f32 %v3144, %v3187
  %v3408 = vmul.f32 %v3145, %v3187
  %v3409 = vmul.f32 %v3146, %v3187
  %v3410 = vmul.f32 %v3147, %v3187
  %v3411 = vmul.f32 %v3148, %v3187
  %v3412 = vmul.f32 %v3149, %v3187
  %v3413 = vmul.f32 %v3150, %v3187
  %v3414 = vmul.f32 %v3151, %v3187
  %v3415 = vmul.f32 %v3152, %v3187
  %v3416 = vmul.f32 %v3153, %v3187
  %v3417 = vmul.f32 %v3154, %v3187
  %v3418 = vmul.f32 %v3155, %v3187
  %v3419 = vmul.f32 %v3156, %v3187
  %v3420 = vmul.f32 %v3157, %v3187
  %v3421 = vmul.f32 %v3158, %v3187
  %v3422 = vmul.f32 %v3159, %v3187
  %v3423 = vmul.f32 %v3160, %v3187
  %v3424 = vmul.f32 %v3161, %v3187
  %v3425 = vmul.f32 %v3162, %v3187
  %v3426 = vmul.f32 %v3163, %v3187
  %v3427 = vmul.f32 %v3164, %v3187
  %v3428 = vmul.f32 %v3165, %v3187
  %v3429 = vmul.f32 %v3166, %v3187
  %v3430 = vmul.f32 %v3167, %v3187
  %v3431 = vmul.f32 %v3168, %v3187
  %v3432 = vmul.f32 %v3169, %v3187
  %v3433 = vmul.f32 %v3170, %v3187
  %v3434 = vmul.f32 %v3171, %v3187
  %v3435 = vmul.f32 %v3172, %v3187
  %v3436 = vmul.f32 %v3173, %v3187
  %v3437 = vmul.f32 %v3174, %v3187
  %v3438 = vmul.f32 %v3175, %v3187
  %v3439 = vmul.f32 %v3176, %v3187
  %v3440 = vmul.f32 %v3177, %v3187
  %v3441 = vmul.f32 %v3178, %v3187
  %v3442 = vmul.f32 %v3179, %v3187
  %v3443 = vmul.f32 %v3180, %v3187
  %v3444 = vmul.f32 %v3181, %v3187
  %v3445 = vld [vmem:[%s4] sm:$0x1]
  %v3447 = vlaneseq
  %v3448 = vshrl.u32 %v3447, 7
  %v3449 = vsub.s32 0, %v3448
  %v3450 = vrot.slane %v3445, %v3449
  %v3452 = vadd.f32 %v3189, %v3450
  %v3453 = vadd.f32 %v3190, %v3450
  %v3454 = vadd.f32 %v3191, %v3450
  %v3455 = vadd.f32 %v3192, %v3450
  %v3456 = vadd.f32 %v3193, %v3450
  %v3457 = vadd.f32 %v3194, %v3450
  %v3458 = vadd.f32 %v3195, %v3450
  %v3459 = vadd.f32 %v3196, %v3450
  %v3460 = vadd.f32 %v3197, %v3450
  %v3461 = vadd.f32 %v3198, %v3450
  %v3462 = vadd.f32 %v3199, %v3450
  %v3463 = vadd.f32 %v3200, %v3450
  %v3464 = vadd.f32 %v3201, %v3450
  %v3465 = vadd.f32 %v3202, %v3450
  %v3466 = vadd.f32 %v3203, %v3450
  %v3467 = vadd.f32 %v3204, %v3450
  %v3468 = vadd.f32 %v3205, %v3450
  %v3469 = vadd.f32 %v3206, %v3450
  %v3470 = vadd.f32 %v3207, %v3450
  %v3471 = vadd.f32 %v3208, %v3450
  %v3472 = vadd.f32 %v3209, %v3450
  %v3473 = vadd.f32 %v3210, %v3450
  %v3474 = vadd.f32 %v3211, %v3450
  %v3475 = vadd.f32 %v3212, %v3450
  %v3476 = vadd.f32 %v3213, %v3450
  %v3477 = vadd.f32 %v3214, %v3450
  %v3478 = vadd.f32 %v3215, %v3450
  %v3479 = vadd.f32 %v3216, %v3450
  %v3480 = vadd.f32 %v3217, %v3450
  %v3481 = vadd.f32 %v3218, %v3450
  %v3482 = vadd.f32 %v3219, %v3450
  %v3483 = vadd.f32 %v3220, %v3450
  %v3484 = vadd.f32 %v3221, %v3450
  %v3485 = vadd.f32 %v3222, %v3450
  %v3486 = vadd.f32 %v3223, %v3450
  %v3487 = vadd.f32 %v3224, %v3450
  %v3488 = vadd.f32 %v3225, %v3450
  %v3489 = vadd.f32 %v3226, %v3450
  %v3490 = vadd.f32 %v3227, %v3450
  %v3491 = vadd.f32 %v3228, %v3450
  %v3492 = vadd.f32 %v3229, %v3450
  %v3493 = vadd.f32 %v3230, %v3450
  %v3494 = vadd.f32 %v3231, %v3450
  %v3495 = vadd.f32 %v3232, %v3450
  %v3496 = vadd.f32 %v3233, %v3450
  %v3497 = vadd.f32 %v3234, %v3450
  %v3498 = vadd.f32 %v3235, %v3450
  %v3499 = vadd.f32 %v3236, %v3450
  %v3500 = vadd.f32 %v3237, %v3450
  %v3501 = vadd.f32 %v3238, %v3450
  %v3502 = vadd.f32 %v3239, %v3450
  %v3503 = vadd.f32 %v3240, %v3450
  %v3504 = vadd.f32 %v3241, %v3450
  %v3505 = vadd.f32 %v3242, %v3450
  %v3506 = vadd.f32 %v3243, %v3450
  %v3507 = vadd.f32 %v3244, %v3450
  %v3508 = vadd.f32 %v3245, %v3450
  %v3509 = vadd.f32 %v3246, %v3450
  %v3510 = vadd.f32 %v3247, %v3450
  %v3511 = vadd.f32 %v3248, %v3450
  %v3512 = vadd.f32 %v3249, %v3450
  %v3513 = vadd.f32 %v3250, %v3450
  %v3514 = vadd.f32 %v3251, %v3450
  %v3515 = vadd.f32 %v3252, %v3450
  %v3516 = vadd.f32 %v3253, %v3450
  %v3517 = vadd.f32 %v3254, %v3450
  %v3518 = vadd.f32 %v3255, %v3450
  %v3519 = vadd.f32 %v3256, %v3450
  %v3520 = vadd.f32 %v3257, %v3450
  %v3521 = vadd.f32 %v3258, %v3450
  %v3522 = vadd.f32 %v3259, %v3450
  %v3523 = vadd.f32 %v3260, %v3450
  %v3524 = vadd.f32 %v3261, %v3450
  %v3525 = vadd.f32 %v3262, %v3450
  %v3526 = vadd.f32 %v3263, %v3450
  %v3527 = vadd.f32 %v3264, %v3450
  %v3528 = vadd.f32 %v3265, %v3450
  %v3529 = vadd.f32 %v3266, %v3450
  %v3530 = vadd.f32 %v3267, %v3450
  %v3531 = vadd.f32 %v3268, %v3450
  %v3532 = vadd.f32 %v3269, %v3450
  %v3533 = vadd.f32 %v3270, %v3450
  %v3534 = vadd.f32 %v3271, %v3450
  %v3535 = vadd.f32 %v3272, %v3450
  %v3536 = vadd.f32 %v3273, %v3450
  %v3537 = vadd.f32 %v3274, %v3450
  %v3538 = vadd.f32 %v3275, %v3450
  %v3539 = vadd.f32 %v3276, %v3450
  %v3540 = vadd.f32 %v3277, %v3450
  %v3541 = vadd.f32 %v3278, %v3450
  %v3542 = vadd.f32 %v3279, %v3450
  %v3543 = vadd.f32 %v3280, %v3450
  %v3544 = vadd.f32 %v3281, %v3450
  %v3545 = vadd.f32 %v3282, %v3450
  %v3546 = vadd.f32 %v3283, %v3450
  %v3547 = vadd.f32 %v3284, %v3450
  %v3548 = vadd.f32 %v3285, %v3450
  %v3549 = vadd.f32 %v3286, %v3450
  %v3550 = vadd.f32 %v3287, %v3450
  %v3551 = vadd.f32 %v3288, %v3450
  %v3552 = vadd.f32 %v3289, %v3450
  %v3553 = vadd.f32 %v3290, %v3450
  %v3554 = vadd.f32 %v3291, %v3450
  %v3555 = vadd.f32 %v3292, %v3450
  %v3556 = vadd.f32 %v3293, %v3450
  %v3557 = vadd.f32 %v3294, %v3450
  %v3558 = vadd.f32 %v3295, %v3450
  %v3559 = vadd.f32 %v3296, %v3450
  %v3560 = vadd.f32 %v3297, %v3450
  %v3561 = vadd.f32 %v3298, %v3450
  %v3562 = vadd.f32 %v3299, %v3450
  %v3563 = vadd.f32 %v3300, %v3450
  %v3564 = vadd.f32 %v3301, %v3450
  %v3565 = vadd.f32 %v3302, %v3450
  %v3566 = vadd.f32 %v3303, %v3450
  %v3567 = vadd.f32 %v3304, %v3450
  %v3568 = vadd.f32 %v3305, %v3450
  %v3569 = vadd.f32 %v3306, %v3450
  %v3570 = vadd.f32 %v3307, %v3450
  %v3571 = vadd.f32 %v3308, %v3450
  %v3572 = vadd.f32 %v3309, %v3450
  %v3573 = vadd.f32 %v3310, %v3450
  %v3574 = vadd.f32 %v3311, %v3450
  %v3575 = vadd.f32 %v3312, %v3450
  %v3576 = vadd.f32 %v3313, %v3450
  %v3577 = vadd.f32 %v3314, %v3450
  %v3578 = vadd.f32 %v3315, %v3450
  %v3579 = vadd.f32 %v3316, %v3450
  %v3580 = vadd.f32 %v3317, %v3450
  %v3581 = vadd.f32 %v3318, %v3450
  %v3582 = vadd.f32 %v3319, %v3450
  %v3583 = vadd.f32 %v3320, %v3450
  %v3584 = vadd.f32 %v3321, %v3450
  %v3585 = vadd.f32 %v3322, %v3450
  %v3586 = vadd.f32 %v3323, %v3450
  %v3587 = vadd.f32 %v3324, %v3450
  %v3588 = vadd.f32 %v3325, %v3450
  %v3589 = vadd.f32 %v3326, %v3450
  %v3590 = vadd.f32 %v3327, %v3450
  %v3591 = vadd.f32 %v3328, %v3450
  %v3592 = vadd.f32 %v3329, %v3450
  %v3593 = vadd.f32 %v3330, %v3450
  %v3594 = vadd.f32 %v3331, %v3450
  %v3595 = vadd.f32 %v3332, %v3450
  %v3596 = vadd.f32 %v3333, %v3450
  %v3597 = vadd.f32 %v3334, %v3450
  %v3598 = vadd.f32 %v3335, %v3450
  %v3599 = vadd.f32 %v3336, %v3450
  %v3600 = vadd.f32 %v3337, %v3450
  %v3601 = vadd.f32 %v3338, %v3450
  %v3602 = vadd.f32 %v3339, %v3450
  %v3603 = vadd.f32 %v3340, %v3450
  %v3604 = vadd.f32 %v3341, %v3450
  %v3605 = vadd.f32 %v3342, %v3450
  %v3606 = vadd.f32 %v3343, %v3450
  %v3607 = vadd.f32 %v3344, %v3450
  %v3608 = vadd.f32 %v3345, %v3450
  %v3609 = vadd.f32 %v3346, %v3450
  %v3610 = vadd.f32 %v3347, %v3450
  %v3611 = vadd.f32 %v3348, %v3450
  %v3612 = vadd.f32 %v3349, %v3450
  %v3613 = vadd.f32 %v3350, %v3450
  %v3614 = vadd.f32 %v3351, %v3450
  %v3615 = vadd.f32 %v3352, %v3450
  %v3616 = vadd.f32 %v3353, %v3450
  %v3617 = vadd.f32 %v3354, %v3450
  %v3618 = vadd.f32 %v3355, %v3450
  %v3619 = vadd.f32 %v3356, %v3450
  %v3620 = vadd.f32 %v3357, %v3450
  %v3621 = vadd.f32 %v3358, %v3450
  %v3622 = vadd.f32 %v3359, %v3450
  %v3623 = vadd.f32 %v3360, %v3450
  %v3624 = vadd.f32 %v3361, %v3450
  %v3625 = vadd.f32 %v3362, %v3450
  %v3626 = vadd.f32 %v3363, %v3450
  %v3627 = vadd.f32 %v3364, %v3450
  %v3628 = vadd.f32 %v3365, %v3450
  %v3629 = vadd.f32 %v3366, %v3450
  %v3630 = vadd.f32 %v3367, %v3450
  %v3631 = vadd.f32 %v3368, %v3450
  %v3632 = vadd.f32 %v3369, %v3450
  %v3633 = vadd.f32 %v3370, %v3450
  %v3634 = vadd.f32 %v3371, %v3450
  %v3635 = vadd.f32 %v3372, %v3450
  %v3636 = vadd.f32 %v3373, %v3450
  %v3637 = vadd.f32 %v3374, %v3450
  %v3638 = vadd.f32 %v3375, %v3450
  %v3639 = vadd.f32 %v3376, %v3450
  %v3640 = vadd.f32 %v3377, %v3450
  %v3641 = vadd.f32 %v3378, %v3450
  %v3642 = vadd.f32 %v3379, %v3450
  %v3643 = vadd.f32 %v3380, %v3450
  %v3644 = vadd.f32 %v3381, %v3450
  %v3645 = vadd.f32 %v3382, %v3450
  %v3646 = vadd.f32 %v3383, %v3450
  %v3647 = vadd.f32 %v3384, %v3450
  %v3648 = vadd.f32 %v3385, %v3450
  %v3649 = vadd.f32 %v3386, %v3450
  %v3650 = vadd.f32 %v3387, %v3450
  %v3651 = vadd.f32 %v3388, %v3450
  %v3652 = vadd.f32 %v3389, %v3450
  %v3653 = vadd.f32 %v3390, %v3450
  %v3654 = vadd.f32 %v3391, %v3450
  %v3655 = vadd.f32 %v3392, %v3450
  %v3656 = vadd.f32 %v3393, %v3450
  %v3657 = vadd.f32 %v3394, %v3450
  %v3658 = vadd.f32 %v3395, %v3450
  %v3659 = vadd.f32 %v3396, %v3450
  %v3660 = vadd.f32 %v3397, %v3450
  %v3661 = vadd.f32 %v3398, %v3450
  %v3662 = vadd.f32 %v3399, %v3450
  %v3663 = vadd.f32 %v3400, %v3450
  %v3664 = vadd.f32 %v3401, %v3450
  %v3665 = vadd.f32 %v3402, %v3450
  %v3666 = vadd.f32 %v3403, %v3450
  %v3667 = vadd.f32 %v3404, %v3450
  %v3668 = vadd.f32 %v3405, %v3450
  %v3669 = vadd.f32 %v3406, %v3450
  %v3670 = vadd.f32 %v3407, %v3450
  %v3671 = vadd.f32 %v3408, %v3450
  %v3672 = vadd.f32 %v3409, %v3450
  %v3673 = vadd.f32 %v3410, %v3450
  %v3674 = vadd.f32 %v3411, %v3450
  %v3675 = vadd.f32 %v3412, %v3450
  %v3676 = vadd.f32 %v3413, %v3450
  %v3677 = vadd.f32 %v3414, %v3450
  %v3678 = vadd.f32 %v3415, %v3450
  %v3679 = vadd.f32 %v3416, %v3450
  %v3680 = vadd.f32 %v3417, %v3450
  %v3681 = vadd.f32 %v3418, %v3450
  %v3682 = vadd.f32 %v3419, %v3450
  %v3683 = vadd.f32 %v3420, %v3450
  %v3684 = vadd.f32 %v3421, %v3450
  %v3685 = vadd.f32 %v3422, %v3450
  %v3686 = vadd.f32 %v3423, %v3450
  %v3687 = vadd.f32 %v3424, %v3450
  %v3688 = vadd.f32 %v3425, %v3450
  %v3689 = vadd.f32 %v3426, %v3450
  %v3690 = vadd.f32 %v3427, %v3450
  %v3691 = vadd.f32 %v3428, %v3450
  %v3692 = vadd.f32 %v3429, %v3450
  %v3693 = vadd.f32 %v3430, %v3450
  %v3694 = vadd.f32 %v3431, %v3450
  %v3695 = vadd.f32 %v3432, %v3450
  %v3696 = vadd.f32 %v3433, %v3450
  %v3697 = vadd.f32 %v3434, %v3450
  %v3698 = vadd.f32 %v3435, %v3450
  %v3699 = vadd.f32 %v3436, %v3450
  %v3700 = vadd.f32 %v3437, %v3450
  %v3701 = vadd.f32 %v3438, %v3450
  %v3702 = vadd.f32 %v3439, %v3450
  %v3703 = vadd.f32 %v3440, %v3450
  %v3704 = vadd.f32 %v3441, %v3450
  %v3705 = vadd.f32 %v3442, %v3450
  %v3706 = vadd.f32 %v3443, %v3450
  %v3707 = vadd.f32 %v3444, %v3450
  %v3708 = vmax.f32 %v3452, %v3516
  %v3709 = vmax.f32 %v3453, %v3517
  %v3710 = vmax.f32 %v3454, %v3518
  %v3711 = vmax.f32 %v3455, %v3519
  %v3712 = vmax.f32 %v3456, %v3520
  %v3713 = vmax.f32 %v3457, %v3521
  %v3714 = vmax.f32 %v3458, %v3522
  %v3715 = vmax.f32 %v3459, %v3523
  %v3716 = vmax.f32 %v3460, %v3524
  %v3717 = vmax.f32 %v3461, %v3525
  %v3718 = vmax.f32 %v3462, %v3526
  %v3719 = vmax.f32 %v3463, %v3527
  %v3720 = vmax.f32 %v3464, %v3528
  %v3721 = vmax.f32 %v3465, %v3529
  %v3722 = vmax.f32 %v3466, %v3530
  %v3723 = vmax.f32 %v3467, %v3531
  %v3724 = vmax.f32 %v3468, %v3532
  %v3725 = vmax.f32 %v3469, %v3533
  %v3726 = vmax.f32 %v3470, %v3534
  %v3727 = vmax.f32 %v3471, %v3535
  %v3728 = vmax.f32 %v3472, %v3536
  %v3729 = vmax.f32 %v3473, %v3537
  %v3730 = vmax.f32 %v3474, %v3538
  %v3731 = vmax.f32 %v3475, %v3539
  %v3732 = vmax.f32 %v3476, %v3540
  %v3733 = vmax.f32 %v3477, %v3541
  %v3734 = vmax.f32 %v3478, %v3542
  %v3735 = vmax.f32 %v3479, %v3543
  %v3736 = vmax.f32 %v3480, %v3544
  %v3737 = vmax.f32 %v3481, %v3545
  %v3738 = vmax.f32 %v3482, %v3546
  %v3739 = vmax.f32 %v3483, %v3547
  %v3740 = vmax.f32 %v3484, %v3548
  %v3741 = vmax.f32 %v3485, %v3549
  %v3742 = vmax.f32 %v3486, %v3550
  %v3743 = vmax.f32 %v3487, %v3551
  %v3744 = vmax.f32 %v3488, %v3552
  %v3745 = vmax.f32 %v3489, %v3553
  %v3746 = vmax.f32 %v3490, %v3554
  %v3747 = vmax.f32 %v3491, %v3555
  %v3748 = vmax.f32 %v3492, %v3556
  %v3749 = vmax.f32 %v3493, %v3557
  %v3750 = vmax.f32 %v3494, %v3558
  %v3751 = vmax.f32 %v3495, %v3559
  %v3752 = vmax.f32 %v3496, %v3560
  %v3753 = vmax.f32 %v3497, %v3561
  %v3754 = vmax.f32 %v3498, %v3562
  %v3755 = vmax.f32 %v3499, %v3563
  %v3756 = vmax.f32 %v3500, %v3564
  %v3757 = vmax.f32 %v3501, %v3565
  %v3758 = vmax.f32 %v3502, %v3566
  %v3759 = vmax.f32 %v3503, %v3567
  %v3760 = vmax.f32 %v3504, %v3568
  %v3761 = vmax.f32 %v3505, %v3569
  %v3762 = vmax.f32 %v3506, %v3570
  %v3763 = vmax.f32 %v3507, %v3571
  %v3764 = vmax.f32 %v3508, %v3572
  %v3765 = vmax.f32 %v3509, %v3573
  %v3766 = vmax.f32 %v3510, %v3574
  %v3767 = vmax.f32 %v3511, %v3575
  %v3768 = vmax.f32 %v3512, %v3576
  %v3769 = vmax.f32 %v3513, %v3577
  %v3770 = vmax.f32 %v3514, %v3578
  %v3771 = vmax.f32 %v3515, %v3579
  %v3772 = vmax.f32 %v3580, %v3644
  %v3773 = vmax.f32 %v3581, %v3645
  %v3774 = vmax.f32 %v3582, %v3646
  %v3775 = vmax.f32 %v3583, %v3647
  %v3776 = vmax.f32 %v3584, %v3648
  %v3777 = vmax.f32 %v3585, %v3649
  %v3778 = vmax.f32 %v3586, %v3650
  %v3779 = vmax.f32 %v3587, %v3651
  %v3780 = vmax.f32 %v3588, %v3652
  %v3781 = vmax.f32 %v3589, %v3653
  %v3782 = vmax.f32 %v3590, %v3654
  %v3783 = vmax.f32 %v3591, %v3655
  %v3784 = vmax.f32 %v3592, %v3656
  %v3785 = vmax.f32 %v3593, %v3657
  %v3786 = vmax.f32 %v3594, %v3658
  %v3787 = vmax.f32 %v3595, %v3659
  %v3788 = vmax.f32 %v3596, %v3660
  %v3789 = vmax.f32 %v3597, %v3661
  %v3790 = vmax.f32 %v3598, %v3662
  %v3791 = vmax.f32 %v3599, %v3663
  %v3792 = vmax.f32 %v3600, %v3664
  %v3793 = vmax.f32 %v3601, %v3665
  %v3794 = vmax.f32 %v3602, %v3666
  %v3795 = vmax.f32 %v3603, %v3667
  %v3796 = vmax.f32 %v3604, %v3668
  %v3797 = vmax.f32 %v3605, %v3669
  %v3798 = vmax.f32 %v3606, %v3670
  %v3799 = vmax.f32 %v3607, %v3671
  %v3800 = vmax.f32 %v3608, %v3672
  %v3801 = vmax.f32 %v3609, %v3673
  %v3802 = vmax.f32 %v3610, %v3674
  %v3803 = vmax.f32 %v3611, %v3675
  %v3804 = vmax.f32 %v3612, %v3676
  %v3805 = vmax.f32 %v3613, %v3677
  %v3806 = vmax.f32 %v3614, %v3678
  %v3807 = vmax.f32 %v3615, %v3679
  %v3808 = vmax.f32 %v3616, %v3680
  %v3809 = vmax.f32 %v3617, %v3681
  %v3810 = vmax.f32 %v3618, %v3682
  %v3811 = vmax.f32 %v3619, %v3683
  %v3812 = vmax.f32 %v3620, %v3684
  %v3813 = vmax.f32 %v3621, %v3685
  %v3814 = vmax.f32 %v3622, %v3686
  %v3815 = vmax.f32 %v3623, %v3687
  %v3816 = vmax.f32 %v3624, %v3688
  %v3817 = vmax.f32 %v3625, %v3689
  %v3818 = vmax.f32 %v3626, %v3690
  %v3819 = vmax.f32 %v3627, %v3691
  %v3820 = vmax.f32 %v3628, %v3692
  %v3821 = vmax.f32 %v3629, %v3693
  %v3822 = vmax.f32 %v3630, %v3694
  %v3823 = vmax.f32 %v3631, %v3695
  %v3824 = vmax.f32 %v3632, %v3696
  %v3825 = vmax.f32 %v3633, %v3697
  %v3826 = vmax.f32 %v3634, %v3698
  %v3827 = vmax.f32 %v3635, %v3699
  %v3828 = vmax.f32 %v3636, %v3700
  %v3829 = vmax.f32 %v3637, %v3701
  %v3830 = vmax.f32 %v3638, %v3702
  %v3831 = vmax.f32 %v3639, %v3703
  %v3832 = vmax.f32 %v3640, %v3704
  %v3833 = vmax.f32 %v3641, %v3705
  %v3834 = vmax.f32 %v3642, %v3706
  %v3835 = vmax.f32 %v3643, %v3707
  %v3836 = vmax.f32 %v3708, %v3772
  %v3837 = vmax.f32 %v3709, %v3773
  %v3838 = vmax.f32 %v3710, %v3774
  %v3839 = vmax.f32 %v3711, %v3775
  %v3840 = vmax.f32 %v3712, %v3776
  %v3841 = vmax.f32 %v3713, %v3777
  %v3842 = vmax.f32 %v3714, %v3778
  %v3843 = vmax.f32 %v3715, %v3779
  %v3844 = vmax.f32 %v3716, %v3780
  %v3845 = vmax.f32 %v3717, %v3781
  %v3846 = vmax.f32 %v3718, %v3782
  %v3847 = vmax.f32 %v3719, %v3783
  %v3848 = vmax.f32 %v3720, %v3784
  %v3849 = vmax.f32 %v3721, %v3785
  %v3850 = vmax.f32 %v3722, %v3786
  %v3851 = vmax.f32 %v3723, %v3787
  %v3852 = vmax.f32 %v3724, %v3788
  %v3853 = vmax.f32 %v3725, %v3789
  %v3854 = vmax.f32 %v3726, %v3790
  %v3855 = vmax.f32 %v3727, %v3791
  %v3856 = vmax.f32 %v3728, %v3792
  %v3857 = vmax.f32 %v3729, %v3793
  %v3858 = vmax.f32 %v3730, %v3794
  %v3859 = vmax.f32 %v3731, %v3795
  %v3860 = vmax.f32 %v3732, %v3796
  %v3861 = vmax.f32 %v3733, %v3797
  %v3862 = vmax.f32 %v3734, %v3798
  %v3863 = vmax.f32 %v3735, %v3799
  %v3864 = vmax.f32 %v3736, %v3800
  %v3865 = vmax.f32 %v3737, %v3801
  %v3866 = vmax.f32 %v3738, %v3802
  %v3867 = vmax.f32 %v3739, %v3803
  %v3868 = vmax.f32 %v3740, %v3804
  %v3869 = vmax.f32 %v3741, %v3805
  %v3870 = vmax.f32 %v3742, %v3806
  %v3871 = vmax.f32 %v3743, %v3807
  %v3872 = vmax.f32 %v3744, %v3808
  %v3873 = vmax.f32 %v3745, %v3809
  %v3874 = vmax.f32 %v3746, %v3810
  %v3875 = vmax.f32 %v3747, %v3811
  %v3876 = vmax.f32 %v3748, %v3812
  %v3877 = vmax.f32 %v3749, %v3813
  %v3878 = vmax.f32 %v3750, %v3814
  %v3879 = vmax.f32 %v3751, %v3815
  %v3880 = vmax.f32 %v3752, %v3816
  %v3881 = vmax.f32 %v3753, %v3817
  %v3882 = vmax.f32 %v3754, %v3818
  %v3883 = vmax.f32 %v3755, %v3819
  %v3884 = vmax.f32 %v3756, %v3820
  %v3885 = vmax.f32 %v3757, %v3821
  %v3886 = vmax.f32 %v3758, %v3822
  %v3887 = vmax.f32 %v3759, %v3823
  %v3888 = vmax.f32 %v3760, %v3824
  %v3889 = vmax.f32 %v3761, %v3825
  %v3890 = vmax.f32 %v3762, %v3826
  %v3891 = vmax.f32 %v3763, %v3827
  %v3892 = vmax.f32 %v3764, %v3828
  %v3893 = vmax.f32 %v3765, %v3829
  %v3894 = vmax.f32 %v3766, %v3830
  %v3895 = vmax.f32 %v3767, %v3831
  %v3896 = vmax.f32 %v3768, %v3832
  %v3897 = vmax.f32 %v3769, %v3833
  %v3898 = vmax.f32 %v3770, %v3834
  %v3899 = vmax.f32 %v3771, %v3835
  %3900 = vst [vmem:[%s5] sm:$0xff] %v3836
  %3901 = vst [vmem:[%s5 + $0x8] sm:$0xff] %v3837
  %3902 = vst [vmem:[%s5 + $0x10] sm:$0xff] %v3838
  %3903 = vst [vmem:[%s5 + $0x18] sm:$0xff] %v3839
  %3904 = vst [vmem:[%s5 + $0x20] sm:$0xff] %v3840
  %3905 = vst [vmem:[%s5 + $0x28] sm:$0xff] %v3841
  %3906 = vst [vmem:[%s5 + $0x30] sm:$0xff] %v3842
  %3907 = vst [vmem:[%s5 + $0x38] sm:$0xff] %v3843
  %3908 = vst [vmem:[%s5 + $0x40] sm:$0xff] %v3844
  %3909 = vst [vmem:[%s5 + $0x48] sm:$0xff] %v3845
  %3910 = vst [vmem:[%s5 + $0x50] sm:$0xff] %v3846
  %3911 = vst [vmem:[%s5 + $0x58] sm:$0xff] %v3847
  %3912 = vst [vmem:[%s5 + $0x60] sm:$0xff] %v3848
  %3913 = vst [vmem:[%s5 + $0x68] sm:$0xff] %v3849
  %3914 = vst [vmem:[%s5 + $0x70] sm:$0xff] %v3850
  %3915 = vst [vmem:[%s5 + $0x78] sm:$0xff] %v3851
  %3916 = vst [vmem:[%s5 + $0x80] sm:$0xff] %v3852
  %3917 = vst [vmem:[%s5 + $0x88] sm:$0xff] %v3853
  %3918 = vst [vmem:[%s5 + $0x90] sm:$0xff] %v3854
  %3919 = vst [vmem:[%s5 + $0x98] sm:$0xff] %v3855
  %3920 = vst [vmem:[%s5 + $0xa0] sm:$0xff] %v3856
  %3921 = vst [vmem:[%s5 + $0xa8] sm:$0xff] %v3857
  %3922 = vst [vmem:[%s5 + $0xb0] sm:$0xff] %v3858
  %3923 = vst [vmem:[%s5 + $0xb8] sm:$0xff] %v3859
  %3924 = vst [vmem:[%s5 + $0xc0] sm:$0xff] %v3860
  %3925 = vst [vmem:[%s5 + $0xc8] sm:$0xff] %v3861
  %3926 = vst [vmem:[%s5 + $0xd0] sm:$0xff] %v3862
  %3927 = vst [vmem:[%s5 + $0xd8] sm:$0xff] %v3863
  %3928 = vst [vmem:[%s5 + $0xe0] sm:$0xff] %v3864
  %3929 = vst [vmem:[%s5 + $0xe8] sm:$0xff] %v3865
  %3930 = vst [vmem:[%s5 + $0xf0] sm:$0xff] %v3866
  %3931 = vst [vmem:[%s5 + $0xf8] sm:$0xff] %v3867
  %3932 = vst [vmem:[%s5 + $0x100] sm:$0xff] %v3868
  %3933 = vst [vmem:[%s5 + $0x108] sm:$0xff] %v3869
  %3934 = vst [vmem:[%s5 + $0x110] sm:$0xff] %v3870
  %3935 = vst [vmem:[%s5 + $0x118] sm:$0xff] %v3871
  %3936 = vst [vmem:[%s5 + $0x120] sm:$0xff] %v3872
  %3937 = vst [vmem:[%s5 + $0x128] sm:$0xff] %v3873
  %3938 = vst [vmem:[%s5 + $0x130] sm:$0xff] %v3874
  %3939 = vst [vmem:[%s5 + $0x138] sm:$0xff] %v3875
  %3940 = vst [vmem:[%s5 + $0x140] sm:$0xff] %v3876
  %3941 = vst [vmem:[%s5 + $0x148] sm:$0xff] %v3877
  %3942 = vst [vmem:[%s5 + $0x150] sm:$0xff] %v3878
  %3943 = vst [vmem:[%s5 + $0x158] sm:$0xff] %v3879
  %3944 = vst [vmem:[%s5 + $0x160] sm:$0xff] %v3880
  %3945 = vst [vmem:[%s5 + $0x168] sm:$0xff] %v3881
  %3946 = vst [vmem:[%s5 + $0x170] sm:$0xff] %v3882
  %3947 = vst [vmem:[%s5 + $0x178] sm:$0xff] %v3883
  %3948 = vst [vmem:[%s5 + $0x180] sm:$0xff] %v3884
  %3949 = vst [vmem:[%s5 + $0x188] sm:$0xff] %v3885
  %3950 = vst [vmem:[%s5 + $0x190] sm:$0xff] %v3886
  %3951 = vst [vmem:[%s5 + $0x198] sm:$0xff] %v3887
  %3952 = vst [vmem:[%s5 + $0x1a0] sm:$0xff] %v3888
  %3953 = vst [vmem:[%s5 + $0x1a8] sm:$0xff] %v3889
  %3954 = vst [vmem:[%s5 + $0x1b0] sm:$0xff] %v3890
  %3955 = vst [vmem:[%s5 + $0x1b8] sm:$0xff] %v3891
  %3956 = vst [vmem:[%s5 + $0x1c0] sm:$0xff] %v3892
  %3957 = vst [vmem:[%s5 + $0x1c8] sm:$0xff] %v3893
  %3958 = vst [vmem:[%s5 + $0x1d0] sm:$0xff] %v3894
  %3959 = vst [vmem:[%s5 + $0x1d8] sm:$0xff] %v3895
  %3960 = vst [vmem:[%s5 + $0x1e0] sm:$0xff] %v3896
  %3961 = vst [vmem:[%s5 + $0x1e8] sm:$0xff] %v3897
  %3962 = vst [vmem:[%s5 + $0x1f0] sm:$0xff] %v3898
  %3963 = vst [vmem:[%s5 + $0x1f8] sm:$0xff] %v3899
  // Predicated region
  $region22: #{conv_classifier_forward.5} parent=0 // pred_check
    _
  $region23: #{conv_classifier_forward.5} parent=0 // pred_check_branch
    %3965 = sbr.rel (0) target = $region25
  $region24: #{conv_classifier_forward.5} parent=0 // pred_region
    _
  $region25: #{conv_classifier_forward.5} parent=0 // pred_fallthru
    _
  // Predicated region
  $region26: #{conv_classifier_forward.5} parent=0 // pred_check
    _
  $region27: #{conv_classifier_forward.5} parent=0 // pred_check_branch
    %3967 = sbr.rel (0) target = $region29
  $region28: #{conv_classifier_forward.5} parent=0 // pred_region
    _
  $region29: #{conv_classifier_forward.5} parent=0 // pred_fallthru
    _

// kernel: conv_classifier_forward.6
$region0: #{conv_classifier_forward.6}
  #allocation0 [shape = 'u32[]', space=smem, size = 0x4, offset = 0x4, fixed_abs, tag = 'smem constant byte address 0x4 - core index']
  #allocation1 [shape = 'u32[144,128]{1,0:T(1,128)}', space=vmem, size = 0x12000, scoped, tag = 'internal scratch']
  %s0 = inlined_call_operand.vmem [shape: f32[512,400], index: 0, kind: input, shape index: {}]
  %s1 = inlined_call_operand.vmem [shape: f32[400,128], index: 1, kind: input, shape index: {}]
  %s2 = inlined_call_operand.vmem [shape: f32[1,128], index: 2, kind: input, shape index: {}]
  %s3 = inlined_call_operand.vmem [shape: f32[1,128], index: 3, kind: input, shape index: {}]
  %s4 = inlined_call_operand.vmem [shape: f32[1,128], index: 4, kind: input, shape index: {}]
  %s5 = inlined_call_operand.vmem [shape: f32[128,128], index: 5, kind: output, shape index: {}]
  %s6 = sld [smem:[#allocation0]]
  $region30: #{conv_classifier_forward.6} parent=0
    _
  %s8 = ssub.s32 1, %s6
  %s9 = scalar_select 0, %s8, %s6
  // Predicated region
  $region2: #{conv_classifier_forward.6} parent=0 // pred_check
    _
  $region3: #{conv_classifier_forward.6} parent=0 // pred_check_branch
    %11 = sbr.rel (0) target = $region5
  $region4: #{conv_classifier_forward.6} parent=0 // pred_region
    _
  $region5: #{conv_classifier_forward.6} parent=0 // pred_fallthru
    _
  // Predicated region
  $region6: #{conv_classifier_forward.6} parent=0 // pred_check
    _
  $region7: #{conv_classifier_forward.6} parent=0 // pred_check_branch
    %13 = sbr.rel (0) target = $region9
  $region8: #{conv_classifier_forward.6} parent=0 // pred_region
    _
  $region9: #{conv_classifier_forward.6} parent=0 // pred_fallthru
    _
  // Predicated region
  $region10: #{conv_classifier_forward.6} parent=0 // pred_check
    _
  $region11: #{conv_classifier_forward.6} parent=0 // pred_check_branch
    %15 = sbr.rel (0) target = $region13
  $region12: #{conv_classifier_forward.6} parent=0 // pred_region
    _
  $region13: #{conv_classifier_forward.6} parent=0 // pred_fallthru
    _
  // Predicated region
  $region14: #{conv_classifier_forward.6} parent=0 // pred_check
    _
  $region15: #{conv_classifier_forward.6} parent=0 // pred_check_branch
    %17 = sbr.rel (0) target = $region17
  $region16: #{conv_classifier_forward.6} parent=0 // pred_region
    _
  $region17: #{conv_classifier_forward.6} parent=0 // pred_fallthru
    _
  // Predicated region
  $region18: #{conv_classifier_forward.6} parent=0 // pred_check
    _
  $region19: #{conv_classifier_forward.6} parent=0 // pred_check_branch
    %19 = sbr.rel (0) target = $region21
  $region20: #{conv_classifier_forward.6} parent=0 // pred_region
    _
  $region21: #{conv_classifier_forward.6} parent=0 // pred_fallthru
    _
  %v20 = vld [vmem:[%s0] sm:$0xff]
  %v21 = vld [vmem:[%s0 + $0x8] sm:$0xff]
  %v22 = vld [vmem:[%s0 + $0x10] sm:$0xff]
  %v23 = vld [vmem:[%s0 + $0x18] sm:$0xff]
  %v24 = vld [vmem:[%s0 + $0x20] sm:$0xff]
  %v25 = vld [vmem:[%s0 + $0x28] sm:$0xff]
  %v26 = vld [vmem:[%s0 + $0x30] sm:$0xff]
  %v27 = vld [vmem:[%s0 + $0x38] sm:$0xff]
  %v28 = vld [vmem:[%s0 + $0x40] sm:$0xff]
  %v29 = vld [vmem:[%s0 + $0x48] sm:$0xff]
  %v30 = vld [vmem:[%s0 + $0x50] sm:$0xff]
  %v31 = vld [vmem:[%s0 + $0x58] sm:$0xff]
  %v32 = vld [vmem:[%s0 + $0x60] sm:$0xff]
  %v33 = vld [vmem:[%s0 + $0x68] sm:$0xff]
  %v34 = vld [vmem:[%s0 + $0x70] sm:$0xff]
  %v35 = vld [vmem:[%s0 + $0x78] sm:$0xff]
  %v36 = vld [vmem:[%s0 + $0x80] sm:$0xff]
  %v37 = vld [vmem:[%s0 + $0x88] sm:$0xff]
  %v38 = vld [vmem:[%s0 + $0x90] sm:$0xff]
  %v39 = vld [vmem:[%s0 + $0x98] sm:$0xff]
  %v40 = vld [vmem:[%s0 + $0xa0] sm:$0xff]
  %v41 = vld [vmem:[%s0 + $0xa8] sm:$0xff]
  %v42 = vld [vmem:[%s0 + $0xb0] sm:$0xff]
  %v43 = vld [vmem:[%s0 + $0xb8] sm:$0xff]
  %v44 = vld [vmem:[%s0 + $0xc0] sm:$0xff]
  %v45 = vld [vmem:[%s0 + $0xc8] sm:$0xff]
  %v46 = vld [vmem:[%s0 + $0xd0] sm:$0xff]
  %v47 = vld [vmem:[%s0 + $0xd8] sm:$0xff]
  %v48 = vld [vmem:[%s0 + $0xe0] sm:$0xff]
  %v49 = vld [vmem:[%s0 + $0xe8] sm:$0xff]
  %v50 = vld [vmem:[%s0 + $0xf0] sm:$0xff]
  %v51 = vld [vmem:[%s0 + $0xf8] sm:$0xff]
  %v52 = vld [vmem:[%s0 + $0x100] sm:$0xff]
  %v53 = vld [vmem:[%s0 + $0x108] sm:$0xff]
  %v54 = vld [vmem:[%s0 + $0x110] sm:$0xff]
  %v55 = vld [vmem:[%s0 + $0x118] sm:$0xff]
  %v56 = vld [vmem:[%s0 + $0x120] sm:$0xff]
  %v57 = vld [vmem:[%s0 + $0x128] sm:$0xff]
  %v58 = vld [vmem:[%s0 + $0x130] sm:$0xff]
  %v59 = vld [vmem:[%s0 + $0x138] sm:$0xff]
  %v60 = vld [vmem:[%s0 + $0x140] sm:$0xff]
  %v61 = vld [vmem:[%s0 + $0x148] sm:$0xff]
  %v62 = vld [vmem:[%s0 + $0x150] sm:$0xff]
  %v63 = vld [vmem:[%s0 + $0x158] sm:$0xff]
  %v64 = vld [vmem:[%s0 + $0x160] sm:$0xff]
  %v65 = vld [vmem:[%s0 + $0x168] sm:$0xff]
  %v66 = vld [vmem:[%s0 + $0x170] sm:$0xff]
  %v67 = vld [vmem:[%s0 + $0x178] sm:$0xff]
  %v68 = vld [vmem:[%s0 + $0x180] sm:$0xff]
  %v69 = vld [vmem:[%s0 + $0x188] sm:$0xff]
  %v70 = vld [vmem:[%s0 + $0x190] sm:$0xff]
  %v71 = vld [vmem:[%s0 + $0x198] sm:$0xff]
  %v72 = vld [vmem:[%s0 + $0x1a0] sm:$0xff]
  %v73 = vld [vmem:[%s0 + $0x1a8] sm:$0xff]
  %v74 = vld [vmem:[%s0 + $0x1b0] sm:$0xff]
  %v75 = vld [vmem:[%s0 + $0x1b8] sm:$0xff]
  %v76 = vld [vmem:[%s0 + $0x1c0] sm:$0xff]
  %v77 = vld [vmem:[%s0 + $0x1c8] sm:$0xff]
  %v78 = vld [vmem:[%s0 + $0x1d0] sm:$0xff]
  %v79 = vld [vmem:[%s0 + $0x1d8] sm:$0xff]
  %v80 = vld [vmem:[%s0 + $0x1e0] sm:$0xff]
  %v81 = vld [vmem:[%s0 + $0x1e8] sm:$0xff]
  %v82 = vld [vmem:[%s0 + $0x1f0] sm:$0xff]
  %v83 = vld [vmem:[%s0 + $0x1f8] sm:$0xff]
  %v84 = vld [vmem:[%s0 + $0x200] sm:$0xff]
  %v85 = vld [vmem:[%s0 + $0x208] sm:$0xff]
  %v86 = vld [vmem:[%s0 + $0x210] sm:$0xff]
  %v87 = vld [vmem:[%s0 + $0x218] sm:$0xff]
  %v88 = vld [vmem:[%s0 + $0x220] sm:$0xff]
  %v89 = vld [vmem:[%s0 + $0x228] sm:$0xff]
  %v90 = vld [vmem:[%s0 + $0x230] sm:$0xff]
  %v91 = vld [vmem:[%s0 + $0x238] sm:$0xff]
  %v92 = vld [vmem:[%s0 + $0x240] sm:$0xff]
  %v93 = vld [vmem:[%s0 + $0x248] sm:$0xff]
  %v94 = vld [vmem:[%s0 + $0x250] sm:$0xff]
  %v95 = vld [vmem:[%s0 + $0x258] sm:$0xff]
  %v96 = vld [vmem:[%s0 + $0x260] sm:$0xff]
  %v97 = vld [vmem:[%s0 + $0x268] sm:$0xff]
  %v98 = vld [vmem:[%s0 + $0x270] sm:$0xff]
  %v99 = vld [vmem:[%s0 + $0x278] sm:$0xff]
  %v100 = vld [vmem:[%s0 + $0x280] sm:$0xff]
  %v101 = vld [vmem:[%s0 + $0x288] sm:$0xff]
  %v102 = vld [vmem:[%s0 + $0x290] sm:$0xff]
  %v103 = vld [vmem:[%s0 + $0x298] sm:$0xff]
  %v104 = vld [vmem:[%s0 + $0x2a0] sm:$0xff]
  %v105 = vld [vmem:[%s0 + $0x2a8] sm:$0xff]
  %v106 = vld [vmem:[%s0 + $0x2b0] sm:$0xff]
  %v107 = vld [vmem:[%s0 + $0x2b8] sm:$0xff]
  %v108 = vld [vmem:[%s0 + $0x2c0] sm:$0xff]
  %v109 = vld [vmem:[%s0 + $0x2c8] sm:$0xff]
  %v110 = vld [vmem:[%s0 + $0x2d0] sm:$0xff]
  %v111 = vld [vmem:[%s0 + $0x2d8] sm:$0xff]
  %v112 = vld [vmem:[%s0 + $0x2e0] sm:$0xff]
  %v113 = vld [vmem:[%s0 + $0x2e8] sm:$0xff]
  %v114 = vld [vmem:[%s0 + $0x2f0] sm:$0xff]
  %v115 = vld [vmem:[%s0 + $0x2f8] sm:$0xff]
  %v116 = vld [vmem:[%s0 + $0x300] sm:$0xff]
  %v117 = vld [vmem:[%s0 + $0x308] sm:$0xff]
  %v118 = vld [vmem:[%s0 + $0x310] sm:$0xff]
  %v119 = vld [vmem:[%s0 + $0x318] sm:$0xff]
  %v120 = vld [vmem:[%s0 + $0x320] sm:$0xff]
  %v121 = vld [vmem:[%s0 + $0x328] sm:$0xff]
  %v122 = vld [vmem:[%s0 + $0x330] sm:$0xff]
  %v123 = vld [vmem:[%s0 + $0x338] sm:$0xff]
  %v124 = vld [vmem:[%s0 + $0x340] sm:$0xff]
  %v125 = vld [vmem:[%s0 + $0x348] sm:$0xff]
  %v126 = vld [vmem:[%s0 + $0x350] sm:$0xff]
  %v127 = vld [vmem:[%s0 + $0x358] sm:$0xff]
  %v128 = vld [vmem:[%s0 + $0x360] sm:$0xff]
  %v129 = vld [vmem:[%s0 + $0x368] sm:$0xff]
  %v130 = vld [vmem:[%s0 + $0x370] sm:$0xff]
  %v131 = vld [vmem:[%s0 + $0x378] sm:$0xff]
  %v132 = vld [vmem:[%s0 + $0x380] sm:$0xff]
  %v133 = vld [vmem:[%s0 + $0x388] sm:$0xff]
  %v134 = vld [vmem:[%s0 + $0x390] sm:$0xff]
  %v135 = vld [vmem:[%s0 + $0x398] sm:$0xff]
  %v136 = vld [vmem:[%s0 + $0x3a0] sm:$0xff]
  %v137 = vld [vmem:[%s0 + $0x3a8] sm:$0xff]
  %v138 = vld [vmem:[%s0 + $0x3b0] sm:$0xff]
  %v139 = vld [vmem:[%s0 + $0x3b8] sm:$0xff]
  %v140 = vld [vmem:[%s0 + $0x3c0] sm:$0xff]
  %v141 = vld [vmem:[%s0 + $0x3c8] sm:$0xff]
  %v142 = vld [vmem:[%s0 + $0x3d0] sm:$0xff]
  %v143 = vld [vmem:[%s0 + $0x3d8] sm:$0xff]
  %v144 = vld [vmem:[%s0 + $0x3e0] sm:$0xff]
  %v145 = vld [vmem:[%s0 + $0x3e8] sm:$0xff]
  %v146 = vld [vmem:[%s0 + $0x3f0] sm:$0xff]
  %v147 = vld [vmem:[%s0 + $0x3f8] sm:$0xff]
  %v148 = vld [vmem:[%s0 + $0x400] sm:$0xff]
  %v149 = vld [vmem:[%s0 + $0x408] sm:$0xff]
  %v150 = vld [vmem:[%s0 + $0x410] sm:$0xff]
  %v151 = vld [vmem:[%s0 + $0x418] sm:$0xff]
  %v152 = vld [vmem:[%s0 + $0x420] sm:$0xff]
  %v153 = vld [vmem:[%s0 + $0x428] sm:$0xff]
  %v154 = vld [vmem:[%s0 + $0x430] sm:$0xff]
  %v155 = vld [vmem:[%s0 + $0x438] sm:$0xff]
  %v156 = vld [vmem:[%s0 + $0x440] sm:$0xff]
  %v157 = vld [vmem:[%s0 + $0x448] sm:$0xff]
  %v158 = vld [vmem:[%s0 + $0x450] sm:$0xff]
  %v159 = vld [vmem:[%s0 + $0x458] sm:$0xff]
  %v160 = vld [vmem:[%s0 + $0x460] sm:$0xff]
  %v161 = vld [vmem:[%s0 + $0x468] sm:$0xff]
  %v162 = vld [vmem:[%s0 + $0x470] sm:$0xff]
  %v163 = vld [vmem:[%s0 + $0x478] sm:$0xff]
  %v164 = vld [vmem:[%s0 + $0x480] sm:$0xff]
  %v165 = vld [vmem:[%s0 + $0x488] sm:$0xff]
  %v166 = vld [vmem:[%s0 + $0x490] sm:$0xff]
  %v167 = vld [vmem:[%s0 + $0x498] sm:$0xff]
  %v168 = vld [vmem:[%s0 + $0x4a0] sm:$0xff]
  %v169 = vld [vmem:[%s0 + $0x4a8] sm:$0xff]
  %v170 = vld [vmem:[%s0 + $0x4b0] sm:$0xff]
  %v171 = vld [vmem:[%s0 + $0x4b8] sm:$0xff]
  %v172 = vld [vmem:[%s0 + $0x4c0] sm:$0xff]
  %v173 = vld [vmem:[%s0 + $0x4c8] sm:$0xff]
  %v174 = vld [vmem:[%s0 + $0x4d0] sm:$0xff]
  %v175 = vld [vmem:[%s0 + $0x4d8] sm:$0xff]
  %v176 = vld [vmem:[%s0 + $0x4e0] sm:$0xff]
  %v177 = vld [vmem:[%s0 + $0x4e8] sm:$0xff]
  %v178 = vld [vmem:[%s0 + $0x4f0] sm:$0xff]
  %v179 = vld [vmem:[%s0 + $0x4f8] sm:$0xff]
  %v180 = vld [vmem:[%s0 + $0x500] sm:$0xff]
  %v181 = vld [vmem:[%s0 + $0x508] sm:$0xff]
  %v182 = vld [vmem:[%s0 + $0x510] sm:$0xff]
  %v183 = vld [vmem:[%s0 + $0x518] sm:$0xff]
  %v184 = vld [vmem:[%s0 + $0x520] sm:$0xff]
  %v185 = vld [vmem:[%s0 + $0x528] sm:$0xff]
  %v186 = vld [vmem:[%s0 + $0x530] sm:$0xff]
  %v187 = vld [vmem:[%s0 + $0x538] sm:$0xff]
  %v188 = vld [vmem:[%s0 + $0x540] sm:$0xff]
  %v189 = vld [vmem:[%s0 + $0x548] sm:$0xff]
  %v190 = vld [vmem:[%s0 + $0x550] sm:$0xff]
  %v191 = vld [vmem:[%s0 + $0x558] sm:$0xff]
  %v192 = vld [vmem:[%s0 + $0x560] sm:$0xff]
  %v193 = vld [vmem:[%s0 + $0x568] sm:$0xff]
  %v194 = vld [vmem:[%s0 + $0x570] sm:$0xff]
  %v195 = vld [vmem:[%s0 + $0x578] sm:$0xff]
  %v196 = vld [vmem:[%s0 + $0x580] sm:$0xff]
  %v197 = vld [vmem:[%s0 + $0x588] sm:$0xff]
  %v198 = vld [vmem:[%s0 + $0x590] sm:$0xff]
  %v199 = vld [vmem:[%s0 + $0x598] sm:$0xff]
  %v200 = vld [vmem:[%s0 + $0x5a0] sm:$0xff]
  %v201 = vld [vmem:[%s0 + $0x5a8] sm:$0xff]
  %v202 = vld [vmem:[%s0 + $0x5b0] sm:$0xff]
  %v203 = vld [vmem:[%s0 + $0x5b8] sm:$0xff]
  %v204 = vld [vmem:[%s0 + $0x5c0] sm:$0xff]
  %v205 = vld [vmem:[%s0 + $0x5c8] sm:$0xff]
  %v206 = vld [vmem:[%s0 + $0x5d0] sm:$0xff]
  %v207 = vld [vmem:[%s0 + $0x5d8] sm:$0xff]
  %v208 = vld [vmem:[%s0 + $0x5e0] sm:$0xff]
  %v209 = vld [vmem:[%s0 + $0x5e8] sm:$0xff]
  %v210 = vld [vmem:[%s0 + $0x5f0] sm:$0xff]
  %v211 = vld [vmem:[%s0 + $0x5f8] sm:$0xff]
  %v212 = vld [vmem:[%s0 + $0x600] sm:$0xff]
  %v213 = vld [vmem:[%s0 + $0x608] sm:$0xff]
  %v214 = vld [vmem:[%s0 + $0x610] sm:$0xff]
  %v215 = vld [vmem:[%s0 + $0x618] sm:$0xff]
  %v216 = vld [vmem:[%s0 + $0x620] sm:$0xff]
  %v217 = vld [vmem:[%s0 + $0x628] sm:$0xff]
  %v218 = vld [vmem:[%s0 + $0x630] sm:$0xff]
  %v219 = vld [vmem:[%s0 + $0x638] sm:$0xff]
  %v220 = vld [vmem:[%s0 + $0x640] sm:$0xff]
  %v221 = vld [vmem:[%s0 + $0x648] sm:$0xff]
  %v222 = vld [vmem:[%s0 + $0x650] sm:$0xff]
  %v223 = vld [vmem:[%s0 + $0x658] sm:$0xff]
  %v224 = vld [vmem:[%s0 + $0x660] sm:$0xff]
  %v225 = vld [vmem:[%s0 + $0x668] sm:$0xff]
  %v226 = vld [vmem:[%s0 + $0x670] sm:$0xff]
  %v227 = vld [vmem:[%s0 + $0x678] sm:$0xff]
  %v228 = vld [vmem:[%s0 + $0x680] sm:$0xff]
  %v229 = vld [vmem:[%s0 + $0x688] sm:$0xff]
  %v230 = vld [vmem:[%s0 + $0x690] sm:$0xff]
  %v231 = vld [vmem:[%s0 + $0x698] sm:$0xff]
  %v232 = vld [vmem:[%s0 + $0x6a0] sm:$0xff]
  %v233 = vld [vmem:[%s0 + $0x6a8] sm:$0xff]
  %v234 = vld [vmem:[%s0 + $0x6b0] sm:$0xff]
  %v235 = vld [vmem:[%s0 + $0x6b8] sm:$0xff]
  %v236 = vld [vmem:[%s0 + $0x6c0] sm:$0xff]
  %v237 = vld [vmem:[%s0 + $0x6c8] sm:$0xff]
  %v238 = vld [vmem:[%s0 + $0x6d0] sm:$0xff]
  %v239 = vld [vmem:[%s0 + $0x6d8] sm:$0xff]
  %v240 = vld [vmem:[%s0 + $0x6e0] sm:$0xff]
  %v241 = vld [vmem:[%s0 + $0x6e8] sm:$0xff]
  %v242 = vld [vmem:[%s0 + $0x6f0] sm:$0xff]
  %v243 = vld [vmem:[%s0 + $0x6f8] sm:$0xff]
  %v244 = vld [vmem:[%s0 + $0x700] sm:$0xff]
  %v245 = vld [vmem:[%s0 + $0x708] sm:$0xff]
  %v246 = vld [vmem:[%s0 + $0x710] sm:$0xff]
  %v247 = vld [vmem:[%s0 + $0x718] sm:$0xff]
  %v248 = vld [vmem:[%s0 + $0x720] sm:$0xff]
  %v249 = vld [vmem:[%s0 + $0x728] sm:$0xff]
  %v250 = vld [vmem:[%s0 + $0x730] sm:$0xff]
  %v251 = vld [vmem:[%s0 + $0x738] sm:$0xff]
  %v252 = vld [vmem:[%s0 + $0x740] sm:$0xff]
  %v253 = vld [vmem:[%s0 + $0x748] sm:$0xff]
  %v254 = vld [vmem:[%s0 + $0x750] sm:$0xff]
  %v255 = vld [vmem:[%s0 + $0x758] sm:$0xff]
  %v256 = vld [vmem:[%s0 + $0x760] sm:$0xff]
  %v257 = vld [vmem:[%s0 + $0x768] sm:$0xff]
  %v258 = vld [vmem:[%s0 + $0x770] sm:$0xff]
  %v259 = vld [vmem:[%s0 + $0x778] sm:$0xff]
  %v260 = vld [vmem:[%s0 + $0x780] sm:$0xff]
  %v261 = vld [vmem:[%s0 + $0x788] sm:$0xff]
  %v262 = vld [vmem:[%s0 + $0x790] sm:$0xff]
  %v263 = vld [vmem:[%s0 + $0x798] sm:$0xff]
  %v264 = vld [vmem:[%s0 + $0x7a0] sm:$0xff]
  %v265 = vld [vmem:[%s0 + $0x7a8] sm:$0xff]
  %v266 = vld [vmem:[%s0 + $0x7b0] sm:$0xff]
  %v267 = vld [vmem:[%s0 + $0x7b8] sm:$0xff]
  %v268 = vld [vmem:[%s0 + $0x7c0] sm:$0xff]
  %v269 = vld [vmem:[%s0 + $0x7c8] sm:$0xff]
  %v270 = vld [vmem:[%s0 + $0x7d0] sm:$0xff]
  %v271 = vld [vmem:[%s0 + $0x7d8] sm:$0xff]
  %v272 = vld [vmem:[%s0 + $0x7e0] sm:$0xff]
  %v273 = vld [vmem:[%s0 + $0x7e8] sm:$0xff]
  %v274 = vld [vmem:[%s0 + $0x7f0] sm:$0xff]
  %v275 = vld [vmem:[%s0 + $0x7f8] sm:$0xff]
  %v276 = vld [vmem:[%s1] sm:$0xff]
  %v277 = vld [vmem:[%s1 + $0x8] sm:$0xff]
  %v278 = vld [vmem:[%s1 + $0x10] sm:$0xff]
  %v279 = vld [vmem:[%s1 + $0x18] sm:$0xff]
  %v280 = vld [vmem:[%s1 + $0x20] sm:$0xff]
  %v281 = vld [vmem:[%s1 + $0x28] sm:$0xff]
  %v282 = vld [vmem:[%s1 + $0x30] sm:$0xff]
  %v283 = vld [vmem:[%s1 + $0x38] sm:$0xff]
  %v284 = vld [vmem:[%s1 + $0x40] sm:$0xff]
  %v285 = vld [vmem:[%s1 + $0x48] sm:$0xff]
  %v286 = vld [vmem:[%s1 + $0x50] sm:$0xff]
  %v287 = vld [vmem:[%s1 + $0x58] sm:$0xff]
  %v288 = vld [vmem:[%s1 + $0x60] sm:$0xff]
  %v289 = vld [vmem:[%s1 + $0x68] sm:$0xff]
  %v290 = vld [vmem:[%s1 + $0x70] sm:$0xff]
  %v291 = vld [vmem:[%s1 + $0x78] sm:$0xff]
  %v292 = vld [vmem:[%s1 + $0x80] sm:$0xff]
  %v293 = vld [vmem:[%s1 + $0x88] sm:$0xff]
  %v294 = vld [vmem:[%s1 + $0x90] sm:$0xff]
  %v295 = vld [vmem:[%s1 + $0x98] sm:$0xff]
  %v296 = vld [vmem:[%s1 + $0xa0] sm:$0xff]
  %v297 = vld [vmem:[%s1 + $0xa8] sm:$0xff]
  %v298 = vld [vmem:[%s1 + $0xb0] sm:$0xff]
  %v299 = vld [vmem:[%s1 + $0xb8] sm:$0xff]
  %v300 = vld [vmem:[%s1 + $0xc0] sm:$0xff]
  %v301 = vld [vmem:[%s1 + $0xc8] sm:$0xff]
  %v302 = vld [vmem:[%s1 + $0xd0] sm:$0xff]
  %v303 = vld [vmem:[%s1 + $0xd8] sm:$0xff]
  %v304 = vld [vmem:[%s1 + $0xe0] sm:$0xff]
  %v305 = vld [vmem:[%s1 + $0xe8] sm:$0xff]
  %v306 = vld [vmem:[%s1 + $0xf0] sm:$0xff]
  %v307 = vld [vmem:[%s1 + $0xf8] sm:$0xff]
  %v308 = vld [vmem:[%s1 + $0x100] sm:$0xff]
  %v309 = vld [vmem:[%s1 + $0x108] sm:$0xff]
  %v310 = vld [vmem:[%s1 + $0x110] sm:$0xff]
  %v311 = vld [vmem:[%s1 + $0x118] sm:$0xff]
  %v312 = vld [vmem:[%s1 + $0x120] sm:$0xff]
  %v313 = vld [vmem:[%s1 + $0x128] sm:$0xff]
  %v314 = vld [vmem:[%s1 + $0x130] sm:$0xff]
  %v315 = vld [vmem:[%s1 + $0x138] sm:$0xff]
  %v316 = vld [vmem:[%s1 + $0x140] sm:$0xff]
  %v317 = vld [vmem:[%s1 + $0x148] sm:$0xff]
  %v318 = vld [vmem:[%s1 + $0x150] sm:$0xff]
  %v319 = vld [vmem:[%s1 + $0x158] sm:$0xff]
  %v320 = vld [vmem:[%s1 + $0x160] sm:$0xff]
  %v321 = vld [vmem:[%s1 + $0x168] sm:$0xff]
  %v322 = vld [vmem:[%s1 + $0x170] sm:$0xff]
  %v323 = vld [vmem:[%s1 + $0x178] sm:$0xff]
  %v324 = vld [vmem:[%s1 + $0x180] sm:$0xff]
  %v325 = vld [vmem:[%s1 + $0x188] sm:$0xff]
  %v326 = vld [vmem:[%s2] sm:$0x1]
  %v328 = vlaneseq
  %v329 = vshrl.u32 %v328, 7
  %v330 = vsub.s32 0, %v329
  %v331 = vrot.slane %v326, %v330
  %vm333 = vcmask 130048
  %v335 = vsel %vm333, %v23, 0
  %v338 = vsel %vm333, %v27, 0
  %v341 = vsel %vm333, %v31, 0
  %v344 = vsel %vm333, %v35, 0
  %v347 = vsel %vm333, %v39, 0
  %v350 = vsel %vm333, %v43, 0
  %v353 = vsel %vm333, %v47, 0
  %v356 = vsel %vm333, %v51, 0
  %v359 = vsel %vm333, %v55, 0
  %v362 = vsel %vm333, %v59, 0
  %v365 = vsel %vm333, %v63, 0
  %v368 = vsel %vm333, %v67, 0
  %v371 = vsel %vm333, %v71, 0
  %v374 = vsel %vm333, %v75, 0
  %v377 = vsel %vm333, %v79, 0
  %v380 = vsel %vm333, %v83, 0
  %v383 = vsel %vm333, %v87, 0
  %v386 = vsel %vm333, %v91, 0
  %v389 = vsel %vm333, %v95, 0
  %v392 = vsel %vm333, %v99, 0
  %v395 = vsel %vm333, %v103, 0
  %v398 = vsel %vm333, %v107, 0
  %v401 = vsel %vm333, %v111, 0
  %v404 = vsel %vm333, %v115, 0
  %v407 = vsel %vm333, %v119, 0
  %v410 = vsel %vm333, %v123, 0
  %v413 = vsel %vm333, %v127, 0
  %v416 = vsel %vm333, %v131, 0
  %v419 = vsel %vm333, %v135, 0
  %v422 = vsel %vm333, %v139, 0
  %v425 = vsel %vm333, %v143, 0
  %v428 = vsel %vm333, %v147, 0
  %v431 = vsel %vm333, %v151, 0
  %v434 = vsel %vm333, %v155, 0
  %v437 = vsel %vm333, %v159, 0
  %v440 = vsel %vm333, %v163, 0
  %v443 = vsel %vm333, %v167, 0
  %v446 = vsel %vm333, %v171, 0
  %v449 = vsel %vm333, %v175, 0
  %v452 = vsel %vm333, %v179, 0
  %v455 = vsel %vm333, %v183, 0
  %v458 = vsel %vm333, %v187, 0
  %v461 = vsel %vm333, %v191, 0
  %v464 = vsel %vm333, %v195, 0
  %v467 = vsel %vm333, %v199, 0
  %v470 = vsel %vm333, %v203, 0
  %v473 = vsel %vm333, %v207, 0
  %v476 = vsel %vm333, %v211, 0
  %v479 = vsel %vm333, %v215, 0
  %v482 = vsel %vm333, %v219, 0
  %v485 = vsel %vm333, %v223, 0
  %v488 = vsel %vm333, %v227, 0
  %v491 = vsel %vm333, %v231, 0
  %v494 = vsel %vm333, %v235, 0
  %v497 = vsel %vm333, %v239, 0
  %v500 = vsel %vm333, %v243, 0
  %v503 = vsel %vm333, %v247, 0
  %v506 = vsel %vm333, %v251, 0
  %v509 = vsel %vm333, %v255, 0
  %v512 = vsel %vm333, %v259, 0
  %v515 = vsel %vm333, %v263, 0
  %v518 = vsel %vm333, %v267, 0
  %v521 = vsel %vm333, %v271, 0
  %v524 = vsel %vm333, %v275, 0
  %526 = vmatprep.subr.mxu0 0.0
  %527 = vmatpush1.msra.mxu0 %v276
  %528 = vmatprep.subr.mxu0 0.0
  %529 = vmatpush1.msra.mxu0 %v277
  %530 = vmatprep.subr.mxu0 0.0
  %531 = vmatpush1.msra.mxu0 %v278
  %532 = vmatprep.subr.mxu0 0.0
  %533 = vmatpush1.msra.mxu0 %v279
  %534 = vmatprep.subr.mxu0 0.0
  %535 = vmatpush1.msra.mxu0 %v280
  %536 = vmatprep.subr.mxu0 0.0
  %537 = vmatpush1.msra.mxu0 %v281
  %538 = vmatprep.subr.mxu0 0.0
  %539 = vmatpush1.msra.mxu0 %v282
  %540 = vmatprep.subr.mxu0 0.0
  %541 = vmatpush1.msra.mxu0 %v283
  %542 = vmatprep.subr.mxu0 0.0
  %543 = vmatpush1.msra.mxu0 %v284
  %544 = vmatprep.subr.mxu0 0.0
  %545 = vmatpush1.msra.mxu0 %v285
  %546 = vmatprep.subr.mxu0 0.0
  %547 = vmatpush1.msra.mxu0 %v286
  %548 = vmatprep.subr.mxu0 0.0
  %549 = vmatpush1.msra.mxu0 %v287
  %550 = vmatprep.subr.mxu0 0.0
  %551 = vmatpush1.msra.mxu0 %v288
  %552 = vmatprep.subr.mxu0 0.0
  %553 = vmatpush1.msra.mxu0 %v289
  %554 = vmatprep.subr.mxu0 0.0
  %555 = vmatpush1.msra.mxu0 %v290
  %556 = vmatprep.subr.mxu0 0.0
  %557 = vmatpush1.msra.mxu0 %v291
  %558 = vmatprep.subr.mxu0 0.0
  %559 = vmatpush1.msra.mxu0 %v292
  %560 = vmatprep.subr.mxu0 0.0
  %561 = vmatpush1.msra.mxu0 %v293
  %562 = vmatprep.subr.mxu0 0.0
  %563 = vmatpush1.msra.mxu0 %v294
  %564 = vmatprep.subr.mxu0 0.0
  %565 = vmatpush1.msra.mxu0 %v295
  %566 = vmatprep.subr.mxu0 0.0
  %567 = vmatpush1.msra.mxu0 %v296
  %568 = vmatprep.subr.mxu0 0.0
  %569 = vmatpush1.msra.mxu0 %v297
  %570 = vmatprep.subr.mxu0 0.0
  %571 = vmatpush1.msra.mxu0 %v298
  %572 = vmatprep.subr.mxu0 0.0
  %573 = vmatpush1.msra.mxu0 %v299
  %574 = vmatprep.subr.mxu0 0.0
  %575 = vmatpush1.msra.mxu0 %v300
  %576 = vmatprep.subr.mxu0 0.0
  %577 = vmatpush1.msra.mxu0 %v301
  %578 = vmatprep.subr.mxu0 0.0
  %579 = vmatpush1.msra.mxu0 %v302
  %580 = vmatprep.subr.mxu0 0.0
  %581 = vmatpush1.msra.mxu0 %v303
  %582 = vmatprep.subr.mxu0 0.0
  %583 = vmatpush1.msra.mxu0 %v304
  %584 = vmatprep.subr.mxu0 0.0
  %585 = vmatpush1.msra.mxu0 %v305
  %586 = vmatprep.subr.mxu0 0.0
  %587 = vmatpush1.msra.mxu0 %v306
  %588 = vmatprep.subr.mxu0 0.0
  %589 = vmatpush1.msra.mxu0 %v307
  %590 = vmatprep.mubr.f32.mxu0 %v21
  %591 = vmatmul.mubr.f32.gmra.mrb[0].mxu0 %v20
  %v592 = vpop.f32.mrb[0].mxu0
  %v593 = vadd.f32 %v331, %v592
  %v594 = vpop.f32.mrb[0].mxu0
  %595 = vmatprep.mubr.f32.mxu0 %v25
  %596 = vmatmul.mubr.f32.gmra.mrb[0].mxu0 %v24
  %v597 = vpop.f32.mrb[0].mxu0
  %v598 = vadd.f32 %v331, %v597
  %v599 = vpop.f32.mrb[0].mxu0
  %600 = vmatprep.mubr.f32.mxu0 %v29
  %601 = vmatmul.mubr.f32.gmra.mrb[0].mxu0 %v28
  %v602 = vpop.f32.mrb[0].mxu0
  %v603 = vadd.f32 %v331, %v602
  %v604 = vpop.f32.mrb[0].mxu0
  %605 = vmatprep.mubr.f32.mxu0 %v33
  %606 = vmatmul.mubr.f32.gmra.mrb[0].mxu0 %v32
  %v607 = vpop.f32.mrb[0].mxu0
  %v608 = vadd.f32 %v331, %v607
  %v609 = vpop.f32.mrb[0].mxu0
  %610 = vmatprep.mubr.f32.mxu0 %v37
  %611 = vmatmul.mubr.f32.gmra.mrb[0].mxu0 %v36
  %v612 = vpop.f32.mrb[0].mxu0
  %v613 = vadd.f32 %v331, %v612
  %v614 = vpop.f32.mrb[0].mxu0
  %615 = vmatprep.mubr.f32.mxu0 %v41
  %616 = vmatmul.mubr.f32.gmra.mrb[0].mxu0 %v40
  %v617 = vpop.f32.mrb[0].mxu0
  %v618 = vadd.f32 %v331, %v617
  %v619 = vpop.f32.mrb[0].mxu0
  %620 = vmatprep.mubr.f32.mxu0 %v45
  %621 = vmatmul.mubr.f32.gmra.mrb[0].mxu0 %v44
  %v622 = vpop.f32.mrb[0].mxu0
  %v623 = vadd.f32 %v331, %v622
  %v624 = vpop.f32.mrb[0].mxu0
  %625 = vmatprep.mubr.f32.mxu0 %v49
  %626 = vmatmul.mubr.f32.gmra.mrb[0].mxu0 %v48
  %v627 = vpop.f32.mrb[0].mxu0
  %v628 = vadd.f32 %v331, %v627
  %v629 = vpop.f32.mrb[0].mxu0
  %630 = vmatprep.mubr.f32.mxu0 %v53
  %631 = vmatmul.mubr.f32.gmra.mrb[0].mxu0 %v52
  %v632 = vpop.f32.mrb[0].mxu0
  %v633 = vadd.f32 %v331, %v632
  %v634 = vpop.f32.mrb[0].mxu0
  %635 = vmatprep.mubr.f32.mxu0 %v57
  %636 = vmatmul.mubr.f32.gmra.mrb[0].mxu0 %v56
  %v637 = vpop.f32.mrb[0].mxu0
  %v638 = vadd.f32 %v331, %v637
  %v639 = vpop.f32.mrb[0].mxu0
  %640 = vmatprep.mubr.f32.mxu0 %v61
  %641 = vmatmul.mubr.f32.gmra.mrb[0].mxu0 %v60
  %v642 = vpop.f32.mrb[0].mxu0
  %v643 = vadd.f32 %v331, %v642
  %v644 = vpop.f32.mrb[0].mxu0
  %645 = vmatprep.mubr.f32.mxu0 %v65
  %646 = vmatmul.mubr.f32.gmra.mrb[0].mxu0 %v64
  %v647 = vpop.f32.mrb[0].mxu0
  %v648 = vadd.f32 %v331, %v647
  %v649 = vpop.f32.mrb[0].mxu0
  %650 = vmatprep.mubr.f32.mxu0 %v69
  %651 = vmatmul.mubr.f32.gmra.mrb[0].mxu0 %v68
  %v652 = vpop.f32.mrb[0].mxu0
  %v653 = vadd.f32 %v331, %v652
  %v654 = vpop.f32.mrb[0].mxu0
  %655 = vmatprep.mubr.f32.mxu0 %v73
  %656 = vmatmul.mubr.f32.gmra.mrb[0].mxu0 %v72
  %v657 = vpop.f32.mrb[0].mxu0
  %v658 = vadd.f32 %v331, %v657
  %v659 = vpop.f32.mrb[0].mxu0
  %660 = vmatprep.mubr.f32.mxu0 %v77
  %661 = vmatmul.mubr.f32.gmra.mrb[0].mxu0 %v76
  %v662 = vpop.f32.mrb[0].mxu0
  %v663 = vadd.f32 %v331, %v662
  %v664 = vpop.f32.mrb[0].mxu0
  %665 = vmatprep.mubr.f32.mxu0 %v81
  %666 = vmatmul.mubr.f32.gmra.mrb[0].mxu0 %v80
  %v667 = vpop.f32.mrb[0].mxu0
  %v668 = vadd.f32 %v331, %v667
  %v669 = vpop.f32.mrb[0].mxu0
  %670 = vmatprep.mubr.f32.mxu0 %v85
  %671 = vmatmul.mubr.f32.gmra.mrb[0].mxu0 %v84
  %v672 = vpop.f32.mrb[0].mxu0
  %v673 = vadd.f32 %v331, %v672
  %v674 = vpop.f32.mrb[0].mxu0
  %675 = vmatprep.mubr.f32.mxu0 %v89
  %676 = vmatmul.mubr.f32.gmra.mrb[0].mxu0 %v88
  %v677 = vpop.f32.mrb[0].mxu0
  %v678 = vadd.f32 %v331, %v677
  %v679 = vpop.f32.mrb[0].mxu0
  %680 = vmatprep.mubr.f32.mxu0 %v93
  %681 = vmatmul.mubr.f32.gmra.mrb[0].mxu0 %v92
  %v682 = vpop.f32.mrb[0].mxu0
  %v683 = vadd.f32 %v331, %v682
  %v684 = vpop.f32.mrb[0].mxu0
  %685 = vmatprep.mubr.f32.mxu0 %v97
  %686 = vmatmul.mubr.f32.gmra.mrb[0].mxu0 %v96
  %v687 = vpop.f32.mrb[0].mxu0
  %v688 = vadd.f32 %v331, %v687
  %v689 = vpop.f32.mrb[0].mxu0
  %690 = vmatprep.mubr.f32.mxu0 %v101
  %691 = vmatmul.mubr.f32.gmra.mrb[0].mxu0 %v100
  %v692 = vpop.f32.mrb[0].mxu0
  %v693 = vadd.f32 %v331, %v692
  %v694 = vpop.f32.mrb[0].mxu0
  %695 = vmatprep.mubr.f32.mxu0 %v105
  %696 = vmatmul.mubr.f32.gmra.mrb[0].mxu0 %v104
  %v697 = vpop.f32.mrb[0].mxu0
  %v698 = vadd.f32 %v331, %v697
  %v699 = vpop.f32.mrb[0].mxu0
  %700 = vmatprep.mubr.f32.mxu0 %v109
  %701 = vmatmul.mubr.f32.gmra.mrb[0].mxu0 %v108
  %v702 = vpop.f32.mrb[0].mxu0
  %v703 = vadd.f32 %v331, %v702
  %v704 = vpop.f32.mrb[0].mxu0
  %705 = vmatprep.mubr.f32.mxu0 %v113
  %706 = vmatmul.mubr.f32.gmra.mrb[0].mxu0 %v112
  %v707 = vpop.f32.mrb[0].mxu0
  %v708 = vadd.f32 %v331, %v707
  %v709 = vpop.f32.mrb[0].mxu0
  %710 = vmatprep.mubr.f32.mxu0 %v117
  %711 = vmatmul.mubr.f32.gmra.mrb[0].mxu0 %v116
  %v712 = vpop.f32.mrb[0].mxu0
  %v713 = vadd.f32 %v331, %v712
  %v714 = vpop.f32.mrb[0].mxu0
  %715 = vmatprep.mubr.f32.mxu0 %v121
  %716 = vmatmul.mubr.f32.gmra.mrb[0].mxu0 %v120
  %v717 = vpop.f32.mrb[0].mxu0
  %v718 = vadd.f32 %v331, %v717
  %v719 = vpop.f32.mrb[0].mxu0
  %720 = vmatprep.mubr.f32.mxu0 %v125
  %721 = vmatmul.mubr.f32.gmra.mrb[0].mxu0 %v124
  %v722 = vpop.f32.mrb[0].mxu0
  %v723 = vadd.f32 %v331, %v722
  %v724 = vpop.f32.mrb[0].mxu0
  %725 = vmatprep.mubr.f32.mxu0 %v129
  %726 = vmatmul.mubr.f32.gmra.mrb[0].mxu0 %v128
  %v727 = vpop.f32.mrb[0].mxu0
  %v728 = vadd.f32 %v331, %v727
  %v729 = vpop.f32.mrb[0].mxu0
  %730 = vmatprep.mubr.f32.mxu0 %v133
  %731 = vmatmul.mubr.f32.gmra.mrb[0].mxu0 %v132
  %v732 = vpop.f32.mrb[0].mxu0
  %v733 = vadd.f32 %v331, %v732
  %v734 = vpop.f32.mrb[0].mxu0
  %735 = vmatprep.mubr.f32.mxu0 %v137
  %736 = vmatmul.mubr.f32.gmra.mrb[0].mxu0 %v136
  %v737 = vpop.f32.mrb[0].mxu0
  %v738 = vadd.f32 %v331, %v737
  %v739 = vpop.f32.mrb[0].mxu0
  %740 = vmatprep.mubr.f32.mxu0 %v141
  %741 = vmatmul.mubr.f32.gmra.mrb[0].mxu0 %v140
  %v742 = vpop.f32.mrb[0].mxu0
  %v743 = vadd.f32 %v331, %v742
  %v744 = vpop.f32.mrb[0].mxu0
  %745 = vmatprep.mubr.f32.mxu0 %v145
  %746 = vmatmul.mubr.f32.gmra.mrb[0].mxu0 %v144
  %v747 = vpop.f32.mrb[0].mxu0
  %v748 = vadd.f32 %v331, %v747
  %v749 = vpop.f32.mrb[0].mxu0
  %750 = vmatprep.mubr.f32.mxu0 %v149
  %751 = vmatmul.mubr.f32.gmra.mrb[0].mxu0 %v148
  %v752 = vpop.f32.mrb[0].mxu0
  %v753 = vadd.f32 %v331, %v752
  %v754 = vpop.f32.mrb[0].mxu0
  %755 = vmatprep.mubr.f32.mxu0 %v153
  %756 = vmatmul.mubr.f32.gmra.mrb[0].mxu0 %v152
  %v757 = vpop.f32.mrb[0].mxu0
  %v758 = vadd.f32 %v331, %v757
  %v759 = vpop.f32.mrb[0].mxu0
  %760 = vmatprep.mubr.f32.mxu0 %v157
  %761 = vmatmul.mubr.f32.gmra.mrb[0].mxu0 %v156
  %v762 = vpop.f32.mrb[0].mxu0
  %v763 = vadd.f32 %v331, %v762
  %v764 = vpop.f32.mrb[0].mxu0
  %765 = vmatprep.mubr.f32.mxu0 %v161
  %766 = vmatmul.mubr.f32.gmra.mrb[0].mxu0 %v160
  %v767 = vpop.f32.mrb[0].mxu0
  %v768 = vadd.f32 %v331, %v767
  %v769 = vpop.f32.mrb[0].mxu0
  %770 = vmatprep.mubr.f32.mxu0 %v165
  %771 = vmatmul.mubr.f32.gmra.mrb[0].mxu0 %v164
  %v772 = vpop.f32.mrb[0].mxu0
  %v773 = vadd.f32 %v331, %v772
  %v774 = vpop.f32.mrb[0].mxu0
  %775 = vmatprep.mubr.f32.mxu0 %v169
  %776 = vmatmul.mubr.f32.gmra.mrb[0].mxu0 %v168
  %v777 = vpop.f32.mrb[0].mxu0
  %v778 = vadd.f32 %v331, %v777
  %v779 = vpop.f32.mrb[0].mxu0
  %780 = vmatprep.mubr.f32.mxu0 %v173
  %781 = vmatmul.mubr.f32.gmra.mrb[0].mxu0 %v172
  %v782 = vpop.f32.mrb[0].mxu0
  %v783 = vadd.f32 %v331, %v782
  %v784 = vpop.f32.mrb[0].mxu0
  %785 = vmatprep.mubr.f32.mxu0 %v177
  %786 = vmatmul.mubr.f32.gmra.mrb[0].mxu0 %v176
  %v787 = vpop.f32.mrb[0].mxu0
  %v788 = vadd.f32 %v331, %v787
  %v789 = vpop.f32.mrb[0].mxu0
  %790 = vmatprep.mubr.f32.mxu0 %v181
  %791 = vmatmul.mubr.f32.gmra.mrb[0].mxu0 %v180
  %v792 = vpop.f32.mrb[0].mxu0
  %v793 = vadd.f32 %v331, %v792
  %v794 = vpop.f32.mrb[0].mxu0
  %795 = vmatprep.mubr.f32.mxu0 %v185
  %796 = vmatmul.mubr.f32.gmra.mrb[0].mxu0 %v184
  %v797 = vpop.f32.mrb[0].mxu0
  %v798 = vadd.f32 %v331, %v797
  %v799 = vpop.f32.mrb[0].mxu0
  %800 = vmatprep.mubr.f32.mxu0 %v189
  %801 = vmatmul.mubr.f32.gmra.mrb[0].mxu0 %v188
  %v802 = vpop.f32.mrb[0].mxu0
  %v803 = vadd.f32 %v331, %v802
  %v804 = vpop.f32.mrb[0].mxu0
  %805 = vmatprep.mubr.f32.mxu0 %v193
  %806 = vmatmul.mubr.f32.gmra.mrb[0].mxu0 %v192
  %v807 = vpop.f32.mrb[0].mxu0
  %v808 = vadd.f32 %v331, %v807
  %v809 = vpop.f32.mrb[0].mxu0
  %810 = vmatprep.mubr.f32.mxu0 %v197
  %811 = vmatmul.mubr.f32.gmra.mrb[0].mxu0 %v196
  %v812 = vpop.f32.mrb[0].mxu0
  %v813 = vadd.f32 %v331, %v812
  %v814 = vpop.f32.mrb[0].mxu0
  %815 = vmatprep.mubr.f32.mxu0 %v201
  %816 = vmatmul.mubr.f32.gmra.mrb[0].mxu0 %v200
  %v817 = vpop.f32.mrb[0].mxu0
  %v818 = vadd.f32 %v331, %v817
  %v819 = vpop.f32.mrb[0].mxu0
  %820 = vmatprep.mubr.f32.mxu0 %v205
  %821 = vmatmul.mubr.f32.gmra.mrb[0].mxu0 %v204
  %v822 = vpop.f32.mrb[0].mxu0
  %v823 = vadd.f32 %v331, %v822
  %v824 = vpop.f32.mrb[0].mxu0
  %825 = vmatprep.mubr.f32.mxu0 %v209
  %826 = vmatmul.mubr.f32.gmra.mrb[0].mxu0 %v208
  %v827 = vpop.f32.mrb[0].mxu0
  %v828 = vadd.f32 %v331, %v827
  %v829 = vpop.f32.mrb[0].mxu0
  %830 = vmatprep.mubr.f32.mxu0 %v213
  %831 = vmatmul.mubr.f32.gmra.mrb[0].mxu0 %v212
  %v832 = vpop.f32.mrb[0].mxu0
  %v833 = vadd.f32 %v331, %v832
  %v834 = vpop.f32.mrb[0].mxu0
  %835 = vmatprep.mubr.f32.mxu0 %v217
  %836 = vmatmul.mubr.f32.gmra.mrb[0].mxu0 %v216
  %v837 = vpop.f32.mrb[0].mxu0
  %v838 = vadd.f32 %v331, %v837
  %v839 = vpop.f32.mrb[0].mxu0
  %840 = vmatprep.mubr.f32.mxu0 %v221
  %841 = vmatmul.mubr.f32.gmra.mrb[0].mxu0 %v220
  %v842 = vpop.f32.mrb[0].mxu0
  %v843 = vadd.f32 %v331, %v842
  %v844 = vpop.f32.mrb[0].mxu0
  %845 = vmatprep.mubr.f32.mxu0 %v225
  %846 = vmatmul.mubr.f32.gmra.mrb[0].mxu0 %v224
  %v847 = vpop.f32.mrb[0].mxu0
  %v848 = vadd.f32 %v331, %v847
  %v849 = vpop.f32.mrb[0].mxu0
  %850 = vmatprep.mubr.f32.mxu0 %v229
  %851 = vmatmul.mubr.f32.gmra.mrb[0].mxu0 %v228
  %v852 = vpop.f32.mrb[0].mxu0
  %v853 = vadd.f32 %v331, %v852
  %v854 = vpop.f32.mrb[0].mxu0
  %855 = vmatprep.mubr.f32.mxu0 %v233
  %856 = vmatmul.mubr.f32.gmra.mrb[0].mxu0 %v232
  %v857 = vpop.f32.mrb[0].mxu0
  %v858 = vadd.f32 %v331, %v857
  %v859 = vpop.f32.mrb[0].mxu0
  %860 = vmatprep.mubr.f32.mxu0 %v237
  %861 = vmatmul.mubr.f32.gmra.mrb[0].mxu0 %v236
  %v862 = vpop.f32.mrb[0].mxu0
  %v863 = vadd.f32 %v331, %v862
  %v864 = vpop.f32.mrb[0].mxu0
  %865 = vmatprep.mubr.f32.mxu0 %v241
  %866 = vmatmul.mubr.f32.gmra.mrb[0].mxu0 %v240
  %v867 = vpop.f32.mrb[0].mxu0
  %v868 = vadd.f32 %v331, %v867
  %v869 = vpop.f32.mrb[0].mxu0
  %870 = vmatprep.mubr.f32.mxu0 %v245
  %871 = vmatmul.mubr.f32.gmra.mrb[0].mxu0 %v244
  %v872 = vpop.f32.mrb[0].mxu0
  %v873 = vadd.f32 %v331, %v872
  %v874 = vpop.f32.mrb[0].mxu0
  %875 = vmatprep.mubr.f32.mxu0 %v249
  %876 = vmatmul.mubr.f32.gmra.mrb[0].mxu0 %v248
  %v877 = vpop.f32.mrb[0].mxu0
  %v878 = vadd.f32 %v331, %v877
  %v879 = vpop.f32.mrb[0].mxu0
  %880 = vmatprep.mubr.f32.mxu0 %v253
  %881 = vmatmul.mubr.f32.gmra.mrb[0].mxu0 %v252
  %v882 = vpop.f32.mrb[0].mxu0
  %v883 = vadd.f32 %v331, %v882
  %v884 = vpop.f32.mrb[0].mxu0
  %885 = vmatprep.mubr.f32.mxu0 %v257
  %886 = vmatmul.mubr.f32.gmra.mrb[0].mxu0 %v256
  %v887 = vpop.f32.mrb[0].mxu0
  %v888 = vadd.f32 %v331, %v887
  %v889 = vpop.f32.mrb[0].mxu0
  %890 = vmatprep.mubr.f32.mxu0 %v261
  %891 = vmatmul.mubr.f32.gmra.mrb[0].mxu0 %v260
  %v892 = vpop.f32.mrb[0].mxu0
  %v893 = vadd.f32 %v331, %v892
  %v894 = vpop.f32.mrb[0].mxu0
  %895 = vmatprep.mubr.f32.mxu0 %v265
  %896 = vmatmul.mubr.f32.gmra.mrb[0].mxu0 %v264
  %v897 = vpop.f32.mrb[0].mxu0
  %v898 = vadd.f32 %v331, %v897
  %v899 = vpop.f32.mrb[0].mxu0
  %900 = vmatprep.mubr.f32.mxu0 %v269
  %901 = vmatmul.mubr.f32.gmra.mrb[0].mxu0 %v268
  %v902 = vpop.f32.mrb[0].mxu0
  %v903 = vadd.f32 %v331, %v902
  %v904 = vpop.f32.mrb[0].mxu0
  %905 = vmatprep.mubr.f32.mxu0 %v273
  %906 = vmatmul.mubr.f32.gmra.mrb[0].mxu0 %v272
  %v907 = vpop.f32.mrb[0].mxu0
  %v908 = vadd.f32 %v331, %v907
  %v909 = vpop.f32.mrb[0].mxu0
  %910 = vdwg.mxu0
  %911 = vmatprep.subr.mxu0 0.0
  %912 = vmatpush1.msra.mxu0 %v308
  %913 = vmatprep.subr.mxu0 0.0
  %914 = vmatpush1.msra.mxu0 %v309
  %915 = vmatprep.subr.mxu0 0.0
  %916 = vmatpush1.msra.mxu0 %v310
  %917 = vmatprep.subr.mxu0 0.0
  %918 = vmatpush1.msra.mxu0 %v311
  %919 = vmatprep.subr.mxu0 0.0
  %920 = vmatpush1.msra.mxu0 %v312
  %921 = vmatprep.subr.mxu0 0.0
  %922 = vmatpush1.msra.mxu0 %v313
  %923 = vmatprep.subr.mxu0 0.0
  %924 = vmatpush1.msra.mxu0 %v314
  %925 = vmatprep.subr.mxu0 0.0
  %926 = vmatpush1.msra.mxu0 %v315
  %927 = vmatprep.subr.mxu0 0.0
  %928 = vmatpush1.msra.mxu0 %v316
  %929 = vmatprep.subr.mxu0 0.0
  %930 = vmatpush1.msra.mxu0 %v317
  %931 = vmatprep.subr.mxu0 0.0
  %932 = vmatpush1.msra.mxu0 %v318
  %933 = vmatprep.subr.mxu0 0.0
  %934 = vmatpush1.msra.mxu0 %v319
  %935 = vmatprep.subr.mxu0 0.0
  %936 = vmatpush1.msra.mxu0 %v320
  %937 = vmatprep.subr.mxu0 0.0
  %938 = vmatpush1.msra.mxu0 %v321
  %939 = vmatprep.subr.mxu0 0.0
  %940 = vmatpush1.msra.mxu0 %v322
  %941 = vmatprep.subr.mxu0 0.0
  %942 = vmatpush1.msra.mxu0 %v323
  %943 = vmatprep.subr.mxu0 0.0
  %944 = vmatpush1.msra.mxu0 %v324
  %945 = vmatprep.subr.mxu0 0.0
  %946 = vmatpush1.msra.mxu0 %v325
  %947 = vmatprep.subr.mxu0 0.0
  %948 = vmatpush1.msra.mxu0 0.0
  %949 = vmatprep.subr.mxu0 0.0
  %950 = vmatpush1.msra.mxu0 0.0
  %951 = vmatprep.subr.mxu0 0.0
  %952 = vmatpush1.msra.mxu0 0.0
  %953 = vmatprep.subr.mxu0 0.0
  %954 = vmatpush1.msra.mxu0 0.0
  %955 = vmatprep.subr.mxu0 0.0
  %956 = vmatpush1.msra.mxu0 0.0
  %957 = vmatprep.subr.mxu0 0.0
  %958 = vmatpush1.msra.mxu0 0.0
  %959 = vmatprep.subr.mxu0 0.0
  %960 = vmatpush1.msra.mxu0 0.0
  %961 = vmatprep.subr.mxu0 0.0
  %962 = vmatpush1.msra.mxu0 0.0
  %963 = vmatprep.subr.mxu0 0.0
  %964 = vmatpush1.msra.mxu0 0.0
  %965 = vmatprep.subr.mxu0 0.0
  %966 = vmatpush1.msra.mxu0 0.0
  %967 = vmatprep.subr.mxu0 0.0
  %968 = vmatpush1.msra.mxu0 0.0
  %969 = vmatprep.subr.mxu0 0.0
  %970 = vmatpush1.msra.mxu0 0.0
  %971 = vmatprep.subr.mxu0 0.0
  %972 = vmatpush1.msra.mxu0 0.0
  %973 = vmatprep.subr.mxu0 0.0
  %974 = vmatpush1.msra.mxu0 0.0
  %975 = vmatprep.mubr.f32.mxu0 %v335
  %976 = vmatmul.mubr.f32.gmra.mrb[0].mxu0 %v22
  %v977 = vpop.f32.mrb[0].mxu0
  %v978 = vadd.f32 %v593, %v977
  %v979 = vpop.f32.mrb[0].mxu0
  %980 = vmatprep.mubr.f32.mxu0 %v338
  %981 = vmatmul.mubr.f32.gmra.mrb[0].mxu0 %v26
  %v982 = vpop.f32.mrb[0].mxu0
  %v983 = vadd.f32 %v598, %v982
  %v984 = vpop.f32.mrb[0].mxu0
  %985 = vmatprep.mubr.f32.mxu0 %v341
  %986 = vmatmul.mubr.f32.gmra.mrb[0].mxu0 %v30
  %v987 = vpop.f32.mrb[0].mxu0
  %v988 = vadd.f32 %v603, %v987
  %v989 = vpop.f32.mrb[0].mxu0
  %990 = vmatprep.mubr.f32.mxu0 %v344
  %991 = vmatmul.mubr.f32.gmra.mrb[0].mxu0 %v34
  %v992 = vpop.f32.mrb[0].mxu0
  %v993 = vadd.f32 %v608, %v992
  %v994 = vpop.f32.mrb[0].mxu0
  %995 = vmatprep.mubr.f32.mxu0 %v347
  %996 = vmatmul.mubr.f32.gmra.mrb[0].mxu0 %v38
  %v997 = vpop.f32.mrb[0].mxu0
  %v998 = vadd.f32 %v613, %v997
  %v999 = vpop.f32.mrb[0].mxu0
  %1000 = vmatprep.mubr.f32.mxu0 %v350
  %1001 = vmatmul.mubr.f32.gmra.mrb[0].mxu0 %v42
  %v1002 = vpop.f32.mrb[0].mxu0
  %v1003 = vadd.f32 %v618, %v1002
  %v1004 = vpop.f32.mrb[0].mxu0
  %1005 = vmatprep.mubr.f32.mxu0 %v353
  %1006 = vmatmul.mubr.f32.gmra.mrb[0].mxu0 %v46
  %v1007 = vpop.f32.mrb[0].mxu0
  %v1008 = vadd.f32 %v623, %v1007
  %v1009 = vpop.f32.mrb[0].mxu0
  %1010 = vmatprep.mubr.f32.mxu0 %v356
  %1011 = vmatmul.mubr.f32.gmra.mrb[0].mxu0 %v50
  %v1012 = vpop.f32.mrb[0].mxu0
  %v1013 = vadd.f32 %v628, %v1012
  %v1014 = vpop.f32.mrb[0].mxu0
  %1015 = vmatprep.mubr.f32.mxu0 %v359
  %1016 = vmatmul.mubr.f32.gmra.mrb[0].mxu0 %v54
  %v1017 = vpop.f32.mrb[0].mxu0
  %v1018 = vadd.f32 %v633, %v1017
  %v1019 = vpop.f32.mrb[0].mxu0
  %1020 = vmatprep.mubr.f32.mxu0 %v362
  %1021 = vmatmul.mubr.f32.gmra.mrb[0].mxu0 %v58
  %v1022 = vpop.f32.mrb[0].mxu0
  %v1023 = vadd.f32 %v638, %v1022
  %v1024 = vpop.f32.mrb[0].mxu0
  %1025 = vmatprep.mubr.f32.mxu0 %v365
  %1026 = vmatmul.mubr.f32.gmra.mrb[0].mxu0 %v62
  %v1027 = vpop.f32.mrb[0].mxu0
  %v1028 = vadd.f32 %v643, %v1027
  %v1029 = vpop.f32.mrb[0].mxu0
  %1030 = vmatprep.mubr.f32.mxu0 %v368
  %1031 = vmatmul.mubr.f32.gmra.mrb[0].mxu0 %v66
  %v1032 = vpop.f32.mrb[0].mxu0
  %v1033 = vadd.f32 %v648, %v1032
  %v1034 = vpop.f32.mrb[0].mxu0
  %1035 = vmatprep.mubr.f32.mxu0 %v371
  %1036 = vmatmul.mubr.f32.gmra.mrb[0].mxu0 %v70
  %v1037 = vpop.f32.mrb[0].mxu0
  %v1038 = vadd.f32 %v653, %v1037
  %v1039 = vpop.f32.mrb[0].mxu0
  %1040 = vmatprep.mubr.f32.mxu0 %v374
  %1041 = vmatmul.mubr.f32.gmra.mrb[0].mxu0 %v74
  %v1042 = vpop.f32.mrb[0].mxu0
  %v1043 = vadd.f32 %v658, %v1042
  %v1044 = vpop.f32.mrb[0].mxu0
  %1045 = vmatprep.mubr.f32.mxu0 %v377
  %1046 = vmatmul.mubr.f32.gmra.mrb[0].mxu0 %v78
  %v1047 = vpop.f32.mrb[0].mxu0
  %v1048 = vadd.f32 %v663, %v1047
  %v1049 = vpop.f32.mrb[0].mxu0
  %1050 = vmatprep.mubr.f32.mxu0 %v380
  %1051 = vmatmul.mubr.f32.gmra.mrb[0].mxu0 %v82
  %v1052 = vpop.f32.mrb[0].mxu0
  %v1053 = vadd.f32 %v668, %v1052
  %v1054 = vpop.f32.mrb[0].mxu0
  %1055 = vmatprep.mubr.f32.mxu0 %v383
  %1056 = vmatmul.mubr.f32.gmra.mrb[0].mxu0 %v86
  %v1057 = vpop.f32.mrb[0].mxu0
  %v1058 = vadd.f32 %v673, %v1057
  %v1059 = vpop.f32.mrb[0].mxu0
  %1060 = vmatprep.mubr.f32.mxu0 %v386
  %1061 = vmatmul.mubr.f32.gmra.mrb[0].mxu0 %v90
  %v1062 = vpop.f32.mrb[0].mxu0
  %v1063 = vadd.f32 %v678, %v1062
  %v1064 = vpop.f32.mrb[0].mxu0
  %1065 = vmatprep.mubr.f32.mxu0 %v389
  %1066 = vmatmul.mubr.f32.gmra.mrb[0].mxu0 %v94
  %v1067 = vpop.f32.mrb[0].mxu0
  %v1068 = vadd.f32 %v683, %v1067
  %v1069 = vpop.f32.mrb[0].mxu0
  %1070 = vmatprep.mubr.f32.mxu0 %v392
  %1071 = vmatmul.mubr.f32.gmra.mrb[0].mxu0 %v98
  %v1072 = vpop.f32.mrb[0].mxu0
  %v1073 = vadd.f32 %v688, %v1072
  %v1074 = vpop.f32.mrb[0].mxu0
  %1075 = vmatprep.mubr.f32.mxu0 %v395
  %1076 = vmatmul.mubr.f32.gmra.mrb[0].mxu0 %v102
  %v1077 = vpop.f32.mrb[0].mxu0
  %v1078 = vadd.f32 %v693, %v1077
  %v1079 = vpop.f32.mrb[0].mxu0
  %1080 = vmatprep.mubr.f32.mxu0 %v398
  %1081 = vmatmul.mubr.f32.gmra.mrb[0].mxu0 %v106
  %v1082 = vpop.f32.mrb[0].mxu0
  %v1083 = vadd.f32 %v698, %v1082
  %v1084 = vpop.f32.mrb[0].mxu0
  %1085 = vmatprep.mubr.f32.mxu0 %v401
  %1086 = vmatmul.mubr.f32.gmra.mrb[0].mxu0 %v110
  %v1087 = vpop.f32.mrb[0].mxu0
  %v1088 = vadd.f32 %v703, %v1087
  %v1089 = vpop.f32.mrb[0].mxu0
  %1090 = vmatprep.mubr.f32.mxu0 %v404
  %1091 = vmatmul.mubr.f32.gmra.mrb[0].mxu0 %v114
  %v1092 = vpop.f32.mrb[0].mxu0
  %v1093 = vadd.f32 %v708, %v1092
  %v1094 = vpop.f32.mrb[0].mxu0
  %1095 = vmatprep.mubr.f32.mxu0 %v407
  %1096 = vmatmul.mubr.f32.gmra.mrb[0].mxu0 %v118
  %v1097 = vpop.f32.mrb[0].mxu0
  %v1098 = vadd.f32 %v713, %v1097
  %v1099 = vpop.f32.mrb[0].mxu0
  %1100 = vmatprep.mubr.f32.mxu0 %v410
  %1101 = vmatmul.mubr.f32.gmra.mrb[0].mxu0 %v122
  %v1102 = vpop.f32.mrb[0].mxu0
  %v1103 = vadd.f32 %v718, %v1102
  %v1104 = vpop.f32.mrb[0].mxu0
  %1105 = vmatprep.mubr.f32.mxu0 %v413
  %1106 = vmatmul.mubr.f32.gmra.mrb[0].mxu0 %v126
  %v1107 = vpop.f32.mrb[0].mxu0
  %v1108 = vadd.f32 %v723, %v1107
  %v1109 = vpop.f32.mrb[0].mxu0
  %1110 = vmatprep.mubr.f32.mxu0 %v416
  %1111 = vmatmul.mubr.f32.gmra.mrb[0].mxu0 %v130
  %v1112 = vpop.f32.mrb[0].mxu0
  %v1113 = vadd.f32 %v728, %v1112
  %v1114 = vpop.f32.mrb[0].mxu0
  %1115 = vmatprep.mubr.f32.mxu0 %v419
  %1116 = vmatmul.mubr.f32.gmra.mrb[0].mxu0 %v134
  %v1117 = vpop.f32.mrb[0].mxu0
  %v1118 = vadd.f32 %v733, %v1117
  %v1119 = vpop.f32.mrb[0].mxu0
  %1120 = vmatprep.mubr.f32.mxu0 %v422
  %1121 = vmatmul.mubr.f32.gmra.mrb[0].mxu0 %v138
  %v1122 = vpop.f32.mrb[0].mxu0
  %v1123 = vadd.f32 %v738, %v1122
  %v1124 = vpop.f32.mrb[0].mxu0
  %1125 = vmatprep.mubr.f32.mxu0 %v425
  %1126 = vmatmul.mubr.f32.gmra.mrb[0].mxu0 %v142
  %v1127 = vpop.f32.mrb[0].mxu0
  %v1128 = vadd.f32 %v743, %v1127
  %v1129 = vpop.f32.mrb[0].mxu0
  %1130 = vmatprep.mubr.f32.mxu0 %v428
  %1131 = vmatmul.mubr.f32.gmra.mrb[0].mxu0 %v146
  %v1132 = vpop.f32.mrb[0].mxu0
  %v1133 = vadd.f32 %v748, %v1132
  %v1134 = vpop.f32.mrb[0].mxu0
  %1135 = vmatprep.mubr.f32.mxu0 %v431
  %1136 = vmatmul.mubr.f32.gmra.mrb[0].mxu0 %v150
  %v1137 = vpop.f32.mrb[0].mxu0
  %v1138 = vadd.f32 %v753, %v1137
  %v1139 = vpop.f32.mrb[0].mxu0
  %1140 = vmatprep.mubr.f32.mxu0 %v434
  %1141 = vmatmul.mubr.f32.gmra.mrb[0].mxu0 %v154
  %v1142 = vpop.f32.mrb[0].mxu0
  %v1143 = vadd.f32 %v758, %v1142
  %v1144 = vpop.f32.mrb[0].mxu0
  %1145 = vmatprep.mubr.f32.mxu0 %v437
  %1146 = vmatmul.mubr.f32.gmra.mrb[0].mxu0 %v158
  %v1147 = vpop.f32.mrb[0].mxu0
  %v1148 = vadd.f32 %v763, %v1147
  %v1149 = vpop.f32.mrb[0].mxu0
  %1150 = vmatprep.mubr.f32.mxu0 %v440
  %1151 = vmatmul.mubr.f32.gmra.mrb[0].mxu0 %v162
  %v1152 = vpop.f32.mrb[0].mxu0
  %v1153 = vadd.f32 %v768, %v1152
  %v1154 = vpop.f32.mrb[0].mxu0
  %1155 = vmatprep.mubr.f32.mxu0 %v443
  %1156 = vmatmul.mubr.f32.gmra.mrb[0].mxu0 %v166
  %v1157 = vpop.f32.mrb[0].mxu0
  %v1158 = vadd.f32 %v773, %v1157
  %v1159 = vpop.f32.mrb[0].mxu0
  %1160 = vmatprep.mubr.f32.mxu0 %v446
  %1161 = vmatmul.mubr.f32.gmra.mrb[0].mxu0 %v170
  %v1162 = vpop.f32.mrb[0].mxu0
  %v1163 = vadd.f32 %v778, %v1162
  %v1164 = vpop.f32.mrb[0].mxu0
  %1165 = vmatprep.mubr.f32.mxu0 %v449
  %1166 = vmatmul.mubr.f32.gmra.mrb[0].mxu0 %v174
  %v1167 = vpop.f32.mrb[0].mxu0
  %v1168 = vadd.f32 %v783, %v1167
  %v1169 = vpop.f32.mrb[0].mxu0
  %1170 = vmatprep.mubr.f32.mxu0 %v452
  %1171 = vmatmul.mubr.f32.gmra.mrb[0].mxu0 %v178
  %v1172 = vpop.f32.mrb[0].mxu0
  %v1173 = vadd.f32 %v788, %v1172
  %v1174 = vpop.f32.mrb[0].mxu0
  %1175 = vmatprep.mubr.f32.mxu0 %v455
  %1176 = vmatmul.mubr.f32.gmra.mrb[0].mxu0 %v182
  %v1177 = vpop.f32.mrb[0].mxu0
  %v1178 = vadd.f32 %v793, %v1177
  %v1179 = vpop.f32.mrb[0].mxu0
  %1180 = vmatprep.mubr.f32.mxu0 %v458
  %1181 = vmatmul.mubr.f32.gmra.mrb[0].mxu0 %v186
  %v1182 = vpop.f32.mrb[0].mxu0
  %v1183 = vadd.f32 %v798, %v1182
  %v1184 = vpop.f32.mrb[0].mxu0
  %1185 = vmatprep.mubr.f32.mxu0 %v461
  %1186 = vmatmul.mubr.f32.gmra.mrb[0].mxu0 %v190
  %v1187 = vpop.f32.mrb[0].mxu0
  %v1188 = vadd.f32 %v803, %v1187
  %v1189 = vpop.f32.mrb[0].mxu0
  %1190 = vmatprep.mubr.f32.mxu0 %v464
  %1191 = vmatmul.mubr.f32.gmra.mrb[0].mxu0 %v194
  %v1192 = vpop.f32.mrb[0].mxu0
  %v1193 = vadd.f32 %v808, %v1192
  %v1194 = vpop.f32.mrb[0].mxu0
  %1195 = vmatprep.mubr.f32.mxu0 %v467
  %1196 = vmatmul.mubr.f32.gmra.mrb[0].mxu0 %v198
  %v1197 = vpop.f32.mrb[0].mxu0
  %v1198 = vadd.f32 %v813, %v1197
  %v1199 = vpop.f32.mrb[0].mxu0
  %1200 = vmatprep.mubr.f32.mxu0 %v470
  %1201 = vmatmul.mubr.f32.gmra.mrb[0].mxu0 %v202
  %v1202 = vpop.f32.mrb[0].mxu0
  %v1203 = vadd.f32 %v818, %v1202
  %v1204 = vpop.f32.mrb[0].mxu0
  %1205 = vmatprep.mubr.f32.mxu0 %v473
  %1206 = vmatmul.mubr.f32.gmra.mrb[0].mxu0 %v206
  %v1207 = vpop.f32.mrb[0].mxu0
  %v1208 = vadd.f32 %v823, %v1207
  %v1209 = vpop.f32.mrb[0].mxu0
  %1210 = vmatprep.mubr.f32.mxu0 %v476
  %1211 = vmatmul.mubr.f32.gmra.mrb[0].mxu0 %v210
  %v1212 = vpop.f32.mrb[0].mxu0
  %v1213 = vadd.f32 %v828, %v1212
  %v1214 = vpop.f32.mrb[0].mxu0
  %1215 = vmatprep.mubr.f32.mxu0 %v479
  %1216 = vmatmul.mubr.f32.gmra.mrb[0].mxu0 %v214
  %v1217 = vpop.f32.mrb[0].mxu0
  %v1218 = vadd.f32 %v833, %v1217
  %v1219 = vpop.f32.mrb[0].mxu0
  %1220 = vmatprep.mubr.f32.mxu0 %v482
  %1221 = vmatmul.mubr.f32.gmra.mrb[0].mxu0 %v218
  %v1222 = vpop.f32.mrb[0].mxu0
  %v1223 = vadd.f32 %v838, %v1222
  %v1224 = vpop.f32.mrb[0].mxu0
  %1225 = vmatprep.mubr.f32.mxu0 %v485
  %1226 = vmatmul.mubr.f32.gmra.mrb[0].mxu0 %v222
  %v1227 = vpop.f32.mrb[0].mxu0
  %v1228 = vadd.f32 %v843, %v1227
  %v1229 = vpop.f32.mrb[0].mxu0
  %1230 = vmatprep.mubr.f32.mxu0 %v488
  %1231 = vmatmul.mubr.f32.gmra.mrb[0].mxu0 %v226
  %v1232 = vpop.f32.mrb[0].mxu0
  %v1233 = vadd.f32 %v848, %v1232
  %v1234 = vpop.f32.mrb[0].mxu0
  %1235 = vmatprep.mubr.f32.mxu0 %v491
  %1236 = vmatmul.mubr.f32.gmra.mrb[0].mxu0 %v230
  %v1237 = vpop.f32.mrb[0].mxu0
  %v1238 = vadd.f32 %v853, %v1237
  %v1239 = vpop.f32.mrb[0].mxu0
  %1240 = vmatprep.mubr.f32.mxu0 %v494
  %1241 = vmatmul.mubr.f32.gmra.mrb[0].mxu0 %v234
  %v1242 = vpop.f32.mrb[0].mxu0
  %v1243 = vadd.f32 %v858, %v1242
  %v1244 = vpop.f32.mrb[0].mxu0
  %1245 = vmatprep.mubr.f32.mxu0 %v497
  %1246 = vmatmul.mubr.f32.gmra.mrb[0].mxu0 %v238
  %v1247 = vpop.f32.mrb[0].mxu0
  %v1248 = vadd.f32 %v863, %v1247
  %v1249 = vpop.f32.mrb[0].mxu0
  %1250 = vmatprep.mubr.f32.mxu0 %v500
  %1251 = vmatmul.mubr.f32.gmra.mrb[0].mxu0 %v242
  %v1252 = vpop.f32.mrb[0].mxu0
  %v1253 = vadd.f32 %v868, %v1252
  %v1254 = vpop.f32.mrb[0].mxu0
  %1255 = vmatprep.mubr.f32.mxu0 %v503
  %1256 = vmatmul.mubr.f32.gmra.mrb[0].mxu0 %v246
  %v1257 = vpop.f32.mrb[0].mxu0
  %v1258 = vadd.f32 %v873, %v1257
  %v1259 = vpop.f32.mrb[0].mxu0
  %1260 = vmatprep.mubr.f32.mxu0 %v506
  %1261 = vmatmul.mubr.f32.gmra.mrb[0].mxu0 %v250
  %v1262 = vpop.f32.mrb[0].mxu0
  %v1263 = vadd.f32 %v878, %v1262
  %v1264 = vpop.f32.mrb[0].mxu0
  %1265 = vmatprep.mubr.f32.mxu0 %v509
  %1266 = vmatmul.mubr.f32.gmra.mrb[0].mxu0 %v254
  %v1267 = vpop.f32.mrb[0].mxu0
  %v1268 = vadd.f32 %v883, %v1267
  %v1269 = vpop.f32.mrb[0].mxu0
  %1270 = vmatprep.mubr.f32.mxu0 %v512
  %1271 = vmatmul.mubr.f32.gmra.mrb[0].mxu0 %v258
  %v1272 = vpop.f32.mrb[0].mxu0
  %v1273 = vadd.f32 %v888, %v1272
  %v1274 = vpop.f32.mrb[0].mxu0
  %1275 = vmatprep.mubr.f32.mxu0 %v515
  %1276 = vmatmul.mubr.f32.gmra.mrb[0].mxu0 %v262
  %v1277 = vpop.f32.mrb[0].mxu0
  %v1278 = vadd.f32 %v893, %v1277
  %v1279 = vpop.f32.mrb[0].mxu0
  %1280 = vmatprep.mubr.f32.mxu0 %v518
  %1281 = vmatmul.mubr.f32.gmra.mrb[0].mxu0 %v266
  %v1282 = vpop.f32.mrb[0].mxu0
  %v1283 = vadd.f32 %v898, %v1282
  %v1284 = vpop.f32.mrb[0].mxu0
  %1285 = vmatprep.mubr.f32.mxu0 %v521
  %1286 = vmatmul.mubr.f32.gmra.mrb[0].mxu0 %v270
  %v1287 = vpop.f32.mrb[0].mxu0
  %v1288 = vadd.f32 %v903, %v1287
  %v1289 = vpop.f32.mrb[0].mxu0
  %1290 = vmatprep.mubr.f32.mxu0 %v524
  %1291 = vmatmul.mubr.f32.gmra.mrb[0].mxu0 %v274
  %v1292 = vpop.f32.mrb[0].mxu0
  %v1293 = vadd.f32 %v908, %v1292
  %v1294 = vpop.f32.mrb[0].mxu0
  %1295 = vdwg.mxu0
  %vm1296 = vcmp.ge.f32.partialorder %v978, 0.0
  %vm1297 = vcmp.ge.f32.partialorder %v983, 0.0
  %vm1298 = vcmp.ge.f32.partialorder %v988, 0.0
  %vm1299 = vcmp.ge.f32.partialorder %v993, 0.0
  %vm1300 = vcmp.ge.f32.partialorder %v998, 0.0
  %vm1301 = vcmp.ge.f32.partialorder %v1003, 0.0
  %vm1302 = vcmp.ge.f32.partialorder %v1008, 0.0
  %vm1303 = vcmp.ge.f32.partialorder %v1013, 0.0
  %vm1304 = vcmp.ge.f32.partialorder %v1018, 0.0
  %vm1305 = vcmp.ge.f32.partialorder %v1023, 0.0
  %vm1306 = vcmp.ge.f32.partialorder %v1028, 0.0
  %vm1307 = vcmp.ge.f32.partialorder %v1033, 0.0
  %vm1308 = vcmp.ge.f32.partialorder %v1038, 0.0
  %vm1309 = vcmp.ge.f32.partialorder %v1043, 0.0
  %vm1310 = vcmp.ge.f32.partialorder %v1048, 0.0
  %vm1311 = vcmp.ge.f32.partialorder %v1053, 0.0
  %vm1312 = vcmp.ge.f32.partialorder %v1058, 0.0
  %vm1313 = vcmp.ge.f32.partialorder %v1063, 0.0
  %vm1314 = vcmp.ge.f32.partialorder %v1068, 0.0
  %vm1315 = vcmp.ge.f32.partialorder %v1073, 0.0
  %vm1316 = vcmp.ge.f32.partialorder %v1078, 0.0
  %vm1317 = vcmp.ge.f32.partialorder %v1083, 0.0
  %vm1318 = vcmp.ge.f32.partialorder %v1088, 0.0
  %vm1319 = vcmp.ge.f32.partialorder %v1093, 0.0
  %vm1320 = vcmp.ge.f32.partialorder %v1098, 0.0
  %vm1321 = vcmp.ge.f32.partialorder %v1103, 0.0
  %vm1322 = vcmp.ge.f32.partialorder %v1108, 0.0
  %vm1323 = vcmp.ge.f32.partialorder %v1113, 0.0
  %vm1324 = vcmp.ge.f32.partialorder %v1118, 0.0
  %vm1325 = vcmp.ge.f32.partialorder %v1123, 0.0
  %vm1326 = vcmp.ge.f32.partialorder %v1128, 0.0
  %vm1327 = vcmp.ge.f32.partialorder %v1133, 0.0
  %vm1328 = vcmp.ge.f32.partialorder %v1138, 0.0
  %vm1329 = vcmp.ge.f32.partialorder %v1143, 0.0
  %vm1330 = vcmp.ge.f32.partialorder %v1148, 0.0
  %vm1331 = vcmp.ge.f32.partialorder %v1153, 0.0
  %vm1332 = vcmp.ge.f32.partialorder %v1158, 0.0
  %vm1333 = vcmp.ge.f32.partialorder %v1163, 0.0
  %vm1334 = vcmp.ge.f32.partialorder %v1168, 0.0
  %vm1335 = vcmp.ge.f32.partialorder %v1173, 0.0
  %vm1336 = vcmp.ge.f32.partialorder %v1178, 0.0
  %vm1337 = vcmp.ge.f32.partialorder %v1183, 0.0
  %vm1338 = vcmp.ge.f32.partialorder %v1188, 0.0
  %vm1339 = vcmp.ge.f32.partialorder %v1193, 0.0
  %vm1340 = vcmp.ge.f32.partialorder %v1198, 0.0
  %vm1341 = vcmp.ge.f32.partialorder %v1203, 0.0
  %vm1342 = vcmp.ge.f32.partialorder %v1208, 0.0
  %vm1343 = vcmp.ge.f32.partialorder %v1213, 0.0
  %vm1344 = vcmp.ge.f32.partialorder %v1218, 0.0
  %vm1345 = vcmp.ge.f32.partialorder %v1223, 0.0
  %vm1346 = vcmp.ge.f32.partialorder %v1228, 0.0
  %vm1347 = vcmp.ge.f32.partialorder %v1233, 0.0
  %vm1348 = vcmp.ge.f32.partialorder %v1238, 0.0
  %vm1349 = vcmp.ge.f32.partialorder %v1243, 0.0
  %vm1350 = vcmp.ge.f32.partialorder %v1248, 0.0
  %vm1351 = vcmp.ge.f32.partialorder %v1253, 0.0
  %vm1352 = vcmp.ge.f32.partialorder %v1258, 0.0
  %vm1353 = vcmp.ge.f32.partialorder %v1263, 0.0
  %vm1354 = vcmp.ge.f32.partialorder %v1268, 0.0
  %vm1355 = vcmp.ge.f32.partialorder %v1273, 0.0
  %vm1356 = vcmp.ge.f32.partialorder %v1278, 0.0
  %vm1357 = vcmp.ge.f32.partialorder %v1283, 0.0
  %vm1358 = vcmp.ge.f32.partialorder %v1288, 0.0
  %vm1359 = vcmp.ge.f32.partialorder %v1293, 0.0
  %v1360 = vmul.f32 %v978, 0.01
  %v1361 = vmul.f32 %v983, 0.01
  %v1362 = vmul.f32 %v988, 0.01
  %v1363 = vmul.f32 %v993, 0.01
  %v1364 = vmul.f32 %v998, 0.01
  %v1365 = vmul.f32 %v1003, 0.01
  %v1366 = vmul.f32 %v1008, 0.01
  %v1367 = vmul.f32 %v1013, 0.01
  %v1368 = vmul.f32 %v1018, 0.01
  %v1369 = vmul.f32 %v1023, 0.01
  %v1370 = vmul.f32 %v1028, 0.01
  %v1371 = vmul.f32 %v1033, 0.01
  %v1372 = vmul.f32 %v1038, 0.01
  %v1373 = vmul.f32 %v1043, 0.01
  %v1374 = vmul.f32 %v1048, 0.01
  %v1375 = vmul.f32 %v1053, 0.01
  %v1376 = vmul.f32 %v1058, 0.01
  %v1377 = vmul.f32 %v1063, 0.01
  %v1378 = vmul.f32 %v1068, 0.01
  %v1379 = vmul.f32 %v1073, 0.01
  %v1380 = vmul.f32 %v1078, 0.01
  %v1381 = vmul.f32 %v1083, 0.01
  %v1382 = vmul.f32 %v1088, 0.01
  %v1383 = vmul.f32 %v1093, 0.01
  %v1384 = vmul.f32 %v1098, 0.01
  %v1385 = vmul.f32 %v1103, 0.01
  %v1386 = vmul.f32 %v1108, 0.01
  %v1387 = vmul.f32 %v1113, 0.01
  %v1388 = vmul.f32 %v1118, 0.01
  %v1389 = vmul.f32 %v1123, 0.01
  %v1390 = vmul.f32 %v1128, 0.01
  %v1391 = vmul.f32 %v1133, 0.01
  %v1392 = vmul.f32 %v1138, 0.01
  %v1393 = vmul.f32 %v1143, 0.01
  %v1394 = vmul.f32 %v1148, 0.01
  %v1395 = vmul.f32 %v1153, 0.01
  %v1396 = vmul.f32 %v1158, 0.01
  %v1397 = vmul.f32 %v1163, 0.01
  %v1398 = vmul.f32 %v1168, 0.01
  %v1399 = vmul.f32 %v1173, 0.01
  %v1400 = vmul.f32 %v1178, 0.01
  %v1401 = vmul.f32 %v1183, 0.01
  %v1402 = vmul.f32 %v1188, 0.01
  %v1403 = vmul.f32 %v1193, 0.01
  %v1404 = vmul.f32 %v1198, 0.01
  %v1405 = vmul.f32 %v1203, 0.01
  %v1406 = vmul.f32 %v1208, 0.01
  %v1407 = vmul.f32 %v1213, 0.01
  %v1408 = vmul.f32 %v1218, 0.01
  %v1409 = vmul.f32 %v1223, 0.01
  %v1410 = vmul.f32 %v1228, 0.01
  %v1411 = vmul.f32 %v1233, 0.01
  %v1412 = vmul.f32 %v1238, 0.01
  %v1413 = vmul.f32 %v1243, 0.01
  %v1414 = vmul.f32 %v1248, 0.01
  %v1415 = vmul.f32 %v1253, 0.01
  %v1416 = vmul.f32 %v1258, 0.01
  %v1417 = vmul.f32 %v1263, 0.01
  %v1418 = vmul.f32 %v1268, 0.01
  %v1419 = vmul.f32 %v1273, 0.01
  %v1420 = vmul.f32 %v1278, 0.01
  %v1421 = vmul.f32 %v1283, 0.01
  %v1422 = vmul.f32 %v1288, 0.01
  %v1423 = vmul.f32 %v1293, 0.01
  %v1424 = vsel %vm1296, %v978, %v1360
  %v1425 = vsel %vm1297, %v983, %v1361
  %v1426 = vsel %vm1298, %v988, %v1362
  %v1427 = vsel %vm1299, %v993, %v1363
  %v1428 = vsel %vm1300, %v998, %v1364
  %v1429 = vsel %vm1301, %v1003, %v1365
  %v1430 = vsel %vm1302, %v1008, %v1366
  %v1431 = vsel %vm1303, %v1013, %v1367
  %v1432 = vsel %vm1304, %v1018, %v1368
  %v1433 = vsel %vm1305, %v1023, %v1369
  %v1434 = vsel %vm1306, %v1028, %v1370
  %v1435 = vsel %vm1307, %v1033, %v1371
  %v1436 = vsel %vm1308, %v1038, %v1372
  %v1437 = vsel %vm1309, %v1043, %v1373
  %v1438 = vsel %vm1310, %v1048, %v1374
  %v1439 = vsel %vm1311, %v1053, %v1375
  %v1440 = vsel %vm1312, %v1058, %v1376
  %v1441 = vsel %vm1313, %v1063, %v1377
  %v1442 = vsel %vm1314, %v1068, %v1378
  %v1443 = vsel %vm1315, %v1073, %v1379
  %v1444 = vsel %vm1316, %v1078, %v1380
  %v1445 = vsel %vm1317, %v1083, %v1381
  %v1446 = vsel %vm1318, %v1088, %v1382
  %v1447 = vsel %vm1319, %v1093, %v1383
  %v1448 = vsel %vm1320, %v1098, %v1384
  %v1449 = vsel %vm1321, %v1103, %v1385
  %v1450 = vsel %vm1322, %v1108, %v1386
  %v1451 = vsel %vm1323, %v1113, %v1387
  %v1452 = vsel %vm1324, %v1118, %v1388
  %v1453 = vsel %vm1325, %v1123, %v1389
  %v1454 = vsel %vm1326, %v1128, %v1390
  %v1455 = vsel %vm1327, %v1133, %v1391
  %v1456 = vsel %vm1328, %v1138, %v1392
  %v1457 = vsel %vm1329, %v1143, %v1393
  %v1458 = vsel %vm1330, %v1148, %v1394
  %v1459 = vsel %vm1331, %v1153, %v1395
  %v1460 = vsel %vm1332, %v1158, %v1396
  %v1461 = vsel %vm1333, %v1163, %v1397
  %v1462 = vsel %vm1334, %v1168, %v1398
  %v1463 = vsel %vm1335, %v1173, %v1399
  %v1464 = vsel %vm1336, %v1178, %v1400
  %v1465 = vsel %vm1337, %v1183, %v1401
  %v1466 = vsel %vm1338, %v1188, %v1402
  %v1467 = vsel %vm1339, %v1193, %v1403
  %v1468 = vsel %vm1340, %v1198, %v1404
  %v1469 = vsel %vm1341, %v1203, %v1405
  %v1470 = vsel %vm1342, %v1208, %v1406
  %v1471 = vsel %vm1343, %v1213, %v1407
  %v1472 = vsel %vm1344, %v1218, %v1408
  %v1473 = vsel %vm1345, %v1223, %v1409
  %v1474 = vsel %vm1346, %v1228, %v1410
  %v1475 = vsel %vm1347, %v1233, %v1411
  %v1476 = vsel %vm1348, %v1238, %v1412
  %v1477 = vsel %vm1349, %v1243, %v1413
  %v1478 = vsel %vm1350, %v1248, %v1414
  %v1479 = vsel %vm1351, %v1253, %v1415
  %v1480 = vsel %vm1352, %v1258, %v1416
  %v1481 = vsel %vm1353, %v1263, %v1417
  %v1482 = vsel %vm1354, %v1268, %v1418
  %v1483 = vsel %vm1355, %v1273, %v1419
  %v1484 = vsel %vm1356, %v1278, %v1420
  %v1485 = vsel %vm1357, %v1283, %v1421
  %v1486 = vsel %vm1358, %v1288, %v1422
  %v1487 = vsel %vm1359, %v1293, %v1423
  %v1488 = vld [vmem:[%s3] sm:$0x1]
  %v1490 = vlaneseq
  %v1491 = vshrl.u32 %v1490, 7
  %v1492 = vsub.s32 0, %v1491
  %v1493 = vrot.slane %v1488, %v1492
  %v1495 = vmul.f32 %v1424, %v1493
  %v1496 = vmul.f32 %v1425, %v1493
  %v1497 = vmul.f32 %v1426, %v1493
  %v1498 = vmul.f32 %v1427, %v1493
  %v1499 = vmul.f32 %v1428, %v1493
  %v1500 = vmul.f32 %v1429, %v1493
  %v1501 = vmul.f32 %v1430, %v1493
  %v1502 = vmul.f32 %v1431, %v1493
  %v1503 = vmul.f32 %v1432, %v1493
  %v1504 = vmul.f32 %v1433, %v1493
  %v1505 = vmul.f32 %v1434, %v1493
  %v1506 = vmul.f32 %v1435, %v1493
  %v1507 = vmul.f32 %v1436, %v1493
  %v1508 = vmul.f32 %v1437, %v1493
  %v1509 = vmul.f32 %v1438, %v1493
  %v1510 = vmul.f32 %v1439, %v1493
  %v1511 = vmul.f32 %v1440, %v1493
  %v1512 = vmul.f32 %v1441, %v1493
  %v1513 = vmul.f32 %v1442, %v1493
  %v1514 = vmul.f32 %v1443, %v1493
  %v1515 = vmul.f32 %v1444, %v1493
  %v1516 = vmul.f32 %v1445, %v1493
  %v1517 = vmul.f32 %v1446, %v1493
  %v1518 = vmul.f32 %v1447, %v1493
  %v1519 = vmul.f32 %v1448, %v1493
  %v1520 = vmul.f32 %v1449, %v1493
  %v1521 = vmul.f32 %v1450, %v1493
  %v1522 = vmul.f32 %v1451, %v1493
  %v1523 = vmul.f32 %v1452, %v1493
  %v1524 = vmul.f32 %v1453, %v1493
  %v1525 = vmul.f32 %v1454, %v1493
  %v1526 = vmul.f32 %v1455, %v1493
  %v1527 = vmul.f32 %v1456, %v1493
  %v1528 = vmul.f32 %v1457, %v1493
  %v1529 = vmul.f32 %v1458, %v1493
  %v1530 = vmul.f32 %v1459, %v1493
  %v1531 = vmul.f32 %v1460, %v1493
  %v1532 = vmul.f32 %v1461, %v1493
  %v1533 = vmul.f32 %v1462, %v1493
  %v1534 = vmul.f32 %v1463, %v1493
  %v1535 = vmul.f32 %v1464, %v1493
  %v1536 = vmul.f32 %v1465, %v1493
  %v1537 = vmul.f32 %v1466, %v1493
  %v1538 = vmul.f32 %v1467, %v1493
  %v1539 = vmul.f32 %v1468, %v1493
  %v1540 = vmul.f32 %v1469, %v1493
  %v1541 = vmul.f32 %v1470, %v1493
  %v1542 = vmul.f32 %v1471, %v1493
  %v1543 = vmul.f32 %v1472, %v1493
  %v1544 = vmul.f32 %v1473, %v1493
  %v1545 = vmul.f32 %v1474, %v1493
  %v1546 = vmul.f32 %v1475, %v1493
  %v1547 = vmul.f32 %v1476, %v1493
  %v1548 = vmul.f32 %v1477, %v1493
  %v1549 = vmul.f32 %v1478, %v1493
  %v1550 = vmul.f32 %v1479, %v1493
  %v1551 = vmul.f32 %v1480, %v1493
  %v1552 = vmul.f32 %v1481, %v1493
  %v1553 = vmul.f32 %v1482, %v1493
  %v1554 = vmul.f32 %v1483, %v1493
  %v1555 = vmul.f32 %v1484, %v1493
  %v1556 = vmul.f32 %v1485, %v1493
  %v1557 = vmul.f32 %v1486, %v1493
  %v1558 = vmul.f32 %v1487, %v1493
  %v1559 = vld [vmem:[%s4] sm:$0x1]
  %v1561 = vlaneseq
  %v1562 = vshrl.u32 %v1561, 7
  %v1563 = vsub.s32 0, %v1562
  %v1564 = vrot.slane %v1559, %v1563
  %v1566 = vadd.f32 %v1495, %v1564
  %v1567 = vadd.f32 %v1496, %v1564
  %v1568 = vadd.f32 %v1497, %v1564
  %v1569 = vadd.f32 %v1498, %v1564
  %v1570 = vadd.f32 %v1499, %v1564
  %v1571 = vadd.f32 %v1500, %v1564
  %v1572 = vadd.f32 %v1501, %v1564
  %v1573 = vadd.f32 %v1502, %v1564
  %v1574 = vadd.f32 %v1503, %v1564
  %v1575 = vadd.f32 %v1504, %v1564
  %v1576 = vadd.f32 %v1505, %v1564
  %v1577 = vadd.f32 %v1506, %v1564
  %v1578 = vadd.f32 %v1507, %v1564
  %v1579 = vadd.f32 %v1508, %v1564
  %v1580 = vadd.f32 %v1509, %v1564
  %v1581 = vadd.f32 %v1510, %v1564
  %v1582 = vadd.f32 %v1511, %v1564
  %v1583 = vadd.f32 %v1512, %v1564
  %v1584 = vadd.f32 %v1513, %v1564
  %v1585 = vadd.f32 %v1514, %v1564
  %v1586 = vadd.f32 %v1515, %v1564
  %v1587 = vadd.f32 %v1516, %v1564
  %v1588 = vadd.f32 %v1517, %v1564
  %v1589 = vadd.f32 %v1518, %v1564
  %v1590 = vadd.f32 %v1519, %v1564
  %v1591 = vadd.f32 %v1520, %v1564
  %v1592 = vadd.f32 %v1521, %v1564
  %v1593 = vadd.f32 %v1522, %v1564
  %v1594 = vadd.f32 %v1523, %v1564
  %v1595 = vadd.f32 %v1524, %v1564
  %v1596 = vadd.f32 %v1525, %v1564
  %v1597 = vadd.f32 %v1526, %v1564
  %v1598 = vadd.f32 %v1527, %v1564
  %v1599 = vadd.f32 %v1528, %v1564
  %v1600 = vadd.f32 %v1529, %v1564
  %v1601 = vadd.f32 %v1530, %v1564
  %v1602 = vadd.f32 %v1531, %v1564
  %v1603 = vadd.f32 %v1532, %v1564
  %v1604 = vadd.f32 %v1533, %v1564
  %v1605 = vadd.f32 %v1534, %v1564
  %v1606 = vadd.f32 %v1535, %v1564
  %v1607 = vadd.f32 %v1536, %v1564
  %v1608 = vadd.f32 %v1537, %v1564
  %v1609 = vadd.f32 %v1538, %v1564
  %v1610 = vadd.f32 %v1539, %v1564
  %v1611 = vadd.f32 %v1540, %v1564
  %v1612 = vadd.f32 %v1541, %v1564
  %v1613 = vadd.f32 %v1542, %v1564
  %v1614 = vadd.f32 %v1543, %v1564
  %v1615 = vadd.f32 %v1544, %v1564
  %v1616 = vadd.f32 %v1545, %v1564
  %v1617 = vadd.f32 %v1546, %v1564
  %v1618 = vadd.f32 %v1547, %v1564
  %v1619 = vadd.f32 %v1548, %v1564
  %v1620 = vadd.f32 %v1549, %v1564
  %v1621 = vadd.f32 %v1550, %v1564
  %v1622 = vadd.f32 %v1551, %v1564
  %v1623 = vadd.f32 %v1552, %v1564
  %v1624 = vadd.f32 %v1553, %v1564
  %v1625 = vadd.f32 %v1554, %v1564
  %v1626 = vadd.f32 %v1555, %v1564
  %v1627 = vadd.f32 %v1556, %v1564
  %v1628 = vadd.f32 %v1557, %v1564
  %v1629 = vadd.f32 %v1558, %v1564
  %v1630 = vmax.f32 %v1566, %v1582
  %v1631 = vmax.f32 %v1567, %v1583
  %v1632 = vmax.f32 %v1568, %v1584
  %v1633 = vmax.f32 %v1569, %v1585
  %v1634 = vmax.f32 %v1570, %v1586
  %v1635 = vmax.f32 %v1571, %v1587
  %v1636 = vmax.f32 %v1572, %v1588
  %v1637 = vmax.f32 %v1573, %v1589
  %v1638 = vmax.f32 %v1574, %v1590
  %v1639 = vmax.f32 %v1575, %v1591
  %v1640 = vmax.f32 %v1576, %v1592
  %v1641 = vmax.f32 %v1577, %v1593
  %v1642 = vmax.f32 %v1578, %v1594
  %v1643 = vmax.f32 %v1579, %v1595
  %v1644 = vmax.f32 %v1580, %v1596
  %v1645 = vmax.f32 %v1581, %v1597
  %v1646 = vmax.f32 %v1598, %v1614
  %v1647 = vmax.f32 %v1599, %v1615
  %v1648 = vmax.f32 %v1600, %v1616
  %v1649 = vmax.f32 %v1601, %v1617
  %v1650 = vmax.f32 %v1602, %v1618
  %v1651 = vmax.f32 %v1603, %v1619
  %v1652 = vmax.f32 %v1604, %v1620
  %v1653 = vmax.f32 %v1605, %v1621
  %v1654 = vmax.f32 %v1606, %v1622
  %v1655 = vmax.f32 %v1607, %v1623
  %v1656 = vmax.f32 %v1608, %v1624
  %v1657 = vmax.f32 %v1609, %v1625
  %v1658 = vmax.f32 %v1610, %v1626
  %v1659 = vmax.f32 %v1611, %v1627
  %v1660 = vmax.f32 %v1612, %v1628
  %v1661 = vmax.f32 %v1613, %v1629
  %v1662 = vmax.f32 %v1630, %v1646
  %v1663 = vmax.f32 %v1631, %v1647
  %v1664 = vmax.f32 %v1632, %v1648
  %v1665 = vmax.f32 %v1633, %v1649
  %v1666 = vmax.f32 %v1634, %v1650
  %v1667 = vmax.f32 %v1635, %v1651
  %v1668 = vmax.f32 %v1636, %v1652
  %v1669 = vmax.f32 %v1637, %v1653
  %v1670 = vmax.f32 %v1638, %v1654
  %v1671 = vmax.f32 %v1639, %v1655
  %v1672 = vmax.f32 %v1640, %v1656
  %v1673 = vmax.f32 %v1641, %v1657
  %v1674 = vmax.f32 %v1642, %v1658
  %v1675 = vmax.f32 %v1643, %v1659
  %v1676 = vmax.f32 %v1644, %v1660
  %v1677 = vmax.f32 %v1645, %v1661
  %1678 = vst [vmem:[%s5] sm:$0xff] %v1662
  %1679 = vst [vmem:[%s5 + $0x8] sm:$0xff] %v1663
  %1680 = vst [vmem:[%s5 + $0x10] sm:$0xff] %v1664
  %1681 = vst [vmem:[%s5 + $0x18] sm:$0xff] %v1665
  %1682 = vst [vmem:[%s5 + $0x20] sm:$0xff] %v1666
  %1683 = vst [vmem:[%s5 + $0x28] sm:$0xff] %v1667
  %1684 = vst [vmem:[%s5 + $0x30] sm:$0xff] %v1668
  %1685 = vst [vmem:[%s5 + $0x38] sm:$0xff] %v1669
  %1686 = vst [vmem:[%s5 + $0x40] sm:$0xff] %v1670
  %1687 = vst [vmem:[%s5 + $0x48] sm:$0xff] %v1671
  %1688 = vst [vmem:[%s5 + $0x50] sm:$0xff] %v1672
  %1689 = vst [vmem:[%s5 + $0x58] sm:$0xff] %v1673
  %1690 = vst [vmem:[%s5 + $0x60] sm:$0xff] %v1674
  %1691 = vst [vmem:[%s5 + $0x68] sm:$0xff] %v1675
  %1692 = vst [vmem:[%s5 + $0x70] sm:$0xff] %v1676
  %1693 = vst [vmem:[%s5 + $0x78] sm:$0xff] %v1677
  // Predicated region
  $region22: #{conv_classifier_forward.6} parent=0 // pred_check
    _
  $region23: #{conv_classifier_forward.6} parent=0 // pred_check_branch
    %1695 = sbr.rel (0) target = $region25
  $region24: #{conv_classifier_forward.6} parent=0 // pred_region
    _
  $region25: #{conv_classifier_forward.6} parent=0 // pred_fallthru
    _
  // Predicated region
  $region26: #{conv_classifier_forward.6} parent=0 // pred_check
    _
  $region27: #{conv_classifier_forward.6} parent=0 // pred_check_branch
    %1697 = sbr.rel (0) target = $region29
  $region28: #{conv_classifier_forward.6} parent=0 // pred_region
    _
  $region29: #{conv_classifier_forward.6} parent=0 // pred_fallthru
    _

// kernel: conv_classifier_forward.7
$region0: #{conv_classifier_forward.7}
  #allocation0 [shape = 'u32[]', space=smem, size = 0x4, offset = 0x4, fixed_abs, tag = 'smem constant byte address 0x4 - core index']
  #allocation1 [shape = 'u32[144,128]{1,0:T(1,128)}', space=vmem, size = 0x12000, scoped, tag = 'internal scratch']
  %s0 = inlined_call_operand.vmem [shape: f32[128,800], index: 0, kind: input, shape index: {}]
  %s1 = inlined_call_operand.vmem [shape: f32[800,128], index: 1, kind: input, shape index: {}]
  %s2 = inlined_call_operand.vmem [shape: f32[1,128], index: 2, kind: input, shape index: {}]
  %s3 = inlined_call_operand.vmem [shape: f32[1,128], index: 3, kind: input, shape index: {}]
  %s4 = inlined_call_operand.vmem [shape: f32[1,128], index: 4, kind: input, shape index: {}]
  %s5 = inlined_call_operand.vmem [shape: f32[32,128], index: 5, kind: output, shape index: {}]
  %s6 = sld [smem:[#allocation0]]
  $region30: #{conv_classifier_forward.7} parent=0
    _
  %s8 = ssub.s32 1, %s6
  %s9 = scalar_select 0, %s8, %s6
  // Predicated region
  $region2: #{conv_classifier_forward.7} parent=0 // pred_check
    _
  $region3: #{conv_classifier_forward.7} parent=0 // pred_check_branch
    %11 = sbr.rel (0) target = $region5
  $region4: #{conv_classifier_forward.7} parent=0 // pred_region
    _
  $region5: #{conv_classifier_forward.7} parent=0 // pred_fallthru
    _
  // Predicated region
  $region6: #{conv_classifier_forward.7} parent=0 // pred_check
    _
  $region7: #{conv_classifier_forward.7} parent=0 // pred_check_branch
    %13 = sbr.rel (0) target = $region9
  $region8: #{conv_classifier_forward.7} parent=0 // pred_region
    _
  $region9: #{conv_classifier_forward.7} parent=0 // pred_fallthru
    _
  // Predicated region
  $region10: #{conv_classifier_forward.7} parent=0 // pred_check
    _
  $region11: #{conv_classifier_forward.7} parent=0 // pred_check_branch
    %15 = sbr.rel (0) target = $region13
  $region12: #{conv_classifier_forward.7} parent=0 // pred_region
    _
  $region13: #{conv_classifier_forward.7} parent=0 // pred_fallthru
    _
  // Predicated region
  $region14: #{conv_classifier_forward.7} parent=0 // pred_check
    _
  $region15: #{conv_classifier_forward.7} parent=0 // pred_check_branch
    %17 = sbr.rel (0) target = $region17
  $region16: #{conv_classifier_forward.7} parent=0 // pred_region
    _
  $region17: #{conv_classifier_forward.7} parent=0 // pred_fallthru
    _
  // Predicated region
  $region18: #{conv_classifier_forward.7} parent=0 // pred_check
    _
  $region19: #{conv_classifier_forward.7} parent=0 // pred_check_branch
    %19 = sbr.rel (0) target = $region21
  $region20: #{conv_classifier_forward.7} parent=0 // pred_region
    _
  $region21: #{conv_classifier_forward.7} parent=0 // pred_fallthru
    _
  %v20 = vld [vmem:[%s0] sm:$0xff]
  %v21 = vld [vmem:[%s0 + $0x8] sm:$0xff]
  %v22 = vld [vmem:[%s0 + $0x10] sm:$0xff]
  %v23 = vld [vmem:[%s0 + $0x18] sm:$0xff]
  %v24 = vld [vmem:[%s0 + $0x20] sm:$0xff]
  %v25 = vld [vmem:[%s0 + $0x28] sm:$0xff]
  %v26 = vld [vmem:[%s0 + $0x30] sm:$0xff]
  %v27 = vld [vmem:[%s0 + $0x38] sm:$0xff]
  %v28 = vld [vmem:[%s0 + $0x40] sm:$0xff]
  %v29 = vld [vmem:[%s0 + $0x48] sm:$0xff]
  %v30 = vld [vmem:[%s0 + $0x50] sm:$0xff]
  %v31 = vld [vmem:[%s0 + $0x58] sm:$0xff]
  %v32 = vld [vmem:[%s0 + $0x60] sm:$0xff]
  %v33 = vld [vmem:[%s0 + $0x68] sm:$0xff]
  %v34 = vld [vmem:[%s0 + $0x70] sm:$0xff]
  %v35 = vld [vmem:[%s0 + $0x78] sm:$0xff]
  %v36 = vld [vmem:[%s0 + $0x80] sm:$0xff]
  %v37 = vld [vmem:[%s0 + $0x88] sm:$0xff]
  %v38 = vld [vmem:[%s0 + $0x90] sm:$0xff]
  %v39 = vld [vmem:[%s0 + $0x98] sm:$0xff]
  %v40 = vld [vmem:[%s0 + $0xa0] sm:$0xff]
  %v41 = vld [vmem:[%s0 + $0xa8] sm:$0xff]
  %v42 = vld [vmem:[%s0 + $0xb0] sm:$0xff]
  %v43 = vld [vmem:[%s0 + $0xb8] sm:$0xff]
  %v44 = vld [vmem:[%s0 + $0xc0] sm:$0xff]
  %v45 = vld [vmem:[%s0 + $0xc8] sm:$0xff]
  %v46 = vld [vmem:[%s0 + $0xd0] sm:$0xff]
  %v47 = vld [vmem:[%s0 + $0xd8] sm:$0xff]
  %v48 = vld [vmem:[%s0 + $0xe0] sm:$0xff]
  %v49 = vld [vmem:[%s0 + $0xe8] sm:$0xff]
  %v50 = vld [vmem:[%s0 + $0xf0] sm:$0xff]
  %v51 = vld [vmem:[%s0 + $0xf8] sm:$0xff]
  %v52 = vld [vmem:[%s0 + $0x100] sm:$0xff]
  %v53 = vld [vmem:[%s0 + $0x108] sm:$0xff]
  %v54 = vld [vmem:[%s0 + $0x110] sm:$0xff]
  %v55 = vld [vmem:[%s0 + $0x118] sm:$0xff]
  %v56 = vld [vmem:[%s0 + $0x120] sm:$0xff]
  %v57 = vld [vmem:[%s0 + $0x128] sm:$0xff]
  %v58 = vld [vmem:[%s0 + $0x130] sm:$0xff]
  %v59 = vld [vmem:[%s0 + $0x138] sm:$0xff]
  %v60 = vld [vmem:[%s0 + $0x140] sm:$0xff]
  %v61 = vld [vmem:[%s0 + $0x148] sm:$0xff]
  %v62 = vld [vmem:[%s0 + $0x150] sm:$0xff]
  %v63 = vld [vmem:[%s0 + $0x158] sm:$0xff]
  %v64 = vld [vmem:[%s0 + $0x160] sm:$0xff]
  %v65 = vld [vmem:[%s0 + $0x168] sm:$0xff]
  %v66 = vld [vmem:[%s0 + $0x170] sm:$0xff]
  %v67 = vld [vmem:[%s0 + $0x178] sm:$0xff]
  %v68 = vld [vmem:[%s0 + $0x180] sm:$0xff]
  %v69 = vld [vmem:[%s0 + $0x188] sm:$0xff]
  %v70 = vld [vmem:[%s0 + $0x190] sm:$0xff]
  %v71 = vld [vmem:[%s0 + $0x198] sm:$0xff]
  %v72 = vld [vmem:[%s0 + $0x1a0] sm:$0xff]
  %v73 = vld [vmem:[%s0 + $0x1a8] sm:$0xff]
  %v74 = vld [vmem:[%s0 + $0x1b0] sm:$0xff]
  %v75 = vld [vmem:[%s0 + $0x1b8] sm:$0xff]
  %v76 = vld [vmem:[%s0 + $0x1c0] sm:$0xff]
  %v77 = vld [vmem:[%s0 + $0x1c8] sm:$0xff]
  %v78 = vld [vmem:[%s0 + $0x1d0] sm:$0xff]
  %v79 = vld [vmem:[%s0 + $0x1d8] sm:$0xff]
  %v80 = vld [vmem:[%s0 + $0x1e0] sm:$0xff]
  %v81 = vld [vmem:[%s0 + $0x1e8] sm:$0xff]
  %v82 = vld [vmem:[%s0 + $0x1f0] sm:$0xff]
  %v83 = vld [vmem:[%s0 + $0x1f8] sm:$0xff]
  %v84 = vld [vmem:[%s0 + $0x200] sm:$0xff]
  %v85 = vld [vmem:[%s0 + $0x208] sm:$0xff]
  %v86 = vld [vmem:[%s0 + $0x210] sm:$0xff]
  %v87 = vld [vmem:[%s0 + $0x218] sm:$0xff]
  %v88 = vld [vmem:[%s0 + $0x220] sm:$0xff]
  %v89 = vld [vmem:[%s0 + $0x228] sm:$0xff]
  %v90 = vld [vmem:[%s0 + $0x230] sm:$0xff]
  %v91 = vld [vmem:[%s0 + $0x238] sm:$0xff]
  %v92 = vld [vmem:[%s0 + $0x240] sm:$0xff]
  %v93 = vld [vmem:[%s0 + $0x248] sm:$0xff]
  %v94 = vld [vmem:[%s0 + $0x250] sm:$0xff]
  %v95 = vld [vmem:[%s0 + $0x258] sm:$0xff]
  %v96 = vld [vmem:[%s0 + $0x260] sm:$0xff]
  %v97 = vld [vmem:[%s0 + $0x268] sm:$0xff]
  %v98 = vld [vmem:[%s0 + $0x270] sm:$0xff]
  %v99 = vld [vmem:[%s0 + $0x278] sm:$0xff]
  %v100 = vld [vmem:[%s0 + $0x280] sm:$0xff]
  %v101 = vld [vmem:[%s0 + $0x288] sm:$0xff]
  %v102 = vld [vmem:[%s0 + $0x290] sm:$0xff]
  %v103 = vld [vmem:[%s0 + $0x298] sm:$0xff]
  %v104 = vld [vmem:[%s0 + $0x2a0] sm:$0xff]
  %v105 = vld [vmem:[%s0 + $0x2a8] sm:$0xff]
  %v106 = vld [vmem:[%s0 + $0x2b0] sm:$0xff]
  %v107 = vld [vmem:[%s0 + $0x2b8] sm:$0xff]
  %v108 = vld [vmem:[%s0 + $0x2c0] sm:$0xff]
  %v109 = vld [vmem:[%s0 + $0x2c8] sm:$0xff]
  %v110 = vld [vmem:[%s0 + $0x2d0] sm:$0xff]
  %v111 = vld [vmem:[%s0 + $0x2d8] sm:$0xff]
  %v112 = vld [vmem:[%s0 + $0x2e0] sm:$0xff]
  %v113 = vld [vmem:[%s0 + $0x2e8] sm:$0xff]
  %v114 = vld [vmem:[%s0 + $0x2f0] sm:$0xff]
  %v115 = vld [vmem:[%s0 + $0x2f8] sm:$0xff]
  %v116 = vld [vmem:[%s0 + $0x300] sm:$0xff]
  %v117 = vld [vmem:[%s0 + $0x308] sm:$0xff]
  %v118 = vld [vmem:[%s0 + $0x310] sm:$0xff]
  %v119 = vld [vmem:[%s0 + $0x318] sm:$0xff]
  %v120 = vld [vmem:[%s0 + $0x320] sm:$0xff]
  %v121 = vld [vmem:[%s0 + $0x328] sm:$0xff]
  %v122 = vld [vmem:[%s0 + $0x330] sm:$0xff]
  %v123 = vld [vmem:[%s0 + $0x338] sm:$0xff]
  %v124 = vld [vmem:[%s0 + $0x340] sm:$0xff]
  %v125 = vld [vmem:[%s0 + $0x348] sm:$0xff]
  %v126 = vld [vmem:[%s0 + $0x350] sm:$0xff]
  %v127 = vld [vmem:[%s0 + $0x358] sm:$0xff]
  %v128 = vld [vmem:[%s0 + $0x360] sm:$0xff]
  %v129 = vld [vmem:[%s0 + $0x368] sm:$0xff]
  %v130 = vld [vmem:[%s0 + $0x370] sm:$0xff]
  %v131 = vld [vmem:[%s0 + $0x378] sm:$0xff]
  %v132 = vld [vmem:[%s1] sm:$0xff]
  %v133 = vld [vmem:[%s1 + $0x8] sm:$0xff]
  %v134 = vld [vmem:[%s1 + $0x10] sm:$0xff]
  %v135 = vld [vmem:[%s1 + $0x18] sm:$0xff]
  %v136 = vld [vmem:[%s1 + $0x20] sm:$0xff]
  %v137 = vld [vmem:[%s1 + $0x28] sm:$0xff]
  %v138 = vld [vmem:[%s1 + $0x30] sm:$0xff]
  %v139 = vld [vmem:[%s1 + $0x38] sm:$0xff]
  %v140 = vld [vmem:[%s1 + $0x40] sm:$0xff]
  %v141 = vld [vmem:[%s1 + $0x48] sm:$0xff]
  %v142 = vld [vmem:[%s1 + $0x50] sm:$0xff]
  %v143 = vld [vmem:[%s1 + $0x58] sm:$0xff]
  %v144 = vld [vmem:[%s1 + $0x60] sm:$0xff]
  %v145 = vld [vmem:[%s1 + $0x68] sm:$0xff]
  %v146 = vld [vmem:[%s1 + $0x70] sm:$0xff]
  %v147 = vld [vmem:[%s1 + $0x78] sm:$0xff]
  %v148 = vld [vmem:[%s1 + $0x80] sm:$0xff]
  %v149 = vld [vmem:[%s1 + $0x88] sm:$0xff]
  %v150 = vld [vmem:[%s1 + $0x90] sm:$0xff]
  %v151 = vld [vmem:[%s1 + $0x98] sm:$0xff]
  %v152 = vld [vmem:[%s1 + $0xa0] sm:$0xff]
  %v153 = vld [vmem:[%s1 + $0xa8] sm:$0xff]
  %v154 = vld [vmem:[%s1 + $0xb0] sm:$0xff]
  %v155 = vld [vmem:[%s1 + $0xb8] sm:$0xff]
  %v156 = vld [vmem:[%s1 + $0xc0] sm:$0xff]
  %v157 = vld [vmem:[%s1 + $0xc8] sm:$0xff]
  %v158 = vld [vmem:[%s1 + $0xd0] sm:$0xff]
  %v159 = vld [vmem:[%s1 + $0xd8] sm:$0xff]
  %v160 = vld [vmem:[%s1 + $0xe0] sm:$0xff]
  %v161 = vld [vmem:[%s1 + $0xe8] sm:$0xff]
  %v162 = vld [vmem:[%s1 + $0xf0] sm:$0xff]
  %v163 = vld [vmem:[%s1 + $0xf8] sm:$0xff]
  %v164 = vld [vmem:[%s1 + $0x100] sm:$0xff]
  %v165 = vld [vmem:[%s1 + $0x108] sm:$0xff]
  %v166 = vld [vmem:[%s1 + $0x110] sm:$0xff]
  %v167 = vld [vmem:[%s1 + $0x118] sm:$0xff]
  %v168 = vld [vmem:[%s1 + $0x120] sm:$0xff]
  %v169 = vld [vmem:[%s1 + $0x128] sm:$0xff]
  %v170 = vld [vmem:[%s1 + $0x130] sm:$0xff]
  %v171 = vld [vmem:[%s1 + $0x138] sm:$0xff]
  %v172 = vld [vmem:[%s1 + $0x140] sm:$0xff]
  %v173 = vld [vmem:[%s1 + $0x148] sm:$0xff]
  %v174 = vld [vmem:[%s1 + $0x150] sm:$0xff]
  %v175 = vld [vmem:[%s1 + $0x158] sm:$0xff]
  %v176 = vld [vmem:[%s1 + $0x160] sm:$0xff]
  %v177 = vld [vmem:[%s1 + $0x168] sm:$0xff]
  %v178 = vld [vmem:[%s1 + $0x170] sm:$0xff]
  %v179 = vld [vmem:[%s1 + $0x178] sm:$0xff]
  %v180 = vld [vmem:[%s1 + $0x180] sm:$0xff]
  %v181 = vld [vmem:[%s1 + $0x188] sm:$0xff]
  %v182 = vld [vmem:[%s1 + $0x190] sm:$0xff]
  %v183 = vld [vmem:[%s1 + $0x198] sm:$0xff]
  %v184 = vld [vmem:[%s1 + $0x1a0] sm:$0xff]
  %v185 = vld [vmem:[%s1 + $0x1a8] sm:$0xff]
  %v186 = vld [vmem:[%s1 + $0x1b0] sm:$0xff]
  %v187 = vld [vmem:[%s1 + $0x1b8] sm:$0xff]
  %v188 = vld [vmem:[%s1 + $0x1c0] sm:$0xff]
  %v189 = vld [vmem:[%s1 + $0x1c8] sm:$0xff]
  %v190 = vld [vmem:[%s1 + $0x1d0] sm:$0xff]
  %v191 = vld [vmem:[%s1 + $0x1d8] sm:$0xff]
  %v192 = vld [vmem:[%s1 + $0x1e0] sm:$0xff]
  %v193 = vld [vmem:[%s1 + $0x1e8] sm:$0xff]
  %v194 = vld [vmem:[%s1 + $0x1f0] sm:$0xff]
  %v195 = vld [vmem:[%s1 + $0x1f8] sm:$0xff]
  %v196 = vld [vmem:[%s1 + $0x200] sm:$0xff]
  %v197 = vld [vmem:[%s1 + $0x208] sm:$0xff]
  %v198 = vld [vmem:[%s1 + $0x210] sm:$0xff]
  %v199 = vld [vmem:[%s1 + $0x218] sm:$0xff]
  %v200 = vld [vmem:[%s1 + $0x220] sm:$0xff]
  %v201 = vld [vmem:[%s1 + $0x228] sm:$0xff]
  %v202 = vld [vmem:[%s1 + $0x230] sm:$0xff]
  %v203 = vld [vmem:[%s1 + $0x238] sm:$0xff]
  %v204 = vld [vmem:[%s1 + $0x240] sm:$0xff]
  %v205 = vld [vmem:[%s1 + $0x248] sm:$0xff]
  %v206 = vld [vmem:[%s1 + $0x250] sm:$0xff]
  %v207 = vld [vmem:[%s1 + $0x258] sm:$0xff]
  %v208 = vld [vmem:[%s1 + $0x260] sm:$0xff]
  %v209 = vld [vmem:[%s1 + $0x268] sm:$0xff]
  %v210 = vld [vmem:[%s1 + $0x270] sm:$0xff]
  %v211 = vld [vmem:[%s1 + $0x278] sm:$0xff]
  %v212 = vld [vmem:[%s1 + $0x280] sm:$0xff]
  %v213 = vld [vmem:[%s1 + $0x288] sm:$0xff]
  %v214 = vld [vmem:[%s1 + $0x290] sm:$0xff]
  %v215 = vld [vmem:[%s1 + $0x298] sm:$0xff]
  %v216 = vld [vmem:[%s1 + $0x2a0] sm:$0xff]
  %v217 = vld [vmem:[%s1 + $0x2a8] sm:$0xff]
  %v218 = vld [vmem:[%s1 + $0x2b0] sm:$0xff]
  %v219 = vld [vmem:[%s1 + $0x2b8] sm:$0xff]
  %v220 = vld [vmem:[%s1 + $0x2c0] sm:$0xff]
  %v221 = vld [vmem:[%s1 + $0x2c8] sm:$0xff]
  %v222 = vld [vmem:[%s1 + $0x2d0] sm:$0xff]
  %v223 = vld [vmem:[%s1 + $0x2d8] sm:$0xff]
  %v224 = vld [vmem:[%s1 + $0x2e0] sm:$0xff]
  %v225 = vld [vmem:[%s1 + $0x2e8] sm:$0xff]
  %v226 = vld [vmem:[%s1 + $0x2f0] sm:$0xff]
  %v227 = vld [vmem:[%s1 + $0x2f8] sm:$0xff]
  %v228 = vld [vmem:[%s1 + $0x300] sm:$0xff]
  %v229 = vld [vmem:[%s1 + $0x308] sm:$0xff]
  %v230 = vld [vmem:[%s1 + $0x310] sm:$0xff]
  %v231 = vld [vmem:[%s1 + $0x318] sm:$0xff]
  %v232 = vld [vmem:[%s2] sm:$0x1]
  %v234 = vlaneseq
  %v235 = vshrl.u32 %v234, 7
  %v236 = vsub.s32 0, %v235
  %v237 = vrot.slane %v232, %v236
  %vm239 = vcmask 261120
  %v241 = vsel %vm239, %v26, 0
  %v244 = vsel %vm239, %v33, 0
  %v247 = vsel %vm239, %v40, 0
  %v250 = vsel %vm239, %v47, 0
  %v253 = vsel %vm239, %v54, 0
  %v256 = vsel %vm239, %v61, 0
  %v259 = vsel %vm239, %v68, 0
  %v262 = vsel %vm239, %v75, 0
  %v265 = vsel %vm239, %v82, 0
  %v268 = vsel %vm239, %v89, 0
  %v271 = vsel %vm239, %v96, 0
  %v274 = vsel %vm239, %v103, 0
  %v277 = vsel %vm239, %v110, 0
  %v280 = vsel %vm239, %v117, 0
  %v283 = vsel %vm239, %v124, 0
  %v286 = vsel %vm239, %v131, 0
  %288 = vmatprep.subr.mxu0 0.0
  %289 = vmatpush1.msra.mxu0 %v132
  %290 = vmatprep.subr.mxu0 0.0
  %291 = vmatpush1.msra.mxu0 %v133
  %292 = vmatprep.subr.mxu0 0.0
  %293 = vmatpush1.msra.mxu0 %v134
  %294 = vmatprep.subr.mxu0 0.0
  %295 = vmatpush1.msra.mxu0 %v135
  %296 = vmatprep.subr.mxu0 0.0
  %297 = vmatpush1.msra.mxu0 %v136
  %298 = vmatprep.subr.mxu0 0.0
  %299 = vmatpush1.msra.mxu0 %v137
  %300 = vmatprep.subr.mxu0 0.0
  %301 = vmatpush1.msra.mxu0 %v138
  %302 = vmatprep.subr.mxu0 0.0
  %303 = vmatpush1.msra.mxu0 %v139
  %304 = vmatprep.subr.mxu0 0.0
  %305 = vmatpush1.msra.mxu0 %v140
  %306 = vmatprep.subr.mxu0 0.0
  %307 = vmatpush1.msra.mxu0 %v141
  %308 = vmatprep.subr.mxu0 0.0
  %309 = vmatpush1.msra.mxu0 %v142
  %310 = vmatprep.subr.mxu0 0.0
  %311 = vmatpush1.msra.mxu0 %v143
  %312 = vmatprep.subr.mxu0 0.0
  %313 = vmatpush1.msra.mxu0 %v144
  %314 = vmatprep.subr.mxu0 0.0
  %315 = vmatpush1.msra.mxu0 %v145
  %316 = vmatprep.subr.mxu0 0.0
  %317 = vmatpush1.msra.mxu0 %v146
  %318 = vmatprep.subr.mxu0 0.0
  %319 = vmatpush1.msra.mxu0 %v147
  %320 = vmatprep.subr.mxu0 0.0
  %321 = vmatpush1.msra.mxu0 %v148
  %322 = vmatprep.subr.mxu0 0.0
  %323 = vmatpush1.msra.mxu0 %v149
  %324 = vmatprep.subr.mxu0 0.0
  %325 = vmatpush1.msra.mxu0 %v150
  %326 = vmatprep.subr.mxu0 0.0
  %327 = vmatpush1.msra.mxu0 %v151
  %328 = vmatprep.subr.mxu0 0.0
  %329 = vmatpush1.msra.mxu0 %v152
  %330 = vmatprep.subr.mxu0 0.0
  %331 = vmatpush1.msra.mxu0 %v153
  %332 = vmatprep.subr.mxu0 0.0
  %333 = vmatpush1.msra.mxu0 %v154
  %334 = vmatprep.subr.mxu0 0.0
  %335 = vmatpush1.msra.mxu0 %v155
  %336 = vmatprep.subr.mxu0 0.0
  %337 = vmatpush1.msra.mxu0 %v156
  %338 = vmatprep.subr.mxu0 0.0
  %339 = vmatpush1.msra.mxu0 %v157
  %340 = vmatprep.subr.mxu0 0.0
  %341 = vmatpush1.msra.mxu0 %v158
  %342 = vmatprep.subr.mxu0 0.0
  %343 = vmatpush1.msra.mxu0 %v159
  %344 = vmatprep.subr.mxu0 0.0
  %345 = vmatpush1.msra.mxu0 %v160
  %346 = vmatprep.subr.mxu0 0.0
  %347 = vmatpush1.msra.mxu0 %v161
  %348 = vmatprep.subr.mxu0 0.0
  %349 = vmatpush1.msra.mxu0 %v162
  %350 = vmatprep.subr.mxu0 0.0
  %351 = vmatpush1.msra.mxu0 %v163
  %352 = vmatprep.mubr.f32.mxu0 %v21
  %353 = vmatmul.mubr.f32.gmra.mrb[0].mxu0 %v20
  %v354 = vpop.f32.mrb[0].mxu0
  %v355 = vadd.f32 %v237, %v354
  %v356 = vpop.f32.mrb[0].mxu0
  %357 = vmatprep.mubr.f32.mxu0 %v28
  %358 = vmatmul.mubr.f32.gmra.mrb[0].mxu0 %v27
  %v359 = vpop.f32.mrb[0].mxu0
  %v360 = vadd.f32 %v237, %v359
  %v361 = vpop.f32.mrb[0].mxu0
  %362 = vmatprep.mubr.f32.mxu0 %v35
  %363 = vmatmul.mubr.f32.gmra.mrb[0].mxu0 %v34
  %v364 = vpop.f32.mrb[0].mxu0
  %v365 = vadd.f32 %v237, %v364
  %v366 = vpop.f32.mrb[0].mxu0
  %367 = vmatprep.mubr.f32.mxu0 %v42
  %368 = vmatmul.mubr.f32.gmra.mrb[0].mxu0 %v41
  %v369 = vpop.f32.mrb[0].mxu0
  %v370 = vadd.f32 %v237, %v369
  %v371 = vpop.f32.mrb[0].mxu0
  %372 = vmatprep.mubr.f32.mxu0 %v49
  %373 = vmatmul.mubr.f32.gmra.mrb[0].mxu0 %v48
  %v374 = vpop.f32.mrb[0].mxu0
  %v375 = vadd.f32 %v237, %v374
  %v376 = vpop.f32.mrb[0].mxu0
  %377 = vmatprep.mubr.f32.mxu0 %v56
  %378 = vmatmul.mubr.f32.gmra.mrb[0].mxu0 %v55
  %v379 = vpop.f32.mrb[0].mxu0
  %v380 = vadd.f32 %v237, %v379
  %v381 = vpop.f32.mrb[0].mxu0
  %382 = vmatprep.mubr.f32.mxu0 %v63
  %383 = vmatmul.mubr.f32.gmra.mrb[0].mxu0 %v62
  %v384 = vpop.f32.mrb[0].mxu0
  %v385 = vadd.f32 %v237, %v384
  %v386 = vpop.f32.mrb[0].mxu0
  %387 = vmatprep.mubr.f32.mxu0 %v70
  %388 = vmatmul.mubr.f32.gmra.mrb[0].mxu0 %v69
  %v389 = vpop.f32.mrb[0].mxu0
  %v390 = vadd.f32 %v237, %v389
  %v391 = vpop.f32.mrb[0].mxu0
  %392 = vmatprep.mubr.f32.mxu0 %v77
  %393 = vmatmul.mubr.f32.gmra.mrb[0].mxu0 %v76
  %v394 = vpop.f32.mrb[0].mxu0
  %v395 = vadd.f32 %v237, %v394
  %v396 = vpop.f32.mrb[0].mxu0
  %397 = vmatprep.mubr.f32.mxu0 %v84
  %398 = vmatmul.mubr.f32.gmra.mrb[0].mxu0 %v83
  %v399 = vpop.f32.mrb[0].mxu0
  %v400 = vadd.f32 %v237, %v399
  %v401 = vpop.f32.mrb[0].mxu0
  %402 = vmatprep.mubr.f32.mxu0 %v91
  %403 = vmatmul.mubr.f32.gmra.mrb[0].mxu0 %v90
  %v404 = vpop.f32.mrb[0].mxu0
  %v405 = vadd.f32 %v237, %v404
  %v406 = vpop.f32.mrb[0].mxu0
  %407 = vmatprep.mubr.f32.mxu0 %v98
  %408 = vmatmul.mubr.f32.gmra.mrb[0].mxu0 %v97
  %v409 = vpop.f32.mrb[0].mxu0
  %v410 = vadd.f32 %v237, %v409
  %v411 = vpop.f32.mrb[0].mxu0
  %412 = vmatprep.mubr.f32.mxu0 %v105
  %413 = vmatmul.mubr.f32.gmra.mrb[0].mxu0 %v104
  %v414 = vpop.f32.mrb[0].mxu0
  %v415 = vadd.f32 %v237, %v414
  %v416 = vpop.f32.mrb[0].mxu0
  %417 = vmatprep.mubr.f32.mxu0 %v112
  %418 = vmatmul.mubr.f32.gmra.mrb[0].mxu0 %v111
  %v419 = vpop.f32.mrb[0].mxu0
  %v420 = vadd.f32 %v237, %v419
  %v421 = vpop.f32.mrb[0].mxu0
  %422 = vmatprep.mubr.f32.mxu0 %v119
  %423 = vmatmul.mubr.f32.gmra.mrb[0].mxu0 %v118
  %v424 = vpop.f32.mrb[0].mxu0
  %v425 = vadd.f32 %v237, %v424
  %v426 = vpop.f32.mrb[0].mxu0
  %427 = vmatprep.mubr.f32.mxu0 %v126
  %428 = vmatmul.mubr.f32.gmra.mrb[0].mxu0 %v125
  %v429 = vpop.f32.mrb[0].mxu0
  %v430 = vadd.f32 %v237, %v429
  %v431 = vpop.f32.mrb[0].mxu0
  %432 = vdwg.mxu0
  %433 = vmatprep.subr.mxu0 0.0
  %434 = vmatpush1.msra.mxu0 %v164
  %435 = vmatprep.subr.mxu0 0.0
  %436 = vmatpush1.msra.mxu0 %v165
  %437 = vmatprep.subr.mxu0 0.0
  %438 = vmatpush1.msra.mxu0 %v166
  %439 = vmatprep.subr.mxu0 0.0
  %440 = vmatpush1.msra.mxu0 %v167
  %441 = vmatprep.subr.mxu0 0.0
  %442 = vmatpush1.msra.mxu0 %v168
  %443 = vmatprep.subr.mxu0 0.0
  %444 = vmatpush1.msra.mxu0 %v169
  %445 = vmatprep.subr.mxu0 0.0
  %446 = vmatpush1.msra.mxu0 %v170
  %447 = vmatprep.subr.mxu0 0.0
  %448 = vmatpush1.msra.mxu0 %v171
  %449 = vmatprep.subr.mxu0 0.0
  %450 = vmatpush1.msra.mxu0 %v172
  %451 = vmatprep.subr.mxu0 0.0
  %452 = vmatpush1.msra.mxu0 %v173
  %453 = vmatprep.subr.mxu0 0.0
  %454 = vmatpush1.msra.mxu0 %v174
  %455 = vmatprep.subr.mxu0 0.0
  %456 = vmatpush1.msra.mxu0 %v175
  %457 = vmatprep.subr.mxu0 0.0
  %458 = vmatpush1.msra.mxu0 %v176
  %459 = vmatprep.subr.mxu0 0.0
  %460 = vmatpush1.msra.mxu0 %v177
  %461 = vmatprep.subr.mxu0 0.0
  %462 = vmatpush1.msra.mxu0 %v178
  %463 = vmatprep.subr.mxu0 0.0
  %464 = vmatpush1.msra.mxu0 %v179
  %465 = vmatprep.subr.mxu0 0.0
  %466 = vmatpush1.msra.mxu0 %v180
  %467 = vmatprep.subr.mxu0 0.0
  %468 = vmatpush1.msra.mxu0 %v181
  %469 = vmatprep.subr.mxu0 0.0
  %470 = vmatpush1.msra.mxu0 %v182
  %471 = vmatprep.subr.mxu0 0.0
  %472 = vmatpush1.msra.mxu0 %v183
  %473 = vmatprep.subr.mxu0 0.0
  %474 = vmatpush1.msra.mxu0 %v184
  %475 = vmatprep.subr.mxu0 0.0
  %476 = vmatpush1.msra.mxu0 %v185
  %477 = vmatprep.subr.mxu0 0.0
  %478 = vmatpush1.msra.mxu0 %v186
  %479 = vmatprep.subr.mxu0 0.0
  %480 = vmatpush1.msra.mxu0 %v187
  %481 = vmatprep.subr.mxu0 0.0
  %482 = vmatpush1.msra.mxu0 %v188
  %483 = vmatprep.subr.mxu0 0.0
  %484 = vmatpush1.msra.mxu0 %v189
  %485 = vmatprep.subr.mxu0 0.0
  %486 = vmatpush1.msra.mxu0 %v190
  %487 = vmatprep.subr.mxu0 0.0
  %488 = vmatpush1.msra.mxu0 %v191
  %489 = vmatprep.subr.mxu0 0.0
  %490 = vmatpush1.msra.mxu0 %v192
  %491 = vmatprep.subr.mxu0 0.0
  %492 = vmatpush1.msra.mxu0 %v193
  %493 = vmatprep.subr.mxu0 0.0
  %494 = vmatpush1.msra.mxu0 %v194
  %495 = vmatprep.subr.mxu0 0.0
  %496 = vmatpush1.msra.mxu0 %v195
  %497 = vmatprep.mubr.f32.mxu0 %v23
  %498 = vmatmul.mubr.f32.gmra.mrb[0].mxu0 %v22
  %v499 = vpop.f32.mrb[0].mxu0
  %v500 = vadd.f32 %v355, %v499
  %v501 = vpop.f32.mrb[0].mxu0
  %502 = vmatprep.mubr.f32.mxu0 %v30
  %503 = vmatmul.mubr.f32.gmra.mrb[0].mxu0 %v29
  %v504 = vpop.f32.mrb[0].mxu0
  %v505 = vadd.f32 %v360, %v504
  %v506 = vpop.f32.mrb[0].mxu0
  %507 = vmatprep.mubr.f32.mxu0 %v37
  %508 = vmatmul.mubr.f32.gmra.mrb[0].mxu0 %v36
  %v509 = vpop.f32.mrb[0].mxu0
  %v510 = vadd.f32 %v365, %v509
  %v511 = vpop.f32.mrb[0].mxu0
  %512 = vmatprep.mubr.f32.mxu0 %v44
  %513 = vmatmul.mubr.f32.gmra.mrb[0].mxu0 %v43
  %v514 = vpop.f32.mrb[0].mxu0
  %v515 = vadd.f32 %v370, %v514
  %v516 = vpop.f32.mrb[0].mxu0
  %517 = vmatprep.mubr.f32.mxu0 %v51
  %518 = vmatmul.mubr.f32.gmra.mrb[0].mxu0 %v50
  %v519 = vpop.f32.mrb[0].mxu0
  %v520 = vadd.f32 %v375, %v519
  %v521 = vpop.f32.mrb[0].mxu0
  %522 = vmatprep.mubr.f32.mxu0 %v58
  %523 = vmatmul.mubr.f32.gmra.mrb[0].mxu0 %v57
  %v524 = vpop.f32.mrb[0].mxu0
  %v525 = vadd.f32 %v380, %v524
  %v526 = vpop.f32.mrb[0].mxu0
  %527 = vmatprep.mubr.f32.mxu0 %v65
  %528 = vmatmul.mubr.f32.gmra.mrb[0].mxu0 %v64
  %v529 = vpop.f32.mrb[0].mxu0
  %v530 = vadd.f32 %v385, %v529
  %v531 = vpop.f32.mrb[0].mxu0
  %532 = vmatprep.mubr.f32.mxu0 %v72
  %533 = vmatmul.mubr.f32.gmra.mrb[0].mxu0 %v71
  %v534 = vpop.f32.mrb[0].mxu0
  %v535 = vadd.f32 %v390, %v534
  %v536 = vpop.f32.mrb[0].mxu0
  %537 = vmatprep.mubr.f32.mxu0 %v79
  %538 = vmatmul.mubr.f32.gmra.mrb[0].mxu0 %v78
  %v539 = vpop.f32.mrb[0].mxu0
  %v540 = vadd.f32 %v395, %v539
  %v541 = vpop.f32.mrb[0].mxu0
  %542 = vmatprep.mubr.f32.mxu0 %v86
  %543 = vmatmul.mubr.f32.gmra.mrb[0].mxu0 %v85
  %v544 = vpop.f32.mrb[0].mxu0
  %v545 = vadd.f32 %v400, %v544
  %v546 = vpop.f32.mrb[0].mxu0
  %547 = vmatprep.mubr.f32.mxu0 %v93
  %548 = vmatmul.mubr.f32.gmra.mrb[0].mxu0 %v92
  %v549 = vpop.f32.mrb[0].mxu0
  %v550 = vadd.f32 %v405, %v549
  %v551 = vpop.f32.mrb[0].mxu0
  %552 = vmatprep.mubr.f32.mxu0 %v100
  %553 = vmatmul.mubr.f32.gmra.mrb[0].mxu0 %v99
  %v554 = vpop.f32.mrb[0].mxu0
  %v555 = vadd.f32 %v410, %v554
  %v556 = vpop.f32.mrb[0].mxu0
  %557 = vmatprep.mubr.f32.mxu0 %v107
  %558 = vmatmul.mubr.f32.gmra.mrb[0].mxu0 %v106
  %v559 = vpop.f32.mrb[0].mxu0
  %v560 = vadd.f32 %v415, %v559
  %v561 = vpop.f32.mrb[0].mxu0
  %562 = vmatprep.mubr.f32.mxu0 %v114
  %563 = vmatmul.mubr.f32.gmra.mrb[0].mxu0 %v113
  %v564 = vpop.f32.mrb[0].mxu0
  %v565 = vadd.f32 %v420, %v564
  %v566 = vpop.f32.mrb[0].mxu0
  %567 = vmatprep.mubr.f32.mxu0 %v121
  %568 = vmatmul.mubr.f32.gmra.mrb[0].mxu0 %v120
  %v569 = vpop.f32.mrb[0].mxu0
  %v570 = vadd.f32 %v425, %v569
  %v571 = vpop.f32.mrb[0].mxu0
  %572 = vmatprep.mubr.f32.mxu0 %v128
  %573 = vmatmul.mubr.f32.gmra.mrb[0].mxu0 %v127
  %v574 = vpop.f32.mrb[0].mxu0
  %v575 = vadd.f32 %v430, %v574
  %v576 = vpop.f32.mrb[0].mxu0
  %577 = vdwg.mxu0
  %578 = vmatprep.subr.mxu0 0.0
  %579 = vmatpush1.msra.mxu0 %v196
  %580 = vmatprep.subr.mxu0 0.0
  %581 = vmatpush1.msra.mxu0 %v197
  %582 = vmatprep.subr.mxu0 0.0
  %583 = vmatpush1.msra.mxu0 %v198
  %584 = vmatprep.subr.mxu0 0.0
  %585 = vmatpush1.msra.mxu0 %v199
  %586 = vmatprep.subr.mxu0 0.0
  %587 = vmatpush1.msra.mxu0 %v200
  %588 = vmatprep.subr.mxu0 0.0
  %589 = vmatpush1.msra.mxu0 %v201
  %590 = vmatprep.subr.mxu0 0.0
  %591 = vmatpush1.msra.mxu0 %v202
  %592 = vmatprep.subr.mxu0 0.0
  %593 = vmatpush1.msra.mxu0 %v203
  %594 = vmatprep.subr.mxu0 0.0
  %595 = vmatpush1.msra.mxu0 %v204
  %596 = vmatprep.subr.mxu0 0.0
  %597 = vmatpush1.msra.mxu0 %v205
  %598 = vmatprep.subr.mxu0 0.0
  %599 = vmatpush1.msra.mxu0 %v206
  %600 = vmatprep.subr.mxu0 0.0
  %601 = vmatpush1.msra.mxu0 %v207
  %602 = vmatprep.subr.mxu0 0.0
  %603 = vmatpush1.msra.mxu0 %v208
  %604 = vmatprep.subr.mxu0 0.0
  %605 = vmatpush1.msra.mxu0 %v209
  %606 = vmatprep.subr.mxu0 0.0
  %607 = vmatpush1.msra.mxu0 %v210
  %608 = vmatprep.subr.mxu0 0.0
  %609 = vmatpush1.msra.mxu0 %v211
  %610 = vmatprep.subr.mxu0 0.0
  %611 = vmatpush1.msra.mxu0 %v212
  %612 = vmatprep.subr.mxu0 0.0
  %613 = vmatpush1.msra.mxu0 %v213
  %614 = vmatprep.subr.mxu0 0.0
  %615 = vmatpush1.msra.mxu0 %v214
  %616 = vmatprep.subr.mxu0 0.0
  %617 = vmatpush1.msra.mxu0 %v215
  %618 = vmatprep.subr.mxu0 0.0
  %619 = vmatpush1.msra.mxu0 %v216
  %620 = vmatprep.subr.mxu0 0.0
  %621 = vmatpush1.msra.mxu0 %v217
  %622 = vmatprep.subr.mxu0 0.0
  %623 = vmatpush1.msra.mxu0 %v218
  %624 = vmatprep.subr.mxu0 0.0
  %625 = vmatpush1.msra.mxu0 %v219
  %626 = vmatprep.subr.mxu0 0.0
  %627 = vmatpush1.msra.mxu0 %v220
  %628 = vmatprep.subr.mxu0 0.0
  %629 = vmatpush1.msra.mxu0 %v221
  %630 = vmatprep.subr.mxu0 0.0
  %631 = vmatpush1.msra.mxu0 %v222
  %632 = vmatprep.subr.mxu0 0.0
  %633 = vmatpush1.msra.mxu0 %v223
  %634 = vmatprep.subr.mxu0 0.0
  %635 = vmatpush1.msra.mxu0 %v224
  %636 = vmatprep.subr.mxu0 0.0
  %637 = vmatpush1.msra.mxu0 %v225
  %638 = vmatprep.subr.mxu0 0.0
  %639 = vmatpush1.msra.mxu0 %v226
  %640 = vmatprep.subr.mxu0 0.0
  %641 = vmatpush1.msra.mxu0 %v227
  %642 = vmatprep.mubr.f32.mxu0 %v25
  %643 = vmatmul.mubr.f32.gmra.mrb[0].mxu0 %v24
  %v644 = vpop.f32.mrb[0].mxu0
  %v645 = vadd.f32 %v500, %v644
  %v646 = vpop.f32.mrb[0].mxu0
  %647 = vmatprep.mubr.f32.mxu0 %v32
  %648 = vmatmul.mubr.f32.gmra.mrb[0].mxu0 %v31
  %v649 = vpop.f32.mrb[0].mxu0
  %v650 = vadd.f32 %v505, %v649
  %v651 = vpop.f32.mrb[0].mxu0
  %652 = vmatprep.mubr.f32.mxu0 %v39
  %653 = vmatmul.mubr.f32.gmra.mrb[0].mxu0 %v38
  %v654 = vpop.f32.mrb[0].mxu0
  %v655 = vadd.f32 %v510, %v654
  %v656 = vpop.f32.mrb[0].mxu0
  %657 = vmatprep.mubr.f32.mxu0 %v46
  %658 = vmatmul.mubr.f32.gmra.mrb[0].mxu0 %v45
  %v659 = vpop.f32.mrb[0].mxu0
  %v660 = vadd.f32 %v515, %v659
  %v661 = vpop.f32.mrb[0].mxu0
  %662 = vmatprep.mubr.f32.mxu0 %v53
  %663 = vmatmul.mubr.f32.gmra.mrb[0].mxu0 %v52
  %v664 = vpop.f32.mrb[0].mxu0
  %v665 = vadd.f32 %v520, %v664
  %v666 = vpop.f32.mrb[0].mxu0
  %667 = vmatprep.mubr.f32.mxu0 %v60
  %668 = vmatmul.mubr.f32.gmra.mrb[0].mxu0 %v59
  %v669 = vpop.f32.mrb[0].mxu0
  %v670 = vadd.f32 %v525, %v669
  %v671 = vpop.f32.mrb[0].mxu0
  %672 = vmatprep.mubr.f32.mxu0 %v67
  %673 = vmatmul.mubr.f32.gmra.mrb[0].mxu0 %v66
  %v674 = vpop.f32.mrb[0].mxu0
  %v675 = vadd.f32 %v530, %v674
  %v676 = vpop.f32.mrb[0].mxu0
  %677 = vmatprep.mubr.f32.mxu0 %v74
  %678 = vmatmul.mubr.f32.gmra.mrb[0].mxu0 %v73
  %v679 = vpop.f32.mrb[0].mxu0
  %v680 = vadd.f32 %v535, %v679
  %v681 = vpop.f32.mrb[0].mxu0
  %682 = vmatprep.mubr.f32.mxu0 %v81
  %683 = vmatmul.mubr.f32.gmra.mrb[0].mxu0 %v80
  %v684 = vpop.f32.mrb[0].mxu0
  %v685 = vadd.f32 %v540, %v684
  %v686 = vpop.f32.mrb[0].mxu0
  %687 = vmatprep.mubr.f32.mxu0 %v88
  %688 = vmatmul.mubr.f32.gmra.mrb[0].mxu0 %v87
  %v689 = vpop.f32.mrb[0].mxu0
  %v690 = vadd.f32 %v545, %v689
  %v691 = vpop.f32.mrb[0].mxu0
  %692 = vmatprep.mubr.f32.mxu0 %v95
  %693 = vmatmul.mubr.f32.gmra.mrb[0].mxu0 %v94
  %v694 = vpop.f32.mrb[0].mxu0
  %v695 = vadd.f32 %v550, %v694
  %v696 = vpop.f32.mrb[0].mxu0
  %697 = vmatprep.mubr.f32.mxu0 %v102
  %698 = vmatmul.mubr.f32.gmra.mrb[0].mxu0 %v101
  %v699 = vpop.f32.mrb[0].mxu0
  %v700 = vadd.f32 %v555, %v699
  %v701 = vpop.f32.mrb[0].mxu0
  %702 = vmatprep.mubr.f32.mxu0 %v109
  %703 = vmatmul.mubr.f32.gmra.mrb[0].mxu0 %v108
  %v704 = vpop.f32.mrb[0].mxu0
  %v705 = vadd.f32 %v560, %v704
  %v706 = vpop.f32.mrb[0].mxu0
  %707 = vmatprep.mubr.f32.mxu0 %v116
  %708 = vmatmul.mubr.f32.gmra.mrb[0].mxu0 %v115
  %v709 = vpop.f32.mrb[0].mxu0
  %v710 = vadd.f32 %v565, %v709
  %v711 = vpop.f32.mrb[0].mxu0
  %712 = vmatprep.mubr.f32.mxu0 %v123
  %713 = vmatmul.mubr.f32.gmra.mrb[0].mxu0 %v122
  %v714 = vpop.f32.mrb[0].mxu0
  %v715 = vadd.f32 %v570, %v714
  %v716 = vpop.f32.mrb[0].mxu0
  %717 = vmatprep.mubr.f32.mxu0 %v130
  %718 = vmatmul.mubr.f32.gmra.mrb[0].mxu0 %v129
  %v719 = vpop.f32.mrb[0].mxu0
  %v720 = vadd.f32 %v575, %v719
  %v721 = vpop.f32.mrb[0].mxu0
  %722 = vdwg.mxu0
  %723 = vmatprep.subr.mxu0 0.0
  %724 = vmatpush1.msra.mxu0 %v228
  %725 = vmatprep.subr.mxu0 0.0
  %726 = vmatpush1.msra.mxu0 %v229
  %727 = vmatprep.subr.mxu0 0.0
  %728 = vmatpush1.msra.mxu0 %v230
  %729 = vmatprep.subr.mxu0 0.0
  %730 = vmatpush1.msra.mxu0 %v231
  %731 = vmatprep.subr.mxu0 0.0
  %732 = vmatpush1.msra.mxu0 0.0
  %733 = vmatprep.subr.mxu0 0.0
  %734 = vmatpush1.msra.mxu0 0.0
  %735 = vmatprep.subr.mxu0 0.0
  %736 = vmatpush1.msra.mxu0 0.0
  %737 = vmatprep.subr.mxu0 0.0
  %738 = vmatpush1.msra.mxu0 0.0
  %739 = vmatprep.subr.mxu0 0.0
  %740 = vmatpush1.msra.mxu0 0.0
  %741 = vmatprep.subr.mxu0 0.0
  %742 = vmatpush1.msra.mxu0 0.0
  %743 = vmatprep.subr.mxu0 0.0
  %744 = vmatpush1.msra.mxu0 0.0
  %745 = vmatprep.subr.mxu0 0.0
  %746 = vmatpush1.msra.mxu0 0.0
  %747 = vmatprep.subr.mxu0 0.0
  %748 = vmatpush1.msra.mxu0 0.0
  %749 = vmatprep.subr.mxu0 0.0
  %750 = vmatpush1.msra.mxu0 0.0
  %751 = vmatprep.subr.mxu0 0.0
  %752 = vmatpush1.msra.mxu0 0.0
  %753 = vmatprep.subr.mxu0 0.0
  %754 = vmatpush1.msra.mxu0 0.0
  %755 = vmatprep.subr.mxu0 0.0
  %756 = vmatpush1.msra.mxu0 0.0
  %757 = vmatprep.subr.mxu0 0.0
  %758 = vmatpush1.msra.mxu0 0.0
  %759 = vmatprep.subr.mxu0 0.0
  %760 = vmatpush1.msra.mxu0 0.0
  %761 = vmatprep.subr.mxu0 0.0
  %762 = vmatpush1.msra.mxu0 0.0
  %763 = vmatprep.subr.mxu0 0.0
  %764 = vmatpush1.msra.mxu0 0.0
  %765 = vmatprep.subr.mxu0 0.0
  %766 = vmatpush1.msra.mxu0 0.0
  %767 = vmatprep.subr.mxu0 0.0
  %768 = vmatpush1.msra.mxu0 0.0
  %769 = vmatprep.subr.mxu0 0.0
  %770 = vmatpush1.msra.mxu0 0.0
  %771 = vmatprep.subr.mxu0 0.0
  %772 = vmatpush1.msra.mxu0 0.0
  %773 = vmatprep.subr.mxu0 0.0
  %774 = vmatpush1.msra.mxu0 0.0
  %775 = vmatprep.subr.mxu0 0.0
  %776 = vmatpush1.msra.mxu0 0.0
  %777 = vmatprep.subr.mxu0 0.0
  %778 = vmatpush1.msra.mxu0 0.0
  %779 = vmatprep.subr.mxu0 0.0
  %780 = vmatpush1.msra.mxu0 0.0
  %781 = vmatprep.subr.mxu0 0.0
  %782 = vmatpush1.msra.mxu0 0.0
  %783 = vmatprep.subr.mxu0 0.0
  %784 = vmatpush1.msra.mxu0 0.0
  %785 = vmatprep.subr.mxu0 0.0
  %786 = vmatpush1.msra.mxu0 0.0
  %787 = vmatprep.mubr.f32.mxu0 0.0
  %788 = vmatmul.mubr.f32.gmra.mrb[0].mxu0 %v241
  %v789 = vpop.f32.mrb[0].mxu0
  %v790 = vadd.f32 %v645, %v789
  %v791 = vpop.f32.mrb[0].mxu0
  %792 = vmatprep.mubr.f32.mxu0 0.0
  %793 = vmatmul.mubr.f32.gmra.mrb[0].mxu0 %v244
  %v794 = vpop.f32.mrb[0].mxu0
  %v795 = vadd.f32 %v650, %v794
  %v796 = vpop.f32.mrb[0].mxu0
  %797 = vmatprep.mubr.f32.mxu0 0.0
  %798 = vmatmul.mubr.f32.gmra.mrb[0].mxu0 %v247
  %v799 = vpop.f32.mrb[0].mxu0
  %v800 = vadd.f32 %v655, %v799
  %v801 = vpop.f32.mrb[0].mxu0
  %802 = vmatprep.mubr.f32.mxu0 0.0
  %803 = vmatmul.mubr.f32.gmra.mrb[0].mxu0 %v250
  %v804 = vpop.f32.mrb[0].mxu0
  %v805 = vadd.f32 %v660, %v804
  %v806 = vpop.f32.mrb[0].mxu0
  %807 = vmatprep.mubr.f32.mxu0 0.0
  %808 = vmatmul.mubr.f32.gmra.mrb[0].mxu0 %v253
  %v809 = vpop.f32.mrb[0].mxu0
  %v810 = vadd.f32 %v665, %v809
  %v811 = vpop.f32.mrb[0].mxu0
  %812 = vmatprep.mubr.f32.mxu0 0.0
  %813 = vmatmul.mubr.f32.gmra.mrb[0].mxu0 %v256
  %v814 = vpop.f32.mrb[0].mxu0
  %v815 = vadd.f32 %v670, %v814
  %v816 = vpop.f32.mrb[0].mxu0
  %817 = vmatprep.mubr.f32.mxu0 0.0
  %818 = vmatmul.mubr.f32.gmra.mrb[0].mxu0 %v259
  %v819 = vpop.f32.mrb[0].mxu0
  %v820 = vadd.f32 %v675, %v819
  %v821 = vpop.f32.mrb[0].mxu0
  %822 = vmatprep.mubr.f32.mxu0 0.0
  %823 = vmatmul.mubr.f32.gmra.mrb[0].mxu0 %v262
  %v824 = vpop.f32.mrb[0].mxu0
  %v825 = vadd.f32 %v680, %v824
  %v826 = vpop.f32.mrb[0].mxu0
  %827 = vmatprep.mubr.f32.mxu0 0.0
  %828 = vmatmul.mubr.f32.gmra.mrb[0].mxu0 %v265
  %v829 = vpop.f32.mrb[0].mxu0
  %v830 = vadd.f32 %v685, %v829
  %v831 = vpop.f32.mrb[0].mxu0
  %832 = vmatprep.mubr.f32.mxu0 0.0
  %833 = vmatmul.mubr.f32.gmra.mrb[0].mxu0 %v268
  %v834 = vpop.f32.mrb[0].mxu0
  %v835 = vadd.f32 %v690, %v834
  %v836 = vpop.f32.mrb[0].mxu0
  %837 = vmatprep.mubr.f32.mxu0 0.0
  %838 = vmatmul.mubr.f32.gmra.mrb[0].mxu0 %v271
  %v839 = vpop.f32.mrb[0].mxu0
  %v840 = vadd.f32 %v695, %v839
  %v841 = vpop.f32.mrb[0].mxu0
  %842 = vmatprep.mubr.f32.mxu0 0.0
  %843 = vmatmul.mubr.f32.gmra.mrb[0].mxu0 %v274
  %v844 = vpop.f32.mrb[0].mxu0
  %v845 = vadd.f32 %v700, %v844
  %v846 = vpop.f32.mrb[0].mxu0
  %847 = vmatprep.mubr.f32.mxu0 0.0
  %848 = vmatmul.mubr.f32.gmra.mrb[0].mxu0 %v277
  %v849 = vpop.f32.mrb[0].mxu0
  %v850 = vadd.f32 %v705, %v849
  %v851 = vpop.f32.mrb[0].mxu0
  %852 = vmatprep.mubr.f32.mxu0 0.0
  %853 = vmatmul.mubr.f32.gmra.mrb[0].mxu0 %v280
  %v854 = vpop.f32.mrb[0].mxu0
  %v855 = vadd.f32 %v710, %v854
  %v856 = vpop.f32.mrb[0].mxu0
  %857 = vmatprep.mubr.f32.mxu0 0.0
  %858 = vmatmul.mubr.f32.gmra.mrb[0].mxu0 %v283
  %v859 = vpop.f32.mrb[0].mxu0
  %v860 = vadd.f32 %v715, %v859
  %v861 = vpop.f32.mrb[0].mxu0
  %862 = vmatprep.mubr.f32.mxu0 0.0
  %863 = vmatmul.mubr.f32.gmra.mrb[0].mxu0 %v286
  %v864 = vpop.f32.mrb[0].mxu0
  %v865 = vadd.f32 %v720, %v864
  %v866 = vpop.f32.mrb[0].mxu0
  %867 = vdwg.mxu0
  %vm868 = vcmp.ge.f32.partialorder %v790, 0.0
  %vm869 = vcmp.ge.f32.partialorder %v795, 0.0
  %vm870 = vcmp.ge.f32.partialorder %v800, 0.0
  %vm871 = vcmp.ge.f32.partialorder %v805, 0.0
  %vm872 = vcmp.ge.f32.partialorder %v810, 0.0
  %vm873 = vcmp.ge.f32.partialorder %v815, 0.0
  %vm874 = vcmp.ge.f32.partialorder %v820, 0.0
  %vm875 = vcmp.ge.f32.partialorder %v825, 0.0
  %vm876 = vcmp.ge.f32.partialorder %v830, 0.0
  %vm877 = vcmp.ge.f32.partialorder %v835, 0.0
  %vm878 = vcmp.ge.f32.partialorder %v840, 0.0
  %vm879 = vcmp.ge.f32.partialorder %v845, 0.0
  %vm880 = vcmp.ge.f32.partialorder %v850, 0.0
  %vm881 = vcmp.ge.f32.partialorder %v855, 0.0
  %vm882 = vcmp.ge.f32.partialorder %v860, 0.0
  %vm883 = vcmp.ge.f32.partialorder %v865, 0.0
  %v884 = vmul.f32 %v790, 0.01
  %v885 = vmul.f32 %v795, 0.01
  %v886 = vmul.f32 %v800, 0.01
  %v887 = vmul.f32 %v805, 0.01
  %v888 = vmul.f32 %v810, 0.01
  %v889 = vmul.f32 %v815, 0.01
  %v890 = vmul.f32 %v820, 0.01
  %v891 = vmul.f32 %v825, 0.01
  %v892 = vmul.f32 %v830, 0.01
  %v893 = vmul.f32 %v835, 0.01
  %v894 = vmul.f32 %v840, 0.01
  %v895 = vmul.f32 %v845, 0.01
  %v896 = vmul.f32 %v850, 0.01
  %v897 = vmul.f32 %v855, 0.01
  %v898 = vmul.f32 %v860, 0.01
  %v899 = vmul.f32 %v865, 0.01
  %v900 = vsel %vm868, %v790, %v884
  %v901 = vsel %vm869, %v795, %v885
  %v902 = vsel %vm870, %v800, %v886
  %v903 = vsel %vm871, %v805, %v887
  %v904 = vsel %vm872, %v810, %v888
  %v905 = vsel %vm873, %v815, %v889
  %v906 = vsel %vm874, %v820, %v890
  %v907 = vsel %vm875, %v825, %v891
  %v908 = vsel %vm876, %v830, %v892
  %v909 = vsel %vm877, %v835, %v893
  %v910 = vsel %vm878, %v840, %v894
  %v911 = vsel %vm879, %v845, %v895
  %v912 = vsel %vm880, %v850, %v896
  %v913 = vsel %vm881, %v855, %v897
  %v914 = vsel %vm882, %v860, %v898
  %v915 = vsel %vm883, %v865, %v899
  %v916 = vld [vmem:[%s3] sm:$0x1]
  %v918 = vlaneseq
  %v919 = vshrl.u32 %v918, 7
  %v920 = vsub.s32 0, %v919
  %v921 = vrot.slane %v916, %v920
  %v923 = vmul.f32 %v900, %v921
  %v924 = vmul.f32 %v901, %v921
  %v925 = vmul.f32 %v902, %v921
  %v926 = vmul.f32 %v903, %v921
  %v927 = vmul.f32 %v904, %v921
  %v928 = vmul.f32 %v905, %v921
  %v929 = vmul.f32 %v906, %v921
  %v930 = vmul.f32 %v907, %v921
  %v931 = vmul.f32 %v908, %v921
  %v932 = vmul.f32 %v909, %v921
  %v933 = vmul.f32 %v910, %v921
  %v934 = vmul.f32 %v911, %v921
  %v935 = vmul.f32 %v912, %v921
  %v936 = vmul.f32 %v913, %v921
  %v937 = vmul.f32 %v914, %v921
  %v938 = vmul.f32 %v915, %v921
  %v939 = vld [vmem:[%s4] sm:$0x1]
  %v941 = vlaneseq
  %v942 = vshrl.u32 %v941, 7
  %v943 = vsub.s32 0, %v942
  %v944 = vrot.slane %v939, %v943
  %v946 = vadd.f32 %v923, %v944
  %v947 = vadd.f32 %v924, %v944
  %v948 = vadd.f32 %v925, %v944
  %v949 = vadd.f32 %v926, %v944
  %v950 = vadd.f32 %v927, %v944
  %v951 = vadd.f32 %v928, %v944
  %v952 = vadd.f32 %v929, %v944
  %v953 = vadd.f32 %v930, %v944
  %v954 = vadd.f32 %v931, %v944
  %v955 = vadd.f32 %v932, %v944
  %v956 = vadd.f32 %v933, %v944
  %v957 = vadd.f32 %v934, %v944
  %v958 = vadd.f32 %v935, %v944
  %v959 = vadd.f32 %v936, %v944
  %v960 = vadd.f32 %v937, %v944
  %v961 = vadd.f32 %v938, %v944
  %v962 = vmax.f32 %v946, %v950
  %v963 = vmax.f32 %v947, %v951
  %v964 = vmax.f32 %v948, %v952
  %v965 = vmax.f32 %v949, %v953
  %v966 = vmax.f32 %v954, %v958
  %v967 = vmax.f32 %v955, %v959
  %v968 = vmax.f32 %v956, %v960
  %v969 = vmax.f32 %v957, %v961
  %v970 = vmax.f32 %v962, %v966
  %v971 = vmax.f32 %v963, %v967
  %v972 = vmax.f32 %v964, %v968
  %v973 = vmax.f32 %v965, %v969
  %974 = vst [vmem:[%s5] sm:$0xff] %v970
  %975 = vst [vmem:[%s5 + $0x8] sm:$0xff] %v971
  %976 = vst [vmem:[%s5 + $0x10] sm:$0xff] %v972
  %977 = vst [vmem:[%s5 + $0x18] sm:$0xff] %v973
  // Predicated region
  $region22: #{conv_classifier_forward.7} parent=0 // pred_check
    _
  $region23: #{conv_classifier_forward.7} parent=0 // pred_check_branch
    %979 = sbr.rel (0) target = $region25
  $region24: #{conv_classifier_forward.7} parent=0 // pred_region
    _
  $region25: #{conv_classifier_forward.7} parent=0 // pred_fallthru
    _
  // Predicated region
  $region26: #{conv_classifier_forward.7} parent=0 // pred_check
    _
  $region27: #{conv_classifier_forward.7} parent=0 // pred_check_branch
    %981 = sbr.rel (0) target = $region29
  $region28: #{conv_classifier_forward.7} parent=0 // pred_region
    _
  $region29: #{conv_classifier_forward.7} parent=0 // pred_fallthru
    _

// kernel: conv_classifier_forward.8
$region0: #{conv_classifier_forward.8}
  #allocation0 [shape = 'u32[]', space=smem, size = 0x4, offset = 0x4, fixed_abs, tag = 'smem constant byte address 0x4 - core index']
  #allocation1 [shape = 'u32[144,128]{1,0:T(1,128)}', space=vmem, size = 0x12000, scoped, tag = 'internal scratch']
  %s0 = inlined_call_operand.vmem [shape: f32[32,1600], index: 0, kind: input, shape index: {}]
  %s1 = inlined_call_operand.vmem [shape: f32[1600,128], index: 1, kind: input, shape index: {}]
  %s2 = inlined_call_operand.vmem [shape: f32[1,128], index: 2, kind: input, shape index: {}]
  %s3 = inlined_call_operand.vmem [shape: f32[1,128], index: 3, kind: input, shape index: {}]
  %s4 = inlined_call_operand.vmem [shape: f32[1,128], index: 4, kind: input, shape index: {}]
  %s5 = inlined_call_operand.vmem [shape: f32[8,128], index: 5, kind: output, shape index: {}]
  %s6 = sld [smem:[#allocation0]]
  $region30: #{conv_classifier_forward.8} parent=0
    _
  %s8 = ssub.s32 1, %s6
  %s9 = scalar_select 0, %s8, %s6
  // Predicated region
  $region2: #{conv_classifier_forward.8} parent=0 // pred_check
    _
  $region3: #{conv_classifier_forward.8} parent=0 // pred_check_branch
    %11 = sbr.rel (0) target = $region5
  $region4: #{conv_classifier_forward.8} parent=0 // pred_region
    _
  $region5: #{conv_classifier_forward.8} parent=0 // pred_fallthru
    _
  // Predicated region
  $region6: #{conv_classifier_forward.8} parent=0 // pred_check
    _
  $region7: #{conv_classifier_forward.8} parent=0 // pred_check_branch
    %13 = sbr.rel (0) target = $region9
  $region8: #{conv_classifier_forward.8} parent=0 // pred_region
    _
  $region9: #{conv_classifier_forward.8} parent=0 // pred_fallthru
    _
  // Predicated region
  $region10: #{conv_classifier_forward.8} parent=0 // pred_check
    _
  $region11: #{conv_classifier_forward.8} parent=0 // pred_check_branch
    %15 = sbr.rel (0) target = $region13
  $region12: #{conv_classifier_forward.8} parent=0 // pred_region
    _
  $region13: #{conv_classifier_forward.8} parent=0 // pred_fallthru
    _
  // Predicated region
  $region14: #{conv_classifier_forward.8} parent=0 // pred_check
    _
  $region15: #{conv_classifier_forward.8} parent=0 // pred_check_branch
    %17 = sbr.rel (0) target = $region17
  $region16: #{conv_classifier_forward.8} parent=0 // pred_region
    _
  $region17: #{conv_classifier_forward.8} parent=0 // pred_fallthru
    _
  // Predicated region
  $region18: #{conv_classifier_forward.8} parent=0 // pred_check
    _
  $region19: #{conv_classifier_forward.8} parent=0 // pred_check_branch
    %19 = sbr.rel (0) target = $region21
  $region20: #{conv_classifier_forward.8} parent=0 // pred_region
    _
  $region21: #{conv_classifier_forward.8} parent=0 // pred_fallthru
    _
  %v20 = vld [vmem:[%s0] sm:$0xff]
  %v21 = vld [vmem:[%s0 + $0x8] sm:$0xff]
  %v22 = vld [vmem:[%s0 + $0x10] sm:$0xff]
  %v23 = vld [vmem:[%s0 + $0x18] sm:$0xff]
  %v24 = vld [vmem:[%s0 + $0x20] sm:$0xff]
  %v25 = vld [vmem:[%s0 + $0x28] sm:$0xff]
  %v26 = vld [vmem:[%s0 + $0x30] sm:$0xff]
  %v27 = vld [vmem:[%s0 + $0x38] sm:$0xff]
  %v28 = vld [vmem:[%s0 + $0x40] sm:$0xff]
  %v29 = vld [vmem:[%s0 + $0x48] sm:$0xff]
  %v30 = vld [vmem:[%s0 + $0x50] sm:$0xff]
  %v31 = vld [vmem:[%s0 + $0x58] sm:$0xff]
  %v32 = vld [vmem:[%s0 + $0x60] sm:$0xff]
  %v33 = vld [vmem:[%s0 + $0x68] sm:$0xff]
  %v34 = vld [vmem:[%s0 + $0x70] sm:$0xff]
  %v35 = vld [vmem:[%s0 + $0x78] sm:$0xff]
  %v36 = vld [vmem:[%s0 + $0x80] sm:$0xff]
  %v37 = vld [vmem:[%s0 + $0x88] sm:$0xff]
  %v38 = vld [vmem:[%s0 + $0x90] sm:$0xff]
  %v39 = vld [vmem:[%s0 + $0x98] sm:$0xff]
  %v40 = vld [vmem:[%s0 + $0xa0] sm:$0xff]
  %v41 = vld [vmem:[%s0 + $0xa8] sm:$0xff]
  %v42 = vld [vmem:[%s0 + $0xb0] sm:$0xff]
  %v43 = vld [vmem:[%s0 + $0xb8] sm:$0xff]
  %v44 = vld [vmem:[%s0 + $0xc0] sm:$0xff]
  %v45 = vld [vmem:[%s0 + $0xc8] sm:$0xff]
  %v46 = vld [vmem:[%s0 + $0xd0] sm:$0xff]
  %v47 = vld [vmem:[%s0 + $0xd8] sm:$0xff]
  %v48 = vld [vmem:[%s0 + $0xe0] sm:$0xff]
  %v49 = vld [vmem:[%s0 + $0xe8] sm:$0xff]
  %v50 = vld [vmem:[%s0 + $0xf0] sm:$0xff]
  %v51 = vld [vmem:[%s0 + $0xf8] sm:$0xff]
  %v52 = vld [vmem:[%s0 + $0x100] sm:$0xff]
  %v53 = vld [vmem:[%s0 + $0x108] sm:$0xff]
  %v54 = vld [vmem:[%s0 + $0x110] sm:$0xff]
  %v55 = vld [vmem:[%s0 + $0x118] sm:$0xff]
  %v56 = vld [vmem:[%s0 + $0x120] sm:$0xff]
  %v57 = vld [vmem:[%s0 + $0x128] sm:$0xff]
  %v58 = vld [vmem:[%s0 + $0x130] sm:$0xff]
  %v59 = vld [vmem:[%s0 + $0x138] sm:$0xff]
  %v60 = vld [vmem:[%s0 + $0x140] sm:$0xff]
  %v61 = vld [vmem:[%s0 + $0x148] sm:$0xff]
  %v62 = vld [vmem:[%s0 + $0x150] sm:$0xff]
  %v63 = vld [vmem:[%s0 + $0x158] sm:$0xff]
  %v64 = vld [vmem:[%s0 + $0x160] sm:$0xff]
  %v65 = vld [vmem:[%s0 + $0x168] sm:$0xff]
  %v66 = vld [vmem:[%s0 + $0x170] sm:$0xff]
  %v67 = vld [vmem:[%s0 + $0x178] sm:$0xff]
  %v68 = vld [vmem:[%s0 + $0x180] sm:$0xff]
  %v69 = vld [vmem:[%s0 + $0x188] sm:$0xff]
  %v70 = vld [vmem:[%s0 + $0x190] sm:$0xff]
  %v71 = vld [vmem:[%s0 + $0x198] sm:$0xff]
  %v72 = vld [vmem:[%s1] sm:$0xff]
  %v73 = vld [vmem:[%s1 + $0x8] sm:$0xff]
  %v74 = vld [vmem:[%s1 + $0x10] sm:$0xff]
  %v75 = vld [vmem:[%s1 + $0x18] sm:$0xff]
  %v76 = vld [vmem:[%s1 + $0x20] sm:$0xff]
  %v77 = vld [vmem:[%s1 + $0x28] sm:$0xff]
  %v78 = vld [vmem:[%s1 + $0x30] sm:$0xff]
  %v79 = vld [vmem:[%s1 + $0x38] sm:$0xff]
  %v80 = vld [vmem:[%s1 + $0x40] sm:$0xff]
  %v81 = vld [vmem:[%s1 + $0x48] sm:$0xff]
  %v82 = vld [vmem:[%s1 + $0x50] sm:$0xff]
  %v83 = vld [vmem:[%s1 + $0x58] sm:$0xff]
  %v84 = vld [vmem:[%s1 + $0x60] sm:$0xff]
  %v85 = vld [vmem:[%s1 + $0x68] sm:$0xff]
  %v86 = vld [vmem:[%s1 + $0x70] sm:$0xff]
  %v87 = vld [vmem:[%s1 + $0x78] sm:$0xff]
  %v88 = vld [vmem:[%s1 + $0x80] sm:$0xff]
  %v89 = vld [vmem:[%s1 + $0x88] sm:$0xff]
  %v90 = vld [vmem:[%s1 + $0x90] sm:$0xff]
  %v91 = vld [vmem:[%s1 + $0x98] sm:$0xff]
  %v92 = vld [vmem:[%s1 + $0xa0] sm:$0xff]
  %v93 = vld [vmem:[%s1 + $0xa8] sm:$0xff]
  %v94 = vld [vmem:[%s1 + $0xb0] sm:$0xff]
  %v95 = vld [vmem:[%s1 + $0xb8] sm:$0xff]
  %v96 = vld [vmem:[%s1 + $0xc0] sm:$0xff]
  %v97 = vld [vmem:[%s1 + $0xc8] sm:$0xff]
  %v98 = vld [vmem:[%s1 + $0xd0] sm:$0xff]
  %v99 = vld [vmem:[%s1 + $0xd8] sm:$0xff]
  %v100 = vld [vmem:[%s1 + $0xe0] sm:$0xff]
  %v101 = vld [vmem:[%s1 + $0xe8] sm:$0xff]
  %v102 = vld [vmem:[%s1 + $0xf0] sm:$0xff]
  %v103 = vld [vmem:[%s1 + $0xf8] sm:$0xff]
  %v104 = vld [vmem:[%s1 + $0x100] sm:$0xff]
  %v105 = vld [vmem:[%s1 + $0x108] sm:$0xff]
  %v106 = vld [vmem:[%s1 + $0x110] sm:$0xff]
  %v107 = vld [vmem:[%s1 + $0x118] sm:$0xff]
  %v108 = vld [vmem:[%s1 + $0x120] sm:$0xff]
  %v109 = vld [vmem:[%s1 + $0x128] sm:$0xff]
  %v110 = vld [vmem:[%s1 + $0x130] sm:$0xff]
  %v111 = vld [vmem:[%s1 + $0x138] sm:$0xff]
  %v112 = vld [vmem:[%s1 + $0x140] sm:$0xff]
  %v113 = vld [vmem:[%s1 + $0x148] sm:$0xff]
  %v114 = vld [vmem:[%s1 + $0x150] sm:$0xff]
  %v115 = vld [vmem:[%s1 + $0x158] sm:$0xff]
  %v116 = vld [vmem:[%s1 + $0x160] sm:$0xff]
  %v117 = vld [vmem:[%s1 + $0x168] sm:$0xff]
  %v118 = vld [vmem:[%s1 + $0x170] sm:$0xff]
  %v119 = vld [vmem:[%s1 + $0x178] sm:$0xff]
  %v120 = vld [vmem:[%s1 + $0x180] sm:$0xff]
  %v121 = vld [vmem:[%s1 + $0x188] sm:$0xff]
  %v122 = vld [vmem:[%s1 + $0x190] sm:$0xff]
  %v123 = vld [vmem:[%s1 + $0x198] sm:$0xff]
  %v124 = vld [vmem:[%s1 + $0x1a0] sm:$0xff]
  %v125 = vld [vmem:[%s1 + $0x1a8] sm:$0xff]
  %v126 = vld [vmem:[%s1 + $0x1b0] sm:$0xff]
  %v127 = vld [vmem:[%s1 + $0x1b8] sm:$0xff]
  %v128 = vld [vmem:[%s1 + $0x1c0] sm:$0xff]
  %v129 = vld [vmem:[%s1 + $0x1c8] sm:$0xff]
  %v130 = vld [vmem:[%s1 + $0x1d0] sm:$0xff]
  %v131 = vld [vmem:[%s1 + $0x1d8] sm:$0xff]
  %v132 = vld [vmem:[%s1 + $0x1e0] sm:$0xff]
  %v133 = vld [vmem:[%s1 + $0x1e8] sm:$0xff]
  %v134 = vld [vmem:[%s1 + $0x1f0] sm:$0xff]
  %v135 = vld [vmem:[%s1 + $0x1f8] sm:$0xff]
  %v136 = vld [vmem:[%s1 + $0x200] sm:$0xff]
  %v137 = vld [vmem:[%s1 + $0x208] sm:$0xff]
  %v138 = vld [vmem:[%s1 + $0x210] sm:$0xff]
  %v139 = vld [vmem:[%s1 + $0x218] sm:$0xff]
  %v140 = vld [vmem:[%s1 + $0x220] sm:$0xff]
  %v141 = vld [vmem:[%s1 + $0x228] sm:$0xff]
  %v142 = vld [vmem:[%s1 + $0x230] sm:$0xff]
  %v143 = vld [vmem:[%s1 + $0x238] sm:$0xff]
  %v144 = vld [vmem:[%s1 + $0x240] sm:$0xff]
  %v145 = vld [vmem:[%s1 + $0x248] sm:$0xff]
  %v146 = vld [vmem:[%s1 + $0x250] sm:$0xff]
  %v147 = vld [vmem:[%s1 + $0x258] sm:$0xff]
  %v148 = vld [vmem:[%s1 + $0x260] sm:$0xff]
  %v149 = vld [vmem:[%s1 + $0x268] sm:$0xff]
  %v150 = vld [vmem:[%s1 + $0x270] sm:$0xff]
  %v151 = vld [vmem:[%s1 + $0x278] sm:$0xff]
  %v152 = vld [vmem:[%s1 + $0x280] sm:$0xff]
  %v153 = vld [vmem:[%s1 + $0x288] sm:$0xff]
  %v154 = vld [vmem:[%s1 + $0x290] sm:$0xff]
  %v155 = vld [vmem:[%s1 + $0x298] sm:$0xff]
  %v156 = vld [vmem:[%s1 + $0x2a0] sm:$0xff]
  %v157 = vld [vmem:[%s1 + $0x2a8] sm:$0xff]
  %v158 = vld [vmem:[%s1 + $0x2b0] sm:$0xff]
  %v159 = vld [vmem:[%s1 + $0x2b8] sm:$0xff]
  %v160 = vld [vmem:[%s1 + $0x2c0] sm:$0xff]
  %v161 = vld [vmem:[%s1 + $0x2c8] sm:$0xff]
  %v162 = vld [vmem:[%s1 + $0x2d0] sm:$0xff]
  %v163 = vld [vmem:[%s1 + $0x2d8] sm:$0xff]
  %v164 = vld [vmem:[%s1 + $0x2e0] sm:$0xff]
  %v165 = vld [vmem:[%s1 + $0x2e8] sm:$0xff]
  %v166 = vld [vmem:[%s1 + $0x2f0] sm:$0xff]
  %v167 = vld [vmem:[%s1 + $0x2f8] sm:$0xff]
  %v168 = vld [vmem:[%s1 + $0x300] sm:$0xff]
  %v169 = vld [vmem:[%s1 + $0x308] sm:$0xff]
  %v170 = vld [vmem:[%s1 + $0x310] sm:$0xff]
  %v171 = vld [vmem:[%s1 + $0x318] sm:$0xff]
  %v172 = vld [vmem:[%s1 + $0x320] sm:$0xff]
  %v173 = vld [vmem:[%s1 + $0x328] sm:$0xff]
  %v174 = vld [vmem:[%s1 + $0x330] sm:$0xff]
  %v175 = vld [vmem:[%s1 + $0x338] sm:$0xff]
  %v176 = vld [vmem:[%s1 + $0x340] sm:$0xff]
  %v177 = vld [vmem:[%s1 + $0x348] sm:$0xff]
  %v178 = vld [vmem:[%s1 + $0x350] sm:$0xff]
  %v179 = vld [vmem:[%s1 + $0x358] sm:$0xff]
  %v180 = vld [vmem:[%s1 + $0x360] sm:$0xff]
  %v181 = vld [vmem:[%s1 + $0x368] sm:$0xff]
  %v182 = vld [vmem:[%s1 + $0x370] sm:$0xff]
  %v183 = vld [vmem:[%s1 + $0x378] sm:$0xff]
  %v184 = vld [vmem:[%s1 + $0x380] sm:$0xff]
  %v185 = vld [vmem:[%s1 + $0x388] sm:$0xff]
  %v186 = vld [vmem:[%s1 + $0x390] sm:$0xff]
  %v187 = vld [vmem:[%s1 + $0x398] sm:$0xff]
  %v188 = vld [vmem:[%s1 + $0x3a0] sm:$0xff]
  %v189 = vld [vmem:[%s1 + $0x3a8] sm:$0xff]
  %v190 = vld [vmem:[%s1 + $0x3b0] sm:$0xff]
  %v191 = vld [vmem:[%s1 + $0x3b8] sm:$0xff]
  %v192 = vld [vmem:[%s1 + $0x3c0] sm:$0xff]
  %v193 = vld [vmem:[%s1 + $0x3c8] sm:$0xff]
  %v194 = vld [vmem:[%s1 + $0x3d0] sm:$0xff]
  %v195 = vld [vmem:[%s1 + $0x3d8] sm:$0xff]
  %v196 = vld [vmem:[%s1 + $0x3e0] sm:$0xff]
  %v197 = vld [vmem:[%s1 + $0x3e8] sm:$0xff]
  %v198 = vld [vmem:[%s1 + $0x3f0] sm:$0xff]
  %v199 = vld [vmem:[%s1 + $0x3f8] sm:$0xff]
  %v200 = vld [vmem:[%s1 + $0x400] sm:$0xff]
  %v201 = vld [vmem:[%s1 + $0x408] sm:$0xff]
  %v202 = vld [vmem:[%s1 + $0x410] sm:$0xff]
  %v203 = vld [vmem:[%s1 + $0x418] sm:$0xff]
  %v204 = vld [vmem:[%s1 + $0x420] sm:$0xff]
  %v205 = vld [vmem:[%s1 + $0x428] sm:$0xff]
  %v206 = vld [vmem:[%s1 + $0x430] sm:$0xff]
  %v207 = vld [vmem:[%s1 + $0x438] sm:$0xff]
  %v208 = vld [vmem:[%s1 + $0x440] sm:$0xff]
  %v209 = vld [vmem:[%s1 + $0x448] sm:$0xff]
  %v210 = vld [vmem:[%s1 + $0x450] sm:$0xff]
  %v211 = vld [vmem:[%s1 + $0x458] sm:$0xff]
  %v212 = vld [vmem:[%s1 + $0x460] sm:$0xff]
  %v213 = vld [vmem:[%s1 + $0x468] sm:$0xff]
  %v214 = vld [vmem:[%s1 + $0x470] sm:$0xff]
  %v215 = vld [vmem:[%s1 + $0x478] sm:$0xff]
  %v216 = vld [vmem:[%s1 + $0x480] sm:$0xff]
  %v217 = vld [vmem:[%s1 + $0x488] sm:$0xff]
  %v218 = vld [vmem:[%s1 + $0x490] sm:$0xff]
  %v219 = vld [vmem:[%s1 + $0x498] sm:$0xff]
  %v220 = vld [vmem:[%s1 + $0x4a0] sm:$0xff]
  %v221 = vld [vmem:[%s1 + $0x4a8] sm:$0xff]
  %v222 = vld [vmem:[%s1 + $0x4b0] sm:$0xff]
  %v223 = vld [vmem:[%s1 + $0x4b8] sm:$0xff]
  %v224 = vld [vmem:[%s1 + $0x4c0] sm:$0xff]
  %v225 = vld [vmem:[%s1 + $0x4c8] sm:$0xff]
  %v226 = vld [vmem:[%s1 + $0x4d0] sm:$0xff]
  %v227 = vld [vmem:[%s1 + $0x4d8] sm:$0xff]
  %v228 = vld [vmem:[%s1 + $0x4e0] sm:$0xff]
  %v229 = vld [vmem:[%s1 + $0x4e8] sm:$0xff]
  %v230 = vld [vmem:[%s1 + $0x4f0] sm:$0xff]
  %v231 = vld [vmem:[%s1 + $0x4f8] sm:$0xff]
  %v232 = vld [vmem:[%s1 + $0x500] sm:$0xff]
  %v233 = vld [vmem:[%s1 + $0x508] sm:$0xff]
  %v234 = vld [vmem:[%s1 + $0x510] sm:$0xff]
  %v235 = vld [vmem:[%s1 + $0x518] sm:$0xff]
  %v236 = vld [vmem:[%s1 + $0x520] sm:$0xff]
  %v237 = vld [vmem:[%s1 + $0x528] sm:$0xff]
  %v238 = vld [vmem:[%s1 + $0x530] sm:$0xff]
  %v239 = vld [vmem:[%s1 + $0x538] sm:$0xff]
  %v240 = vld [vmem:[%s1 + $0x540] sm:$0xff]
  %v241 = vld [vmem:[%s1 + $0x548] sm:$0xff]
  %v242 = vld [vmem:[%s1 + $0x550] sm:$0xff]
  %v243 = vld [vmem:[%s1 + $0x558] sm:$0xff]
  %v244 = vld [vmem:[%s1 + $0x560] sm:$0xff]
  %v245 = vld [vmem:[%s1 + $0x568] sm:$0xff]
  %v246 = vld [vmem:[%s1 + $0x570] sm:$0xff]
  %v247 = vld [vmem:[%s1 + $0x578] sm:$0xff]
  %v248 = vld [vmem:[%s1 + $0x580] sm:$0xff]
  %v249 = vld [vmem:[%s1 + $0x588] sm:$0xff]
  %v250 = vld [vmem:[%s1 + $0x590] sm:$0xff]
  %v251 = vld [vmem:[%s1 + $0x598] sm:$0xff]
  %v252 = vld [vmem:[%s1 + $0x5a0] sm:$0xff]
  %v253 = vld [vmem:[%s1 + $0x5a8] sm:$0xff]
  %v254 = vld [vmem:[%s1 + $0x5b0] sm:$0xff]
  %v255 = vld [vmem:[%s1 + $0x5b8] sm:$0xff]
  %v256 = vld [vmem:[%s1 + $0x5c0] sm:$0xff]
  %v257 = vld [vmem:[%s1 + $0x5c8] sm:$0xff]
  %v258 = vld [vmem:[%s1 + $0x5d0] sm:$0xff]
  %v259 = vld [vmem:[%s1 + $0x5d8] sm:$0xff]
  %v260 = vld [vmem:[%s1 + $0x5e0] sm:$0xff]
  %v261 = vld [vmem:[%s1 + $0x5e8] sm:$0xff]
  %v262 = vld [vmem:[%s1 + $0x5f0] sm:$0xff]
  %v263 = vld [vmem:[%s1 + $0x5f8] sm:$0xff]
  %v264 = vld [vmem:[%s1 + $0x600] sm:$0xff]
  %v265 = vld [vmem:[%s1 + $0x608] sm:$0xff]
  %v266 = vld [vmem:[%s1 + $0x610] sm:$0xff]
  %v267 = vld [vmem:[%s1 + $0x618] sm:$0xff]
  %v268 = vld [vmem:[%s1 + $0x620] sm:$0xff]
  %v269 = vld [vmem:[%s1 + $0x628] sm:$0xff]
  %v270 = vld [vmem:[%s1 + $0x630] sm:$0xff]
  %v271 = vld [vmem:[%s1 + $0x638] sm:$0xff]
  %v272 = vld [vmem:[%s2] sm:$0x1]
  %v274 = vlaneseq
  %v275 = vshrl.u32 %v274, 7
  %v276 = vsub.s32 0, %v275
  %v277 = vrot.slane %v272, %v276
  %vm279 = vcmask 523264
  %v281 = vsel %vm279, %v32, 0
  %v284 = vsel %vm279, %v45, 0
  %v287 = vsel %vm279, %v58, 0
  %v290 = vsel %vm279, %v71, 0
  %292 = vmatprep.subr.mxu0 0.0
  %293 = vmatpush1.msra.mxu0 %v72
  %294 = vmatprep.subr.mxu0 0.0
  %295 = vmatpush1.msra.mxu0 %v73
  %296 = vmatprep.subr.mxu0 0.0
  %297 = vmatpush1.msra.mxu0 %v74
  %298 = vmatprep.subr.mxu0 0.0
  %299 = vmatpush1.msra.mxu0 %v75
  %300 = vmatprep.subr.mxu0 0.0
  %301 = vmatpush1.msra.mxu0 %v76
  %302 = vmatprep.subr.mxu0 0.0
  %303 = vmatpush1.msra.mxu0 %v77
  %304 = vmatprep.subr.mxu0 0.0
  %305 = vmatpush1.msra.mxu0 %v78
  %306 = vmatprep.subr.mxu0 0.0
  %307 = vmatpush1.msra.mxu0 %v79
  %308 = vmatprep.subr.mxu0 0.0
  %309 = vmatpush1.msra.mxu0 %v80
  %310 = vmatprep.subr.mxu0 0.0
  %311 = vmatpush1.msra.mxu0 %v81
  %312 = vmatprep.subr.mxu0 0.0
  %313 = vmatpush1.msra.mxu0 %v82
  %314 = vmatprep.subr.mxu0 0.0
  %315 = vmatpush1.msra.mxu0 %v83
  %316 = vmatprep.subr.mxu0 0.0
  %317 = vmatpush1.msra.mxu0 %v84
  %318 = vmatprep.subr.mxu0 0.0
  %319 = vmatpush1.msra.mxu0 %v85
  %320 = vmatprep.subr.mxu0 0.0
  %321 = vmatpush1.msra.mxu0 %v86
  %322 = vmatprep.subr.mxu0 0.0
  %323 = vmatpush1.msra.mxu0 %v87
  %324 = vmatprep.subr.mxu0 0.0
  %325 = vmatpush1.msra.mxu0 %v88
  %326 = vmatprep.subr.mxu0 0.0
  %327 = vmatpush1.msra.mxu0 %v89
  %328 = vmatprep.subr.mxu0 0.0
  %329 = vmatpush1.msra.mxu0 %v90
  %330 = vmatprep.subr.mxu0 0.0
  %331 = vmatpush1.msra.mxu0 %v91
  %332 = vmatprep.subr.mxu0 0.0
  %333 = vmatpush1.msra.mxu0 %v92
  %334 = vmatprep.subr.mxu0 0.0
  %335 = vmatpush1.msra.mxu0 %v93
  %336 = vmatprep.subr.mxu0 0.0
  %337 = vmatpush1.msra.mxu0 %v94
  %338 = vmatprep.subr.mxu0 0.0
  %339 = vmatpush1.msra.mxu0 %v95
  %340 = vmatprep.subr.mxu0 0.0
  %341 = vmatpush1.msra.mxu0 %v96
  %342 = vmatprep.subr.mxu0 0.0
  %343 = vmatpush1.msra.mxu0 %v97
  %344 = vmatprep.subr.mxu0 0.0
  %345 = vmatpush1.msra.mxu0 %v98
  %346 = vmatprep.subr.mxu0 0.0
  %347 = vmatpush1.msra.mxu0 %v99
  %348 = vmatprep.subr.mxu0 0.0
  %349 = vmatpush1.msra.mxu0 %v100
  %350 = vmatprep.subr.mxu0 0.0
  %351 = vmatpush1.msra.mxu0 %v101
  %352 = vmatprep.subr.mxu0 0.0
  %353 = vmatpush1.msra.mxu0 %v102
  %354 = vmatprep.subr.mxu0 0.0
  %355 = vmatpush1.msra.mxu0 %v103
  %356 = vmatprep.mubr.f32.mxu0 %v21
  %357 = vmatmul.mubr.f32.gmra.mrb[0].mxu0 %v20
  %v358 = vpop.f32.mrb[0].mxu0
  %v359 = vadd.f32 %v277, %v358
  %v360 = vpop.f32.mrb[0].mxu0
  %361 = vmatprep.mubr.f32.mxu0 %v34
  %362 = vmatmul.mubr.f32.gmra.mrb[0].mxu0 %v33
  %v363 = vpop.f32.mrb[0].mxu0
  %v364 = vadd.f32 %v277, %v363
  %v365 = vpop.f32.mrb[0].mxu0
  %366 = vmatprep.mubr.f32.mxu0 %v47
  %367 = vmatmul.mubr.f32.gmra.mrb[0].mxu0 %v46
  %v368 = vpop.f32.mrb[0].mxu0
  %v369 = vadd.f32 %v277, %v368
  %v370 = vpop.f32.mrb[0].mxu0
  %371 = vmatprep.mubr.f32.mxu0 %v60
  %372 = vmatmul.mubr.f32.gmra.mrb[0].mxu0 %v59
  %v373 = vpop.f32.mrb[0].mxu0
  %v374 = vadd.f32 %v277, %v373
  %v375 = vpop.f32.mrb[0].mxu0
  %376 = vdwg.mxu0
  %377 = vmatprep.subr.mxu0 0.0
  %378 = vmatpush1.msra.mxu0 %v104
  %379 = vmatprep.subr.mxu0 0.0
  %380 = vmatpush1.msra.mxu0 %v105
  %381 = vmatprep.subr.mxu0 0.0
  %382 = vmatpush1.msra.mxu0 %v106
  %383 = vmatprep.subr.mxu0 0.0
  %384 = vmatpush1.msra.mxu0 %v107
  %385 = vmatprep.subr.mxu0 0.0
  %386 = vmatpush1.msra.mxu0 %v108
  %387 = vmatprep.subr.mxu0 0.0
  %388 = vmatpush1.msra.mxu0 %v109
  %389 = vmatprep.subr.mxu0 0.0
  %390 = vmatpush1.msra.mxu0 %v110
  %391 = vmatprep.subr.mxu0 0.0
  %392 = vmatpush1.msra.mxu0 %v111
  %393 = vmatprep.subr.mxu0 0.0
  %394 = vmatpush1.msra.mxu0 %v112
  %395 = vmatprep.subr.mxu0 0.0
  %396 = vmatpush1.msra.mxu0 %v113
  %397 = vmatprep.subr.mxu0 0.0
  %398 = vmatpush1.msra.mxu0 %v114
  %399 = vmatprep.subr.mxu0 0.0
  %400 = vmatpush1.msra.mxu0 %v115
  %401 = vmatprep.subr.mxu0 0.0
  %402 = vmatpush1.msra.mxu0 %v116
  %403 = vmatprep.subr.mxu0 0.0
  %404 = vmatpush1.msra.mxu0 %v117
  %405 = vmatprep.subr.mxu0 0.0
  %406 = vmatpush1.msra.mxu0 %v118
  %407 = vmatprep.subr.mxu0 0.0
  %408 = vmatpush1.msra.mxu0 %v119
  %409 = vmatprep.subr.mxu0 0.0
  %410 = vmatpush1.msra.mxu0 %v120
  %411 = vmatprep.subr.mxu0 0.0
  %412 = vmatpush1.msra.mxu0 %v121
  %413 = vmatprep.subr.mxu0 0.0
  %414 = vmatpush1.msra.mxu0 %v122
  %415 = vmatprep.subr.mxu0 0.0
  %416 = vmatpush1.msra.mxu0 %v123
  %417 = vmatprep.subr.mxu0 0.0
  %418 = vmatpush1.msra.mxu0 %v124
  %419 = vmatprep.subr.mxu0 0.0
  %420 = vmatpush1.msra.mxu0 %v125
  %421 = vmatprep.subr.mxu0 0.0
  %422 = vmatpush1.msra.mxu0 %v126
  %423 = vmatprep.subr.mxu0 0.0
  %424 = vmatpush1.msra.mxu0 %v127
  %425 = vmatprep.subr.mxu0 0.0
  %426 = vmatpush1.msra.mxu0 %v128
  %427 = vmatprep.subr.mxu0 0.0
  %428 = vmatpush1.msra.mxu0 %v129
  %429 = vmatprep.subr.mxu0 0.0
  %430 = vmatpush1.msra.mxu0 %v130
  %431 = vmatprep.subr.mxu0 0.0
  %432 = vmatpush1.msra.mxu0 %v131
  %433 = vmatprep.subr.mxu0 0.0
  %434 = vmatpush1.msra.mxu0 %v132
  %435 = vmatprep.subr.mxu0 0.0
  %436 = vmatpush1.msra.mxu0 %v133
  %437 = vmatprep.subr.mxu0 0.0
  %438 = vmatpush1.msra.mxu0 %v134
  %439 = vmatprep.subr.mxu0 0.0
  %440 = vmatpush1.msra.mxu0 %v135
  %441 = vmatprep.mubr.f32.mxu0 %v23
  %442 = vmatmul.mubr.f32.gmra.mrb[0].mxu0 %v22
  %v443 = vpop.f32.mrb[0].mxu0
  %v444 = vadd.f32 %v359, %v443
  %v445 = vpop.f32.mrb[0].mxu0
  %446 = vmatprep.mubr.f32.mxu0 %v36
  %447 = vmatmul.mubr.f32.gmra.mrb[0].mxu0 %v35
  %v448 = vpop.f32.mrb[0].mxu0
  %v449 = vadd.f32 %v364, %v448
  %v450 = vpop.f32.mrb[0].mxu0
  %451 = vmatprep.mubr.f32.mxu0 %v49
  %452 = vmatmul.mubr.f32.gmra.mrb[0].mxu0 %v48
  %v453 = vpop.f32.mrb[0].mxu0
  %v454 = vadd.f32 %v369, %v453
  %v455 = vpop.f32.mrb[0].mxu0
  %456 = vmatprep.mubr.f32.mxu0 %v62
  %457 = vmatmul.mubr.f32.gmra.mrb[0].mxu0 %v61
  %v458 = vpop.f32.mrb[0].mxu0
  %v459 = vadd.f32 %v374, %v458
  %v460 = vpop.f32.mrb[0].mxu0
  %461 = vdwg.mxu0
  %462 = vmatprep.subr.mxu0 0.0
  %463 = vmatpush1.msra.mxu0 %v136
  %464 = vmatprep.subr.mxu0 0.0
  %465 = vmatpush1.msra.mxu0 %v137
  %466 = vmatprep.subr.mxu0 0.0
  %467 = vmatpush1.msra.mxu0 %v138
  %468 = vmatprep.subr.mxu0 0.0
  %469 = vmatpush1.msra.mxu0 %v139
  %470 = vmatprep.subr.mxu0 0.0
  %471 = vmatpush1.msra.mxu0 %v140
  %472 = vmatprep.subr.mxu0 0.0
  %473 = vmatpush1.msra.mxu0 %v141
  %474 = vmatprep.subr.mxu0 0.0
  %475 = vmatpush1.msra.mxu0 %v142
  %476 = vmatprep.subr.mxu0 0.0
  %477 = vmatpush1.msra.mxu0 %v143
  %478 = vmatprep.subr.mxu0 0.0
  %479 = vmatpush1.msra.mxu0 %v144
  %480 = vmatprep.subr.mxu0 0.0
  %481 = vmatpush1.msra.mxu0 %v145
  %482 = vmatprep.subr.mxu0 0.0
  %483 = vmatpush1.msra.mxu0 %v146
  %484 = vmatprep.subr.mxu0 0.0
  %485 = vmatpush1.msra.mxu0 %v147
  %486 = vmatprep.subr.mxu0 0.0
  %487 = vmatpush1.msra.mxu0 %v148
  %488 = vmatprep.subr.mxu0 0.0
  %489 = vmatpush1.msra.mxu0 %v149
  %490 = vmatprep.subr.mxu0 0.0
  %491 = vmatpush1.msra.mxu0 %v150
  %492 = vmatprep.subr.mxu0 0.0
  %493 = vmatpush1.msra.mxu0 %v151
  %494 = vmatprep.subr.mxu0 0.0
  %495 = vmatpush1.msra.mxu0 %v152
  %496 = vmatprep.subr.mxu0 0.0
  %497 = vmatpush1.msra.mxu0 %v153
  %498 = vmatprep.subr.mxu0 0.0
  %499 = vmatpush1.msra.mxu0 %v154
  %500 = vmatprep.subr.mxu0 0.0
  %501 = vmatpush1.msra.mxu0 %v155
  %502 = vmatprep.subr.mxu0 0.0
  %503 = vmatpush1.msra.mxu0 %v156
  %504 = vmatprep.subr.mxu0 0.0
  %505 = vmatpush1.msra.mxu0 %v157
  %506 = vmatprep.subr.mxu0 0.0
  %507 = vmatpush1.msra.mxu0 %v158
  %508 = vmatprep.subr.mxu0 0.0
  %509 = vmatpush1.msra.mxu0 %v159
  %510 = vmatprep.subr.mxu0 0.0
  %511 = vmatpush1.msra.mxu0 %v160
  %512 = vmatprep.subr.mxu0 0.0
  %513 = vmatpush1.msra.mxu0 %v161
  %514 = vmatprep.subr.mxu0 0.0
  %515 = vmatpush1.msra.mxu0 %v162
  %516 = vmatprep.subr.mxu0 0.0
  %517 = vmatpush1.msra.mxu0 %v163
  %518 = vmatprep.subr.mxu0 0.0
  %519 = vmatpush1.msra.mxu0 %v164
  %520 = vmatprep.subr.mxu0 0.0
  %521 = vmatpush1.msra.mxu0 %v165
  %522 = vmatprep.subr.mxu0 0.0
  %523 = vmatpush1.msra.mxu0 %v166
  %524 = vmatprep.subr.mxu0 0.0
  %525 = vmatpush1.msra.mxu0 %v167
  %526 = vmatprep.mubr.f32.mxu0 %v25
  %527 = vmatmul.mubr.f32.gmra.mrb[0].mxu0 %v24
  %v528 = vpop.f32.mrb[0].mxu0
  %v529 = vadd.f32 %v444, %v528
  %v530 = vpop.f32.mrb[0].mxu0
  %531 = vmatprep.mubr.f32.mxu0 %v38
  %532 = vmatmul.mubr.f32.gmra.mrb[0].mxu0 %v37
  %v533 = vpop.f32.mrb[0].mxu0
  %v534 = vadd.f32 %v449, %v533
  %v535 = vpop.f32.mrb[0].mxu0
  %536 = vmatprep.mubr.f32.mxu0 %v51
  %537 = vmatmul.mubr.f32.gmra.mrb[0].mxu0 %v50
  %v538 = vpop.f32.mrb[0].mxu0
  %v539 = vadd.f32 %v454, %v538
  %v540 = vpop.f32.mrb[0].mxu0
  %541 = vmatprep.mubr.f32.mxu0 %v64
  %542 = vmatmul.mubr.f32.gmra.mrb[0].mxu0 %v63
  %v543 = vpop.f32.mrb[0].mxu0
  %v544 = vadd.f32 %v459, %v543
  %v545 = vpop.f32.mrb[0].mxu0
  %546 = vdwg.mxu0
  %547 = vmatprep.subr.mxu0 0.0
  %548 = vmatpush1.msra.mxu0 %v168
  %549 = vmatprep.subr.mxu0 0.0
  %550 = vmatpush1.msra.mxu0 %v169
  %551 = vmatprep.subr.mxu0 0.0
  %552 = vmatpush1.msra.mxu0 %v170
  %553 = vmatprep.subr.mxu0 0.0
  %554 = vmatpush1.msra.mxu0 %v171
  %555 = vmatprep.subr.mxu0 0.0
  %556 = vmatpush1.msra.mxu0 %v172
  %557 = vmatprep.subr.mxu0 0.0
  %558 = vmatpush1.msra.mxu0 %v173
  %559 = vmatprep.subr.mxu0 0.0
  %560 = vmatpush1.msra.mxu0 %v174
  %561 = vmatprep.subr.mxu0 0.0
  %562 = vmatpush1.msra.mxu0 %v175
  %563 = vmatprep.subr.mxu0 0.0
  %564 = vmatpush1.msra.mxu0 %v176
  %565 = vmatprep.subr.mxu0 0.0
  %566 = vmatpush1.msra.mxu0 %v177
  %567 = vmatprep.subr.mxu0 0.0
  %568 = vmatpush1.msra.mxu0 %v178
  %569 = vmatprep.subr.mxu0 0.0
  %570 = vmatpush1.msra.mxu0 %v179
  %571 = vmatprep.subr.mxu0 0.0
  %572 = vmatpush1.msra.mxu0 %v180
  %573 = vmatprep.subr.mxu0 0.0
  %574 = vmatpush1.msra.mxu0 %v181
  %575 = vmatprep.subr.mxu0 0.0
  %576 = vmatpush1.msra.mxu0 %v182
  %577 = vmatprep.subr.mxu0 0.0
  %578 = vmatpush1.msra.mxu0 %v183
  %579 = vmatprep.subr.mxu0 0.0
  %580 = vmatpush1.msra.mxu0 %v184
  %581 = vmatprep.subr.mxu0 0.0
  %582 = vmatpush1.msra.mxu0 %v185
  %583 = vmatprep.subr.mxu0 0.0
  %584 = vmatpush1.msra.mxu0 %v186
  %585 = vmatprep.subr.mxu0 0.0
  %586 = vmatpush1.msra.mxu0 %v187
  %587 = vmatprep.subr.mxu0 0.0
  %588 = vmatpush1.msra.mxu0 %v188
  %589 = vmatprep.subr.mxu0 0.0
  %590 = vmatpush1.msra.mxu0 %v189
  %591 = vmatprep.subr.mxu0 0.0
  %592 = vmatpush1.msra.mxu0 %v190
  %593 = vmatprep.subr.mxu0 0.0
  %594 = vmatpush1.msra.mxu0 %v191
  %595 = vmatprep.subr.mxu0 0.0
  %596 = vmatpush1.msra.mxu0 %v192
  %597 = vmatprep.subr.mxu0 0.0
  %598 = vmatpush1.msra.mxu0 %v193
  %599 = vmatprep.subr.mxu0 0.0
  %600 = vmatpush1.msra.mxu0 %v194
  %601 = vmatprep.subr.mxu0 0.0
  %602 = vmatpush1.msra.mxu0 %v195
  %603 = vmatprep.subr.mxu0 0.0
  %604 = vmatpush1.msra.mxu0 %v196
  %605 = vmatprep.subr.mxu0 0.0
  %606 = vmatpush1.msra.mxu0 %v197
  %607 = vmatprep.subr.mxu0 0.0
  %608 = vmatpush1.msra.mxu0 %v198
  %609 = vmatprep.subr.mxu0 0.0
  %610 = vmatpush1.msra.mxu0 %v199
  %611 = vmatprep.mubr.f32.mxu0 %v27
  %612 = vmatmul.mubr.f32.gmra.mrb[0].mxu0 %v26
  %v613 = vpop.f32.mrb[0].mxu0
  %v614 = vadd.f32 %v529, %v613
  %v615 = vpop.f32.mrb[0].mxu0
  %616 = vmatprep.mubr.f32.mxu0 %v40
  %617 = vmatmul.mubr.f32.gmra.mrb[0].mxu0 %v39
  %v618 = vpop.f32.mrb[0].mxu0
  %v619 = vadd.f32 %v534, %v618
  %v620 = vpop.f32.mrb[0].mxu0
  %621 = vmatprep.mubr.f32.mxu0 %v53
  %622 = vmatmul.mubr.f32.gmra.mrb[0].mxu0 %v52
  %v623 = vpop.f32.mrb[0].mxu0
  %v624 = vadd.f32 %v539, %v623
  %v625 = vpop.f32.mrb[0].mxu0
  %626 = vmatprep.mubr.f32.mxu0 %v66
  %627 = vmatmul.mubr.f32.gmra.mrb[0].mxu0 %v65
  %v628 = vpop.f32.mrb[0].mxu0
  %v629 = vadd.f32 %v544, %v628
  %v630 = vpop.f32.mrb[0].mxu0
  %631 = vdwg.mxu0
  %632 = vmatprep.subr.mxu0 0.0
  %633 = vmatpush1.msra.mxu0 %v200
  %634 = vmatprep.subr.mxu0 0.0
  %635 = vmatpush1.msra.mxu0 %v201
  %636 = vmatprep.subr.mxu0 0.0
  %637 = vmatpush1.msra.mxu0 %v202
  %638 = vmatprep.subr.mxu0 0.0
  %639 = vmatpush1.msra.mxu0 %v203
  %640 = vmatprep.subr.mxu0 0.0
  %641 = vmatpush1.msra.mxu0 %v204
  %642 = vmatprep.subr.mxu0 0.0
  %643 = vmatpush1.msra.mxu0 %v205
  %644 = vmatprep.subr.mxu0 0.0
  %645 = vmatpush1.msra.mxu0 %v206
  %646 = vmatprep.subr.mxu0 0.0
  %647 = vmatpush1.msra.mxu0 %v207
  %648 = vmatprep.subr.mxu0 0.0
  %649 = vmatpush1.msra.mxu0 %v208
  %650 = vmatprep.subr.mxu0 0.0
  %651 = vmatpush1.msra.mxu0 %v209
  %652 = vmatprep.subr.mxu0 0.0
  %653 = vmatpush1.msra.mxu0 %v210
  %654 = vmatprep.subr.mxu0 0.0
  %655 = vmatpush1.msra.mxu0 %v211
  %656 = vmatprep.subr.mxu0 0.0
  %657 = vmatpush1.msra.mxu0 %v212
  %658 = vmatprep.subr.mxu0 0.0
  %659 = vmatpush1.msra.mxu0 %v213
  %660 = vmatprep.subr.mxu0 0.0
  %661 = vmatpush1.msra.mxu0 %v214
  %662 = vmatprep.subr.mxu0 0.0
  %663 = vmatpush1.msra.mxu0 %v215
  %664 = vmatprep.subr.mxu0 0.0
  %665 = vmatpush1.msra.mxu0 %v216
  %666 = vmatprep.subr.mxu0 0.0
  %667 = vmatpush1.msra.mxu0 %v217
  %668 = vmatprep.subr.mxu0 0.0
  %669 = vmatpush1.msra.mxu0 %v218
  %670 = vmatprep.subr.mxu0 0.0
  %671 = vmatpush1.msra.mxu0 %v219
  %672 = vmatprep.subr.mxu0 0.0
  %673 = vmatpush1.msra.mxu0 %v220
  %674 = vmatprep.subr.mxu0 0.0
  %675 = vmatpush1.msra.mxu0 %v221
  %676 = vmatprep.subr.mxu0 0.0
  %677 = vmatpush1.msra.mxu0 %v222
  %678 = vmatprep.subr.mxu0 0.0
  %679 = vmatpush1.msra.mxu0 %v223
  %680 = vmatprep.subr.mxu0 0.0
  %681 = vmatpush1.msra.mxu0 %v224
  %682 = vmatprep.subr.mxu0 0.0
  %683 = vmatpush1.msra.mxu0 %v225
  %684 = vmatprep.subr.mxu0 0.0
  %685 = vmatpush1.msra.mxu0 %v226
  %686 = vmatprep.subr.mxu0 0.0
  %687 = vmatpush1.msra.mxu0 %v227
  %688 = vmatprep.subr.mxu0 0.0
  %689 = vmatpush1.msra.mxu0 %v228
  %690 = vmatprep.subr.mxu0 0.0
  %691 = vmatpush1.msra.mxu0 %v229
  %692 = vmatprep.subr.mxu0 0.0
  %693 = vmatpush1.msra.mxu0 %v230
  %694 = vmatprep.subr.mxu0 0.0
  %695 = vmatpush1.msra.mxu0 %v231
  %696 = vmatprep.mubr.f32.mxu0 %v29
  %697 = vmatmul.mubr.f32.gmra.mrb[0].mxu0 %v28
  %v698 = vpop.f32.mrb[0].mxu0
  %v699 = vadd.f32 %v614, %v698
  %v700 = vpop.f32.mrb[0].mxu0
  %701 = vmatprep.mubr.f32.mxu0 %v42
  %702 = vmatmul.mubr.f32.gmra.mrb[0].mxu0 %v41
  %v703 = vpop.f32.mrb[0].mxu0
  %v704 = vadd.f32 %v619, %v703
  %v705 = vpop.f32.mrb[0].mxu0
  %706 = vmatprep.mubr.f32.mxu0 %v55
  %707 = vmatmul.mubr.f32.gmra.mrb[0].mxu0 %v54
  %v708 = vpop.f32.mrb[0].mxu0
  %v709 = vadd.f32 %v624, %v708
  %v710 = vpop.f32.mrb[0].mxu0
  %711 = vmatprep.mubr.f32.mxu0 %v68
  %712 = vmatmul.mubr.f32.gmra.mrb[0].mxu0 %v67
  %v713 = vpop.f32.mrb[0].mxu0
  %v714 = vadd.f32 %v629, %v713
  %v715 = vpop.f32.mrb[0].mxu0
  %716 = vdwg.mxu0
  %717 = vmatprep.subr.mxu0 0.0
  %718 = vmatpush1.msra.mxu0 %v232
  %719 = vmatprep.subr.mxu0 0.0
  %720 = vmatpush1.msra.mxu0 %v233
  %721 = vmatprep.subr.mxu0 0.0
  %722 = vmatpush1.msra.mxu0 %v234
  %723 = vmatprep.subr.mxu0 0.0
  %724 = vmatpush1.msra.mxu0 %v235
  %725 = vmatprep.subr.mxu0 0.0
  %726 = vmatpush1.msra.mxu0 %v236
  %727 = vmatprep.subr.mxu0 0.0
  %728 = vmatpush1.msra.mxu0 %v237
  %729 = vmatprep.subr.mxu0 0.0
  %730 = vmatpush1.msra.mxu0 %v238
  %731 = vmatprep.subr.mxu0 0.0
  %732 = vmatpush1.msra.mxu0 %v239
  %733 = vmatprep.subr.mxu0 0.0
  %734 = vmatpush1.msra.mxu0 %v240
  %735 = vmatprep.subr.mxu0 0.0
  %736 = vmatpush1.msra.mxu0 %v241
  %737 = vmatprep.subr.mxu0 0.0
  %738 = vmatpush1.msra.mxu0 %v242
  %739 = vmatprep.subr.mxu0 0.0
  %740 = vmatpush1.msra.mxu0 %v243
  %741 = vmatprep.subr.mxu0 0.0
  %742 = vmatpush1.msra.mxu0 %v244
  %743 = vmatprep.subr.mxu0 0.0
  %744 = vmatpush1.msra.mxu0 %v245
  %745 = vmatprep.subr.mxu0 0.0
  %746 = vmatpush1.msra.mxu0 %v246
  %747 = vmatprep.subr.mxu0 0.0
  %748 = vmatpush1.msra.mxu0 %v247
  %749 = vmatprep.subr.mxu0 0.0
  %750 = vmatpush1.msra.mxu0 %v248
  %751 = vmatprep.subr.mxu0 0.0
  %752 = vmatpush1.msra.mxu0 %v249
  %753 = vmatprep.subr.mxu0 0.0
  %754 = vmatpush1.msra.mxu0 %v250
  %755 = vmatprep.subr.mxu0 0.0
  %756 = vmatpush1.msra.mxu0 %v251
  %757 = vmatprep.subr.mxu0 0.0
  %758 = vmatpush1.msra.mxu0 %v252
  %759 = vmatprep.subr.mxu0 0.0
  %760 = vmatpush1.msra.mxu0 %v253
  %761 = vmatprep.subr.mxu0 0.0
  %762 = vmatpush1.msra.mxu0 %v254
  %763 = vmatprep.subr.mxu0 0.0
  %764 = vmatpush1.msra.mxu0 %v255
  %765 = vmatprep.subr.mxu0 0.0
  %766 = vmatpush1.msra.mxu0 %v256
  %767 = vmatprep.subr.mxu0 0.0
  %768 = vmatpush1.msra.mxu0 %v257
  %769 = vmatprep.subr.mxu0 0.0
  %770 = vmatpush1.msra.mxu0 %v258
  %771 = vmatprep.subr.mxu0 0.0
  %772 = vmatpush1.msra.mxu0 %v259
  %773 = vmatprep.subr.mxu0 0.0
  %774 = vmatpush1.msra.mxu0 %v260
  %775 = vmatprep.subr.mxu0 0.0
  %776 = vmatpush1.msra.mxu0 %v261
  %777 = vmatprep.subr.mxu0 0.0
  %778 = vmatpush1.msra.mxu0 %v262
  %779 = vmatprep.subr.mxu0 0.0
  %780 = vmatpush1.msra.mxu0 %v263
  %781 = vmatprep.mubr.f32.mxu0 %v31
  %782 = vmatmul.mubr.f32.gmra.mrb[0].mxu0 %v30
  %v783 = vpop.f32.mrb[0].mxu0
  %v784 = vadd.f32 %v699, %v783
  %v785 = vpop.f32.mrb[0].mxu0
  %786 = vmatprep.mubr.f32.mxu0 %v44
  %787 = vmatmul.mubr.f32.gmra.mrb[0].mxu0 %v43
  %v788 = vpop.f32.mrb[0].mxu0
  %v789 = vadd.f32 %v704, %v788
  %v790 = vpop.f32.mrb[0].mxu0
  %791 = vmatprep.mubr.f32.mxu0 %v57
  %792 = vmatmul.mubr.f32.gmra.mrb[0].mxu0 %v56
  %v793 = vpop.f32.mrb[0].mxu0
  %v794 = vadd.f32 %v709, %v793
  %v795 = vpop.f32.mrb[0].mxu0
  %796 = vmatprep.mubr.f32.mxu0 %v70
  %797 = vmatmul.mubr.f32.gmra.mrb[0].mxu0 %v69
  %v798 = vpop.f32.mrb[0].mxu0
  %v799 = vadd.f32 %v714, %v798
  %v800 = vpop.f32.mrb[0].mxu0
  %801 = vdwg.mxu0
  %802 = vmatprep.subr.mxu0 0.0
  %803 = vmatpush1.msra.mxu0 %v264
  %804 = vmatprep.subr.mxu0 0.0
  %805 = vmatpush1.msra.mxu0 %v265
  %806 = vmatprep.subr.mxu0 0.0
  %807 = vmatpush1.msra.mxu0 %v266
  %808 = vmatprep.subr.mxu0 0.0
  %809 = vmatpush1.msra.mxu0 %v267
  %810 = vmatprep.subr.mxu0 0.0
  %811 = vmatpush1.msra.mxu0 %v268
  %812 = vmatprep.subr.mxu0 0.0
  %813 = vmatpush1.msra.mxu0 %v269
  %814 = vmatprep.subr.mxu0 0.0
  %815 = vmatpush1.msra.mxu0 %v270
  %816 = vmatprep.subr.mxu0 0.0
  %817 = vmatpush1.msra.mxu0 %v271
  %818 = vmatprep.subr.mxu0 0.0
  %819 = vmatpush1.msra.mxu0 0.0
  %820 = vmatprep.subr.mxu0 0.0
  %821 = vmatpush1.msra.mxu0 0.0
  %822 = vmatprep.subr.mxu0 0.0
  %823 = vmatpush1.msra.mxu0 0.0
  %824 = vmatprep.subr.mxu0 0.0
  %825 = vmatpush1.msra.mxu0 0.0
  %826 = vmatprep.subr.mxu0 0.0
  %827 = vmatpush1.msra.mxu0 0.0
  %828 = vmatprep.subr.mxu0 0.0
  %829 = vmatpush1.msra.mxu0 0.0
  %830 = vmatprep.subr.mxu0 0.0
  %831 = vmatpush1.msra.mxu0 0.0
  %832 = vmatprep.subr.mxu0 0.0
  %833 = vmatpush1.msra.mxu0 0.0
  %834 = vmatprep.subr.mxu0 0.0
  %835 = vmatpush1.msra.mxu0 0.0
  %836 = vmatprep.subr.mxu0 0.0
  %837 = vmatpush1.msra.mxu0 0.0
  %838 = vmatprep.subr.mxu0 0.0
  %839 = vmatpush1.msra.mxu0 0.0
  %840 = vmatprep.subr.mxu0 0.0
  %841 = vmatpush1.msra.mxu0 0.0
  %842 = vmatprep.subr.mxu0 0.0
  %843 = vmatpush1.msra.mxu0 0.0
  %844 = vmatprep.subr.mxu0 0.0
  %845 = vmatpush1.msra.mxu0 0.0
  %846 = vmatprep.subr.mxu0 0.0
  %847 = vmatpush1.msra.mxu0 0.0
  %848 = vmatprep.subr.mxu0 0.0
  %849 = vmatpush1.msra.mxu0 0.0
  %850 = vmatprep.subr.mxu0 0.0
  %851 = vmatpush1.msra.mxu0 0.0
  %852 = vmatprep.subr.mxu0 0.0
  %853 = vmatpush1.msra.mxu0 0.0
  %854 = vmatprep.subr.mxu0 0.0
  %855 = vmatpush1.msra.mxu0 0.0
  %856 = vmatprep.subr.mxu0 0.0
  %857 = vmatpush1.msra.mxu0 0.0
  %858 = vmatprep.subr.mxu0 0.0
  %859 = vmatpush1.msra.mxu0 0.0
  %860 = vmatprep.subr.mxu0 0.0
  %861 = vmatpush1.msra.mxu0 0.0
  %862 = vmatprep.subr.mxu0 0.0
  %863 = vmatpush1.msra.mxu0 0.0
  %864 = vmatprep.subr.mxu0 0.0
  %865 = vmatpush1.msra.mxu0 0.0
  %866 = vmatprep.mubr.f32.mxu0 0.0
  %867 = vmatmul.mubr.f32.gmra.mrb[0].mxu0 %v281
  %v868 = vpop.f32.mrb[0].mxu0
  %v869 = vadd.f32 %v784, %v868
  %v870 = vpop.f32.mrb[0].mxu0
  %871 = vmatprep.mubr.f32.mxu0 0.0
  %872 = vmatmul.mubr.f32.gmra.mrb[0].mxu0 %v284
  %v873 = vpop.f32.mrb[0].mxu0
  %v874 = vadd.f32 %v789, %v873
  %v875 = vpop.f32.mrb[0].mxu0
  %876 = vmatprep.mubr.f32.mxu0 0.0
  %877 = vmatmul.mubr.f32.gmra.mrb[0].mxu0 %v287
  %v878 = vpop.f32.mrb[0].mxu0
  %v879 = vadd.f32 %v794, %v878
  %v880 = vpop.f32.mrb[0].mxu0
  %881 = vmatprep.mubr.f32.mxu0 0.0
  %882 = vmatmul.mubr.f32.gmra.mrb[0].mxu0 %v290
  %v883 = vpop.f32.mrb[0].mxu0
  %v884 = vadd.f32 %v799, %v883
  %v885 = vpop.f32.mrb[0].mxu0
  %886 = vdwg.mxu0
  %vm887 = vcmp.ge.f32.partialorder %v869, 0.0
  %vm888 = vcmp.ge.f32.partialorder %v874, 0.0
  %vm889 = vcmp.ge.f32.partialorder %v879, 0.0
  %vm890 = vcmp.ge.f32.partialorder %v884, 0.0
  %v891 = vmul.f32 %v869, 0.01
  %v892 = vmul.f32 %v874, 0.01
  %v893 = vmul.f32 %v879, 0.01
  %v894 = vmul.f32 %v884, 0.01
  %v895 = vsel %vm887, %v869, %v891
  %v896 = vsel %vm888, %v874, %v892
  %v897 = vsel %vm889, %v879, %v893
  %v898 = vsel %vm890, %v884, %v894
  %v899 = vld [vmem:[%s3] sm:$0x1]
  %v901 = vlaneseq
  %v902 = vshrl.u32 %v901, 7
  %v903 = vsub.s32 0, %v902
  %v904 = vrot.slane %v899, %v903
  %v906 = vmul.f32 %v895, %v904
  %v907 = vmul.f32 %v896, %v904
  %v908 = vmul.f32 %v897, %v904
  %v909 = vmul.f32 %v898, %v904
  %v910 = vld [vmem:[%s4] sm:$0x1]
  %v912 = vlaneseq
  %v913 = vshrl.u32 %v912, 7
  %v914 = vsub.s32 0, %v913
  %v915 = vrot.slane %v910, %v914
  %v917 = vadd.f32 %v906, %v915
  %v918 = vadd.f32 %v907, %v915
  %v919 = vadd.f32 %v908, %v915
  %v920 = vadd.f32 %v909, %v915
  %v921 = vmax.f32 %v917, %v918
  %v922 = vmax.f32 %v919, %v920
  %v923 = vmax.f32 %v921, %v922
  %924 = vst [vmem:[%s5] sm:$0xff] %v923
  // Predicated region
  $region22: #{conv_classifier_forward.8} parent=0 // pred_check
    _
  $region23: #{conv_classifier_forward.8} parent=0 // pred_check_branch
    %926 = sbr.rel (0) target = $region25
  $region24: #{conv_classifier_forward.8} parent=0 // pred_region
    _
  $region25: #{conv_classifier_forward.8} parent=0 // pred_fallthru
    _
  // Predicated region
  $region26: #{conv_classifier_forward.8} parent=0 // pred_check
    _
  $region27: #{conv_classifier_forward.8} parent=0 // pred_check_branch
    %928 = sbr.rel (0) target = $region29
  $region28: #{conv_classifier_forward.8} parent=0 // pred_region
    _
  $region29: #{conv_classifier_forward.8} parent=0 // pred_fallthru
    _

// kernel: conv_classifier_forward.9
$region0: #{conv_classifier_forward.9}
  #allocation0 [shape = 'u32[]', space=smem, size = 0x4, offset = 0x4, fixed_abs, tag = 'smem constant byte address 0x4 - core index']
  #allocation1 [shape = 'u32[144,128]{1,0:T(1,128)}', space=vmem, size = 0x12000, scoped, tag = 'internal scratch']
  %s0 = inlined_call_operand.vmem [shape: f32[2,512], index: 0, kind: input, shape index: {}]
  %s1 = inlined_call_operand.vmem [shape: f32[512,1024], index: 1, kind: input, shape index: {}]
  %s2 = inlined_call_operand.vmem [shape: f32[1,1024], index: 2, kind: input, shape index: {}]
  %s3 = inlined_call_operand.vmem [shape: f32[1,1024], index: 3, kind: input, shape index: {}]
  %s4 = inlined_call_operand.vmem [shape: f32[1,1024], index: 4, kind: input, shape index: {}]
  %s5 = inlined_call_operand.vmem [shape: f32[256,128], index: 5, kind: input, shape index: {}]
  %s6 = inlined_call_operand.vmem [shape: f32[1,128], index: 6, kind: input, shape index: {}]
  %s7 = inlined_call_operand.hbm [shape: f32[2,128], index: 7, kind: output, shape index: {}]
  %s8 = sld [smem:[#allocation0]]
  $region38: #{conv_classifier_forward.9} parent=0
    _
  %s10 = ssub.s32 1, %s8
  %s11 = scalar_select 0, %s10, %s8
  $region1: #{conv_classifier_forward.9} parent=0
    #allocation2 [shape = 'u8[1024]{0}', space=vmem, size = 0x400, scoped, tag = 'output window, operand 0, single buffered']
    #allocation3 [shape = 's32[1]{0}', space=sflag, size = 0x4, scoped, tag = 'scoped memory for conv_classifier_forward.9']
    %12 = vsyncpa [#allocation3], 0
    // Predicated region
    $region2: #{conv_classifier_forward.9} parent=1 // pred_check
      _
    $region3: #{conv_classifier_forward.9} parent=1 // pred_check_branch
      %14 = sbr.rel (0) target = $region5
    $region4: #{conv_classifier_forward.9} parent=1 // pred_region
      _
    $region5: #{conv_classifier_forward.9} parent=1 // pred_fallthru
      _
    // Predicated region
    $region6: #{conv_classifier_forward.9} parent=1 // pred_check
      _
    $region7: #{conv_classifier_forward.9} parent=1 // pred_check_branch
      %16 = sbr.rel (0) target = $region9
    $region8: #{conv_classifier_forward.9} parent=1 // pred_region
      _
    $region9: #{conv_classifier_forward.9} parent=1 // pred_fallthru
      _
    // Predicated region
    $region10: #{conv_classifier_forward.9} parent=1 // pred_check
      _
    $region11: #{conv_classifier_forward.9} parent=1 // pred_check_branch
      %18 = sbr.rel (0) target = $region13
    $region12: #{conv_classifier_forward.9} parent=1 // pred_region
      _
    $region13: #{conv_classifier_forward.9} parent=1 // pred_fallthru
      _
    // Predicated region
    $region14: #{conv_classifier_forward.9} parent=1 // pred_check
      _
    $region15: #{conv_classifier_forward.9} parent=1 // pred_check_branch
      %20 = sbr.rel (0) target = $region17
    $region16: #{conv_classifier_forward.9} parent=1 // pred_region
      _
    $region17: #{conv_classifier_forward.9} parent=1 // pred_fallthru
      _
    // Predicated region
    $region18: #{conv_classifier_forward.9} parent=1 // pred_check
      _
    $region19: #{conv_classifier_forward.9} parent=1 // pred_check_branch
      %22 = sbr.rel (0) target = $region21
    $region20: #{conv_classifier_forward.9} parent=1 // pred_region
      _
    $region21: #{conv_classifier_forward.9} parent=1 // pred_fallthru
      _
    // Predicated region
    $region22: #{conv_classifier_forward.9} parent=1 // pred_check
      _
    $region23: #{conv_classifier_forward.9} parent=1 // pred_check_branch
      %24 = sbr.rel (0) target = $region25
    $region24: #{conv_classifier_forward.9} parent=1 // pred_region
      _
    $region25: #{conv_classifier_forward.9} parent=1 // pred_fallthru
      _
    // Predicated region
    $region26: #{conv_classifier_forward.9} parent=1 // pred_check
      _
    $region27: #{conv_classifier_forward.9} parent=1 // pred_check_branch
      %26 = sbr.rel (0) target = $region29
    $region28: #{conv_classifier_forward.9} parent=1 // pred_region
      _
    $region29: #{conv_classifier_forward.9} parent=1 // pred_fallthru
      _
    %v27 = vld [vmem:[%s0] sm:$0xff]
    %v28 = vld [vmem:[%s1] sm:$0xff]
    %v29 = vld [vmem:[%s1 + $0x8] sm:$0xff]
    %v30 = vld [vmem:[%s1 + $0x10] sm:$0xff]
    %v31 = vld [vmem:[%s1 + $0x18] sm:$0xff]
    %v32 = vld [vmem:[%s1 + $0x20] sm:$0xff]
    %v33 = vld [vmem:[%s1 + $0x28] sm:$0xff]
    %v34 = vld [vmem:[%s1 + $0x30] sm:$0xff]
    %v35 = vld [vmem:[%s1 + $0x38] sm:$0xff]
    %v36 = vld [vmem:[%s1 + $0x40] sm:$0xff]
    %v37 = vld [vmem:[%s1 + $0x48] sm:$0xff]
    %v38 = vld [vmem:[%s1 + $0x50] sm:$0xff]
    %v39 = vld [vmem:[%s1 + $0x58] sm:$0xff]
    %v40 = vld [vmem:[%s1 + $0x60] sm:$0xff]
    %v41 = vld [vmem:[%s1 + $0x68] sm:$0xff]
    %v42 = vld [vmem:[%s1 + $0x70] sm:$0xff]
    %v43 = vld [vmem:[%s1 + $0x78] sm:$0xff]
    %v44 = vld [vmem:[%s1 + $0x80] sm:$0xff]
    %v45 = vld [vmem:[%s1 + $0x88] sm:$0xff]
    %v46 = vld [vmem:[%s1 + $0x90] sm:$0xff]
    %v47 = vld [vmem:[%s1 + $0x98] sm:$0xff]
    %v48 = vld [vmem:[%s1 + $0xa0] sm:$0xff]
    %v49 = vld [vmem:[%s1 + $0xa8] sm:$0xff]
    %v50 = vld [vmem:[%s1 + $0xb0] sm:$0xff]
    %v51 = vld [vmem:[%s1 + $0xb8] sm:$0xff]
    %v52 = vld [vmem:[%s1 + $0xc0] sm:$0xff]
    %v53 = vld [vmem:[%s1 + $0xc8] sm:$0xff]
    %v54 = vld [vmem:[%s1 + $0xd0] sm:$0xff]
    %v55 = vld [vmem:[%s1 + $0xd8] sm:$0xff]
    %v56 = vld [vmem:[%s1 + $0xe0] sm:$0xff]
    %v57 = vld [vmem:[%s1 + $0xe8] sm:$0xff]
    %v58 = vld [vmem:[%s1 + $0xf0] sm:$0xff]
    %v59 = vld [vmem:[%s1 + $0xf8] sm:$0xff]
    %v60 = vld [vmem:[%s1 + $0x100] sm:$0xff]
    %v61 = vld [vmem:[%s1 + $0x108] sm:$0xff]
    %v62 = vld [vmem:[%s1 + $0x110] sm:$0xff]
    %v63 = vld [vmem:[%s1 + $0x118] sm:$0xff]
    %v64 = vld [vmem:[%s1 + $0x120] sm:$0xff]
    %v65 = vld [vmem:[%s1 + $0x128] sm:$0xff]
    %v66 = vld [vmem:[%s1 + $0x130] sm:$0xff]
    %v67 = vld [vmem:[%s1 + $0x138] sm:$0xff]
    %v68 = vld [vmem:[%s1 + $0x140] sm:$0xff]
    %v69 = vld [vmem:[%s1 + $0x148] sm:$0xff]
    %v70 = vld [vmem:[%s1 + $0x150] sm:$0xff]
    %v71 = vld [vmem:[%s1 + $0x158] sm:$0xff]
    %v72 = vld [vmem:[%s1 + $0x160] sm:$0xff]
    %v73 = vld [vmem:[%s1 + $0x168] sm:$0xff]
    %v74 = vld [vmem:[%s1 + $0x170] sm:$0xff]
    %v75 = vld [vmem:[%s1 + $0x178] sm:$0xff]
    %v76 = vld [vmem:[%s1 + $0x180] sm:$0xff]
    %v77 = vld [vmem:[%s1 + $0x188] sm:$0xff]
    %v78 = vld [vmem:[%s1 + $0x190] sm:$0xff]
    %v79 = vld [vmem:[%s1 + $0x198] sm:$0xff]
    %v80 = vld [vmem:[%s1 + $0x1a0] sm:$0xff]
    %v81 = vld [vmem:[%s1 + $0x1a8] sm:$0xff]
    %v82 = vld [vmem:[%s1 + $0x1b0] sm:$0xff]
    %v83 = vld [vmem:[%s1 + $0x1b8] sm:$0xff]
    %v84 = vld [vmem:[%s1 + $0x1c0] sm:$0xff]
    %v85 = vld [vmem:[%s1 + $0x1c8] sm:$0xff]
    %v86 = vld [vmem:[%s1 + $0x1d0] sm:$0xff]
    %v87 = vld [vmem:[%s1 + $0x1d8] sm:$0xff]
    %v88 = vld [vmem:[%s1 + $0x1e0] sm:$0xff]
    %v89 = vld [vmem:[%s1 + $0x1e8] sm:$0xff]
    %v90 = vld [vmem:[%s1 + $0x1f0] sm:$0xff]
    %v91 = vld [vmem:[%s1 + $0x1f8] sm:$0xff]
    %v92 = vld [vmem:[%s1 + $0x200] sm:$0xff]
    %v93 = vld [vmem:[%s1 + $0x208] sm:$0xff]
    %v94 = vld [vmem:[%s1 + $0x210] sm:$0xff]
    %v95 = vld [vmem:[%s1 + $0x218] sm:$0xff]
    %v96 = vld [vmem:[%s1 + $0x220] sm:$0xff]
    %v97 = vld [vmem:[%s1 + $0x228] sm:$0xff]
    %v98 = vld [vmem:[%s1 + $0x230] sm:$0xff]
    %v99 = vld [vmem:[%s1 + $0x238] sm:$0xff]
    %v100 = vld [vmem:[%s1 + $0x240] sm:$0xff]
    %v101 = vld [vmem:[%s1 + $0x248] sm:$0xff]
    %v102 = vld [vmem:[%s1 + $0x250] sm:$0xff]
    %v103 = vld [vmem:[%s1 + $0x258] sm:$0xff]
    %v104 = vld [vmem:[%s1 + $0x260] sm:$0xff]
    %v105 = vld [vmem:[%s1 + $0x268] sm:$0xff]
    %v106 = vld [vmem:[%s1 + $0x270] sm:$0xff]
    %v107 = vld [vmem:[%s1 + $0x278] sm:$0xff]
    %v108 = vld [vmem:[%s1 + $0x280] sm:$0xff]
    %v109 = vld [vmem:[%s1 + $0x288] sm:$0xff]
    %v110 = vld [vmem:[%s1 + $0x290] sm:$0xff]
    %v111 = vld [vmem:[%s1 + $0x298] sm:$0xff]
    %v112 = vld [vmem:[%s1 + $0x2a0] sm:$0xff]
    %v113 = vld [vmem:[%s1 + $0x2a8] sm:$0xff]
    %v114 = vld [vmem:[%s1 + $0x2b0] sm:$0xff]
    %v115 = vld [vmem:[%s1 + $0x2b8] sm:$0xff]
    %v116 = vld [vmem:[%s1 + $0x2c0] sm:$0xff]
    %v117 = vld [vmem:[%s1 + $0x2c8] sm:$0xff]
    %v118 = vld [vmem:[%s1 + $0x2d0] sm:$0xff]
    %v119 = vld [vmem:[%s1 + $0x2d8] sm:$0xff]
    %v120 = vld [vmem:[%s1 + $0x2e0] sm:$0xff]
    %v121 = vld [vmem:[%s1 + $0x2e8] sm:$0xff]
    %v122 = vld [vmem:[%s1 + $0x2f0] sm:$0xff]
    %v123 = vld [vmem:[%s1 + $0x2f8] sm:$0xff]
    %v124 = vld [vmem:[%s1 + $0x300] sm:$0xff]
    %v125 = vld [vmem:[%s1 + $0x308] sm:$0xff]
    %v126 = vld [vmem:[%s1 + $0x310] sm:$0xff]
    %v127 = vld [vmem:[%s1 + $0x318] sm:$0xff]
    %v128 = vld [vmem:[%s1 + $0x320] sm:$0xff]
    %v129 = vld [vmem:[%s1 + $0x328] sm:$0xff]
    %v130 = vld [vmem:[%s1 + $0x330] sm:$0xff]
    %v131 = vld [vmem:[%s1 + $0x338] sm:$0xff]
    %v132 = vld [vmem:[%s1 + $0x340] sm:$0xff]
    %v133 = vld [vmem:[%s1 + $0x348] sm:$0xff]
    %v134 = vld [vmem:[%s1 + $0x350] sm:$0xff]
    %v135 = vld [vmem:[%s1 + $0x358] sm:$0xff]
    %v136 = vld [vmem:[%s1 + $0x360] sm:$0xff]
    %v137 = vld [vmem:[%s1 + $0x368] sm:$0xff]
    %v138 = vld [vmem:[%s1 + $0x370] sm:$0xff]
    %v139 = vld [vmem:[%s1 + $0x378] sm:$0xff]
    %v140 = vld [vmem:[%s1 + $0x380] sm:$0xff]
    %v141 = vld [vmem:[%s1 + $0x388] sm:$0xff]
    %v142 = vld [vmem:[%s1 + $0x390] sm:$0xff]
    %v143 = vld [vmem:[%s1 + $0x398] sm:$0xff]
    %v144 = vld [vmem:[%s1 + $0x3a0] sm:$0xff]
    %v145 = vld [vmem:[%s1 + $0x3a8] sm:$0xff]
    %v146 = vld [vmem:[%s1 + $0x3b0] sm:$0xff]
    %v147 = vld [vmem:[%s1 + $0x3b8] sm:$0xff]
    %v148 = vld [vmem:[%s1 + $0x3c0] sm:$0xff]
    %v149 = vld [vmem:[%s1 + $0x3c8] sm:$0xff]
    %v150 = vld [vmem:[%s1 + $0x3d0] sm:$0xff]
    %v151 = vld [vmem:[%s1 + $0x3d8] sm:$0xff]
    %v152 = vld [vmem:[%s1 + $0x3e0] sm:$0xff]
    %v153 = vld [vmem:[%s1 + $0x3e8] sm:$0xff]
    %v154 = vld [vmem:[%s1 + $0x3f0] sm:$0xff]
    %v155 = vld [vmem:[%s1 + $0x3f8] sm:$0xff]
    %v156 = vld [vmem:[%s1 + $0x400] sm:$0xff]
    %v157 = vld [vmem:[%s1 + $0x408] sm:$0xff]
    %v158 = vld [vmem:[%s1 + $0x410] sm:$0xff]
    %v159 = vld [vmem:[%s1 + $0x418] sm:$0xff]
    %v160 = vld [vmem:[%s1 + $0x420] sm:$0xff]
    %v161 = vld [vmem:[%s1 + $0x428] sm:$0xff]
    %v162 = vld [vmem:[%s1 + $0x430] sm:$0xff]
    %v163 = vld [vmem:[%s1 + $0x438] sm:$0xff]
    %v164 = vld [vmem:[%s1 + $0x440] sm:$0xff]
    %v165 = vld [vmem:[%s1 + $0x448] sm:$0xff]
    %v166 = vld [vmem:[%s1 + $0x450] sm:$0xff]
    %v167 = vld [vmem:[%s1 + $0x458] sm:$0xff]
    %v168 = vld [vmem:[%s1 + $0x460] sm:$0xff]
    %v169 = vld [vmem:[%s1 + $0x468] sm:$0xff]
    %v170 = vld [vmem:[%s1 + $0x470] sm:$0xff]
    %v171 = vld [vmem:[%s1 + $0x478] sm:$0xff]
    %v172 = vld [vmem:[%s1 + $0x480] sm:$0xff]
    %v173 = vld [vmem:[%s1 + $0x488] sm:$0xff]
    %v174 = vld [vmem:[%s1 + $0x490] sm:$0xff]
    %v175 = vld [vmem:[%s1 + $0x498] sm:$0xff]
    %v176 = vld [vmem:[%s1 + $0x4a0] sm:$0xff]
    %v177 = vld [vmem:[%s1 + $0x4a8] sm:$0xff]
    %v178 = vld [vmem:[%s1 + $0x4b0] sm:$0xff]
    %v179 = vld [vmem:[%s1 + $0x4b8] sm:$0xff]
    %v180 = vld [vmem:[%s1 + $0x4c0] sm:$0xff]
    %v181 = vld [vmem:[%s1 + $0x4c8] sm:$0xff]
    %v182 = vld [vmem:[%s1 + $0x4d0] sm:$0xff]
    %v183 = vld [vmem:[%s1 + $0x4d8] sm:$0xff]
    %v184 = vld [vmem:[%s1 + $0x4e0] sm:$0xff]
    %v185 = vld [vmem:[%s1 + $0x4e8] sm:$0xff]
    %v186 = vld [vmem:[%s1 + $0x4f0] sm:$0xff]
    %v187 = vld [vmem:[%s1 + $0x4f8] sm:$0xff]
    %v188 = vld [vmem:[%s1 + $0x500] sm:$0xff]
    %v189 = vld [vmem:[%s1 + $0x508] sm:$0xff]
    %v190 = vld [vmem:[%s1 + $0x510] sm:$0xff]
    %v191 = vld [vmem:[%s1 + $0x518] sm:$0xff]
    %v192 = vld [vmem:[%s1 + $0x520] sm:$0xff]
    %v193 = vld [vmem:[%s1 + $0x528] sm:$0xff]
    %v194 = vld [vmem:[%s1 + $0x530] sm:$0xff]
    %v195 = vld [vmem:[%s1 + $0x538] sm:$0xff]
    %v196 = vld [vmem:[%s1 + $0x540] sm:$0xff]
    %v197 = vld [vmem:[%s1 + $0x548] sm:$0xff]
    %v198 = vld [vmem:[%s1 + $0x550] sm:$0xff]
    %v199 = vld [vmem:[%s1 + $0x558] sm:$0xff]
    %v200 = vld [vmem:[%s1 + $0x560] sm:$0xff]
    %v201 = vld [vmem:[%s1 + $0x568] sm:$0xff]
    %v202 = vld [vmem:[%s1 + $0x570] sm:$0xff]
    %v203 = vld [vmem:[%s1 + $0x578] sm:$0xff]
    %v204 = vld [vmem:[%s1 + $0x580] sm:$0xff]
    %v205 = vld [vmem:[%s1 + $0x588] sm:$0xff]
    %v206 = vld [vmem:[%s1 + $0x590] sm:$0xff]
    %v207 = vld [vmem:[%s1 + $0x598] sm:$0xff]
    %v208 = vld [vmem:[%s1 + $0x5a0] sm:$0xff]
    %v209 = vld [vmem:[%s1 + $0x5a8] sm:$0xff]
    %v210 = vld [vmem:[%s1 + $0x5b0] sm:$0xff]
    %v211 = vld [vmem:[%s1 + $0x5b8] sm:$0xff]
    %v212 = vld [vmem:[%s1 + $0x5c0] sm:$0xff]
    %v213 = vld [vmem:[%s1 + $0x5c8] sm:$0xff]
    %v214 = vld [vmem:[%s1 + $0x5d0] sm:$0xff]
    %v215 = vld [vmem:[%s1 + $0x5d8] sm:$0xff]
    %v216 = vld [vmem:[%s1 + $0x5e0] sm:$0xff]
    %v217 = vld [vmem:[%s1 + $0x5e8] sm:$0xff]
    %v218 = vld [vmem:[%s1 + $0x5f0] sm:$0xff]
    %v219 = vld [vmem:[%s1 + $0x5f8] sm:$0xff]
    %v220 = vld [vmem:[%s1 + $0x600] sm:$0xff]
    %v221 = vld [vmem:[%s1 + $0x608] sm:$0xff]
    %v222 = vld [vmem:[%s1 + $0x610] sm:$0xff]
    %v223 = vld [vmem:[%s1 + $0x618] sm:$0xff]
    %v224 = vld [vmem:[%s1 + $0x620] sm:$0xff]
    %v225 = vld [vmem:[%s1 + $0x628] sm:$0xff]
    %v226 = vld [vmem:[%s1 + $0x630] sm:$0xff]
    %v227 = vld [vmem:[%s1 + $0x638] sm:$0xff]
    %v228 = vld [vmem:[%s1 + $0x640] sm:$0xff]
    %v229 = vld [vmem:[%s1 + $0x648] sm:$0xff]
    %v230 = vld [vmem:[%s1 + $0x650] sm:$0xff]
    %v231 = vld [vmem:[%s1 + $0x658] sm:$0xff]
    %v232 = vld [vmem:[%s1 + $0x660] sm:$0xff]
    %v233 = vld [vmem:[%s1 + $0x668] sm:$0xff]
    %v234 = vld [vmem:[%s1 + $0x670] sm:$0xff]
    %v235 = vld [vmem:[%s1 + $0x678] sm:$0xff]
    %v236 = vld [vmem:[%s1 + $0x680] sm:$0xff]
    %v237 = vld [vmem:[%s1 + $0x688] sm:$0xff]
    %v238 = vld [vmem:[%s1 + $0x690] sm:$0xff]
    %v239 = vld [vmem:[%s1 + $0x698] sm:$0xff]
    %v240 = vld [vmem:[%s1 + $0x6a0] sm:$0xff]
    %v241 = vld [vmem:[%s1 + $0x6a8] sm:$0xff]
    %v242 = vld [vmem:[%s1 + $0x6b0] sm:$0xff]
    %v243 = vld [vmem:[%s1 + $0x6b8] sm:$0xff]
    %v244 = vld [vmem:[%s1 + $0x6c0] sm:$0xff]
    %v245 = vld [vmem:[%s1 + $0x6c8] sm:$0xff]
    %v246 = vld [vmem:[%s1 + $0x6d0] sm:$0xff]
    %v247 = vld [vmem:[%s1 + $0x6d8] sm:$0xff]
    %v248 = vld [vmem:[%s1 + $0x6e0] sm:$0xff]
    %v249 = vld [vmem:[%s1 + $0x6e8] sm:$0xff]
    %v250 = vld [vmem:[%s1 + $0x6f0] sm:$0xff]
    %v251 = vld [vmem:[%s1 + $0x6f8] sm:$0xff]
    %v252 = vld [vmem:[%s1 + $0x700] sm:$0xff]
    %v253 = vld [vmem:[%s1 + $0x708] sm:$0xff]
    %v254 = vld [vmem:[%s1 + $0x710] sm:$0xff]
    %v255 = vld [vmem:[%s1 + $0x718] sm:$0xff]
    %v256 = vld [vmem:[%s1 + $0x720] sm:$0xff]
    %v257 = vld [vmem:[%s1 + $0x728] sm:$0xff]
    %v258 = vld [vmem:[%s1 + $0x730] sm:$0xff]
    %v259 = vld [vmem:[%s1 + $0x738] sm:$0xff]
    %v260 = vld [vmem:[%s1 + $0x740] sm:$0xff]
    %v261 = vld [vmem:[%s1 + $0x748] sm:$0xff]
    %v262 = vld [vmem:[%s1 + $0x750] sm:$0xff]
    %v263 = vld [vmem:[%s1 + $0x758] sm:$0xff]
    %v264 = vld [vmem:[%s1 + $0x760] sm:$0xff]
    %v265 = vld [vmem:[%s1 + $0x768] sm:$0xff]
    %v266 = vld [vmem:[%s1 + $0x770] sm:$0xff]
    %v267 = vld [vmem:[%s1 + $0x778] sm:$0xff]
    %v268 = vld [vmem:[%s1 + $0x780] sm:$0xff]
    %v269 = vld [vmem:[%s1 + $0x788] sm:$0xff]
    %v270 = vld [vmem:[%s1 + $0x790] sm:$0xff]
    %v271 = vld [vmem:[%s1 + $0x798] sm:$0xff]
    %v272 = vld [vmem:[%s1 + $0x7a0] sm:$0xff]
    %v273 = vld [vmem:[%s1 + $0x7a8] sm:$0xff]
    %v274 = vld [vmem:[%s1 + $0x7b0] sm:$0xff]
    %v275 = vld [vmem:[%s1 + $0x7b8] sm:$0xff]
    %v276 = vld [vmem:[%s1 + $0x7c0] sm:$0xff]
    %v277 = vld [vmem:[%s1 + $0x7c8] sm:$0xff]
    %v278 = vld [vmem:[%s1 + $0x7d0] sm:$0xff]
    %v279 = vld [vmem:[%s1 + $0x7d8] sm:$0xff]
    %v280 = vld [vmem:[%s1 + $0x7e0] sm:$0xff]
    %v281 = vld [vmem:[%s1 + $0x7e8] sm:$0xff]
    %v282 = vld [vmem:[%s1 + $0x7f0] sm:$0xff]
    %v283 = vld [vmem:[%s1 + $0x7f8] sm:$0xff]
    %v284 = vld [vmem:[%s1 + $0x800] sm:$0xff]
    %v285 = vld [vmem:[%s1 + $0x808] sm:$0xff]
    %v286 = vld [vmem:[%s1 + $0x810] sm:$0xff]
    %v287 = vld [vmem:[%s1 + $0x818] sm:$0xff]
    %v288 = vld [vmem:[%s1 + $0x820] sm:$0xff]
    %v289 = vld [vmem:[%s1 + $0x828] sm:$0xff]
    %v290 = vld [vmem:[%s1 + $0x830] sm:$0xff]
    %v291 = vld [vmem:[%s1 + $0x838] sm:$0xff]
    %v292 = vld [vmem:[%s1 + $0x840] sm:$0xff]
    %v293 = vld [vmem:[%s1 + $0x848] sm:$0xff]
    %v294 = vld [vmem:[%s1 + $0x850] sm:$0xff]
    %v295 = vld [vmem:[%s1 + $0x858] sm:$0xff]
    %v296 = vld [vmem:[%s1 + $0x860] sm:$0xff]
    %v297 = vld [vmem:[%s1 + $0x868] sm:$0xff]
    %v298 = vld [vmem:[%s1 + $0x870] sm:$0xff]
    %v299 = vld [vmem:[%s1 + $0x878] sm:$0xff]
    %v300 = vld [vmem:[%s1 + $0x880] sm:$0xff]
    %v301 = vld [vmem:[%s1 + $0x888] sm:$0xff]
    %v302 = vld [vmem:[%s1 + $0x890] sm:$0xff]
    %v303 = vld [vmem:[%s1 + $0x898] sm:$0xff]
    %v304 = vld [vmem:[%s1 + $0x8a0] sm:$0xff]
    %v305 = vld [vmem:[%s1 + $0x8a8] sm:$0xff]
    %v306 = vld [vmem:[%s1 + $0x8b0] sm:$0xff]
    %v307 = vld [vmem:[%s1 + $0x8b8] sm:$0xff]
    %v308 = vld [vmem:[%s1 + $0x8c0] sm:$0xff]
    %v309 = vld [vmem:[%s1 + $0x8c8] sm:$0xff]
    %v310 = vld [vmem:[%s1 + $0x8d0] sm:$0xff]
    %v311 = vld [vmem:[%s1 + $0x8d8] sm:$0xff]
    %v312 = vld [vmem:[%s1 + $0x8e0] sm:$0xff]
    %v313 = vld [vmem:[%s1 + $0x8e8] sm:$0xff]
    %v314 = vld [vmem:[%s1 + $0x8f0] sm:$0xff]
    %v315 = vld [vmem:[%s1 + $0x8f8] sm:$0xff]
    %v316 = vld [vmem:[%s1 + $0x900] sm:$0xff]
    %v317 = vld [vmem:[%s1 + $0x908] sm:$0xff]
    %v318 = vld [vmem:[%s1 + $0x910] sm:$0xff]
    %v319 = vld [vmem:[%s1 + $0x918] sm:$0xff]
    %v320 = vld [vmem:[%s1 + $0x920] sm:$0xff]
    %v321 = vld [vmem:[%s1 + $0x928] sm:$0xff]
    %v322 = vld [vmem:[%s1 + $0x930] sm:$0xff]
    %v323 = vld [vmem:[%s1 + $0x938] sm:$0xff]
    %v324 = vld [vmem:[%s1 + $0x940] sm:$0xff]
    %v325 = vld [vmem:[%s1 + $0x948] sm:$0xff]
    %v326 = vld [vmem:[%s1 + $0x950] sm:$0xff]
    %v327 = vld [vmem:[%s1 + $0x958] sm:$0xff]
    %v328 = vld [vmem:[%s1 + $0x960] sm:$0xff]
    %v329 = vld [vmem:[%s1 + $0x968] sm:$0xff]
    %v330 = vld [vmem:[%s1 + $0x970] sm:$0xff]
    %v331 = vld [vmem:[%s1 + $0x978] sm:$0xff]
    %v332 = vld [vmem:[%s1 + $0x980] sm:$0xff]
    %v333 = vld [vmem:[%s1 + $0x988] sm:$0xff]
    %v334 = vld [vmem:[%s1 + $0x990] sm:$0xff]
    %v335 = vld [vmem:[%s1 + $0x998] sm:$0xff]
    %v336 = vld [vmem:[%s1 + $0x9a0] sm:$0xff]
    %v337 = vld [vmem:[%s1 + $0x9a8] sm:$0xff]
    %v338 = vld [vmem:[%s1 + $0x9b0] sm:$0xff]
    %v339 = vld [vmem:[%s1 + $0x9b8] sm:$0xff]
    %v340 = vld [vmem:[%s1 + $0x9c0] sm:$0xff]
    %v341 = vld [vmem:[%s1 + $0x9c8] sm:$0xff]
    %v342 = vld [vmem:[%s1 + $0x9d0] sm:$0xff]
    %v343 = vld [vmem:[%s1 + $0x9d8] sm:$0xff]
    %v344 = vld [vmem:[%s1 + $0x9e0] sm:$0xff]
    %v345 = vld [vmem:[%s1 + $0x9e8] sm:$0xff]
    %v346 = vld [vmem:[%s1 + $0x9f0] sm:$0xff]
    %v347 = vld [vmem:[%s1 + $0x9f8] sm:$0xff]
    %v348 = vld [vmem:[%s1 + $0xa00] sm:$0xff]
    %v349 = vld [vmem:[%s1 + $0xa08] sm:$0xff]
    %v350 = vld [vmem:[%s1 + $0xa10] sm:$0xff]
    %v351 = vld [vmem:[%s1 + $0xa18] sm:$0xff]
    %v352 = vld [vmem:[%s1 + $0xa20] sm:$0xff]
    %v353 = vld [vmem:[%s1 + $0xa28] sm:$0xff]
    %v354 = vld [vmem:[%s1 + $0xa30] sm:$0xff]
    %v355 = vld [vmem:[%s1 + $0xa38] sm:$0xff]
    %v356 = vld [vmem:[%s1 + $0xa40] sm:$0xff]
    %v357 = vld [vmem:[%s1 + $0xa48] sm:$0xff]
    %v358 = vld [vmem:[%s1 + $0xa50] sm:$0xff]
    %v359 = vld [vmem:[%s1 + $0xa58] sm:$0xff]
    %v360 = vld [vmem:[%s1 + $0xa60] sm:$0xff]
    %v361 = vld [vmem:[%s1 + $0xa68] sm:$0xff]
    %v362 = vld [vmem:[%s1 + $0xa70] sm:$0xff]
    %v363 = vld [vmem:[%s1 + $0xa78] sm:$0xff]
    %v364 = vld [vmem:[%s1 + $0xa80] sm:$0xff]
    %v365 = vld [vmem:[%s1 + $0xa88] sm:$0xff]
    %v366 = vld [vmem:[%s1 + $0xa90] sm:$0xff]
    %v367 = vld [vmem:[%s1 + $0xa98] sm:$0xff]
    %v368 = vld [vmem:[%s1 + $0xaa0] sm:$0xff]
    %v369 = vld [vmem:[%s1 + $0xaa8] sm:$0xff]
    %v370 = vld [vmem:[%s1 + $0xab0] sm:$0xff]
    %v371 = vld [vmem:[%s1 + $0xab8] sm:$0xff]
    %v372 = vld [vmem:[%s1 + $0xac0] sm:$0xff]
    %v373 = vld [vmem:[%s1 + $0xac8] sm:$0xff]
    %v374 = vld [vmem:[%s1 + $0xad0] sm:$0xff]
    %v375 = vld [vmem:[%s1 + $0xad8] sm:$0xff]
    %v376 = vld [vmem:[%s1 + $0xae0] sm:$0xff]
    %v377 = vld [vmem:[%s1 + $0xae8] sm:$0xff]
    %v378 = vld [vmem:[%s1 + $0xaf0] sm:$0xff]
    %v379 = vld [vmem:[%s1 + $0xaf8] sm:$0xff]
    %v380 = vld [vmem:[%s1 + $0xb00] sm:$0xff]
    %v381 = vld [vmem:[%s1 + $0xb08] sm:$0xff]
    %v382 = vld [vmem:[%s1 + $0xb10] sm:$0xff]
    %v383 = vld [vmem:[%s1 + $0xb18] sm:$0xff]
    %v384 = vld [vmem:[%s1 + $0xb20] sm:$0xff]
    %v385 = vld [vmem:[%s1 + $0xb28] sm:$0xff]
    %v386 = vld [vmem:[%s1 + $0xb30] sm:$0xff]
    %v387 = vld [vmem:[%s1 + $0xb38] sm:$0xff]
    %v388 = vld [vmem:[%s1 + $0xb40] sm:$0xff]
    %v389 = vld [vmem:[%s1 + $0xb48] sm:$0xff]
    %v390 = vld [vmem:[%s1 + $0xb50] sm:$0xff]
    %v391 = vld [vmem:[%s1 + $0xb58] sm:$0xff]
    %v392 = vld [vmem:[%s1 + $0xb60] sm:$0xff]
    %v393 = vld [vmem:[%s1 + $0xb68] sm:$0xff]
    %v394 = vld [vmem:[%s1 + $0xb70] sm:$0xff]
    %v395 = vld [vmem:[%s1 + $0xb78] sm:$0xff]
    %v396 = vld [vmem:[%s1 + $0xb80] sm:$0xff]
    %v397 = vld [vmem:[%s1 + $0xb88] sm:$0xff]
    %v398 = vld [vmem:[%s1 + $0xb90] sm:$0xff]
    %v399 = vld [vmem:[%s1 + $0xb98] sm:$0xff]
    %v400 = vld [vmem:[%s1 + $0xba0] sm:$0xff]
    %v401 = vld [vmem:[%s1 + $0xba8] sm:$0xff]
    %v402 = vld [vmem:[%s1 + $0xbb0] sm:$0xff]
    %v403 = vld [vmem:[%s1 + $0xbb8] sm:$0xff]
    %v404 = vld [vmem:[%s1 + $0xbc0] sm:$0xff]
    %v405 = vld [vmem:[%s1 + $0xbc8] sm:$0xff]
    %v406 = vld [vmem:[%s1 + $0xbd0] sm:$0xff]
    %v407 = vld [vmem:[%s1 + $0xbd8] sm:$0xff]
    %v408 = vld [vmem:[%s1 + $0xbe0] sm:$0xff]
    %v409 = vld [vmem:[%s1 + $0xbe8] sm:$0xff]
    %v410 = vld [vmem:[%s1 + $0xbf0] sm:$0xff]
    %v411 = vld [vmem:[%s1 + $0xbf8] sm:$0xff]
    %v412 = vld [vmem:[%s1 + $0xc00] sm:$0xff]
    %v413 = vld [vmem:[%s1 + $0xc08] sm:$0xff]
    %v414 = vld [vmem:[%s1 + $0xc10] sm:$0xff]
    %v415 = vld [vmem:[%s1 + $0xc18] sm:$0xff]
    %v416 = vld [vmem:[%s1 + $0xc20] sm:$0xff]
    %v417 = vld [vmem:[%s1 + $0xc28] sm:$0xff]
    %v418 = vld [vmem:[%s1 + $0xc30] sm:$0xff]
    %v419 = vld [vmem:[%s1 + $0xc38] sm:$0xff]
    %v420 = vld [vmem:[%s1 + $0xc40] sm:$0xff]
    %v421 = vld [vmem:[%s1 + $0xc48] sm:$0xff]
    %v422 = vld [vmem:[%s1 + $0xc50] sm:$0xff]
    %v423 = vld [vmem:[%s1 + $0xc58] sm:$0xff]
    %v424 = vld [vmem:[%s1 + $0xc60] sm:$0xff]
    %v425 = vld [vmem:[%s1 + $0xc68] sm:$0xff]
    %v426 = vld [vmem:[%s1 + $0xc70] sm:$0xff]
    %v427 = vld [vmem:[%s1 + $0xc78] sm:$0xff]
    %v428 = vld [vmem:[%s1 + $0xc80] sm:$0xff]
    %v429 = vld [vmem:[%s1 + $0xc88] sm:$0xff]
    %v430 = vld [vmem:[%s1 + $0xc90] sm:$0xff]
    %v431 = vld [vmem:[%s1 + $0xc98] sm:$0xff]
    %v432 = vld [vmem:[%s1 + $0xca0] sm:$0xff]
    %v433 = vld [vmem:[%s1 + $0xca8] sm:$0xff]
    %v434 = vld [vmem:[%s1 + $0xcb0] sm:$0xff]
    %v435 = vld [vmem:[%s1 + $0xcb8] sm:$0xff]
    %v436 = vld [vmem:[%s1 + $0xcc0] sm:$0xff]
    %v437 = vld [vmem:[%s1 + $0xcc8] sm:$0xff]
    %v438 = vld [vmem:[%s1 + $0xcd0] sm:$0xff]
    %v439 = vld [vmem:[%s1 + $0xcd8] sm:$0xff]
    %v440 = vld [vmem:[%s1 + $0xce0] sm:$0xff]
    %v441 = vld [vmem:[%s1 + $0xce8] sm:$0xff]
    %v442 = vld [vmem:[%s1 + $0xcf0] sm:$0xff]
    %v443 = vld [vmem:[%s1 + $0xcf8] sm:$0xff]
    %v444 = vld [vmem:[%s1 + $0xd00] sm:$0xff]
    %v445 = vld [vmem:[%s1 + $0xd08] sm:$0xff]
    %v446 = vld [vmem:[%s1 + $0xd10] sm:$0xff]
    %v447 = vld [vmem:[%s1 + $0xd18] sm:$0xff]
    %v448 = vld [vmem:[%s1 + $0xd20] sm:$0xff]
    %v449 = vld [vmem:[%s1 + $0xd28] sm:$0xff]
    %v450 = vld [vmem:[%s1 + $0xd30] sm:$0xff]
    %v451 = vld [vmem:[%s1 + $0xd38] sm:$0xff]
    %v452 = vld [vmem:[%s1 + $0xd40] sm:$0xff]
    %v453 = vld [vmem:[%s1 + $0xd48] sm:$0xff]
    %v454 = vld [vmem:[%s1 + $0xd50] sm:$0xff]
    %v455 = vld [vmem:[%s1 + $0xd58] sm:$0xff]
    %v456 = vld [vmem:[%s1 + $0xd60] sm:$0xff]
    %v457 = vld [vmem:[%s1 + $0xd68] sm:$0xff]
    %v458 = vld [vmem:[%s1 + $0xd70] sm:$0xff]
    %v459 = vld [vmem:[%s1 + $0xd78] sm:$0xff]
    %v460 = vld [vmem:[%s1 + $0xd80] sm:$0xff]
    %v461 = vld [vmem:[%s1 + $0xd88] sm:$0xff]
    %v462 = vld [vmem:[%s1 + $0xd90] sm:$0xff]
    %v463 = vld [vmem:[%s1 + $0xd98] sm:$0xff]
    %v464 = vld [vmem:[%s1 + $0xda0] sm:$0xff]
    %v465 = vld [vmem:[%s1 + $0xda8] sm:$0xff]
    %v466 = vld [vmem:[%s1 + $0xdb0] sm:$0xff]
    %v467 = vld [vmem:[%s1 + $0xdb8] sm:$0xff]
    %v468 = vld [vmem:[%s1 + $0xdc0] sm:$0xff]
    %v469 = vld [vmem:[%s1 + $0xdc8] sm:$0xff]
    %v470 = vld [vmem:[%s1 + $0xdd0] sm:$0xff]
    %v471 = vld [vmem:[%s1 + $0xdd8] sm:$0xff]
    %v472 = vld [vmem:[%s1 + $0xde0] sm:$0xff]
    %v473 = vld [vmem:[%s1 + $0xde8] sm:$0xff]
    %v474 = vld [vmem:[%s1 + $0xdf0] sm:$0xff]
    %v475 = vld [vmem:[%s1 + $0xdf8] sm:$0xff]
    %v476 = vld [vmem:[%s1 + $0xe00] sm:$0xff]
    %v477 = vld [vmem:[%s1 + $0xe08] sm:$0xff]
    %v478 = vld [vmem:[%s1 + $0xe10] sm:$0xff]
    %v479 = vld [vmem:[%s1 + $0xe18] sm:$0xff]
    %v480 = vld [vmem:[%s1 + $0xe20] sm:$0xff]
    %v481 = vld [vmem:[%s1 + $0xe28] sm:$0xff]
    %v482 = vld [vmem:[%s1 + $0xe30] sm:$0xff]
    %v483 = vld [vmem:[%s1 + $0xe38] sm:$0xff]
    %v484 = vld [vmem:[%s1 + $0xe40] sm:$0xff]
    %v485 = vld [vmem:[%s1 + $0xe48] sm:$0xff]
    %v486 = vld [vmem:[%s1 + $0xe50] sm:$0xff]
    %v487 = vld [vmem:[%s1 + $0xe58] sm:$0xff]
    %v488 = vld [vmem:[%s1 + $0xe60] sm:$0xff]
    %v489 = vld [vmem:[%s1 + $0xe68] sm:$0xff]
    %v490 = vld [vmem:[%s1 + $0xe70] sm:$0xff]
    %v491 = vld [vmem:[%s1 + $0xe78] sm:$0xff]
    %v492 = vld [vmem:[%s1 + $0xe80] sm:$0xff]
    %v493 = vld [vmem:[%s1 + $0xe88] sm:$0xff]
    %v494 = vld [vmem:[%s1 + $0xe90] sm:$0xff]
    %v495 = vld [vmem:[%s1 + $0xe98] sm:$0xff]
    %v496 = vld [vmem:[%s1 + $0xea0] sm:$0xff]
    %v497 = vld [vmem:[%s1 + $0xea8] sm:$0xff]
    %v498 = vld [vmem:[%s1 + $0xeb0] sm:$0xff]
    %v499 = vld [vmem:[%s1 + $0xeb8] sm:$0xff]
    %v500 = vld [vmem:[%s1 + $0xec0] sm:$0xff]
    %v501 = vld [vmem:[%s1 + $0xec8] sm:$0xff]
    %v502 = vld [vmem:[%s1 + $0xed0] sm:$0xff]
    %v503 = vld [vmem:[%s1 + $0xed8] sm:$0xff]
    %v504 = vld [vmem:[%s1 + $0xee0] sm:$0xff]
    %v505 = vld [vmem:[%s1 + $0xee8] sm:$0xff]
    %v506 = vld [vmem:[%s1 + $0xef0] sm:$0xff]
    %v507 = vld [vmem:[%s1 + $0xef8] sm:$0xff]
    %v508 = vld [vmem:[%s1 + $0xf00] sm:$0xff]
    %v509 = vld [vmem:[%s1 + $0xf08] sm:$0xff]
    %v510 = vld [vmem:[%s1 + $0xf10] sm:$0xff]
    %v511 = vld [vmem:[%s1 + $0xf18] sm:$0xff]
    %v512 = vld [vmem:[%s1 + $0xf20] sm:$0xff]
    %v513 = vld [vmem:[%s1 + $0xf28] sm:$0xff]
    %v514 = vld [vmem:[%s1 + $0xf30] sm:$0xff]
    %v515 = vld [vmem:[%s1 + $0xf38] sm:$0xff]
    %v516 = vld [vmem:[%s1 + $0xf40] sm:$0xff]
    %v517 = vld [vmem:[%s1 + $0xf48] sm:$0xff]
    %v518 = vld [vmem:[%s1 + $0xf50] sm:$0xff]
    %v519 = vld [vmem:[%s1 + $0xf58] sm:$0xff]
    %v520 = vld [vmem:[%s1 + $0xf60] sm:$0xff]
    %v521 = vld [vmem:[%s1 + $0xf68] sm:$0xff]
    %v522 = vld [vmem:[%s1 + $0xf70] sm:$0xff]
    %v523 = vld [vmem:[%s1 + $0xf78] sm:$0xff]
    %v524 = vld [vmem:[%s1 + $0xf80] sm:$0xff]
    %v525 = vld [vmem:[%s1 + $0xf88] sm:$0xff]
    %v526 = vld [vmem:[%s1 + $0xf90] sm:$0xff]
    %v527 = vld [vmem:[%s1 + $0xf98] sm:$0xff]
    %v528 = vld [vmem:[%s1 + $0xfa0] sm:$0xff]
    %v529 = vld [vmem:[%s1 + $0xfa8] sm:$0xff]
    %v530 = vld [vmem:[%s1 + $0xfb0] sm:$0xff]
    %v531 = vld [vmem:[%s1 + $0xfb8] sm:$0xff]
    %v532 = vld [vmem:[%s1 + $0xfc0] sm:$0xff]
    %v533 = vld [vmem:[%s1 + $0xfc8] sm:$0xff]
    %v534 = vld [vmem:[%s1 + $0xfd0] sm:$0xff]
    %v535 = vld [vmem:[%s1 + $0xfd8] sm:$0xff]
    %v536 = vld [vmem:[%s1 + $0xfe0] sm:$0xff]
    %v537 = vld [vmem:[%s1 + $0xfe8] sm:$0xff]
    %v538 = vld [vmem:[%s1 + $0xff0] sm:$0xff]
    %v539 = vld [vmem:[%s1 + $0xff8] sm:$0xff]
    %v540 = vld [vmem:[%s2] sm:$0xff]
    %v542 = vlaneseq
    %v543 = vshrl.u32 %v542, 7
    %v544 = vsub.s32 0, %v543
    %v545 = vrot.slane %v540, %v544
    %v546 = vlaneseq
    %v547 = vshrl.u32 %v546, 7
    %v548 = vsub.s32 1, %v547
    %v549 = vrot.slane %v540, %v548
    %v550 = vlaneseq
    %v551 = vshrl.u32 %v550, 7
    %v552 = vsub.s32 2, %v551
    %v553 = vrot.slane %v540, %v552
    %v554 = vlaneseq
    %v555 = vshrl.u32 %v554, 7
    %v556 = vsub.s32 3, %v555
    %v557 = vrot.slane %v540, %v556
    %v558 = vlaneseq
    %v559 = vshrl.u32 %v558, 7
    %v560 = vsub.s32 4, %v559
    %v561 = vrot.slane %v540, %v560
    %v562 = vlaneseq
    %v563 = vshrl.u32 %v562, 7
    %v564 = vsub.s32 5, %v563
    %v565 = vrot.slane %v540, %v564
    %v566 = vlaneseq
    %v567 = vshrl.u32 %v566, 7
    %v568 = vsub.s32 6, %v567
    %v569 = vrot.slane %v540, %v568
    %v570 = vlaneseq
    %v571 = vshrl.u32 %v570, 7
    %v572 = vsub.s32 7, %v571
    %v573 = vrot.slane %v540, %v572
    %v583 = vcombine.high %v27, %v27
    %v585 = vunpack.c.l.s4 1983009808
    %v586 = vunpack.c.0.s8 %v585
    %v587 = vlaneseq
    %v588 = vshrl.u32 %v587, 7
    %v589 = vsub.s32 %v586, %v588
    %v590 = vrot.slane %v27, %v589
    %v592 = vunpack.c.l.s4 1983009808
    %v593 = vunpack.c.0.s8 %v592
    %v594 = vlaneseq
    %v595 = vshrl.u32 %v594, 7
    %v596 = vsub.s32 %v593, %v595
    %v597 = vrot.slane %v583, %v596
    %v598 = vcombine.high %v590, %v590
    %v599 = vcombine.high %v597, %v597
    %604 = vmatprep.subr.mxu0 %v29
    %605 = vmatpush1.msra.mxu0 %v28
    %606 = vmatprep.subr.mxu0 %v37
    %607 = vmatpush1.msra.mxu0 %v36
    %608 = vmatprep.subr.mxu0 %v45
    %609 = vmatpush1.msra.mxu0 %v44
    %610 = vmatprep.subr.mxu0 %v53
    %611 = vmatpush1.msra.mxu0 %v52
    %612 = vmatprep.subr.mxu0 %v61
    %613 = vmatpush1.msra.mxu0 %v60
    %614 = vmatprep.subr.mxu0 %v69
    %615 = vmatpush1.msra.mxu0 %v68
    %616 = vmatprep.subr.mxu0 %v77
    %617 = vmatpush1.msra.mxu0 %v76
    %618 = vmatprep.subr.mxu0 %v85
    %619 = vmatpush1.msra.mxu0 %v84
    %620 = vmatprep.subr.mxu0 %v93
    %621 = vmatpush1.msra.mxu0 %v92
    %622 = vmatprep.subr.mxu0 %v101
    %623 = vmatpush1.msra.mxu0 %v100
    %624 = vmatprep.subr.mxu0 %v109
    %625 = vmatpush1.msra.mxu0 %v108
    %626 = vmatprep.subr.mxu0 %v117
    %627 = vmatpush1.msra.mxu0 %v116
    %628 = vmatprep.subr.mxu0 %v125
    %629 = vmatpush1.msra.mxu0 %v124
    %630 = vmatprep.subr.mxu0 %v133
    %631 = vmatpush1.msra.mxu0 %v132
    %632 = vmatprep.subr.mxu0 %v141
    %633 = vmatpush1.msra.mxu0 %v140
    %634 = vmatprep.subr.mxu0 %v149
    %635 = vmatpush1.msra.mxu0 %v148
    %636 = vmatprep.subr.mxu0 %v157
    %637 = vmatpush1.msra.mxu0 %v156
    %638 = vmatprep.subr.mxu0 %v165
    %639 = vmatpush1.msra.mxu0 %v164
    %640 = vmatprep.subr.mxu0 %v173
    %641 = vmatpush1.msra.mxu0 %v172
    %642 = vmatprep.subr.mxu0 %v181
    %643 = vmatpush1.msra.mxu0 %v180
    %644 = vmatprep.subr.mxu0 %v189
    %645 = vmatpush1.msra.mxu0 %v188
    %646 = vmatprep.subr.mxu0 %v197
    %647 = vmatpush1.msra.mxu0 %v196
    %648 = vmatprep.subr.mxu0 %v205
    %649 = vmatpush1.msra.mxu0 %v204
    %650 = vmatprep.subr.mxu0 %v213
    %651 = vmatpush1.msra.mxu0 %v212
    %652 = vmatprep.subr.mxu0 %v221
    %653 = vmatpush1.msra.mxu0 %v220
    %654 = vmatprep.subr.mxu0 %v229
    %655 = vmatpush1.msra.mxu0 %v228
    %656 = vmatprep.subr.mxu0 %v237
    %657 = vmatpush1.msra.mxu0 %v236
    %658 = vmatprep.subr.mxu0 %v245
    %659 = vmatpush1.msra.mxu0 %v244
    %660 = vmatprep.subr.mxu0 %v253
    %661 = vmatpush1.msra.mxu0 %v252
    %662 = vmatprep.subr.mxu0 %v261
    %663 = vmatpush1.msra.mxu0 %v260
    %664 = vmatprep.subr.mxu0 %v269
    %665 = vmatpush1.msra.mxu0 %v268
    %666 = vmatprep.subr.mxu0 %v277
    %667 = vmatpush1.msra.mxu0 %v276
    %668 = vmatprep.mubr.f32.mxu0 %v598
    %669 = vmatmul.mubr.f32.gmra.mrb[0].mxu0 %v590
    %v670 = vpop.f32.mrb[0].mxu0
    %v671 = vadd.f32 %v545, %v670
    %v672 = vpop.f32.mrb[0].mxu0
    %v673 = vadd.f32 %v549, %v672
    %674 = vdwg.mxu0
    %675 = vmatprep.subr.mxu0 %v285
    %676 = vmatpush1.msra.mxu0 %v284
    %677 = vmatprep.subr.mxu0 %v293
    %678 = vmatpush1.msra.mxu0 %v292
    %679 = vmatprep.subr.mxu0 %v301
    %680 = vmatpush1.msra.mxu0 %v300
    %681 = vmatprep.subr.mxu0 %v309
    %682 = vmatpush1.msra.mxu0 %v308
    %683 = vmatprep.subr.mxu0 %v317
    %684 = vmatpush1.msra.mxu0 %v316
    %685 = vmatprep.subr.mxu0 %v325
    %686 = vmatpush1.msra.mxu0 %v324
    %687 = vmatprep.subr.mxu0 %v333
    %688 = vmatpush1.msra.mxu0 %v332
    %689 = vmatprep.subr.mxu0 %v341
    %690 = vmatpush1.msra.mxu0 %v340
    %691 = vmatprep.subr.mxu0 %v349
    %692 = vmatpush1.msra.mxu0 %v348
    %693 = vmatprep.subr.mxu0 %v357
    %694 = vmatpush1.msra.mxu0 %v356
    %695 = vmatprep.subr.mxu0 %v365
    %696 = vmatpush1.msra.mxu0 %v364
    %697 = vmatprep.subr.mxu0 %v373
    %698 = vmatpush1.msra.mxu0 %v372
    %699 = vmatprep.subr.mxu0 %v381
    %700 = vmatpush1.msra.mxu0 %v380
    %701 = vmatprep.subr.mxu0 %v389
    %702 = vmatpush1.msra.mxu0 %v388
    %703 = vmatprep.subr.mxu0 %v397
    %704 = vmatpush1.msra.mxu0 %v396
    %705 = vmatprep.subr.mxu0 %v405
    %706 = vmatpush1.msra.mxu0 %v404
    %707 = vmatprep.subr.mxu0 %v413
    %708 = vmatpush1.msra.mxu0 %v412
    %709 = vmatprep.subr.mxu0 %v421
    %710 = vmatpush1.msra.mxu0 %v420
    %711 = vmatprep.subr.mxu0 %v429
    %712 = vmatpush1.msra.mxu0 %v428
    %713 = vmatprep.subr.mxu0 %v437
    %714 = vmatpush1.msra.mxu0 %v436
    %715 = vmatprep.subr.mxu0 %v445
    %716 = vmatpush1.msra.mxu0 %v444
    %717 = vmatprep.subr.mxu0 %v453
    %718 = vmatpush1.msra.mxu0 %v452
    %719 = vmatprep.subr.mxu0 %v461
    %720 = vmatpush1.msra.mxu0 %v460
    %721 = vmatprep.subr.mxu0 %v469
    %722 = vmatpush1.msra.mxu0 %v468
    %723 = vmatprep.subr.mxu0 %v477
    %724 = vmatpush1.msra.mxu0 %v476
    %725 = vmatprep.subr.mxu0 %v485
    %726 = vmatpush1.msra.mxu0 %v484
    %727 = vmatprep.subr.mxu0 %v493
    %728 = vmatpush1.msra.mxu0 %v492
    %729 = vmatprep.subr.mxu0 %v501
    %730 = vmatpush1.msra.mxu0 %v500
    %731 = vmatprep.subr.mxu0 %v509
    %732 = vmatpush1.msra.mxu0 %v508
    %733 = vmatprep.subr.mxu0 %v517
    %734 = vmatpush1.msra.mxu0 %v516
    %735 = vmatprep.subr.mxu0 %v525
    %736 = vmatpush1.msra.mxu0 %v524
    %737 = vmatprep.subr.mxu0 %v533
    %738 = vmatpush1.msra.mxu0 %v532
    %739 = vmatprep.mubr.f32.mxu0 %v599
    %740 = vmatmul.mubr.f32.gmra.mrb[0].mxu0 %v597
    %v741 = vpop.f32.mrb[0].mxu0
    %v742 = vadd.f32 %v671, %v741
    %v743 = vpop.f32.mrb[0].mxu0
    %v744 = vadd.f32 %v673, %v743
    %745 = vdwg.mxu0
    %746 = vmatprep.subr.mxu0 %v31
    %747 = vmatpush1.msra.mxu0 %v30
    %748 = vmatprep.subr.mxu0 %v39
    %749 = vmatpush1.msra.mxu0 %v38
    %750 = vmatprep.subr.mxu0 %v47
    %751 = vmatpush1.msra.mxu0 %v46
    %752 = vmatprep.subr.mxu0 %v55
    %753 = vmatpush1.msra.mxu0 %v54
    %754 = vmatprep.subr.mxu0 %v63
    %755 = vmatpush1.msra.mxu0 %v62
    %756 = vmatprep.subr.mxu0 %v71
    %757 = vmatpush1.msra.mxu0 %v70
    %758 = vmatprep.subr.mxu0 %v79
    %759 = vmatpush1.msra.mxu0 %v78
    %760 = vmatprep.subr.mxu0 %v87
    %761 = vmatpush1.msra.mxu0 %v86
    %762 = vmatprep.subr.mxu0 %v95
    %763 = vmatpush1.msra.mxu0 %v94
    %764 = vmatprep.subr.mxu0 %v103
    %765 = vmatpush1.msra.mxu0 %v102
    %766 = vmatprep.subr.mxu0 %v111
    %767 = vmatpush1.msra.mxu0 %v110
    %768 = vmatprep.subr.mxu0 %v119
    %769 = vmatpush1.msra.mxu0 %v118
    %770 = vmatprep.subr.mxu0 %v127
    %771 = vmatpush1.msra.mxu0 %v126
    %772 = vmatprep.subr.mxu0 %v135
    %773 = vmatpush1.msra.mxu0 %v134
    %774 = vmatprep.subr.mxu0 %v143
    %775 = vmatpush1.msra.mxu0 %v142
    %776 = vmatprep.subr.mxu0 %v151
    %777 = vmatpush1.msra.mxu0 %v150
    %778 = vmatprep.subr.mxu0 %v159
    %779 = vmatpush1.msra.mxu0 %v158
    %780 = vmatprep.subr.mxu0 %v167
    %781 = vmatpush1.msra.mxu0 %v166
    %782 = vmatprep.subr.mxu0 %v175
    %783 = vmatpush1.msra.mxu0 %v174
    %784 = vmatprep.subr.mxu0 %v183
    %785 = vmatpush1.msra.mxu0 %v182
    %786 = vmatprep.subr.mxu0 %v191
    %787 = vmatpush1.msra.mxu0 %v190
    %788 = vmatprep.subr.mxu0 %v199
    %789 = vmatpush1.msra.mxu0 %v198
    %790 = vmatprep.subr.mxu0 %v207
    %791 = vmatpush1.msra.mxu0 %v206
    %792 = vmatprep.subr.mxu0 %v215
    %793 = vmatpush1.msra.mxu0 %v214
    %794 = vmatprep.subr.mxu0 %v223
    %795 = vmatpush1.msra.mxu0 %v222
    %796 = vmatprep.subr.mxu0 %v231
    %797 = vmatpush1.msra.mxu0 %v230
    %798 = vmatprep.subr.mxu0 %v239
    %799 = vmatpush1.msra.mxu0 %v238
    %800 = vmatprep.subr.mxu0 %v247
    %801 = vmatpush1.msra.mxu0 %v246
    %802 = vmatprep.subr.mxu0 %v255
    %803 = vmatpush1.msra.mxu0 %v254
    %804 = vmatprep.subr.mxu0 %v263
    %805 = vmatpush1.msra.mxu0 %v262
    %806 = vmatprep.subr.mxu0 %v271
    %807 = vmatpush1.msra.mxu0 %v270
    %808 = vmatprep.subr.mxu0 %v279
    %809 = vmatpush1.msra.mxu0 %v278
    %810 = vmatprep.mubr.f32.mxu0 %v598
    %811 = vmatmul.mubr.f32.gmra.mrb[0].mxu0 %v590
    %v812 = vpop.f32.mrb[0].mxu0
    %v813 = vadd.f32 %v553, %v812
    %v814 = vpop.f32.mrb[0].mxu0
    %v815 = vadd.f32 %v557, %v814
    %816 = vdwg.mxu0
    %817 = vmatprep.subr.mxu0 %v287
    %818 = vmatpush1.msra.mxu0 %v286
    %819 = vmatprep.subr.mxu0 %v295
    %820 = vmatpush1.msra.mxu0 %v294
    %821 = vmatprep.subr.mxu0 %v303
    %822 = vmatpush1.msra.mxu0 %v302
    %823 = vmatprep.subr.mxu0 %v311
    %824 = vmatpush1.msra.mxu0 %v310
    %825 = vmatprep.subr.mxu0 %v319
    %826 = vmatpush1.msra.mxu0 %v318
    %827 = vmatprep.subr.mxu0 %v327
    %828 = vmatpush1.msra.mxu0 %v326
    %829 = vmatprep.subr.mxu0 %v335
    %830 = vmatpush1.msra.mxu0 %v334
    %831 = vmatprep.subr.mxu0 %v343
    %832 = vmatpush1.msra.mxu0 %v342
    %833 = vmatprep.subr.mxu0 %v351
    %834 = vmatpush1.msra.mxu0 %v350
    %835 = vmatprep.subr.mxu0 %v359
    %836 = vmatpush1.msra.mxu0 %v358
    %837 = vmatprep.subr.mxu0 %v367
    %838 = vmatpush1.msra.mxu0 %v366
    %839 = vmatprep.subr.mxu0 %v375
    %840 = vmatpush1.msra.mxu0 %v374
    %841 = vmatprep.subr.mxu0 %v383
    %842 = vmatpush1.msra.mxu0 %v382
    %843 = vmatprep.subr.mxu0 %v391
    %844 = vmatpush1.msra.mxu0 %v390
    %845 = vmatprep.subr.mxu0 %v399
    %846 = vmatpush1.msra.mxu0 %v398
    %847 = vmatprep.subr.mxu0 %v407
    %848 = vmatpush1.msra.mxu0 %v406
    %849 = vmatprep.subr.mxu0 %v415
    %850 = vmatpush1.msra.mxu0 %v414
    %851 = vmatprep.subr.mxu0 %v423
    %852 = vmatpush1.msra.mxu0 %v422
    %853 = vmatprep.subr.mxu0 %v431
    %854 = vmatpush1.msra.mxu0 %v430
    %855 = vmatprep.subr.mxu0 %v439
    %856 = vmatpush1.msra.mxu0 %v438
    %857 = vmatprep.subr.mxu0 %v447
    %858 = vmatpush1.msra.mxu0 %v446
    %859 = vmatprep.subr.mxu0 %v455
    %860 = vmatpush1.msra.mxu0 %v454
    %861 = vmatprep.subr.mxu0 %v463
    %862 = vmatpush1.msra.mxu0 %v462
    %863 = vmatprep.subr.mxu0 %v471
    %864 = vmatpush1.msra.mxu0 %v470
    %865 = vmatprep.subr.mxu0 %v479
    %866 = vmatpush1.msra.mxu0 %v478
    %867 = vmatprep.subr.mxu0 %v487
    %868 = vmatpush1.msra.mxu0 %v486
    %869 = vmatprep.subr.mxu0 %v495
    %870 = vmatpush1.msra.mxu0 %v494
    %871 = vmatprep.subr.mxu0 %v503
    %872 = vmatpush1.msra.mxu0 %v502
    %873 = vmatprep.subr.mxu0 %v511
    %874 = vmatpush1.msra.mxu0 %v510
    %875 = vmatprep.subr.mxu0 %v519
    %876 = vmatpush1.msra.mxu0 %v518
    %877 = vmatprep.subr.mxu0 %v527
    %878 = vmatpush1.msra.mxu0 %v526
    %879 = vmatprep.subr.mxu0 %v535
    %880 = vmatpush1.msra.mxu0 %v534
    %881 = vmatprep.mubr.f32.mxu0 %v599
    %882 = vmatmul.mubr.f32.gmra.mrb[0].mxu0 %v597
    %v883 = vpop.f32.mrb[0].mxu0
    %v884 = vadd.f32 %v813, %v883
    %v885 = vpop.f32.mrb[0].mxu0
    %v886 = vadd.f32 %v815, %v885
    %887 = vdwg.mxu0
    %888 = vmatprep.subr.mxu0 %v33
    %889 = vmatpush1.msra.mxu0 %v32
    %890 = vmatprep.subr.mxu0 %v41
    %891 = vmatpush1.msra.mxu0 %v40
    %892 = vmatprep.subr.mxu0 %v49
    %893 = vmatpush1.msra.mxu0 %v48
    %894 = vmatprep.subr.mxu0 %v57
    %895 = vmatpush1.msra.mxu0 %v56
    %896 = vmatprep.subr.mxu0 %v65
    %897 = vmatpush1.msra.mxu0 %v64
    %898 = vmatprep.subr.mxu0 %v73
    %899 = vmatpush1.msra.mxu0 %v72
    %900 = vmatprep.subr.mxu0 %v81
    %901 = vmatpush1.msra.mxu0 %v80
    %902 = vmatprep.subr.mxu0 %v89
    %903 = vmatpush1.msra.mxu0 %v88
    %904 = vmatprep.subr.mxu0 %v97
    %905 = vmatpush1.msra.mxu0 %v96
    %906 = vmatprep.subr.mxu0 %v105
    %907 = vmatpush1.msra.mxu0 %v104
    %908 = vmatprep.subr.mxu0 %v113
    %909 = vmatpush1.msra.mxu0 %v112
    %910 = vmatprep.subr.mxu0 %v121
    %911 = vmatpush1.msra.mxu0 %v120
    %912 = vmatprep.subr.mxu0 %v129
    %913 = vmatpush1.msra.mxu0 %v128
    %914 = vmatprep.subr.mxu0 %v137
    %915 = vmatpush1.msra.mxu0 %v136
    %916 = vmatprep.subr.mxu0 %v145
    %917 = vmatpush1.msra.mxu0 %v144
    %918 = vmatprep.subr.mxu0 %v153
    %919 = vmatpush1.msra.mxu0 %v152
    %920 = vmatprep.subr.mxu0 %v161
    %921 = vmatpush1.msra.mxu0 %v160
    %922 = vmatprep.subr.mxu0 %v169
    %923 = vmatpush1.msra.mxu0 %v168
    %924 = vmatprep.subr.mxu0 %v177
    %925 = vmatpush1.msra.mxu0 %v176
    %926 = vmatprep.subr.mxu0 %v185
    %927 = vmatpush1.msra.mxu0 %v184
    %928 = vmatprep.subr.mxu0 %v193
    %929 = vmatpush1.msra.mxu0 %v192
    %930 = vmatprep.subr.mxu0 %v201
    %931 = vmatpush1.msra.mxu0 %v200
    %932 = vmatprep.subr.mxu0 %v209
    %933 = vmatpush1.msra.mxu0 %v208
    %934 = vmatprep.subr.mxu0 %v217
    %935 = vmatpush1.msra.mxu0 %v216
    %936 = vmatprep.subr.mxu0 %v225
    %937 = vmatpush1.msra.mxu0 %v224
    %938 = vmatprep.subr.mxu0 %v233
    %939 = vmatpush1.msra.mxu0 %v232
    %940 = vmatprep.subr.mxu0 %v241
    %941 = vmatpush1.msra.mxu0 %v240
    %942 = vmatprep.subr.mxu0 %v249
    %943 = vmatpush1.msra.mxu0 %v248
    %944 = vmatprep.subr.mxu0 %v257
    %945 = vmatpush1.msra.mxu0 %v256
    %946 = vmatprep.subr.mxu0 %v265
    %947 = vmatpush1.msra.mxu0 %v264
    %948 = vmatprep.subr.mxu0 %v273
    %949 = vmatpush1.msra.mxu0 %v272
    %950 = vmatprep.subr.mxu0 %v281
    %951 = vmatpush1.msra.mxu0 %v280
    %952 = vmatprep.mubr.f32.mxu0 %v598
    %953 = vmatmul.mubr.f32.gmra.mrb[0].mxu0 %v590
    %v954 = vpop.f32.mrb[0].mxu0
    %v955 = vadd.f32 %v561, %v954
    %v956 = vpop.f32.mrb[0].mxu0
    %v957 = vadd.f32 %v565, %v956
    %958 = vdwg.mxu0
    %959 = vmatprep.subr.mxu0 %v289
    %960 = vmatpush1.msra.mxu0 %v288
    %961 = vmatprep.subr.mxu0 %v297
    %962 = vmatpush1.msra.mxu0 %v296
    %963 = vmatprep.subr.mxu0 %v305
    %964 = vmatpush1.msra.mxu0 %v304
    %965 = vmatprep.subr.mxu0 %v313
    %966 = vmatpush1.msra.mxu0 %v312
    %967 = vmatprep.subr.mxu0 %v321
    %968 = vmatpush1.msra.mxu0 %v320
    %969 = vmatprep.subr.mxu0 %v329
    %970 = vmatpush1.msra.mxu0 %v328
    %971 = vmatprep.subr.mxu0 %v337
    %972 = vmatpush1.msra.mxu0 %v336
    %973 = vmatprep.subr.mxu0 %v345
    %974 = vmatpush1.msra.mxu0 %v344
    %975 = vmatprep.subr.mxu0 %v353
    %976 = vmatpush1.msra.mxu0 %v352
    %977 = vmatprep.subr.mxu0 %v361
    %978 = vmatpush1.msra.mxu0 %v360
    %979 = vmatprep.subr.mxu0 %v369
    %980 = vmatpush1.msra.mxu0 %v368
    %981 = vmatprep.subr.mxu0 %v377
    %982 = vmatpush1.msra.mxu0 %v376
    %983 = vmatprep.subr.mxu0 %v385
    %984 = vmatpush1.msra.mxu0 %v384
    %985 = vmatprep.subr.mxu0 %v393
    %986 = vmatpush1.msra.mxu0 %v392
    %987 = vmatprep.subr.mxu0 %v401
    %988 = vmatpush1.msra.mxu0 %v400
    %989 = vmatprep.subr.mxu0 %v409
    %990 = vmatpush1.msra.mxu0 %v408
    %991 = vmatprep.subr.mxu0 %v417
    %992 = vmatpush1.msra.mxu0 %v416
    %993 = vmatprep.subr.mxu0 %v425
    %994 = vmatpush1.msra.mxu0 %v424
    %995 = vmatprep.subr.mxu0 %v433
    %996 = vmatpush1.msra.mxu0 %v432
    %997 = vmatprep.subr.mxu0 %v441
    %998 = vmatpush1.msra.mxu0 %v440
    %999 = vmatprep.subr.mxu0 %v449
    %1000 = vmatpush1.msra.mxu0 %v448
    %1001 = vmatprep.subr.mxu0 %v457
    %1002 = vmatpush1.msra.mxu0 %v456
    %1003 = vmatprep.subr.mxu0 %v465
    %1004 = vmatpush1.msra.mxu0 %v464
    %1005 = vmatprep.subr.mxu0 %v473
    %1006 = vmatpush1.msra.mxu0 %v472
    %1007 = vmatprep.subr.mxu0 %v481
    %1008 = vmatpush1.msra.mxu0 %v480
    %1009 = vmatprep.subr.mxu0 %v489
    %1010 = vmatpush1.msra.mxu0 %v488
    %1011 = vmatprep.subr.mxu0 %v497
    %1012 = vmatpush1.msra.mxu0 %v496
    %1013 = vmatprep.subr.mxu0 %v505
    %1014 = vmatpush1.msra.mxu0 %v504
    %1015 = vmatprep.subr.mxu0 %v513
    %1016 = vmatpush1.msra.mxu0 %v512
    %1017 = vmatprep.subr.mxu0 %v521
    %1018 = vmatpush1.msra.mxu0 %v520
    %1019 = vmatprep.subr.mxu0 %v529
    %1020 = vmatpush1.msra.mxu0 %v528
    %1021 = vmatprep.subr.mxu0 %v537
    %1022 = vmatpush1.msra.mxu0 %v536
    %1023 = vmatprep.mubr.f32.mxu0 %v599
    %1024 = vmatmul.mubr.f32.gmra.mrb[0].mxu0 %v597
    %v1025 = vpop.f32.mrb[0].mxu0
    %v1026 = vadd.f32 %v955, %v1025
    %v1027 = vpop.f32.mrb[0].mxu0
    %v1028 = vadd.f32 %v957, %v1027
    %1029 = vdwg.mxu0
    %1030 = vmatprep.subr.mxu0 %v35
    %1031 = vmatpush1.msra.mxu0 %v34
    %1032 = vmatprep.subr.mxu0 %v43
    %1033 = vmatpush1.msra.mxu0 %v42
    %1034 = vmatprep.subr.mxu0 %v51
    %1035 = vmatpush1.msra.mxu0 %v50
    %1036 = vmatprep.subr.mxu0 %v59
    %1037 = vmatpush1.msra.mxu0 %v58
    %1038 = vmatprep.subr.mxu0 %v67
    %1039 = vmatpush1.msra.mxu0 %v66
    %1040 = vmatprep.subr.mxu0 %v75
    %1041 = vmatpush1.msra.mxu0 %v74
    %1042 = vmatprep.subr.mxu0 %v83
    %1043 = vmatpush1.msra.mxu0 %v82
    %1044 = vmatprep.subr.mxu0 %v91
    %1045 = vmatpush1.msra.mxu0 %v90
    %1046 = vmatprep.subr.mxu0 %v99
    %1047 = vmatpush1.msra.mxu0 %v98
    %1048 = vmatprep.subr.mxu0 %v107
    %1049 = vmatpush1.msra.mxu0 %v106
    %1050 = vmatprep.subr.mxu0 %v115
    %1051 = vmatpush1.msra.mxu0 %v114
    %1052 = vmatprep.subr.mxu0 %v123
    %1053 = vmatpush1.msra.mxu0 %v122
    %1054 = vmatprep.subr.mxu0 %v131
    %1055 = vmatpush1.msra.mxu0 %v130
    %1056 = vmatprep.subr.mxu0 %v139
    %1057 = vmatpush1.msra.mxu0 %v138
    %1058 = vmatprep.subr.mxu0 %v147
    %1059 = vmatpush1.msra.mxu0 %v146
    %1060 = vmatprep.subr.mxu0 %v155
    %1061 = vmatpush1.msra.mxu0 %v154
    %1062 = vmatprep.subr.mxu0 %v163
    %1063 = vmatpush1.msra.mxu0 %v162
    %1064 = vmatprep.subr.mxu0 %v171
    %1065 = vmatpush1.msra.mxu0 %v170
    %1066 = vmatprep.subr.mxu0 %v179
    %1067 = vmatpush1.msra.mxu0 %v178
    %1068 = vmatprep.subr.mxu0 %v187
    %1069 = vmatpush1.msra.mxu0 %v186
    %1070 = vmatprep.subr.mxu0 %v195
    %1071 = vmatpush1.msra.mxu0 %v194
    %1072 = vmatprep.subr.mxu0 %v203
    %1073 = vmatpush1.msra.mxu0 %v202
    %1074 = vmatprep.subr.mxu0 %v211
    %1075 = vmatpush1.msra.mxu0 %v210
    %1076 = vmatprep.subr.mxu0 %v219
    %1077 = vmatpush1.msra.mxu0 %v218
    %1078 = vmatprep.subr.mxu0 %v227
    %1079 = vmatpush1.msra.mxu0 %v226
    %1080 = vmatprep.subr.mxu0 %v235
    %1081 = vmatpush1.msra.mxu0 %v234
    %1082 = vmatprep.subr.mxu0 %v243
    %1083 = vmatpush1.msra.mxu0 %v242
    %1084 = vmatprep.subr.mxu0 %v251
    %1085 = vmatpush1.msra.mxu0 %v250
    %1086 = vmatprep.subr.mxu0 %v259
    %1087 = vmatpush1.msra.mxu0 %v258
    %1088 = vmatprep.subr.mxu0 %v267
    %1089 = vmatpush1.msra.mxu0 %v266
    %1090 = vmatprep.subr.mxu0 %v275
    %1091 = vmatpush1.msra.mxu0 %v274
    %1092 = vmatprep.subr.mxu0 %v283
    %1093 = vmatpush1.msra.mxu0 %v282
    %1094 = vmatprep.mubr.f32.mxu0 %v598
    %1095 = vmatmul.mubr.f32.gmra.mrb[0].mxu0 %v590
    %v1096 = vpop.f32.mrb[0].mxu0
    %v1097 = vadd.f32 %v569, %v1096
    %v1098 = vpop.f32.mrb[0].mxu0
    %v1099 = vadd.f32 %v573, %v1098
    %1100 = vdwg.mxu0
    %1101 = vmatprep.subr.mxu0 %v291
    %1102 = vmatpush1.msra.mxu0 %v290
    %1103 = vmatprep.subr.mxu0 %v299
    %1104 = vmatpush1.msra.mxu0 %v298
    %1105 = vmatprep.subr.mxu0 %v307
    %1106 = vmatpush1.msra.mxu0 %v306
    %1107 = vmatprep.subr.mxu0 %v315
    %1108 = vmatpush1.msra.mxu0 %v314
    %1109 = vmatprep.subr.mxu0 %v323
    %1110 = vmatpush1.msra.mxu0 %v322
    %1111 = vmatprep.subr.mxu0 %v331
    %1112 = vmatpush1.msra.mxu0 %v330
    %1113 = vmatprep.subr.mxu0 %v339
    %1114 = vmatpush1.msra.mxu0 %v338
    %1115 = vmatprep.subr.mxu0 %v347
    %1116 = vmatpush1.msra.mxu0 %v346
    %1117 = vmatprep.subr.mxu0 %v355
    %1118 = vmatpush1.msra.mxu0 %v354
    %1119 = vmatprep.subr.mxu0 %v363
    %1120 = vmatpush1.msra.mxu0 %v362
    %1121 = vmatprep.subr.mxu0 %v371
    %1122 = vmatpush1.msra.mxu0 %v370
    %1123 = vmatprep.subr.mxu0 %v379
    %1124 = vmatpush1.msra.mxu0 %v378
    %1125 = vmatprep.subr.mxu0 %v387
    %1126 = vmatpush1.msra.mxu0 %v386
    %1127 = vmatprep.subr.mxu0 %v395
    %1128 = vmatpush1.msra.mxu0 %v394
    %1129 = vmatprep.subr.mxu0 %v403
    %1130 = vmatpush1.msra.mxu0 %v402
    %1131 = vmatprep.subr.mxu0 %v411
    %1132 = vmatpush1.msra.mxu0 %v410
    %1133 = vmatprep.subr.mxu0 %v419
    %1134 = vmatpush1.msra.mxu0 %v418
    %1135 = vmatprep.subr.mxu0 %v427
    %1136 = vmatpush1.msra.mxu0 %v426
    %1137 = vmatprep.subr.mxu0 %v435
    %1138 = vmatpush1.msra.mxu0 %v434
    %1139 = vmatprep.subr.mxu0 %v443
    %1140 = vmatpush1.msra.mxu0 %v442
    %1141 = vmatprep.subr.mxu0 %v451
    %1142 = vmatpush1.msra.mxu0 %v450
    %1143 = vmatprep.subr.mxu0 %v459
    %1144 = vmatpush1.msra.mxu0 %v458
    %1145 = vmatprep.subr.mxu0 %v467
    %1146 = vmatpush1.msra.mxu0 %v466
    %1147 = vmatprep.subr.mxu0 %v475
    %1148 = vmatpush1.msra.mxu0 %v474
    %1149 = vmatprep.subr.mxu0 %v483
    %1150 = vmatpush1.msra.mxu0 %v482
    %1151 = vmatprep.subr.mxu0 %v491
    %1152 = vmatpush1.msra.mxu0 %v490
    %1153 = vmatprep.subr.mxu0 %v499
    %1154 = vmatpush1.msra.mxu0 %v498
    %1155 = vmatprep.subr.mxu0 %v507
    %1156 = vmatpush1.msra.mxu0 %v506
    %1157 = vmatprep.subr.mxu0 %v515
    %1158 = vmatpush1.msra.mxu0 %v514
    %1159 = vmatprep.subr.mxu0 %v523
    %1160 = vmatpush1.msra.mxu0 %v522
    %1161 = vmatprep.subr.mxu0 %v531
    %1162 = vmatpush1.msra.mxu0 %v530
    %1163 = vmatprep.subr.mxu0 %v539
    %1164 = vmatpush1.msra.mxu0 %v538
    %1165 = vmatprep.mubr.f32.mxu0 %v599
    %1166 = vmatmul.mubr.f32.gmra.mrb[0].mxu0 %v597
    %v1167 = vpop.f32.mrb[0].mxu0
    %v1168 = vadd.f32 %v1097, %v1167
    %v1169 = vpop.f32.mrb[0].mxu0
    %v1170 = vadd.f32 %v1099, %v1169
    %1171 = vdwg.mxu0
    %vm1172 = vcmp.ge.f32.partialorder %v742, 0.0
    %vm1173 = vcmp.ge.f32.partialorder %v744, 0.0
    %vm1174 = vcmp.ge.f32.partialorder %v884, 0.0
    %vm1175 = vcmp.ge.f32.partialorder %v886, 0.0
    %vm1176 = vcmp.ge.f32.partialorder %v1026, 0.0
    %vm1177 = vcmp.ge.f32.partialorder %v1028, 0.0
    %vm1178 = vcmp.ge.f32.partialorder %v1168, 0.0
    %vm1179 = vcmp.ge.f32.partialorder %v1170, 0.0
    %v1180 = vmul.f32 %v742, 0.01
    %v1181 = vmul.f32 %v744, 0.01
    %v1182 = vmul.f32 %v884, 0.01
    %v1183 = vmul.f32 %v886, 0.01
    %v1184 = vmul.f32 %v1026, 0.01
    %v1185 = vmul.f32 %v1028, 0.01
    %v1186 = vmul.f32 %v1168, 0.01
    %v1187 = vmul.f32 %v1170, 0.01
    %v1188 = vsel %vm1172, %v742, %v1180
    %v1189 = vsel %vm1173, %v744, %v1181
    %v1190 = vsel %vm1174, %v884, %v1182
    %v1191 = vsel %vm1175, %v886, %v1183
    %v1192 = vsel %vm1176, %v1026, %v1184
    %v1193 = vsel %vm1177, %v1028, %v1185
    %v1194 = vsel %vm1178, %v1168, %v1186
    %v1195 = vsel %vm1179, %v1170, %v1187
    %v1196 = vld [vmem:[%s3] sm:$0xff]
    %v1198 = vlaneseq
    %v1199 = vshrl.u32 %v1198, 7
    %v1200 = vsub.s32 0, %v1199
    %v1201 = vrot.slane %v1196, %v1200
    %v1202 = vlaneseq
    %v1203 = vshrl.u32 %v1202, 7
    %v1204 = vsub.s32 1, %v1203
    %v1205 = vrot.slane %v1196, %v1204
    %v1206 = vlaneseq
    %v1207 = vshrl.u32 %v1206, 7
    %v1208 = vsub.s32 2, %v1207
    %v1209 = vrot.slane %v1196, %v1208
    %v1210 = vlaneseq
    %v1211 = vshrl.u32 %v1210, 7
    %v1212 = vsub.s32 3, %v1211
    %v1213 = vrot.slane %v1196, %v1212
    %v1214 = vlaneseq
    %v1215 = vshrl.u32 %v1214, 7
    %v1216 = vsub.s32 4, %v1215
    %v1217 = vrot.slane %v1196, %v1216
    %v1218 = vlaneseq
    %v1219 = vshrl.u32 %v1218, 7
    %v1220 = vsub.s32 5, %v1219
    %v1221 = vrot.slane %v1196, %v1220
    %v1222 = vlaneseq
    %v1223 = vshrl.u32 %v1222, 7
    %v1224 = vsub.s32 6, %v1223
    %v1225 = vrot.slane %v1196, %v1224
    %v1226 = vlaneseq
    %v1227 = vshrl.u32 %v1226, 7
    %v1228 = vsub.s32 7, %v1227
    %v1229 = vrot.slane %v1196, %v1228
    %v1238 = vmul.f32 %v1188, %v1201
    %v1239 = vmul.f32 %v1189, %v1205
    %v1240 = vmul.f32 %v1190, %v1209
    %v1241 = vmul.f32 %v1191, %v1213
    %v1242 = vmul.f32 %v1192, %v1217
    %v1243 = vmul.f32 %v1193, %v1221
    %v1244 = vmul.f32 %v1194, %v1225
    %v1245 = vmul.f32 %v1195, %v1229
    %v1246 = vld [vmem:[%s4] sm:$0xff]
    %v1248 = vlaneseq
    %v1249 = vshrl.u32 %v1248, 7
    %v1250 = vsub.s32 0, %v1249
    %v1251 = vrot.slane %v1246, %v1250
    %v1252 = vlaneseq
    %v1253 = vshrl.u32 %v1252, 7
    %v1254 = vsub.s32 1, %v1253
    %v1255 = vrot.slane %v1246, %v1254
    %v1256 = vlaneseq
    %v1257 = vshrl.u32 %v1256, 7
    %v1258 = vsub.s32 2, %v1257
    %v1259 = vrot.slane %v1246, %v1258
    %v1260 = vlaneseq
    %v1261 = vshrl.u32 %v1260, 7
    %v1262 = vsub.s32 3, %v1261
    %v1263 = vrot.slane %v1246, %v1262
    %v1264 = vlaneseq
    %v1265 = vshrl.u32 %v1264, 7
    %v1266 = vsub.s32 4, %v1265
    %v1267 = vrot.slane %v1246, %v1266
    %v1268 = vlaneseq
    %v1269 = vshrl.u32 %v1268, 7
    %v1270 = vsub.s32 5, %v1269
    %v1271 = vrot.slane %v1246, %v1270
    %v1272 = vlaneseq
    %v1273 = vshrl.u32 %v1272, 7
    %v1274 = vsub.s32 6, %v1273
    %v1275 = vrot.slane %v1246, %v1274
    %v1276 = vlaneseq
    %v1277 = vshrl.u32 %v1276, 7
    %v1278 = vsub.s32 7, %v1277
    %v1279 = vrot.slane %v1246, %v1278
    %v1288 = vadd.f32 %v1238, %v1251
    %v1289 = vadd.f32 %v1239, %v1255
    %v1290 = vadd.f32 %v1240, %v1259
    %v1291 = vadd.f32 %v1241, %v1263
    %v1292 = vadd.f32 %v1242, %v1267
    %v1293 = vadd.f32 %v1243, %v1271
    %v1294 = vadd.f32 %v1244, %v1275
    %v1295 = vadd.f32 %v1245, %v1279
    %v1296 = vmax.f32 %v1288, %v1290
    %v1297 = vmax.f32 %v1289, %v1291
    %v1298 = vmax.f32 %v1292, %v1294
    %v1299 = vmax.f32 %v1293, %v1295
    %v1300 = vmax.f32 %v1296, %v1298
    %v1301 = vmax.f32 %v1297, %v1299
    %v1302 = vld [vmem:[%s5] sm:$0xff]
    %v1303 = vld [vmem:[%s5 + $0x8] sm:$0xff]
    %v1304 = vld [vmem:[%s5 + $0x10] sm:$0xff]
    %v1305 = vld [vmem:[%s5 + $0x18] sm:$0xff]
    %v1306 = vld [vmem:[%s5 + $0x20] sm:$0xff]
    %v1307 = vld [vmem:[%s5 + $0x28] sm:$0xff]
    %v1308 = vld [vmem:[%s5 + $0x30] sm:$0xff]
    %v1309 = vld [vmem:[%s5 + $0x38] sm:$0xff]
    %v1310 = vld [vmem:[%s5 + $0x40] sm:$0xff]
    %v1311 = vld [vmem:[%s5 + $0x48] sm:$0xff]
    %v1312 = vld [vmem:[%s5 + $0x50] sm:$0xff]
    %v1313 = vld [vmem:[%s5 + $0x58] sm:$0xff]
    %v1314 = vld [vmem:[%s5 + $0x60] sm:$0xff]
    %v1315 = vld [vmem:[%s5 + $0x68] sm:$0xff]
    %v1316 = vld [vmem:[%s5 + $0x70] sm:$0xff]
    %v1317 = vld [vmem:[%s5 + $0x78] sm:$0xff]
    %v1318 = vld [vmem:[%s5 + $0x80] sm:$0xff]
    %v1319 = vld [vmem:[%s5 + $0x88] sm:$0xff]
    %v1320 = vld [vmem:[%s5 + $0x90] sm:$0xff]
    %v1321 = vld [vmem:[%s5 + $0x98] sm:$0xff]
    %v1322 = vld [vmem:[%s5 + $0xa0] sm:$0xff]
    %v1323 = vld [vmem:[%s5 + $0xa8] sm:$0xff]
    %v1324 = vld [vmem:[%s5 + $0xb0] sm:$0xff]
    %v1325 = vld [vmem:[%s5 + $0xb8] sm:$0xff]
    %v1326 = vld [vmem:[%s5 + $0xc0] sm:$0xff]
    %v1327 = vld [vmem:[%s5 + $0xc8] sm:$0xff]
    %v1328 = vld [vmem:[%s5 + $0xd0] sm:$0xff]
    %v1329 = vld [vmem:[%s5 + $0xd8] sm:$0xff]
    %v1330 = vld [vmem:[%s5 + $0xe0] sm:$0xff]
    %v1331 = vld [vmem:[%s5 + $0xe8] sm:$0xff]
    %v1332 = vld [vmem:[%s5 + $0xf0] sm:$0xff]
    %v1333 = vld [vmem:[%s5 + $0xf8] sm:$0xff]
    %v1334 = vld [vmem:[%s6] sm:$0x1]
    %v1336 = vlaneseq
    %v1337 = vshrl.u32 %v1336, 7
    %v1338 = vsub.s32 0, %v1337
    %v1339 = vrot.slane %v1334, %v1338
    %1341 = vmatprep.subr.mxu0 0.0
    %1342 = vmatpush1.msra.mxu0 %v1302
    %1343 = vmatprep.subr.mxu0 0.0
    %1344 = vmatpush1.msra.mxu0 %v1303
    %1345 = vmatprep.subr.mxu0 0.0
    %1346 = vmatpush1.msra.mxu0 %v1304
    %1347 = vmatprep.subr.mxu0 0.0
    %1348 = vmatpush1.msra.mxu0 %v1305
    %1349 = vmatprep.subr.mxu0 0.0
    %1350 = vmatpush1.msra.mxu0 %v1306
    %1351 = vmatprep.subr.mxu0 0.0
    %1352 = vmatpush1.msra.mxu0 %v1307
    %1353 = vmatprep.subr.mxu0 0.0
    %1354 = vmatpush1.msra.mxu0 %v1308
    %1355 = vmatprep.subr.mxu0 0.0
    %1356 = vmatpush1.msra.mxu0 %v1309
    %1357 = vmatprep.subr.mxu0 0.0
    %1358 = vmatpush1.msra.mxu0 %v1310
    %1359 = vmatprep.subr.mxu0 0.0
    %1360 = vmatpush1.msra.mxu0 %v1311
    %1361 = vmatprep.subr.mxu0 0.0
    %1362 = vmatpush1.msra.mxu0 %v1312
    %1363 = vmatprep.subr.mxu0 0.0
    %1364 = vmatpush1.msra.mxu0 %v1313
    %1365 = vmatprep.subr.mxu0 0.0
    %1366 = vmatpush1.msra.mxu0 %v1314
    %1367 = vmatprep.subr.mxu0 0.0
    %1368 = vmatpush1.msra.mxu0 %v1315
    %1369 = vmatprep.subr.mxu0 0.0
    %1370 = vmatpush1.msra.mxu0 %v1316
    %1371 = vmatprep.subr.mxu0 0.0
    %1372 = vmatpush1.msra.mxu0 %v1317
    %1373 = vmatprep.subr.mxu0 0.0
    %1374 = vmatpush1.msra.mxu0 %v1318
    %1375 = vmatprep.subr.mxu0 0.0
    %1376 = vmatpush1.msra.mxu0 %v1319
    %1377 = vmatprep.subr.mxu0 0.0
    %1378 = vmatpush1.msra.mxu0 %v1320
    %1379 = vmatprep.subr.mxu0 0.0
    %1380 = vmatpush1.msra.mxu0 %v1321
    %1381 = vmatprep.subr.mxu0 0.0
    %1382 = vmatpush1.msra.mxu0 %v1322
    %1383 = vmatprep.subr.mxu0 0.0
    %1384 = vmatpush1.msra.mxu0 %v1323
    %1385 = vmatprep.subr.mxu0 0.0
    %1386 = vmatpush1.msra.mxu0 %v1324
    %1387 = vmatprep.subr.mxu0 0.0
    %1388 = vmatpush1.msra.mxu0 %v1325
    %1389 = vmatprep.subr.mxu0 0.0
    %1390 = vmatpush1.msra.mxu0 %v1326
    %1391 = vmatprep.subr.mxu0 0.0
    %1392 = vmatpush1.msra.mxu0 %v1327
    %1393 = vmatprep.subr.mxu0 0.0
    %1394 = vmatpush1.msra.mxu0 %v1328
    %1395 = vmatprep.subr.mxu0 0.0
    %1396 = vmatpush1.msra.mxu0 %v1329
    %1397 = vmatprep.subr.mxu0 0.0
    %1398 = vmatpush1.msra.mxu0 %v1330
    %1399 = vmatprep.subr.mxu0 0.0
    %1400 = vmatpush1.msra.mxu0 %v1331
    %1401 = vmatprep.subr.mxu0 0.0
    %1402 = vmatpush1.msra.mxu0 %v1332
    %1403 = vmatprep.subr.mxu0 0.0
    %1404 = vmatpush1.msra.mxu0 %v1333
    %1405 = vmatprep.mubr.f32.mxu0 %v1301
    %1406 = vmatmul.mubr.f32.gmra.mrb[0].mxu0 %v1300
    %v1407 = vpop.f32.mrb[0].mxu0
    %v1408 = vadd.f32 %v1339, %v1407
    %v1409 = vpop.f32.mrb[0].mxu0
    %1410 = vdwg.mxu0
    %v1411 = vsub.f32 0.0, %v1408
    %v1412 = vmul.f32 %v1411, 1.442695
    %v1413 = vpow.pop %v1412
    %v1414 = vadd.f32 %v1413, 1.0
    %v1415 = vrcp.pop %v1414
    %1416 = vst [vmem:[#allocation2] sm:$0x3] %v1415
    // Predicated region
    $region30: #{conv_classifier_forward.9} parent=1 // pred_check
      _
    $region31: #{conv_classifier_forward.9} parent=1 // pred_check_branch
      %1418 = sbr.rel (0) target = $region33
    $region32: #{conv_classifier_forward.9} parent=1 // pred_region
      %s1420 = ssub.s32 32, 32
      %1421 = vsyncadd [#allocation3], %s1420
      %s1423 = sshll.u32 [#allocation2], 4
      %s1424 = int_to_ptr.vmem [resolvable:$true] %s1423
      %1426 = dma.vmem_to_hbm [thread:$0]  %s1424, 32, %s7, [#allocation3]
    $region33: #{conv_classifier_forward.9} parent=1 // pred_fallthru
      _
    // Predicated region
    $region34: #{conv_classifier_forward.9} parent=1 // pred_check
      _
    $region35: #{conv_classifier_forward.9} parent=1 // pred_check_branch
      %1428 = sbr.rel (0) target = $region37
    $region36: #{conv_classifier_forward.9} parent=1 // pred_region
      %1429 = dma.done [#allocation3], 32
    $region37: #{conv_classifier_forward.9} parent=1 // pred_fallthru
      _
    %1430 = vsyncpa [#allocation3], 1

</llo_original>
